<compile_context>
chip_gen: v7x
topology: tpu7x:2x2x1
jax: 0.10.0
libtpu: 0.0.40
codegen_flags: <defaults>
</compile_context>

<pallas_src>
import functools
import math

import jax
import jax.numpy as jnp
from jax.experimental import pallas as pl
from jax.experimental.pallas import tpu as pltpu


_SQRT_HALF = 0.7071067811865476


def _erf_approx(x):
    # Abramowitz & Stegun 7.1.26 (max abs err ~1.5e-7 in f32).  Built from
    # exp/mul/add/select only so it lowers cleanly on Mosaic; the exp and the
    # approximate reciprocal ride the (otherwise idle) EUP slot.
    a1, a2, a3, a4, a5 = (0.254829592, -0.284496736, 1.421413741,
                          -1.453152027, 1.061405429)
    p = 0.3275911
    sgn = jnp.where(x >= 0.0, 1.0, -1.0)
    ax = jnp.abs(x)
    t = pl.reciprocal(1.0 + p * ax, approx=True)
    poly = ((((a5 * t + a4) * t + a3) * t + a2) * t + a1) * t
    return sgn * (1.0 - poly * jnp.exp(-ax * ax))


def _gelu_exact(x):
    # matches torch.nn.GELU() (approximate='none') to well within tolerance
    return 0.5 * x * (1.0 + _erf_approx(x * _SQRT_HALF))


# ---------------------------------------------------------------------------
# Fused Resblock kernel: one grid step == one sample (NHWC, C on lanes)
# ---------------------------------------------------------------------------
def _resblock_kernel(x_ref, w1_ref, w2_ref, o_ref, pad_ref, patch_ref,
                     *, H, W, C, eps):
    HW = H * W
    inv_hw = 1.0 / HW

    def reflect_pad(img):                       # img: (H, W, C) bf16 value
        # interior + left/right edge columns sourced from register slices
        pad_ref[1:H + 1, 1:W + 1, :] = img
        pad_ref[1:H + 1, 0, :] = img[:, 1, :]
        pad_ref[1:H + 1, W + 1, :] = img[:, W - 2, :]
        # top/bottom: mirror complete already-padded rows (corners fall out)
        pad_ref[0, :, :] = pad_ref[2, :, :]
        pad_ref[H + 1, :, :] = pad_ref[H - 1, :, :]

    def conv3x3(w_ref):
        # im2col in VMEM: 9 shifted bf16 windows -> (HW, 9C) patch buffer,
        # then ONE K=9*C MXU matmul with f32 accumulation.  No accumulator
        # round-trips; the hardware accumulates internally.
        for dy in range(3):
            for dx in range(3):
                tap = dy * 3 + dx
                patch_ref[:, :, tap * C:(tap + 1) * C] = (
                    pad_ref[dy:dy + H, dx:dx + W, :])
        a = patch_ref[...].reshape(HW, 9 * C)
        return jnp.dot(a, w_ref[...], preferred_element_type=jnp.float32)

    def inst_norm(v):                           # v: (HW, C) f32, single pass
        s = jnp.sum(v, axis=0, keepdims=True)
        ss = jnp.sum(v * v, axis=0, keepdims=True)
        mean = s * inv_hw
        var = jnp.maximum(ss * inv_hw - mean * mean, 0.0)
        return (v - mean) * jax.lax.rsqrt(var + eps)

    # --- conv1 -> InstanceNorm -> GELU  (conv bias dropped: IN cancels it) --
    reflect_pad(x_ref[0].astype(jnp.bfloat16))
    h = _gelu_exact(inst_norm(conv3x3(w1_ref)))
    # TODO(synk): Dropout(0.5) is identity here (inference / eval semantics).

    # --- pad -> conv2 -> InstanceNorm -> residual add ------------------------
    reflect_pad(h.reshape(H, W, C).astype(jnp.bfloat16))
    r = inst_norm(conv3x3(w2_ref))
    # x re-read from the resident VMEM input block (not held live across
    # both convs -> no vreg-file pressure from a whole-sample f32 value).
    o_ref[0] = x_ref[0] + r.reshape(H, W, C)


# ---------------------------------------------------------------------------
# Wrappers
# ---------------------------------------------------------------------------
def prepare_resblock_params(w1, b1, w2, b2):
    """Hoisted once, outside the jitted per-call path.

    w*: PyTorch Conv2d layout (O, I, 3, 3);  b*: (O,).
    The biases are accepted for API parity but DROPPED: InstanceNorm2d
    (affine=False) subtracts the per-channel mean right after each conv, so
    a per-channel constant bias cancels exactly.
    Returns im2col-major bf16 weights of shape (9*I, O), row order
    (dy, dx, in_channel) matching the in-kernel patch layout."""
    del b1, b2

    def prep_w(w):
        o, i, kh, kw = w.shape
        return (jnp.transpose(w, (2, 3, 1, 0))      # (KH, KW, I, O)
                .reshape(kh * kw * i, o)
                .astype(jnp.bfloat16))

    return {"w1": prep_w(w1), "w2": prep_w(w2)}


def resblock_forward(params, x):
    """x: (N, C, H, W) f32 -> (N, C, H, W) f32, PyTorch Resblock semantics."""
    n, c, h, w = x.shape
    assert h >= 2 and w >= 2, "ReflectionPad2d(1) needs H, W >= 2"
    x_nhwc = jnp.transpose(x, (0, 2, 3, 1))          # channels on lanes

    kernel = functools.partial(_resblock_kernel, H=h, W=w, C=c, eps=1e-5)
    out = pl.pallas_call(
        kernel,
        out_shape=jax.ShapeDtypeStruct((n, h, w, c), jnp.float32),
        grid_spec=pltpu.PrefetchScalarGridSpec(
            num_scalar_prefetch=0,
            grid=(n,),
            in_specs=[
                pl.BlockSpec((1, h, w, c), lambda i: (i, 0, 0, 0)),   # x
                pl.BlockSpec((9 * c, c), lambda i: (0, 0)),           # w1 im2col
                pl.BlockSpec((9 * c, c), lambda i: (0, 0)),           # w2 im2col
            ],
            out_specs=pl.BlockSpec((1, h, w, c), lambda i: (i, 0, 0, 0)),
            scratch_shapes=[
                pltpu.VMEM((h + 2, w + 2, c), jnp.bfloat16),  # reflected pad
                pltpu.VMEM((h, w, 9 * c), jnp.bfloat16),      # im2col patches
            ],
        ),
        # At 16x16x128: ~0.3 MiB in/out blocks, ~0.6 MiB bf16 weights,
        # ~0.65 MiB bf16 scratch -> well under the scoped VMEM limit on all
        # generations (incl. v7x's 64 MiB physical).
        compiler_params=pltpu.CompilerParams(
            dimension_semantics=("parallel",)),
    )(x_nhwc, params["w1"], params["w2"])
    return jnp.transpose(out, (0, 3, 1, 2))


# ---------------------------------------------------------------------------
# Pure-JAX f32 reference (full PyTorch semantics, incl. the cancelled biases)
# ---------------------------------------------------------------------------
def _reference_resblock(w1, b1, w2, b2, x):
    def conv(v, w, b):
        vp = jnp.pad(v, ((0, 0), (0, 0), (1, 1), (1, 1)), mode="reflect")
        y = jax.lax.conv_general_dilated(
            vp, w, window_strides=(1, 1), padding="VALID",
            dimension_numbers=("NCHW", "OIHW", "NCHW"))
        return y + b[None, :, None, None]

    def inorm(v):
        m = jnp.mean(v, axis=(2, 3), keepdims=True)
        var = jnp.mean((v - m) ** 2, axis=(2, 3), keepdims=True)
        return (v - m) * jax.lax.rsqrt(var + 1e-5)

    def gelu(v):
        return 0.5 * v * (1.0 + jax.lax.erf(v * _SQRT_HALF))

    h = gelu(inorm(conv(x, w1, b1)))
    r = inorm(conv(h, w2, b2))
    return x + r


if __name__ == "__main__":
    key = jax.random.PRNGKey(0)
    kx, kw1, kb1, kw2, kb2 = jax.random.split(key, 5)

    N, C, H, W = 2, 128, 16, 16                    # Resblock(in_features=128)
    bound = 1.0 / math.sqrt(C * 3 * 3)             # PyTorch Conv2d init bound
    w1 = jax.random.uniform(kw1, (C, C, 3, 3), jnp.float32, -bound, bound)
    b1 = jax.random.uniform(kb1, (C,), jnp.float32, -bound, bound)
    w2 = jax.random.uniform(kw2, (C, C, 3, 3), jnp.float32, -bound, bound)
    b2 = jax.random.uniform(kb2, (C,), jnp.float32, -bound, bound)
    x = jax.random.normal(kx, (N, C, H, W), jnp.float32)

    params = prepare_resblock_params(w1, b1, w2, b2)   # weight prep hoisted
    fwd = jax.jit(resblock_forward)
    y = fwd(params, x)
    jax.block_until_ready(y)

    assert y.shape == (N, C, H, W), y.shape
    assert bool(jnp.all(jnp.isfinite(y)))
    y_ref = _reference_resblock(w1, b1, w2, b2, x)
    max_err = float(jnp.max(jnp.abs(y - y_ref)))
    assert max_err < 5e-2, f"max abs err vs f32 reference: {max_err}"
    print("KERNEL_OK")
</pallas_src>

<mosaic_0001>
module attributes {stable_mosaic.version = 11 : i64} {
  func.func @_resblock_kernel(%arg0: i32, %arg1: memref<1x16x16x128xf32, #tpu.memory_space<vmem>>, %arg2: memref<1152x128xbf16, #tpu.memory_space<vmem>>, %arg3: memref<1152x128xbf16, #tpu.memory_space<vmem>>, %arg4: memref<1x16x16x128xf32, #tpu.memory_space<vmem>>, %arg5: memref<18x18x128xbf16, #tpu.memory_space<vmem>>, %arg6: memref<16x16x1152xbf16, #tpu.memory_space<vmem>>) attributes {dimension_semantics = [#tpu.dimension_semantics<parallel>], iteration_bounds = array<i64: 2>, scalar_prefetch = 0 : i64, scratch_operands = 2 : i64, tpu.core_type = #tpu.core_type<tc>, window_params = [{transform_indices = @transform_0, window_bounds = array<i64: 1, 16, 16, 128>}, {pipeline_mode = #tpu.pipeline_mode<synchronous>, transform_indices = @transform_1, window_bounds = array<i64: 1152, 128>}, {pipeline_mode = #tpu.pipeline_mode<synchronous>, transform_indices = @transform_2, window_bounds = array<i64: 1152, 128>}, {transform_indices = @transform_3, window_bounds = array<i64: 1, 16, 16, 128>}]} {
    %c0 = arith.constant 0 : index
    %c0_0 = arith.constant 0 : index
    %c0_1 = arith.constant 0 : index
    %c0_2 = arith.constant 0 : index
    %0 = vector.load %arg1[%c0, %c0_0, %c0_1, %c0_2] : memref<1x16x16x128xf32, #tpu.memory_space<vmem>>, vector<1x16x16x128xf32>
    %1 = vector.shape_cast %0 : vector<1x16x16x128xf32> to vector<16x16x128xf32>
    %2 = arith.truncf %1 : vector<16x16x128xf32> to vector<16x16x128xbf16>
    %c1 = arith.constant 1 : index
    %c1_3 = arith.constant 1 : index
    %c0_4 = arith.constant 0 : index
    %3 = vector.load %arg5[%c1, %c1_3, %c0_4] : memref<18x18x128xbf16, #tpu.memory_space<vmem>>, vector<16x16x128xbf16>
    tpu.vector_store %arg5[%c1, %c1_3, %c0_4], %2 {strides = array<i32>} : memref<18x18x128xbf16, #tpu.memory_space<vmem>>, vector<16x16x128xbf16>,
    %4 = vector.extract_strided_slice %2 {offsets = [0, 1, 0], sizes = [16, 1, 128], strides = [1, 1, 1]} : vector<16x16x128xbf16> to vector<16x1x128xbf16>
    %5 = vector.shape_cast %4 : vector<16x1x128xbf16> to vector<16x128xbf16>
    %c1_5 = arith.constant 1 : index
    %c0_6 = arith.constant 0 : index
    %c0_7 = arith.constant 0 : index
    %6 = vector.load %arg5[%c1_5, %c0_6, %c0_7] : memref<18x18x128xbf16, #tpu.memory_space<vmem>>, vector<16x1x128xbf16>
    %7 = vector.shape_cast %6 : vector<16x1x128xbf16> to vector<16x128xbf16>
    %8 = vector.shape_cast %5 : vector<16x128xbf16> to vector<16x1x128xbf16>
    tpu.vector_store %arg5[%c1_5, %c0_6, %c0_7], %8 {strides = array<i32>} : memref<18x18x128xbf16, #tpu.memory_space<vmem>>, vector<16x1x128xbf16>,
    %9 = vector.extract_strided_slice %2 {offsets = [0, 14, 0], sizes = [16, 1, 128], strides = [1, 1, 1]} : vector<16x16x128xbf16> to vector<16x1x128xbf16>
    %10 = vector.shape_cast %9 : vector<16x1x128xbf16> to vector<16x128xbf16>
    %c1_8 = arith.constant 1 : index
    %c17 = arith.constant 17 : index
    %c0_9 = arith.constant 0 : index
    %11 = vector.load %arg5[%c1_8, %c17, %c0_9] : memref<18x18x128xbf16, #tpu.memory_space<vmem>>, vector<16x1x128xbf16>
    %12 = vector.shape_cast %11 : vector<16x1x128xbf16> to vector<16x128xbf16>
    %13 = vector.shape_cast %10 : vector<16x128xbf16> to vector<16x1x128xbf16>
    tpu.vector_store %arg5[%c1_8, %c17, %c0_9], %13 {strides = array<i32>} : memref<18x18x128xbf16, #tpu.memory_space<vmem>>, vector<16x1x128xbf16>,
    %c2 = arith.constant 2 : index
    %c0_10 = arith.constant 0 : index
    %c0_11 = arith.constant 0 : index
    %14 = vector.load %arg5[%c2, %c0_10, %c0_11] : memref<18x18x128xbf16, #tpu.memory_space<vmem>>, vector<1x18x128xbf16>
    %15 = vector.shape_cast %14 : vector<1x18x128xbf16> to vector<18x128xbf16>
    %c0_12 = arith.constant 0 : index
    %c0_13 = arith.constant 0 : index
    %c0_14 = arith.constant 0 : index
    %16 = vector.load %arg5[%c0_12, %c0_13, %c0_14] : memref<18x18x128xbf16, #tpu.memory_space<vmem>>, vector<1x18x128xbf16>
    %17 = vector.shape_cast %16 : vector<1x18x128xbf16> to vector<18x128xbf16>
    %18 = vector.shape_cast %15 : vector<18x128xbf16> to vector<1x18x128xbf16>
    tpu.vector_store %arg5[%c0_12, %c0_13, %c0_14], %18 {strides = array<i32>} : memref<18x18x128xbf16, #tpu.memory_space<vmem>>, vector<1x18x128xbf16>,
    %c15 = arith.constant 15 : index
    %c0_15 = arith.constant 0 : index
    %c0_16 = arith.constant 0 : index
    %19 = vector.load %arg5[%c15, %c0_15, %c0_16] : memref<18x18x128xbf16, #tpu.memory_space<vmem>>, vector<1x18x128xbf16>
    %20 = vector.shape_cast %19 : vector<1x18x128xbf16> to vector<18x128xbf16>
    %c17_17 = arith.constant 17 : index
    %c0_18 = arith.constant 0 : index
    %c0_19 = arith.constant 0 : index
    %21 = vector.load %arg5[%c17_17, %c0_18, %c0_19] : memref<18x18x128xbf16, #tpu.memory_space<vmem>>, vector<1x18x128xbf16>
    %22 = vector.shape_cast %21 : vector<1x18x128xbf16> to vector<18x128xbf16>
    %23 = vector.shape_cast %20 : vector<18x128xbf16> to vector<1x18x128xbf16>
    tpu.vector_store %arg5[%c17_17, %c0_18, %c0_19], %23 {strides = array<i32>} : memref<18x18x128xbf16, #tpu.memory_space<vmem>>, vector<1x18x128xbf16>,
    %c0_20 = arith.constant 0 : index
    %c0_21 = arith.constant 0 : index
    %c0_22 = arith.constant 0 : index
    %24 = vector.load %arg5[%c0_20, %c0_21, %c0_22] : memref<18x18x128xbf16, #tpu.memory_space<vmem>>, vector<16x16x128xbf16>
    %c0_23 = arith.constant 0 : index
    %c0_24 = arith.constant 0 : index
    %c0_25 = arith.constant 0 : index
    %25 = vector.load %arg6[%c0_23, %c0_24, %c0_25] : memref<16x16x1152xbf16, #tpu.memory_space<vmem>>, vector<16x16x128xbf16>
    tpu.vector_store %arg6[%c0_23, %c0_24, %c0_25], %24 {strides = array<i32>} : memref<16x16x1152xbf16, #tpu.memory_space<vmem>>, vector<16x16x128xbf16>,
    %c0_26 = arith.constant 0 : index
    %c1_27 = arith.constant 1 : index
    %c0_28 = arith.constant 0 : index
    %26 = vector.load %arg5[%c0_26, %c1_27, %c0_28] : memref<18x18x128xbf16, #tpu.memory_space<vmem>>, vector<16x16x128xbf16>
    %c0_29 = arith.constant 0 : index
    %c0_30 = arith.constant 0 : index
    %c128 = arith.constant 128 : index
    %27 = vector.load %arg6[%c0_29, %c0_30, %c128] : memref<16x16x1152xbf16, #tpu.memory_space<vmem>>, vector<16x16x128xbf16>
    tpu.vector_store %arg6[%c0_29, %c0_30, %c128], %26 {strides = array<i32>} : memref<16x16x1152xbf16, #tpu.memory_space<vmem>>, vector<16x16x128xbf16>,
    %c0_31 = arith.constant 0 : index
    %c2_32 = arith.constant 2 : index
    %c0_33 = arith.constant 0 : index
    %28 = vector.load %arg5[%c0_31, %c2_32, %c0_33] : memref<18x18x128xbf16, #tpu.memory_space<vmem>>, vector<16x16x128xbf16>
    %c0_34 = arith.constant 0 : index
    %c0_35 = arith.constant 0 : index
    %c256 = arith.constant 256 : index
    %29 = vector.load %arg6[%c0_34, %c0_35, %c256] : memref<16x16x1152xbf16, #tpu.memory_space<vmem>>, vector<16x16x128xbf16>
    tpu.vector_store %arg6[%c0_34, %c0_35, %c256], %28 {strides = array<i32>} : memref<16x16x1152xbf16, #tpu.memory_space<vmem>>, vector<16x16x128xbf16>,
    %c1_36 = arith.constant 1 : index
    %c0_37 = arith.constant 0 : index
    %c0_38 = arith.constant 0 : index
    %30 = vector.load %arg5[%c1_36, %c0_37, %c0_38] : memref<18x18x128xbf16, #tpu.memory_space<vmem>>, vector<16x16x128xbf16>
    %c0_39 = arith.constant 0 : index
    %c0_40 = arith.constant 0 : index
    %c384 = arith.constant 384 : index
    %31 = vector.load %arg6[%c0_39, %c0_40, %c384] : memref<16x16x1152xbf16, #tpu.memory_space<vmem>>, vector<16x16x128xbf16>
    tpu.vector_store %arg6[%c0_39, %c0_40, %c384], %30 {strides = array<i32>} : memref<16x16x1152xbf16, #tpu.memory_space<vmem>>, vector<16x16x128xbf16>,
    %c1_41 = arith.constant 1 : index
    %c1_42 = arith.constant 1 : index
    %c0_43 = arith.constant 0 : index
    %32 = vector.load %arg5[%c1_41, %c1_42, %c0_43] : memref<18x18x128xbf16, #tpu.memory_space<vmem>>, vector<16x16x128xbf16>
    %c0_44 = arith.constant 0 : index
    %c0_45 = arith.constant 0 : index
    %c512 = arith.constant 512 : index
    %33 = vector.load %arg6[%c0_44, %c0_45, %c512] : memref<16x16x1152xbf16, #tpu.memory_space<vmem>>, vector<16x16x128xbf16>
    tpu.vector_store %arg6[%c0_44, %c0_45, %c512], %32 {strides = array<i32>} : memref<16x16x1152xbf16, #tpu.memory_space<vmem>>, vector<16x16x128xbf16>,
    %c1_46 = arith.constant 1 : index
    %c2_47 = arith.constant 2 : index
    %c0_48 = arith.constant 0 : index
    %34 = vector.load %arg5[%c1_46, %c2_47, %c0_48] : memref<18x18x128xbf16, #tpu.memory_space<vmem>>, vector<16x16x128xbf16>
    %c0_49 = arith.constant 0 : index
    %c0_50 = arith.constant 0 : index
    %c640 = arith.constant 640 : index
    %35 = vector.load %arg6[%c0_49, %c0_50, %c640] : memref<16x16x1152xbf16, #tpu.memory_space<vmem>>, vector<16x16x128xbf16>
    tpu.vector_store %arg6[%c0_49, %c0_50, %c640], %34 {strides = array<i32>} : memref<16x16x1152xbf16, #tpu.memory_space<vmem>>, vector<16x16x128xbf16>,
    %c2_51 = arith.constant 2 : index
    %c0_52 = arith.constant 0 : index
    %c0_53 = arith.constant 0 : index
    %36 = vector.load %arg5[%c2_51, %c0_52, %c0_53] : memref<18x18x128xbf16, #tpu.memory_space<vmem>>, vector<16x16x128xbf16>
    %c0_54 = arith.constant 0 : index
    %c0_55 = arith.constant 0 : index
    %c768 = arith.constant 768 : index
    %37 = vector.load %arg6[%c0_54, %c0_55, %c768] : memref<16x16x1152xbf16, #tpu.memory_space<vmem>>, vector<16x16x128xbf16>
    tpu.vector_store %arg6[%c0_54, %c0_55, %c768], %36 {strides = array<i32>} : memref<16x16x1152xbf16, #tpu.memory_space<vmem>>, vector<16x16x128xbf16>,
    %c2_56 = arith.constant 2 : index
    %c1_57 = arith.constant 1 : index
    %c0_58 = arith.constant 0 : index
    %38 = vector.load %arg5[%c2_56, %c1_57, %c0_58] : memref<18x18x128xbf16, #tpu.memory_space<vmem>>, vector<16x16x128xbf16>
    %c0_59 = arith.constant 0 : index
    %c0_60 = arith.constant 0 : index
    %c896 = arith.constant 896 : index
    %39 = vector.load %arg6[%c0_59, %c0_60, %c896] : memref<16x16x1152xbf16, #tpu.memory_space<vmem>>, vector<16x16x128xbf16>
    tpu.vector_store %arg6[%c0_59, %c0_60, %c896], %38 {strides = array<i32>} : memref<16x16x1152xbf16, #tpu.memory_space<vmem>>, vector<16x16x128xbf16>,
    %c2_61 = arith.constant 2 : index
    %c2_62 = arith.constant 2 : index
    %c0_63 = arith.constant 0 : index
    %40 = vector.load %arg5[%c2_61, %c2_62, %c0_63] : memref<18x18x128xbf16, #tpu.memory_space<vmem>>, vector<16x16x128xbf16>
    %c0_64 = arith.constant 0 : index
    %c0_65 = arith.constant 0 : index
    %c1024 = arith.constant 1024 : index
    %41 = vector.load %arg6[%c0_64, %c0_65, %c1024] : memref<16x16x1152xbf16, #tpu.memory_space<vmem>>, vector<16x16x128xbf16>
    tpu.vector_store %arg6[%c0_64, %c0_65, %c1024], %40 {strides = array<i32>} : memref<16x16x1152xbf16, #tpu.memory_space<vmem>>, vector<16x16x128xbf16>,
    %c0_66 = arith.constant 0 : index
    %c0_67 = arith.constant 0 : index
    %c0_68 = arith.constant 0 : index
    %42 = vector.load %arg6[%c0_66, %c0_67, %c0_68] : memref<16x16x1152xbf16, #tpu.memory_space<vmem>>, vector<16x16x1152xbf16>
    %43 = vector.shape_cast %42 : vector<16x16x1152xbf16> to vector<256x1152xbf16>
    %c0_69 = arith.constant 0 : index
    %c0_70 = arith.constant 0 : index
    %44 = vector.load %arg2[%c0_69, %c0_70] : memref<1152x128xbf16, #tpu.memory_space<vmem>>, vector<1152x128xbf16>
    %cst = arith.constant dense<0.000000e+00> : vector<256x128xf32>
    %45 = tpu.matmul %43, %44, %cst {dimension_numbers = #tpu.dot_dimension_numbers<[1], [0], [0], [1], [0, 0, 1, 1], [], []>} : vector<256x1152xbf16>, vector<1152x128xbf16>, vector<256x128xf32> -> vector<256x128xf32>
    %cst_71 = arith.constant dense<0.000000e+00> : vector<128xf32>
    %46 = vector.multi_reduction <add>, %45, %cst_71 [0] : vector<256x128xf32> to vector<128xf32>
    %47 = vector.shape_cast %46 : vector<128xf32> to vector<1x128xf32>
    %48 = arith.mulf %45, %45 : vector<256x128xf32>
    %cst_72 = arith.constant dense<0.000000e+00> : vector<128xf32>
    %49 = vector.multi_reduction <add>, %48, %cst_72 [0] : vector<256x128xf32> to vector<128xf32>
    %50 = vector.shape_cast %49 : vector<128xf32> to vector<1x128xf32>
    %cst_73 = arith.constant 3.906250e-03 : f32
    %51 = vector.broadcast %cst_73 : f32 to vector<1x128xf32>
    %52 = arith.mulf %47, %51 : vector<1x128xf32>
    %cst_74 = arith.constant 3.906250e-03 : f32
    %53 = vector.broadcast %cst_74 : f32 to vector<1x128xf32>
    %54 = arith.mulf %50, %53 : vector<1x128xf32>
    %55 = arith.mulf %52, %52 : vector<1x128xf32>
    %56 = arith.subf %54, %55 : vector<1x128xf32>
    %cst_75 = arith.constant 0.000000e+00 : f32
    %57 = vector.broadcast %cst_75 : f32 to vector<1x128xf32>
    %58 = arith.maximumf %56, %57 : vector<1x128xf32>
    %59 = vector.broadcast %52 : vector<1x128xf32> to vector<256x128xf32>
    %60 = arith.subf %45, %59 : vector<256x128xf32>
    %cst_76 = arith.constant 9.99999974E-6 : f32
    %61 = vector.broadcast %cst_76 : f32 to vector<1x128xf32>
    %62 = arith.addf %58, %61 : vector<1x128xf32>
    %63 = math.rsqrt %62 : vector<1x128xf32>
    %64 = vector.broadcast %63 : vector<1x128xf32> to vector<256x128xf32>
    %65 = arith.mulf %60, %64 : vector<256x128xf32>
    %cst_77 = arith.constant 5.000000e-01 : f32
    %66 = vector.broadcast %cst_77 : f32 to vector<256x128xf32>
    %67 = arith.mulf %66, %65 : vector<256x128xf32>
    %cst_78 = arith.constant 0.707106769 : f32
    %68 = vector.broadcast %cst_78 : f32 to vector<256x128xf32>
    %69 = arith.mulf %65, %68 : vector<256x128xf32>
    %cst_79 = arith.constant 0.000000e+00 : f32
    %70 = vector.broadcast %cst_79 : f32 to vector<256x128xf32>
    %71 = arith.cmpf oge, %69, %70 : vector<256x128xf32>
    %cst_80 = arith.constant 1.000000e+00 : f32
    %cst_81 = arith.constant -1.000000e+00 : f32
    %72 = vector.broadcast %cst_80 : f32 to vector<256x128xf32>
    %73 = vector.broadcast %cst_81 : f32 to vector<256x128xf32>
    %74 = arith.select %71, %72, %73 : vector<256x128xi1>, vector<256x128xf32>
    %75 = math.absf %69 : vector<256x128xf32>
    %cst_82 = arith.constant 0.327591091 : f32
    %76 = vector.broadcast %cst_82 : f32 to vector<256x128xf32>
    %77 = arith.mulf %76, %75 : vector<256x128xf32>
    %cst_83 = arith.constant 1.000000e+00 : f32
    %78 = vector.broadcast %cst_83 : f32 to vector<256x128xf32>
    %79 = arith.addf %78, %77 : vector<256x128xf32>
    %80 = tpu.reciprocal %79 {approx = true} : vector<256x128xf32> -> vector<256x128xf32>
    %cst_84 = arith.constant 1.06140542 : f32
    %81 = vector.broadcast %cst_84 : f32 to vector<256x128xf32>
    %82 = arith.mulf %81, %80 : vector<256x128xf32>
    %cst_85 = arith.constant -1.45315206 : f32
    %83 = vector.broadcast %cst_85 : f32 to vector<256x128xf32>
    %84 = arith.addf %82, %83 : vector<256x128xf32>
    %85 = arith.mulf %84, %80 : vector<256x128xf32>
    %cst_86 = arith.constant 1.42141378 : f32
    %86 = vector.broadcast %cst_86 : f32 to vector<256x128xf32>
    %87 = arith.addf %85, %86 : vector<256x128xf32>
    %88 = arith.mulf %87, %80 : vector<256x128xf32>
    %cst_87 = arith.constant -0.284496725 : f32
    %89 = vector.broadcast %cst_87 : f32 to vector<256x128xf32>
    %90 = arith.addf %88, %89 : vector<256x128xf32>
    %91 = arith.mulf %90, %80 : vector<256x128xf32>
    %cst_88 = arith.constant 0.254829586 : f32
    %92 = vector.broadcast %cst_88 : f32 to vector<256x128xf32>
    %93 = arith.addf %91, %92 : vector<256x128xf32>
    %94 = arith.mulf %93, %80 : vector<256x128xf32>
    %cst_89 = arith.constant 0.000000e+00 : f32
    %95 = vector.broadcast %cst_89 : f32 to vector<256x128xf32>
    %96 = arith.subf %95, %75 : vector<256x128xf32>
    %97 = arith.mulf %96, %75 : vector<256x128xf32>
    %98 = math.exp %97 : vector<256x128xf32>
    %99 = arith.mulf %94, %98 : vector<256x128xf32>
    %cst_90 = arith.constant 1.000000e+00 : f32
    %100 = vector.broadcast %cst_90 : f32 to vector<256x128xf32>
    %101 = arith.subf %100, %99 : vector<256x128xf32>
    %102 = arith.mulf %74, %101 : vector<256x128xf32>
    %cst_91 = arith.constant 1.000000e+00 : f32
    %103 = vector.broadcast %cst_91 : f32 to vector<256x128xf32>
    %104 = arith.addf %103, %102 : vector<256x128xf32>
    %105 = arith.mulf %67, %104 : vector<256x128xf32>
    %106 = vector.shape_cast %105 : vector<256x128xf32> to vector<16x16x128xf32>
    %107 = arith.truncf %106 : vector<16x16x128xf32> to vector<16x16x128xbf16>
    %c1_92 = arith.constant 1 : index
    %c1_93 = arith.constant 1 : index
    %c0_94 = arith.constant 0 : index
    %108 = vector.load %arg5[%c1_92, %c1_93, %c0_94] : memref<18x18x128xbf16, #tpu.memory_space<vmem>>, vector<16x16x128xbf16>
    tpu.vector_store %arg5[%c1_92, %c1_93, %c0_94], %107 {strides = array<i32>} : memref<18x18x128xbf16, #tpu.memory_space<vmem>>, vector<16x16x128xbf16>,
    %109 = vector.extract_strided_slice %107 {offsets = [0, 1, 0], sizes = [16, 1, 128], strides = [1, 1, 1]} : vector<16x16x128xbf16> to vector<16x1x128xbf16>
    %110 = vector.shape_cast %109 : vector<16x1x128xbf16> to vector<16x128xbf16>
    %c1_95 = arith.constant 1 : index
    %c0_96 = arith.constant 0 : index
    %c0_97 = arith.constant 0 : index
    %111 = vector.load %arg5[%c1_95, %c0_96, %c0_97] : memref<18x18x128xbf16, #tpu.memory_space<vmem>>, vector<16x1x128xbf16>
    %112 = vector.shape_cast %111 : vector<16x1x128xbf16> to vector<16x128xbf16>
    %113 = vector.shape_cast %110 : vector<16x128xbf16> to vector<16x1x128xbf16>
    tpu.vector_store %arg5[%c1_95, %c0_96, %c0_97], %113 {strides = array<i32>} : memref<18x18x128xbf16, #tpu.memory_space<vmem>>, vector<16x1x128xbf16>,
    %114 = vector.extract_strided_slice %107 {offsets = [0, 14, 0], sizes = [16, 1, 128], strides = [1, 1, 1]} : vector<16x16x128xbf16> to vector<16x1x128xbf16>
    %115 = vector.shape_cast %114 : vector<16x1x128xbf16> to vector<16x128xbf16>
    %c1_98 = arith.constant 1 : index
    %c17_99 = arith.constant 17 : index
    %c0_100 = arith.constant 0 : index
    %116 = vector.load %arg5[%c1_98, %c17_99, %c0_100] : memref<18x18x128xbf16, #tpu.memory_space<vmem>>, vector<16x1x128xbf16>
    %117 = vector.shape_cast %116 : vector<16x1x128xbf16> to vector<16x128xbf16>
    %118 = vector.shape_cast %115 : vector<16x128xbf16> to vector<16x1x128xbf16>
    tpu.vector_store %arg5[%c1_98, %c17_99, %c0_100], %118 {strides = array<i32>} : memref<18x18x128xbf16, #tpu.memory_space<vmem>>, vector<16x1x128xbf16>,
    %c2_101 = arith.constant 2 : index
    %c0_102 = arith.constant 0 : index
    %c0_103 = arith.constant 0 : index
    %119 = vector.load %arg5[%c2_101, %c0_102, %c0_103] : memref<18x18x128xbf16, #tpu.memory_space<vmem>>, vector<1x18x128xbf16>
    %120 = vector.shape_cast %119 : vector<1x18x128xbf16> to vector<18x128xbf16>
    %c0_104 = arith.constant 0 : index
    %c0_105 = arith.constant 0 : index
    %c0_106 = arith.constant 0 : index
    %121 = vector.load %arg5[%c0_104, %c0_105, %c0_106] : memref<18x18x128xbf16, #tpu.memory_space<vmem>>, vector<1x18x128xbf16>
    %122 = vector.shape_cast %121 : vector<1x18x128xbf16> to vector<18x128xbf16>
    %123 = vector.shape_cast %120 : vector<18x128xbf16> to vector<1x18x128xbf16>
    tpu.vector_store %arg5[%c0_104, %c0_105, %c0_106], %123 {strides = array<i32>} : memref<18x18x128xbf16, #tpu.memory_space<vmem>>, vector<1x18x128xbf16>,
    %c15_107 = arith.constant 15 : index
    %c0_108 = arith.constant 0 : index
    %c0_109 = arith.constant 0 : index
    %124 = vector.load %arg5[%c15_107, %c0_108, %c0_109] : memref<18x18x128xbf16, #tpu.memory_space<vmem>>, vector<1x18x128xbf16>
    %125 = vector.shape_cast %124 : vector<1x18x128xbf16> to vector<18x128xbf16>
    %c17_110 = arith.constant 17 : index
    %c0_111 = arith.constant 0 : index
    %c0_112 = arith.constant 0 : index
    %126 = vector.load %arg5[%c17_110, %c0_111, %c0_112] : memref<18x18x128xbf16, #tpu.memory_space<vmem>>, vector<1x18x128xbf16>
    %127 = vector.shape_cast %126 : vector<1x18x128xbf16> to vector<18x128xbf16>
    %128 = vector.shape_cast %125 : vector<18x128xbf16> to vector<1x18x128xbf16>
    tpu.vector_store %arg5[%c17_110, %c0_111, %c0_112], %128 {strides = array<i32>} : memref<18x18x128xbf16, #tpu.memory_space<vmem>>, vector<1x18x128xbf16>,
    %c0_113 = arith.constant 0 : index
    %c0_114 = arith.constant 0 : index
    %c0_115 = arith.constant 0 : index
    %129 = vector.load %arg5[%c0_113, %c0_114, %c0_115] : memref<18x18x128xbf16, #tpu.memory_space<vmem>>, vector<16x16x128xbf16>
    %c0_116 = arith.constant 0 : index
    %c0_117 = arith.constant 0 : index
    %c0_118 = arith.constant 0 : index
    %130 = vector.load %arg6[%c0_116, %c0_117, %c0_118] : memref<16x16x1152xbf16, #tpu.memory_space<vmem>>, vector<16x16x128xbf16>
    tpu.vector_store %arg6[%c0_116, %c0_117, %c0_118], %129 {strides = array<i32>} : memref<16x16x1152xbf16, #tpu.memory_space<vmem>>, vector<16x16x128xbf16>,
    %c0_119 = arith.constant 0 : index
    %c1_120 = arith.constant 1 : index
    %c0_121 = arith.constant 0 : index
    %131 = vector.load %arg5[%c0_119, %c1_120, %c0_121] : memref<18x18x128xbf16, #tpu.memory_space<vmem>>, vector<16x16x128xbf16>
    %c0_122 = arith.constant 0 : index
    %c0_123 = arith.constant 0 : index
    %c128_124 = arith.constant 128 : index
    %132 = vector.load %arg6[%c0_122, %c0_123, %c128_124] : memref<16x16x1152xbf16, #tpu.memory_space<vmem>>, vector<16x16x128xbf16>
    tpu.vector_store %arg6[%c0_122, %c0_123, %c128_124], %131 {strides = array<i32>} : memref<16x16x1152xbf16, #tpu.memory_space<vmem>>, vector<16x16x128xbf16>,
    %c0_125 = arith.constant 0 : index
    %c2_126 = arith.constant 2 : index
    %c0_127 = arith.constant 0 : index
    %133 = vector.load %arg5[%c0_125, %c2_126, %c0_127] : memref<18x18x128xbf16, #tpu.memory_space<vmem>>, vector<16x16x128xbf16>
    %c0_128 = arith.constant 0 : index
    %c0_129 = arith.constant 0 : index
    %c256_130 = arith.constant 256 : index
    %134 = vector.load %arg6[%c0_128, %c0_129, %c256_130] : memref<16x16x1152xbf16, #tpu.memory_space<vmem>>, vector<16x16x128xbf16>
    tpu.vector_store %arg6[%c0_128, %c0_129, %c256_130], %133 {strides = array<i32>} : memref<16x16x1152xbf16, #tpu.memory_space<vmem>>, vector<16x16x128xbf16>,
    %c1_131 = arith.constant 1 : index
    %c0_132 = arith.constant 0 : index
    %c0_133 = arith.constant 0 : index
    %135 = vector.load %arg5[%c1_131, %c0_132, %c0_133] : memref<18x18x128xbf16, #tpu.memory_space<vmem>>, vector<16x16x128xbf16>
    %c0_134 = arith.constant 0 : index
    %c0_135 = arith.constant 0 : index
    %c384_136 = arith.constant 384 : index
    %136 = vector.load %arg6[%c0_134, %c0_135, %c384_136] : memref<16x16x1152xbf16, #tpu.memory_space<vmem>>, vector<16x16x128xbf16>
    tpu.vector_store %arg6[%c0_134, %c0_135, %c384_136], %135 {strides = array<i32>} : memref<16x16x1152xbf16, #tpu.memory_space<vmem>>, vector<16x16x128xbf16>,
    %c1_137 = arith.constant 1 : index
    %c1_138 = arith.constant 1 : index
    %c0_139 = arith.constant 0 : index
    %137 = vector.load %arg5[%c1_137, %c1_138, %c0_139] : memref<18x18x128xbf16, #tpu.memory_space<vmem>>, vector<16x16x128xbf16>
    %c0_140 = arith.constant 0 : index
    %c0_141 = arith.constant 0 : index
    %c512_142 = arith.constant 512 : index
    %138 = vector.load %arg6[%c0_140, %c0_141, %c512_142] : memref<16x16x1152xbf16, #tpu.memory_space<vmem>>, vector<16x16x128xbf16>
    tpu.vector_store %arg6[%c0_140, %c0_141, %c512_142], %137 {strides = array<i32>} : memref<16x16x1152xbf16, #tpu.memory_space<vmem>>, vector<16x16x128xbf16>,
    %c1_143 = arith.constant 1 : index
    %c2_144 = arith.constant 2 : index
    %c0_145 = arith.constant 0 : index
    %139 = vector.load %arg5[%c1_143, %c2_144, %c0_145] : memref<18x18x128xbf16, #tpu.memory_space<vmem>>, vector<16x16x128xbf16>
    %c0_146 = arith.constant 0 : index
    %c0_147 = arith.constant 0 : index
    %c640_148 = arith.constant 640 : index
    %140 = vector.load %arg6[%c0_146, %c0_147, %c640_148] : memref<16x16x1152xbf16, #tpu.memory_space<vmem>>, vector<16x16x128xbf16>
    tpu.vector_store %arg6[%c0_146, %c0_147, %c640_148], %139 {strides = array<i32>} : memref<16x16x1152xbf16, #tpu.memory_space<vmem>>, vector<16x16x128xbf16>,
    %c2_149 = arith.constant 2 : index
    %c0_150 = arith.constant 0 : index
    %c0_151 = arith.constant 0 : index
    %141 = vector.load %arg5[%c2_149, %c0_150, %c0_151] : memref<18x18x128xbf16, #tpu.memory_space<vmem>>, vector<16x16x128xbf16>
    %c0_152 = arith.constant 0 : index
    %c0_153 = arith.constant 0 : index
    %c768_154 = arith.constant 768 : index
    %142 = vector.load %arg6[%c0_152, %c0_153, %c768_154] : memref<16x16x1152xbf16, #tpu.memory_space<vmem>>, vector<16x16x128xbf16>
    tpu.vector_store %arg6[%c0_152, %c0_153, %c768_154], %141 {strides = array<i32>} : memref<16x16x1152xbf16, #tpu.memory_space<vmem>>, vector<16x16x128xbf16>,
    %c2_155 = arith.constant 2 : index
    %c1_156 = arith.constant 1 : index
    %c0_157 = arith.constant 0 : index
    %143 = vector.load %arg5[%c2_155, %c1_156, %c0_157] : memref<18x18x128xbf16, #tpu.memory_space<vmem>>, vector<16x16x128xbf16>
    %c0_158 = arith.constant 0 : index
    %c0_159 = arith.constant 0 : index
    %c896_160 = arith.constant 896 : index
    %144 = vector.load %arg6[%c0_158, %c0_159, %c896_160] : memref<16x16x1152xbf16, #tpu.memory_space<vmem>>, vector<16x16x128xbf16>
    tpu.vector_store %arg6[%c0_158, %c0_159, %c896_160], %143 {strides = array<i32>} : memref<16x16x1152xbf16, #tpu.memory_space<vmem>>, vector<16x16x128xbf16>,
    %c2_161 = arith.constant 2 : index
    %c2_162 = arith.constant 2 : index
    %c0_163 = arith.constant 0 : index
    %145 = vector.load %arg5[%c2_161, %c2_162, %c0_163] : memref<18x18x128xbf16, #tpu.memory_space<vmem>>, vector<16x16x128xbf16>
    %c0_164 = arith.constant 0 : index
    %c0_165 = arith.constant 0 : index
    %c1024_166 = arith.constant 1024 : index
    %146 = vector.load %arg6[%c0_164, %c0_165, %c1024_166] : memref<16x16x1152xbf16, #tpu.memory_space<vmem>>, vector<16x16x128xbf16>
    tpu.vector_store %arg6[%c0_164, %c0_165, %c1024_166], %145 {strides = array<i32>} : memref<16x16x1152xbf16, #tpu.memory_space<vmem>>, vector<16x16x128xbf16>,
    %c0_167 = arith.constant 0 : index
    %c0_168 = arith.constant 0 : index
    %c0_169 = arith.constant 0 : index
    %147 = vector.load %arg6[%c0_167, %c0_168, %c0_169] : memref<16x16x1152xbf16, #tpu.memory_space<vmem>>, vector<16x16x1152xbf16>
    %148 = vector.shape_cast %147 : vector<16x16x1152xbf16> to vector<256x1152xbf16>
    %c0_170 = arith.constant 0 : index
    %c0_171 = arith.constant 0 : index
    %149 = vector.load %arg3[%c0_170, %c0_171] : memref<1152x128xbf16, #tpu.memory_space<vmem>>, vector<1152x128xbf16>
    %cst_172 = arith.constant dense<0.000000e+00> : vector<256x128xf32>
    %150 = tpu.matmul %148, %149, %cst_172 {dimension_numbers = #tpu.dot_dimension_numbers<[1], [0], [0], [1], [0, 0, 1, 1], [], []>} : vector<256x1152xbf16>, vector<1152x128xbf16>, vector<256x128xf32> -> vector<256x128xf32>
    %cst_173 = arith.constant dense<0.000000e+00> : vector<128xf32>
    %151 = vector.multi_reduction <add>, %150, %cst_173 [0] : vector<256x128xf32> to vector<128xf32>
    %152 = vector.shape_cast %151 : vector<128xf32> to vector<1x128xf32>
    %153 = arith.mulf %150, %150 : vector<256x128xf32>
    %cst_174 = arith.constant dense<0.000000e+00> : vector<128xf32>
    %154 = vector.multi_reduction <add>, %153, %cst_174 [0] : vector<256x128xf32> to vector<128xf32>
    %155 = vector.shape_cast %154 : vector<128xf32> to vector<1x128xf32>
    %cst_175 = arith.constant 3.906250e-03 : f32
    %156 = vector.broadcast %cst_175 : f32 to vector<1x128xf32>
    %157 = arith.mulf %152, %156 : vector<1x128xf32>
    %cst_176 = arith.constant 3.906250e-03 : f32
    %158 = vector.broadcast %cst_176 : f32 to vector<1x128xf32>
    %159 = arith.mulf %155, %158 : vector<1x128xf32>
    %160 = arith.mulf %157, %157 : vector<1x128xf32>
    %161 = arith.subf %159, %160 : vector<1x128xf32>
    %cst_177 = arith.constant 0.000000e+00 : f32
    %162 = vector.broadcast %cst_177 : f32 to vector<1x128xf32>
    %163 = arith.maximumf %161, %162 : vector<1x128xf32>
    %164 = vector.broadcast %157 : vector<1x128xf32> to vector<256x128xf32>
    %165 = arith.subf %150, %164 : vector<256x128xf32>
    %cst_178 = arith.constant 9.99999974E-6 : f32
    %166 = vector.broadcast %cst_178 : f32 to vector<1x128xf32>
    %167 = arith.addf %163, %166 : vector<1x128xf32>
    %168 = math.rsqrt %167 : vector<1x128xf32>
    %169 = vector.broadcast %168 : vector<1x128xf32> to vector<256x128xf32>
    %170 = arith.mulf %165, %169 : vector<256x128xf32>
    %c0_179 = arith.constant 0 : index
    %c0_180 = arith.constant 0 : index
    %c0_181 = arith.constant 0 : index
    %c0_182 = arith.constant 0 : index
    %171 = vector.load %arg1[%c0_179, %c0_180, %c0_181, %c0_182] : memref<1x16x16x128xf32, #tpu.memory_space<vmem>>, vector<1x16x16x128xf32>
    %172 = vector.shape_cast %171 : vector<1x16x16x128xf32> to vector<16x16x128xf32>
    %173 = vector.shape_cast %170 : vector<256x128xf32> to vector<16x16x128xf32>
    %174 = arith.addf %172, %173 : vector<16x16x128xf32>
    %c0_183 = arith.constant 0 : index
    %c0_184 = arith.constant 0 : index
    %c0_185 = arith.constant 0 : index
    %c0_186 = arith.constant 0 : index
    %175 = vector.load %arg4[%c0_183, %c0_184, %c0_185, %c0_186] : memref<1x16x16x128xf32, #tpu.memory_space<vmem>>, vector<1x16x16x128xf32>
    %176 = vector.shape_cast %175 : vector<1x16x16x128xf32> to vector<16x16x128xf32>
    %177 = vector.shape_cast %174 : vector<16x16x128xf32> to vector<1x16x16x128xf32>
    tpu.vector_store %arg4[%c0_183, %c0_184, %c0_185, %c0_186], %177 {strides = array<i32>} : memref<1x16x16x128xf32, #tpu.memory_space<vmem>>, vector<1x16x16x128xf32>,
    return
  }
  func.func @transform_0(%arg0: i32) -> (i32, i32, i32, i32) {
    %c0_i32 = arith.constant 0 : i32
    %c0_i32_0 = arith.constant 0 : i32
    %c0_i32_1 = arith.constant 0 : i32
    %c0_i32_2 = arith.constant 0 : i32
    return %arg0, %c0_i32, %c0_i32_0, %c0_i32_1 : i32, i32, i32, i32
  }
  func.func @transform_1(%arg0: i32) -> (i32, i32) {
    %c0_i32 = arith.constant 0 : i32
    %c0_i32_0 = arith.constant 0 : i32
    %c0_i32_1 = arith.constant 0 : i32
    return %c0_i32, %c0_i32_0 : i32, i32
  }
  func.func @transform_2(%arg0: i32) -> (i32, i32) {
    %c0_i32 = arith.constant 0 : i32
    %c0_i32_0 = arith.constant 0 : i32
    %c0_i32_1 = arith.constant 0 : i32
    return %c0_i32, %c0_i32_0 : i32, i32
  }
  func.func @transform_3(%arg0: i32) -> (i32, i32, i32, i32) {
    %c0_i32 = arith.constant 0 : i32
    %c0_i32_0 = arith.constant 0 : i32
    %c0_i32_1 = arith.constant 0 : i32
    %c0_i32_2 = arith.constant 0 : i32
    return %arg0, %c0_i32, %c0_i32_0, %c0_i32_1 : i32, i32, i32, i32
  }
}

</mosaic_0001>

<llo_original>
// kernel: resblock_forward.1
$region0: #{resblock_forward.1}
  #allocation0 [shape = 'u32[]', space=smem, size = 0x4, offset = 0x4, fixed_abs, tag = 'smem constant byte address 0x4 - core index']
  #allocation1 [shape = 'u32[144,128]{1,0:T(1,128)}', space=vmem, size = 0x12000, scoped, tag = 'internal scratch']
  #allocation2 [shape = 'bf16[18,18,128]{2,1,0:T(8,128)(2,1)}', space=vmem, size = 0x1b000, scoped, tag = 'scratch operand']
  #allocation3 [shape = 'bf16[16,16,1152]{2,1,0:T(16,128)(2,1)}', space=vmem, size = 0x90000, scoped, tag = 'scratch operand']
  %s0 = inlined_call_operand.hbm [shape: f32[2,16,16,128], index: 0, kind: input, shape index: {}]
  %s1 = inlined_call_operand.hbm [shape: bf16[1152,128], index: 1, kind: input, shape index: {}]
  %s2 = inlined_call_operand.hbm [shape: bf16[1152,128], index: 2, kind: input, shape index: {}]
  %s3 = inlined_call_operand.hbm [shape: f32[2,16,16,128], index: 3, kind: output, shape index: {}]
  %s4 = sld [smem:[#allocation0]]
  $region57: #{resblock_forward.1} parent=0
    _
  %s6 = ssub.s32 1, %s4
  %s7 = scalar_select 0, %s6, %s4
  $region1: #{resblock_forward.1} parent=0
    #allocation4 [shape = 'u8[262144]{0}', space=vmem, size = 0x40000, scoped, tag = 'input window, operand 0']
    #allocation5 [shape = 's32[2]{0}', space=sflag, size = 0x8, scoped, tag = 'scoped memory for resblock_forward.1']
    #allocation6 [shape = 's32[2]{0}', space=sflag, size = 0x8, scoped, tag = 'scoped memory for resblock_forward.1']
    #allocation7 [shape = 'u8[294912]{0}', space=vmem, size = 0x48000, scoped, tag = 'input window, operand 1, single buffered']
    #allocation8 [shape = 's32[1]{0}', space=sflag, size = 0x4, scoped, tag = 'scoped memory for resblock_forward.1']
    #allocation9 [shape = 'u8[294912]{0}', space=vmem, size = 0x48000, scoped, tag = 'input window, operand 2, single buffered']
    #allocation10 [shape = 'u8[262144]{0}', space=vmem, size = 0x40000, scoped, tag = 'output window, operand 0']
    %8 = vsyncpa [#allocation5], 0
    %s9 = scalar_lea.sflag [#allocation5], 1
    %10 = vsyncpa %s9, 0
    %11 = vsyncpa [#allocation8], 0
    %12 = vsyncpa [#allocation6], 0
    %s13 = scalar_lea.sflag [#allocation6], 1
    %14 = vsyncpa %s13, 0
    loop: start=0, step=1, limit=4
    $region2: #{resblock_forward.1} parent=1 // loop_pre_header
      _
    $region3: #{resblock_forward.1} parent=1 // loop_header
      %s16 = sphi 0, %s20
      %p17 = scmp.ge.s32.totalorder %s16, 4
      %s26 = sphi 0, %s28
      %s29 = sphi 0, %s26
      %s30 = sphi 0, %s29
      %s46 = sphi 0, %s30
      %s50 = sphi 0, %s50
      %s52 = sphi 0, %s50
      %s53 = sphi 0, %s52
      %s67 = sphi 0, %s53
      %s71 = sphi 0, %s71
      %s73 = sphi 0, %s71
      %s74 = sphi 0, %s73
      %s88 = sphi 0, %s74
      %s94 = sphi 0, %s96
      %s97 = sphi 0, %s94
      %s98 = sphi 0, %s97
      %s114 = sphi 0, %s98
    $region4: #{resblock_forward.1} parent=1 // loop_header_branch
      %19 = sbr.rel (%p17) target = $region8
    $region5: #{resblock_forward.1} parent=1 // loop_body
      %s21 = ssub.s32 %s16, 1
      %s22 = ssub.s32 %s16, 2
      %s23 = sadd.s32 %s16, 1
      %s24 = ssub.s32 %s16, %s23
      %p25 = scmp.eq.s32.totalorder %s24, 0
      %s27 = sadd.s32 %s26, 1
      %s28 = scalar_select %p25, %s26, %s27
      %p31 = pneg %p25
      %p32 = scmp.eq.s32.totalorder %s16, 1
      %p33 = por %p31, %p32
      %p34 = scmp.ne.s32.totalorder %s26, %s29
      %p35 = scmp.eq.s32.totalorder %s16, 0
      %p36 = por %p34, %p35
      %p37 = scmp.ne.s32.totalorder %s26, %s29
      %p38 = scmp.eq.s32.totalorder %s21, 1
      %p39 = por %p37, %p38
      %p40 = scmp.ne.s32.totalorder %s29, %s30
      %p41 = scmp.eq.s32.totalorder %s21, 0
      %p42 = por %p40, %p41
      %p43 = scmp.ne.s32.totalorder %s29, %s30
      %p44 = scmp.eq.s32.totalorder %s22, 1
      %p45 = por %p43, %p44
      %p47 = scmp.ne.s32.totalorder %s30, %s46
      %p48 = scmp.eq.s32.totalorder %s22, 0
      %p49 = por %p47, %p48
      %s51 = sadd.s32 %s50, 1
      %p54 = scmp.eq.s32.totalorder %s16, 1
      %p55 = scmp.ne.s32.totalorder %s50, %s52
      %p56 = scmp.eq.s32.totalorder %s16, 0
      %p57 = por %p55, %p56
      %p58 = scmp.ne.s32.totalorder %s50, %s52
      %p59 = scmp.eq.s32.totalorder %s21, 1
      %p60 = por %p58, %p59
      %p61 = scmp.ne.s32.totalorder %s52, %s53
      %p62 = scmp.eq.s32.totalorder %s21, 0
      %p63 = por %p61, %p62
      %p64 = scmp.ne.s32.totalorder %s52, %s53
      %p65 = scmp.eq.s32.totalorder %s22, 1
      %p66 = por %p64, %p65
      %p68 = scmp.ne.s32.totalorder %s53, %s67
      %p69 = scmp.eq.s32.totalorder %s22, 0
      %p70 = por %p68, %p69
      %s72 = sadd.s32 %s71, 1
      %p75 = scmp.eq.s32.totalorder %s16, 1
      %p76 = scmp.ne.s32.totalorder %s71, %s73
      %p77 = scmp.eq.s32.totalorder %s16, 0
      %p78 = por %p76, %p77
      %p79 = scmp.ne.s32.totalorder %s71, %s73
      %p80 = scmp.eq.s32.totalorder %s21, 1
      %p81 = por %p79, %p80
      %p82 = scmp.ne.s32.totalorder %s73, %s74
      %p83 = scmp.eq.s32.totalorder %s21, 0
      %p84 = por %p82, %p83
      %p85 = scmp.ne.s32.totalorder %s73, %s74
      %p86 = scmp.eq.s32.totalorder %s22, 1
      %p87 = por %p85, %p86
      %p89 = scmp.ne.s32.totalorder %s74, %s88
      %p90 = scmp.eq.s32.totalorder %s22, 0
      %p91 = por %p89, %p90
      %s92 = ssub.s32 %s16, %s23
      %p93 = scmp.eq.s32.totalorder %s92, 0
      %s95 = sadd.s32 %s94, 1
      %s96 = scalar_select %p93, %s94, %s95
      %p99 = pneg %p93
      %p100 = scmp.eq.s32.totalorder %s16, 1
      %p101 = por %p99, %p100
      %p102 = scmp.ne.s32.totalorder %s94, %s97
      %p103 = scmp.eq.s32.totalorder %s16, 0
      %p104 = por %p102, %p103
      %p105 = scmp.ne.s32.totalorder %s94, %s97
      %p106 = scmp.eq.s32.totalorder %s21, 1
      %p107 = por %p105, %p106
      %p108 = scmp.ne.s32.totalorder %s97, %s98
      %p109 = scmp.eq.s32.totalorder %s21, 0
      %p110 = por %p108, %p109
      %p111 = scmp.ne.s32.totalorder %s97, %s98
      %p112 = scmp.eq.s32.totalorder %s22, 1
      %p113 = por %p111, %p112
      %p115 = scmp.ne.s32.totalorder %s98, %s114
      %p116 = scmp.eq.s32.totalorder %s22, 0
      %p117 = por %p115, %p116
      %p118 = scmp.le.s32.totalorder 1, %s16
      %p119 = scmp.lt.s32.totalorder %s16, 3
      %p120 = pnand %p118, %p119
      %p121 = pneg %p120
      // Predicated region
      $region9: #{resblock_forward.1} parent=5 // pred_check
        _
      $region10: #{resblock_forward.1} parent=5 // pred_check_branch
        %123 = sbr.rel (%p120) target = $region12
      $region11: #{resblock_forward.1} parent=5 // pred_region
        %s124 = ssub.s32 %s16, 1
        // Predicated region
        $region13: #{resblock_forward.1} parent=11 // pred_check
          %p125 = pneg %p63
        $region14: #{resblock_forward.1} parent=11 // pred_check_branch
          %127 = sbr.rel (%p125) target = $region16
        $region15: #{resblock_forward.1} parent=11 // pred_region
          %s129 = ssub.s32 9216, 9216
          %130 = vsyncadd [#allocation8], %s129
          %s131 = sshll.u32 [#allocation7], 4
          %s132 = int_to_ptr.vmem [resolvable:$true] %s131
          %137 = dma.hbm_to_vmem [thread:$0]  %s1, 9216, %s132, [#allocation8], 64, 64, 4
        $region16: #{resblock_forward.1} parent=11 // pred_fallthru
          _
        // Predicated region
        $region17: #{resblock_forward.1} parent=11 // pred_check
          %p138 = pneg %p84
        $region18: #{resblock_forward.1} parent=11 // pred_check_branch
          %140 = sbr.rel (%p138) target = $region20
        $region19: #{resblock_forward.1} parent=11 // pred_region
          %s142 = ssub.s32 9216, 9216
          %143 = vsyncadd [#allocation8], %s142
          %s144 = sshll.u32 [#allocation9], 4
          %s145 = int_to_ptr.vmem [resolvable:$true] %s144
          %150 = dma.hbm_to_vmem [thread:$0]  %s2, 9216, %s145, [#allocation8], 64, 64, 4
        $region20: #{resblock_forward.1} parent=11 // pred_fallthru
          _
      $region12: #{resblock_forward.1} parent=5 // pred_fallthru
        _
      %p151 = scmp.lt.s32.totalorder %s16, 2
      // Predicated region
      $region21: #{resblock_forward.1} parent=5 // pred_check
        %p152 = pneg %p151
      $region22: #{resblock_forward.1} parent=5 // pred_check_branch
        %154 = sbr.rel (%p152) target = $region24
      $region23: #{resblock_forward.1} parent=5 // pred_region
        // Predicated region
        $region25: #{resblock_forward.1} parent=23 // pred_check
          %p155 = pneg %p36
        $region26: #{resblock_forward.1} parent=23 // pred_check_branch
          %157 = sbr.rel (%p155) target = $region28
        $region27: #{resblock_forward.1} parent=23 // pred_region
          %s158 = sand.u32 %s26, 1
          %s159 = scalar_lea.sflag [#allocation5], %s158
          %s160 = sand.u32 %s26, 1
          %s161 = smul.addr %s160, 256
          %s162 = scalar_lea.vmem [#allocation4], %s161
          %s164 = ssub.s32 4096, 4096
          %165 = vsyncadd %s159, %s164
          %s166 = smul.addr %s16, 32
          %s167 = smul.addr %s166, 128
          %s168 = scalar_lea.hbm %s0, %s167
          %s169 = sshll.u32 %s162, 4
          %s170 = int_to_ptr.vmem [resolvable:$true] %s169
          %175 = dma.hbm_to_vmem [thread:$0]  %s168, 4096, %s170, %s159, 128, 128, 8
        $region28: #{resblock_forward.1} parent=23 // pred_fallthru
          _
      $region24: #{resblock_forward.1} parent=5 // pred_fallthru
        _
      %p176 = scmp.le.s32.totalorder 1, %s16
      %p177 = scmp.lt.s32.totalorder %s16, 3
      %p178 = pnand %p176, %p177
      %p179 = pneg %p178
      // Predicated region
      $region29: #{resblock_forward.1} parent=5 // pred_check
        _
      $region30: #{resblock_forward.1} parent=5 // pred_check_branch
        %181 = sbr.rel (%p178) target = $region32
      $region31: #{resblock_forward.1} parent=5 // pred_region
        %s182 = ssub.s32 %s16, 1
        %s183 = sand.u32 %s29, 1
        %s184 = scalar_lea.sflag [#allocation5], %s183
        %s185 = sand.u32 %s29, 1
        %s186 = smul.addr %s185, 256
        %s187 = scalar_lea.vmem [#allocation4], %s186
        // Predicated region
        $region33: #{resblock_forward.1} parent=31 // pred_check
          %p188 = pneg %p42
        $region34: #{resblock_forward.1} parent=31 // pred_check_branch
          %190 = sbr.rel (%p188) target = $region36
        $region35: #{resblock_forward.1} parent=31 // pred_region
          %191 = dma.done %s184, 4096
        $region36: #{resblock_forward.1} parent=31 // pred_fallthru
          _
        // Predicated region
        $region37: #{resblock_forward.1} parent=31 // pred_check
          %p192 = pneg %p63
        $region38: #{resblock_forward.1} parent=31 // pred_check_branch
          %194 = sbr.rel (%p192) target = $region40
        $region39: #{resblock_forward.1} parent=31 // pred_region
          %195 = dma.done [#allocation8], 9216
        $region40: #{resblock_forward.1} parent=31 // pred_fallthru
          _
        // Predicated region
        $region41: #{resblock_forward.1} parent=31 // pred_check
          %p196 = pneg %p84
        $region42: #{resblock_forward.1} parent=31 // pred_check_branch
          %198 = sbr.rel (%p196) target = $region44
        $region43: #{resblock_forward.1} parent=31 // pred_region
          %199 = dma.done [#allocation8], 9216
        $region44: #{resblock_forward.1} parent=31 // pred_fallthru
          _
        %s200 = sand.u32 %s29, 1
        %s201 = scalar_lea.sflag [#allocation5], %s200
        %s202 = sand.u32 %s29, 1
        %s203 = smul.addr %s202, 256
        %s204 = scalar_lea.vmem [#allocation4], %s203
        %p205 = pneg %p42
        %p206 = pneg %p39
        %p207 = pneg %p63
        %p208 = pneg %p60
        %p209 = pneg %p84
        %p210 = pneg %p81
        %p211 = pneg %p110
        %p212 = pneg %p107
        %s213 = sand.u32 %s97, 1
        %s214 = scalar_lea.sflag [#allocation6], %s213
        %s215 = sand.u32 %s97, 1
        %s216 = smul.addr %s215, 256
        %s217 = scalar_lea.vmem [#allocation10], %s216
        %v219 = vld [vmem:[%s187] sm:$0xff]
        %v220 = vld [vmem:[%s187 + $0x8] sm:$0xff]
        %v221 = vld [vmem:[%s187 + $0x10] sm:$0xff]
        %v222 = vld [vmem:[%s187 + $0x18] sm:$0xff]
        %v223 = vld [vmem:[%s187 + $0x20] sm:$0xff]
        %v224 = vld [vmem:[%s187 + $0x28] sm:$0xff]
        %v225 = vld [vmem:[%s187 + $0x30] sm:$0xff]
        %v226 = vld [vmem:[%s187 + $0x38] sm:$0xff]
        %v227 = vld [vmem:[%s187 + $0x40] sm:$0xff]
        %v228 = vld [vmem:[%s187 + $0x48] sm:$0xff]
        %v229 = vld [vmem:[%s187 + $0x50] sm:$0xff]
        %v230 = vld [vmem:[%s187 + $0x58] sm:$0xff]
        %v231 = vld [vmem:[%s187 + $0x60] sm:$0xff]
        %v232 = vld [vmem:[%s187 + $0x68] sm:$0xff]
        %v233 = vld [vmem:[%s187 + $0x70] sm:$0xff]
        %v234 = vld [vmem:[%s187 + $0x78] sm:$0xff]
        %v235 = vld [vmem:[%s187 + $0x80] sm:$0xff]
        %v236 = vld [vmem:[%s187 + $0x88] sm:$0xff]
        %v237 = vld [vmem:[%s187 + $0x90] sm:$0xff]
        %v238 = vld [vmem:[%s187 + $0x98] sm:$0xff]
        %v239 = vld [vmem:[%s187 + $0xa0] sm:$0xff]
        %v240 = vld [vmem:[%s187 + $0xa8] sm:$0xff]
        %v241 = vld [vmem:[%s187 + $0xb0] sm:$0xff]
        %v242 = vld [vmem:[%s187 + $0xb8] sm:$0xff]
        %v243 = vld [vmem:[%s187 + $0xc0] sm:$0xff]
        %v244 = vld [vmem:[%s187 + $0xc8] sm:$0xff]
        %v245 = vld [vmem:[%s187 + $0xd0] sm:$0xff]
        %v246 = vld [vmem:[%s187 + $0xd8] sm:$0xff]
        %v247 = vld [vmem:[%s187 + $0xe0] sm:$0xff]
        %v248 = vld [vmem:[%s187 + $0xe8] sm:$0xff]
        %v249 = vld [vmem:[%s187 + $0xf0] sm:$0xff]
        %v250 = vld [vmem:[%s187 + $0xf8] sm:$0xff]
        %v251 = vpack.c.bf16 %v220, %v219
        %v252 = vpack.c.bf16 %v222, %v221
        %v253 = vpack.c.bf16 %v224, %v223
        %v254 = vpack.c.bf16 %v226, %v225
        %v255 = vpack.c.bf16 %v228, %v227
        %v256 = vpack.c.bf16 %v230, %v229
        %v257 = vpack.c.bf16 %v232, %v231
        %v258 = vpack.c.bf16 %v234, %v233
        %v259 = vpack.c.bf16 %v236, %v235
        %v260 = vpack.c.bf16 %v238, %v237
        %v261 = vpack.c.bf16 %v240, %v239
        %v262 = vpack.c.bf16 %v242, %v241
        %v263 = vpack.c.bf16 %v244, %v243
        %v264 = vpack.c.bf16 %v246, %v245
        %v265 = vpack.c.bf16 %v248, %v247
        %v266 = vpack.c.bf16 %v250, %v249
        %v283 = vunpack.c.l.b16 %v251
        %v284 = vunpack.c.h.b16 %v251
        %v285 = vunpack.c.l.b16 %v252
        %v286 = vunpack.c.h.b16 %v252
        %v287 = vunpack.c.l.b16 %v253
        %v288 = vunpack.c.h.b16 %v253
        %v289 = vunpack.c.l.b16 %v254
        %v290 = vunpack.c.h.b16 %v254
        %v291 = vunpack.c.l.b16 %v255
        %v292 = vunpack.c.h.b16 %v255
        %v293 = vunpack.c.l.b16 %v256
        %v294 = vunpack.c.h.b16 %v256
        %v295 = vunpack.c.l.b16 %v257
        %v296 = vunpack.c.h.b16 %v257
        %v297 = vunpack.c.l.b16 %v258
        %v298 = vunpack.c.h.b16 %v258
        %v299 = vunpack.c.l.b16 %v259
        %v300 = vunpack.c.h.b16 %v259
        %v301 = vunpack.c.l.b16 %v260
        %v302 = vunpack.c.h.b16 %v260
        %v303 = vunpack.c.l.b16 %v261
        %v304 = vunpack.c.h.b16 %v261
        %v305 = vunpack.c.l.b16 %v262
        %v306 = vunpack.c.h.b16 %v262
        %v307 = vunpack.c.l.b16 %v263
        %v308 = vunpack.c.h.b16 %v263
        %v309 = vunpack.c.l.b16 %v264
        %v310 = vunpack.c.h.b16 %v264
        %v311 = vunpack.c.l.b16 %v265
        %v312 = vunpack.c.h.b16 %v265
        %v313 = vunpack.c.l.b16 %v266
        %v314 = vunpack.c.h.b16 %v266
        %v315 = vpack.c.b16 %v283, %v283
        %v316 = vpack.c.b16 %v284, %v284
        %v317 = vpack.c.b16 %v285, %v285
        %v318 = vpack.c.b16 %v286, %v286
        %v319 = vpack.c.b16 %v287, %v287
        %v320 = vpack.c.b16 %v288, %v288
        %v321 = vpack.c.b16 %v289, %v289
        %v322 = vpack.c.b16 %v290, %v290
        %v323 = vpack.c.b16 %v291, %v291
        %v324 = vpack.c.b16 %v292, %v292
        %v325 = vpack.c.b16 %v293, %v293
        %v326 = vpack.c.b16 %v294, %v294
        %v327 = vpack.c.b16 %v295, %v295
        %v328 = vpack.c.b16 %v296, %v296
        %v329 = vpack.c.b16 %v297, %v297
        %v330 = vpack.c.b16 %v298, %v298
        %v331 = vpack.c.b16 %v299, %v299
        %v332 = vpack.c.b16 %v300, %v300
        %v333 = vpack.c.b16 %v301, %v301
        %v334 = vpack.c.b16 %v302, %v302
        %v335 = vpack.c.b16 %v303, %v303
        %v336 = vpack.c.b16 %v304, %v304
        %v337 = vpack.c.b16 %v305, %v305
        %v338 = vpack.c.b16 %v306, %v306
        %v339 = vpack.c.b16 %v307, %v307
        %v340 = vpack.c.b16 %v308, %v308
        %v341 = vpack.c.b16 %v309, %v309
        %v342 = vpack.c.b16 %v310, %v310
        %v343 = vpack.c.b16 %v311, %v311
        %v344 = vpack.c.b16 %v312, %v312
        %v345 = vpack.c.b16 %v313, %v313
        %v346 = vpack.c.b16 %v314, %v314
        %vm347 = vsmask.f32 256
        %vm348 = vsmask.f32 4368
        %vm349 = vmor %vm347, %vm348
        %v351 = vshrl.u32 %v315, 16
        %v353 = vrot.slane %v351, 7
        %v354 = vshll.u32 %v315, 16
        %v356 = vor.u32 %v353, %v354
        %v357 = vrot.slane %v353, 4
        %v359 = vshrl.u32 %v316, 16
        %v361 = vrot.slane %v359, 7
        %v362 = vshll.u32 %v316, 16
        %v364 = vor.u32 %v361, %v362
        %v365 = vsel %vm349, %v357, %v364
        %v366 = vrot.slane %v361, 4
        %v368 = vshrl.u32 %v317, 16
        %v370 = vrot.slane %v368, 7
        %v371 = vshll.u32 %v317, 16
        %v373 = vor.u32 %v370, %v371
        %v374 = vrot.slane %v370, 4
        %v376 = vshrl.u32 %v318, 16
        %v378 = vrot.slane %v376, 7
        %v379 = vshll.u32 %v318, 16
        %v381 = vor.u32 %v378, %v379
        %v382 = vsel %vm349, %v374, %v381
        %v383 = vrot.slane %v378, 4
        %v385 = vshrl.u32 %v319, 16
        %v387 = vrot.slane %v385, 7
        %v388 = vshll.u32 %v319, 16
        %v390 = vor.u32 %v387, %v388
        %v391 = vrot.slane %v387, 4
        %v393 = vshrl.u32 %v320, 16
        %v395 = vrot.slane %v393, 7
        %v396 = vshll.u32 %v320, 16
        %v398 = vor.u32 %v395, %v396
        %v399 = vsel %vm349, %v391, %v398
        %v400 = vrot.slane %v395, 4
        %v402 = vshrl.u32 %v321, 16
        %v404 = vrot.slane %v402, 7
        %v405 = vshll.u32 %v321, 16
        %v407 = vor.u32 %v404, %v405
        %v408 = vrot.slane %v404, 4
        %v410 = vshrl.u32 %v322, 16
        %v412 = vrot.slane %v410, 7
        %v413 = vshll.u32 %v322, 16
        %v415 = vor.u32 %v412, %v413
        %v416 = vsel %vm349, %v408, %v415
        %v417 = vrot.slane %v412, 4
        %v419 = vshrl.u32 %v323, 16
        %v421 = vrot.slane %v419, 7
        %v422 = vshll.u32 %v323, 16
        %v424 = vor.u32 %v421, %v422
        %v425 = vrot.slane %v421, 4
        %v427 = vshrl.u32 %v324, 16
        %v429 = vrot.slane %v427, 7
        %v430 = vshll.u32 %v324, 16
        %v432 = vor.u32 %v429, %v430
        %v433 = vsel %vm349, %v425, %v432
        %v434 = vrot.slane %v429, 4
        %v436 = vshrl.u32 %v325, 16
        %v438 = vrot.slane %v436, 7
        %v439 = vshll.u32 %v325, 16
        %v441 = vor.u32 %v438, %v439
        %v442 = vrot.slane %v438, 4
        %v444 = vshrl.u32 %v326, 16
        %v446 = vrot.slane %v444, 7
        %v447 = vshll.u32 %v326, 16
        %v449 = vor.u32 %v446, %v447
        %v450 = vsel %vm349, %v442, %v449
        %v451 = vrot.slane %v446, 4
        %v453 = vshrl.u32 %v327, 16
        %v455 = vrot.slane %v453, 7
        %v456 = vshll.u32 %v327, 16
        %v458 = vor.u32 %v455, %v456
        %v459 = vrot.slane %v455, 4
        %v461 = vshrl.u32 %v328, 16
        %v463 = vrot.slane %v461, 7
        %v464 = vshll.u32 %v328, 16
        %v466 = vor.u32 %v463, %v464
        %v467 = vsel %vm349, %v459, %v466
        %v468 = vrot.slane %v463, 4
        %v470 = vshrl.u32 %v329, 16
        %v472 = vrot.slane %v470, 7
        %v473 = vshll.u32 %v329, 16
        %v475 = vor.u32 %v472, %v473
        %v476 = vrot.slane %v472, 4
        %v478 = vshrl.u32 %v330, 16
        %v480 = vrot.slane %v478, 7
        %v481 = vshll.u32 %v330, 16
        %v483 = vor.u32 %v480, %v481
        %v484 = vsel %vm349, %v476, %v483
        %v485 = vrot.slane %v480, 4
        %v487 = vshrl.u32 %v331, 16
        %v489 = vrot.slane %v487, 7
        %v490 = vshll.u32 %v331, 16
        %v492 = vor.u32 %v489, %v490
        %v493 = vrot.slane %v489, 4
        %v495 = vshrl.u32 %v332, 16
        %v497 = vrot.slane %v495, 7
        %v498 = vshll.u32 %v332, 16
        %v500 = vor.u32 %v497, %v498
        %v501 = vsel %vm349, %v493, %v500
        %v502 = vrot.slane %v497, 4
        %v504 = vshrl.u32 %v333, 16
        %v506 = vrot.slane %v504, 7
        %v507 = vshll.u32 %v333, 16
        %v509 = vor.u32 %v506, %v507
        %v510 = vrot.slane %v506, 4
        %v512 = vshrl.u32 %v334, 16
        %v514 = vrot.slane %v512, 7
        %v515 = vshll.u32 %v334, 16
        %v517 = vor.u32 %v514, %v515
        %v518 = vsel %vm349, %v510, %v517
        %v519 = vrot.slane %v514, 4
        %v521 = vshrl.u32 %v335, 16
        %v523 = vrot.slane %v521, 7
        %v524 = vshll.u32 %v335, 16
        %v526 = vor.u32 %v523, %v524
        %v527 = vrot.slane %v523, 4
        %v529 = vshrl.u32 %v336, 16
        %v531 = vrot.slane %v529, 7
        %v532 = vshll.u32 %v336, 16
        %v534 = vor.u32 %v531, %v532
        %v535 = vsel %vm349, %v527, %v534
        %v536 = vrot.slane %v531, 4
        %v538 = vshrl.u32 %v337, 16
        %v540 = vrot.slane %v538, 7
        %v541 = vshll.u32 %v337, 16
        %v543 = vor.u32 %v540, %v541
        %v544 = vrot.slane %v540, 4
        %v546 = vshrl.u32 %v338, 16
        %v548 = vrot.slane %v546, 7
        %v549 = vshll.u32 %v338, 16
        %v551 = vor.u32 %v548, %v549
        %v552 = vsel %vm349, %v544, %v551
        %v553 = vrot.slane %v548, 4
        %v555 = vshrl.u32 %v339, 16
        %v557 = vrot.slane %v555, 7
        %v558 = vshll.u32 %v339, 16
        %v560 = vor.u32 %v557, %v558
        %v561 = vrot.slane %v557, 4
        %v563 = vshrl.u32 %v340, 16
        %v565 = vrot.slane %v563, 7
        %v566 = vshll.u32 %v340, 16
        %v568 = vor.u32 %v565, %v566
        %v569 = vsel %vm349, %v561, %v568
        %v570 = vrot.slane %v565, 4
        %v572 = vshrl.u32 %v341, 16
        %v574 = vrot.slane %v572, 7
        %v575 = vshll.u32 %v341, 16
        %v577 = vor.u32 %v574, %v575
        %v578 = vrot.slane %v574, 4
        %v580 = vshrl.u32 %v342, 16
        %v582 = vrot.slane %v580, 7
        %v583 = vshll.u32 %v342, 16
        %v585 = vor.u32 %v582, %v583
        %v586 = vsel %vm349, %v578, %v585
        %v587 = vrot.slane %v582, 4
        %v589 = vshrl.u32 %v343, 16
        %v591 = vrot.slane %v589, 7
        %v592 = vshll.u32 %v343, 16
        %v594 = vor.u32 %v591, %v592
        %v595 = vrot.slane %v591, 4
        %v597 = vshrl.u32 %v344, 16
        %v599 = vrot.slane %v597, 7
        %v600 = vshll.u32 %v344, 16
        %v602 = vor.u32 %v599, %v600
        %v603 = vsel %vm349, %v595, %v602
        %v604 = vrot.slane %v599, 4
        %v606 = vshrl.u32 %v345, 16
        %v608 = vrot.slane %v606, 7
        %v609 = vshll.u32 %v345, 16
        %v611 = vor.u32 %v608, %v609
        %v612 = vrot.slane %v608, 4
        %v614 = vshrl.u32 %v346, 16
        %v616 = vrot.slane %v614, 7
        %v617 = vshll.u32 %v346, 16
        %v619 = vor.u32 %v616, %v617
        %v620 = vsel %vm349, %v612, %v619
        %v621 = vrot.slane %v616, 4
        %s670 = scalar_lea.vmem [#allocation2], 12
        %vm671 = vcmask 1043456
        %vm672 = vsmask.f32 7938
        %vm673 = vmand %vm671, %vm672
        %v674 = vld [vmem:[%s670] sm:$0xf]
        %v675 = vsel %vm673, %v356, %v674
        %676 = vst [vmem:[%s670] sm:$0xf] %v675
        %677 = vst [vmem:[%s670 + $0x4] sm:$0xf] %v365
        %vm678 = vcmask 1040384
        %vm679 = vmand %vm678, %vm347
        %v680 = vld [vmem:[%s670 + $0x8] sm:$0x1]
        %v681 = vsel %vm679, %v366, %v680
        %682 = vst [vmem:[%s670 + $0x8] sm:$0x1] %v681
        %v683 = vld [vmem:[%s670 + $0xc] sm:$0xf]
        %v684 = vsel %vm673, %v373, %v683
        %685 = vst [vmem:[%s670 + $0xc] sm:$0xf] %v684
        %686 = vst [vmem:[%s670 + $0x10] sm:$0xf] %v382
        %v687 = vld [vmem:[%s670 + $0x14] sm:$0x1]
        %v688 = vsel %vm679, %v383, %v687
        %689 = vst [vmem:[%s670 + $0x14] sm:$0x1] %v688
        %v690 = vld [vmem:[%s670 + $0x18] sm:$0xf]
        %v691 = vsel %vm673, %v390, %v690
        %692 = vst [vmem:[%s670 + $0x18] sm:$0xf] %v691
        %693 = vst [vmem:[%s670 + $0x1c] sm:$0xf] %v399
        %v694 = vld [vmem:[%s670 + $0x20] sm:$0x1]
        %v695 = vsel %vm679, %v400, %v694
        %696 = vst [vmem:[%s670 + $0x20] sm:$0x1] %v695
        %v697 = vld [vmem:[%s670 + $0x24] sm:$0xf]
        %v698 = vsel %vm673, %v407, %v697
        %699 = vst [vmem:[%s670 + $0x24] sm:$0xf] %v698
        %700 = vst [vmem:[%s670 + $0x28] sm:$0xf] %v416
        %v701 = vld [vmem:[%s670 + $0x2c] sm:$0x1]
        %v702 = vsel %vm679, %v417, %v701
        %703 = vst [vmem:[%s670 + $0x2c] sm:$0x1] %v702
        %v704 = vld [vmem:[%s670 + $0x30] sm:$0xf]
        %v705 = vsel %vm673, %v424, %v704
        %706 = vst [vmem:[%s670 + $0x30] sm:$0xf] %v705
        %707 = vst [vmem:[%s670 + $0x34] sm:$0xf] %v433
        %v708 = vld [vmem:[%s670 + $0x38] sm:$0x1]
        %v709 = vsel %vm679, %v434, %v708
        %710 = vst [vmem:[%s670 + $0x38] sm:$0x1] %v709
        %v711 = vld [vmem:[%s670 + $0x3c] sm:$0xf]
        %v712 = vsel %vm673, %v441, %v711
        %713 = vst [vmem:[%s670 + $0x3c] sm:$0xf] %v712
        %714 = vst [vmem:[%s670 + $0x40] sm:$0xf] %v450
        %v715 = vld [vmem:[%s670 + $0x44] sm:$0x1]
        %v716 = vsel %vm679, %v451, %v715
        %717 = vst [vmem:[%s670 + $0x44] sm:$0x1] %v716
        %v718 = vld [vmem:[%s670 + $0x48] sm:$0xf]
        %v719 = vsel %vm673, %v458, %v718
        %720 = vst [vmem:[%s670 + $0x48] sm:$0xf] %v719
        %721 = vst [vmem:[%s670 + $0x4c] sm:$0xf] %v467
        %v722 = vld [vmem:[%s670 + $0x50] sm:$0x1]
        %v723 = vsel %vm679, %v468, %v722
        %724 = vst [vmem:[%s670 + $0x50] sm:$0x1] %v723
        %v725 = vld [vmem:[%s670 + $0x54] sm:$0xf]
        %v726 = vsel %vm673, %v475, %v725
        %727 = vst [vmem:[%s670 + $0x54] sm:$0xf] %v726
        %728 = vst [vmem:[%s670 + $0x58] sm:$0xf] %v484
        %v729 = vld [vmem:[%s670 + $0x5c] sm:$0x1]
        %v730 = vsel %vm679, %v485, %v729
        %731 = vst [vmem:[%s670 + $0x5c] sm:$0x1] %v730
        %v732 = vld [vmem:[%s670 + $0x60] sm:$0xf]
        %v733 = vsel %vm673, %v492, %v732
        %734 = vst [vmem:[%s670 + $0x60] sm:$0xf] %v733
        %735 = vst [vmem:[%s670 + $0x64] sm:$0xf] %v501
        %v736 = vld [vmem:[%s670 + $0x68] sm:$0x1]
        %v737 = vsel %vm679, %v502, %v736
        %738 = vst [vmem:[%s670 + $0x68] sm:$0x1] %v737
        %v739 = vld [vmem:[%s670 + $0x6c] sm:$0xf]
        %v740 = vsel %vm673, %v509, %v739
        %741 = vst [vmem:[%s670 + $0x6c] sm:$0xf] %v740
        %742 = vst [vmem:[%s670 + $0x70] sm:$0xf] %v518
        %v743 = vld [vmem:[%s670 + $0x74] sm:$0x1]
        %v744 = vsel %vm679, %v519, %v743
        %745 = vst [vmem:[%s670 + $0x74] sm:$0x1] %v744
        %v746 = vld [vmem:[%s670 + $0x78] sm:$0xf]
        %v747 = vsel %vm673, %v526, %v746
        %748 = vst [vmem:[%s670 + $0x78] sm:$0xf] %v747
        %749 = vst [vmem:[%s670 + $0x7c] sm:$0xf] %v535
        %v750 = vld [vmem:[%s670 + $0x80] sm:$0x1]
        %v751 = vsel %vm679, %v536, %v750
        %752 = vst [vmem:[%s670 + $0x80] sm:$0x1] %v751
        %v753 = vld [vmem:[%s670 + $0x84] sm:$0xf]
        %v754 = vsel %vm673, %v543, %v753
        %755 = vst [vmem:[%s670 + $0x84] sm:$0xf] %v754
        %756 = vst [vmem:[%s670 + $0x88] sm:$0xf] %v552
        %v757 = vld [vmem:[%s670 + $0x8c] sm:$0x1]
        %v758 = vsel %vm679, %v553, %v757
        %759 = vst [vmem:[%s670 + $0x8c] sm:$0x1] %v758
        %v760 = vld [vmem:[%s670 + $0x90] sm:$0xf]
        %v761 = vsel %vm673, %v560, %v760
        %762 = vst [vmem:[%s670 + $0x90] sm:$0xf] %v761
        %763 = vst [vmem:[%s670 + $0x94] sm:$0xf] %v569
        %v764 = vld [vmem:[%s670 + $0x98] sm:$0x1]
        %v765 = vsel %vm679, %v570, %v764
        %766 = vst [vmem:[%s670 + $0x98] sm:$0x1] %v765
        %v767 = vld [vmem:[%s670 + $0x9c] sm:$0xf]
        %v768 = vsel %vm673, %v577, %v767
        %769 = vst [vmem:[%s670 + $0x9c] sm:$0xf] %v768
        %770 = vst [vmem:[%s670 + $0xa0] sm:$0xf] %v586
        %v771 = vld [vmem:[%s670 + $0xa4] sm:$0x1]
        %v772 = vsel %vm679, %v587, %v771
        %773 = vst [vmem:[%s670 + $0xa4] sm:$0x1] %v772
        %v774 = vld [vmem:[%s670 + $0xa8] sm:$0xf]
        %v775 = vsel %vm673, %v594, %v774
        %776 = vst [vmem:[%s670 + $0xa8] sm:$0xf] %v775
        %777 = vst [vmem:[%s670 + $0xac] sm:$0xf] %v603
        %v778 = vld [vmem:[%s670 + $0xb0] sm:$0x1]
        %v779 = vsel %vm679, %v604, %v778
        %780 = vst [vmem:[%s670 + $0xb0] sm:$0x1] %v779
        %v781 = vld [vmem:[%s670 + $0xb4] sm:$0xf]
        %v782 = vsel %vm673, %v611, %v781
        %783 = vst [vmem:[%s670 + $0xb4] sm:$0xf] %v782
        %784 = vst [vmem:[%s670 + $0xb8] sm:$0xf] %v620
        %v785 = vld [vmem:[%s670 + $0xbc] sm:$0x1]
        %v786 = vsel %vm679, %v621, %v785
        %787 = vst [vmem:[%s670 + $0xbc] sm:$0x1] %v786
        %v788 = vrot.slane %v351, 4
        %v789 = vrot.slane %v788, 4
        %v790 = vrot.slane %v368, 4
        %v791 = vrot.slane %v790, 4
        %v792 = vrot.slane %v385, 4
        %v793 = vrot.slane %v792, 4
        %v794 = vrot.slane %v402, 4
        %v795 = vrot.slane %v794, 4
        %v796 = vrot.slane %v419, 4
        %v797 = vrot.slane %v796, 4
        %v798 = vrot.slane %v436, 4
        %v799 = vrot.slane %v798, 4
        %v800 = vrot.slane %v453, 4
        %v801 = vrot.slane %v800, 4
        %v802 = vrot.slane %v470, 4
        %v803 = vrot.slane %v802, 4
        %v804 = vrot.slane %v487, 4
        %v805 = vrot.slane %v804, 4
        %v806 = vrot.slane %v504, 4
        %v807 = vrot.slane %v806, 4
        %v808 = vrot.slane %v521, 4
        %v809 = vrot.slane %v808, 4
        %v810 = vrot.slane %v538, 4
        %v811 = vrot.slane %v810, 4
        %v812 = vrot.slane %v555, 4
        %v813 = vrot.slane %v812, 4
        %v814 = vrot.slane %v572, 4
        %v815 = vrot.slane %v814, 4
        %v816 = vrot.slane %v589, 4
        %v817 = vrot.slane %v816, 4
        %v818 = vrot.slane %v606, 4
        %v819 = vrot.slane %v818, 4
        %v836 = vld [vmem:[%s670] sm:$0x1]
        %v837 = vsel %vm679, %v789, %v836
        %838 = vst [vmem:[%s670] sm:$0x1] %v837
        %v839 = vld [vmem:[%s670 + $0xc] sm:$0x1]
        %v840 = vsel %vm679, %v791, %v839
        %841 = vst [vmem:[%s670 + $0xc] sm:$0x1] %v840
        %v842 = vld [vmem:[%s670 + $0x18] sm:$0x1]
        %v843 = vsel %vm679, %v793, %v842
        %844 = vst [vmem:[%s670 + $0x18] sm:$0x1] %v843
        %v845 = vld [vmem:[%s670 + $0x24] sm:$0x1]
        %v846 = vsel %vm679, %v795, %v845
        %847 = vst [vmem:[%s670 + $0x24] sm:$0x1] %v846
        %v848 = vld [vmem:[%s670 + $0x30] sm:$0x1]
        %v849 = vsel %vm679, %v797, %v848
        %850 = vst [vmem:[%s670 + $0x30] sm:$0x1] %v849
        %v851 = vld [vmem:[%s670 + $0x3c] sm:$0x1]
        %v852 = vsel %vm679, %v799, %v851
        %853 = vst [vmem:[%s670 + $0x3c] sm:$0x1] %v852
        %v854 = vld [vmem:[%s670 + $0x48] sm:$0x1]
        %v855 = vsel %vm679, %v801, %v854
        %856 = vst [vmem:[%s670 + $0x48] sm:$0x1] %v855
        %v857 = vld [vmem:[%s670 + $0x54] sm:$0x1]
        %v858 = vsel %vm679, %v803, %v857
        %859 = vst [vmem:[%s670 + $0x54] sm:$0x1] %v858
        %v860 = vld [vmem:[%s670 + $0x60] sm:$0x1]
        %v861 = vsel %vm679, %v805, %v860
        %862 = vst [vmem:[%s670 + $0x60] sm:$0x1] %v861
        %v863 = vld [vmem:[%s670 + $0x6c] sm:$0x1]
        %v864 = vsel %vm679, %v807, %v863
        %865 = vst [vmem:[%s670 + $0x6c] sm:$0x1] %v864
        %v866 = vld [vmem:[%s670 + $0x78] sm:$0x1]
        %v867 = vsel %vm679, %v809, %v866
        %868 = vst [vmem:[%s670 + $0x78] sm:$0x1] %v867
        %v869 = vld [vmem:[%s670 + $0x84] sm:$0x1]
        %v870 = vsel %vm679, %v811, %v869
        %871 = vst [vmem:[%s670 + $0x84] sm:$0x1] %v870
        %v872 = vld [vmem:[%s670 + $0x90] sm:$0x1]
        %v873 = vsel %vm679, %v813, %v872
        %874 = vst [vmem:[%s670 + $0x90] sm:$0x1] %v873
        %v875 = vld [vmem:[%s670 + $0x9c] sm:$0x1]
        %v876 = vsel %vm679, %v815, %v875
        %877 = vst [vmem:[%s670 + $0x9c] sm:$0x1] %v876
        %v878 = vld [vmem:[%s670 + $0xa8] sm:$0x1]
        %v879 = vsel %vm679, %v817, %v878
        %880 = vst [vmem:[%s670 + $0xa8] sm:$0x1] %v879
        %v881 = vld [vmem:[%s670 + $0xb4] sm:$0x1]
        %v882 = vsel %vm679, %v819, %v881
        %883 = vst [vmem:[%s670 + $0xb4] sm:$0x1] %v882
        %v884 = vrot.slane %v362, 7
        %v885 = vrot.slane %v884, 4
        %v886 = vrot.slane %v379, 7
        %v887 = vrot.slane %v886, 4
        %v888 = vrot.slane %v396, 7
        %v889 = vrot.slane %v888, 4
        %v890 = vrot.slane %v413, 7
        %v891 = vrot.slane %v890, 4
        %v892 = vrot.slane %v430, 7
        %v893 = vrot.slane %v892, 4
        %v894 = vrot.slane %v447, 7
        %v895 = vrot.slane %v894, 4
        %v896 = vrot.slane %v464, 7
        %v897 = vrot.slane %v896, 4
        %v898 = vrot.slane %v481, 7
        %v899 = vrot.slane %v898, 4
        %v900 = vrot.slane %v498, 7
        %v901 = vrot.slane %v900, 4
        %v902 = vrot.slane %v515, 7
        %v903 = vrot.slane %v902, 4
        %v904 = vrot.slane %v532, 7
        %v905 = vrot.slane %v904, 4
        %v906 = vrot.slane %v549, 7
        %v907 = vrot.slane %v906, 4
        %v908 = vrot.slane %v566, 7
        %v909 = vrot.slane %v908, 4
        %v910 = vrot.slane %v583, 7
        %v911 = vrot.slane %v910, 4
        %v912 = vrot.slane %v600, 7
        %v913 = vrot.slane %v912, 4
        %v914 = vrot.slane %v617, 7
        %v915 = vrot.slane %v914, 4
        %vm932 = vmand %vm678, %vm672
        %v933 = vld [vmem:[%s670 + $0x8] sm:$0x1]
        %v934 = vsel %vm932, %v885, %v933
        %935 = vst [vmem:[%s670 + $0x8] sm:$0x1] %v934
        %v936 = vld [vmem:[%s670 + $0x14] sm:$0x1]
        %v937 = vsel %vm932, %v887, %v936
        %938 = vst [vmem:[%s670 + $0x14] sm:$0x1] %v937
        %v939 = vld [vmem:[%s670 + $0x20] sm:$0x1]
        %v940 = vsel %vm932, %v889, %v939
        %941 = vst [vmem:[%s670 + $0x20] sm:$0x1] %v940
        %v942 = vld [vmem:[%s670 + $0x2c] sm:$0x1]
        %v943 = vsel %vm932, %v891, %v942
        %944 = vst [vmem:[%s670 + $0x2c] sm:$0x1] %v943
        %v945 = vld [vmem:[%s670 + $0x38] sm:$0x1]
        %v946 = vsel %vm932, %v893, %v945
        %947 = vst [vmem:[%s670 + $0x38] sm:$0x1] %v946
        %v948 = vld [vmem:[%s670 + $0x44] sm:$0x1]
        %v949 = vsel %vm932, %v895, %v948
        %950 = vst [vmem:[%s670 + $0x44] sm:$0x1] %v949
        %v951 = vld [vmem:[%s670 + $0x50] sm:$0x1]
        %v952 = vsel %vm932, %v897, %v951
        %953 = vst [vmem:[%s670 + $0x50] sm:$0x1] %v952
        %v954 = vld [vmem:[%s670 + $0x5c] sm:$0x1]
        %v955 = vsel %vm932, %v899, %v954
        %956 = vst [vmem:[%s670 + $0x5c] sm:$0x1] %v955
        %v957 = vld [vmem:[%s670 + $0x68] sm:$0x1]
        %v958 = vsel %vm932, %v901, %v957
        %959 = vst [vmem:[%s670 + $0x68] sm:$0x1] %v958
        %v960 = vld [vmem:[%s670 + $0x74] sm:$0x1]
        %v961 = vsel %vm932, %v903, %v960
        %962 = vst [vmem:[%s670 + $0x74] sm:$0x1] %v961
        %v963 = vld [vmem:[%s670 + $0x80] sm:$0x1]
        %v964 = vsel %vm932, %v905, %v963
        %965 = vst [vmem:[%s670 + $0x80] sm:$0x1] %v964
        %v966 = vld [vmem:[%s670 + $0x8c] sm:$0x1]
        %v967 = vsel %vm932, %v907, %v966
        %968 = vst [vmem:[%s670 + $0x8c] sm:$0x1] %v967
        %v969 = vld [vmem:[%s670 + $0x98] sm:$0x1]
        %v970 = vsel %vm932, %v909, %v969
        %971 = vst [vmem:[%s670 + $0x98] sm:$0x1] %v970
        %v972 = vld [vmem:[%s670 + $0xa4] sm:$0x1]
        %v973 = vsel %vm932, %v911, %v972
        %974 = vst [vmem:[%s670 + $0xa4] sm:$0x1] %v973
        %v975 = vld [vmem:[%s670 + $0xb0] sm:$0x1]
        %v976 = vsel %vm932, %v913, %v975
        %977 = vst [vmem:[%s670 + $0xb0] sm:$0x1] %v976
        %v978 = vld [vmem:[%s670 + $0xbc] sm:$0x1]
        %v979 = vsel %vm932, %v915, %v978
        %980 = vst [vmem:[%s670 + $0xbc] sm:$0x1] %v979
        %s981 = scalar_lea.vmem [#allocation2], 24
        %v982 = vld [vmem:[%s981] sm:$0xf]
        %v983 = vld [vmem:[%s981 + $0x4] sm:$0xf]
        %v984 = vld [vmem:[%s981 + $0x8] sm:$0x1]
        %985 = vst [vmem:[#allocation2] sm:$0xf] %v982
        %986 = vst [vmem:[#allocation2 + $0x4] sm:$0xf] %v983
        %987 = vst [vmem:[#allocation2 + $0x8] sm:$0x1] %v984
        %s988 = scalar_lea.vmem [#allocation2], 180
        %v989 = vld [vmem:[%s988] sm:$0xf]
        %v990 = vld [vmem:[%s988 + $0x4] sm:$0xf]
        %v991 = vld [vmem:[%s988 + $0x8] sm:$0x1]
        %s992 = scalar_lea.vmem [#allocation2], 204
        %993 = vst [vmem:[%s992] sm:$0xf] %v989
        %994 = vst [vmem:[%s992 + $0x4] sm:$0xf] %v990
        %995 = vst [vmem:[%s992 + $0x8] sm:$0x1] %v991
        %v996 = vld [vmem:[#allocation2] sm:$0xf]
        %v997 = vld [vmem:[#allocation2 + $0x4] sm:$0xf]
        %v998 = vld [vmem:[#allocation2 + $0xc] sm:$0xf]
        %v999 = vld [vmem:[#allocation2 + $0x10] sm:$0xf]
        %v1000 = vld [vmem:[#allocation2 + $0x18] sm:$0xf]
        %v1001 = vld [vmem:[#allocation2 + $0x1c] sm:$0xf]
        %v1002 = vld [vmem:[#allocation2 + $0x24] sm:$0xf]
        %v1003 = vld [vmem:[#allocation2 + $0x28] sm:$0xf]
        %v1004 = vld [vmem:[#allocation2 + $0x30] sm:$0xf]
        %v1005 = vld [vmem:[#allocation2 + $0x34] sm:$0xf]
        %v1006 = vld [vmem:[#allocation2 + $0x3c] sm:$0xf]
        %v1007 = vld [vmem:[#allocation2 + $0x40] sm:$0xf]
        %v1008 = vld [vmem:[#allocation2 + $0x48] sm:$0xf]
        %v1009 = vld [vmem:[#allocation2 + $0x4c] sm:$0xf]
        %v1010 = vld [vmem:[#allocation2 + $0x54] sm:$0xf]
        %v1011 = vld [vmem:[#allocation2 + $0x58] sm:$0xf]
        %v1012 = vld [vmem:[#allocation2 + $0x60] sm:$0xf]
        %v1013 = vld [vmem:[#allocation2 + $0x64] sm:$0xf]
        %v1014 = vld [vmem:[#allocation2 + $0x6c] sm:$0xf]
        %v1015 = vld [vmem:[#allocation2 + $0x70] sm:$0xf]
        %v1016 = vld [vmem:[#allocation2 + $0x78] sm:$0xf]
        %v1017 = vld [vmem:[#allocation2 + $0x7c] sm:$0xf]
        %v1018 = vld [vmem:[#allocation2 + $0x84] sm:$0xf]
        %v1019 = vld [vmem:[#allocation2 + $0x88] sm:$0xf]
        %v1020 = vld [vmem:[#allocation2 + $0x90] sm:$0xf]
        %v1021 = vld [vmem:[#allocation2 + $0x94] sm:$0xf]
        %v1022 = vld [vmem:[#allocation2 + $0x9c] sm:$0xf]
        %v1023 = vld [vmem:[#allocation2 + $0xa0] sm:$0xf]
        %v1024 = vld [vmem:[#allocation2 + $0xa8] sm:$0xf]
        %v1025 = vld [vmem:[#allocation2 + $0xac] sm:$0xf]
        %v1026 = vld [vmem:[#allocation2 + $0xb4] sm:$0xf]
        %v1027 = vld [vmem:[#allocation2 + $0xb8] sm:$0xf]
        %v1060 = vunpack.c.l.b16 %v996
        %v1061 = vunpack.c.l.b16 %v997
        %v1062 = vunpack.c.l.b16 %v998
        %v1063 = vunpack.c.l.b16 %v999
        %v1064 = vunpack.c.l.b16 %v1000
        %v1065 = vunpack.c.l.b16 %v1001
        %v1066 = vunpack.c.l.b16 %v1002
        %v1067 = vunpack.c.l.b16 %v1003
        %v1068 = vunpack.c.l.b16 %v1004
        %v1069 = vunpack.c.l.b16 %v1005
        %v1070 = vunpack.c.l.b16 %v1006
        %v1071 = vunpack.c.l.b16 %v1007
        %v1072 = vunpack.c.l.b16 %v1008
        %v1073 = vunpack.c.l.b16 %v1009
        %v1074 = vunpack.c.l.b16 %v1010
        %v1075 = vunpack.c.l.b16 %v1011
        %v1076 = vunpack.c.l.b16 %v1012
        %v1077 = vunpack.c.l.b16 %v1013
        %v1078 = vunpack.c.l.b16 %v1014
        %v1079 = vunpack.c.l.b16 %v1015
        %v1080 = vunpack.c.l.b16 %v1016
        %v1081 = vunpack.c.l.b16 %v1017
        %v1082 = vunpack.c.l.b16 %v1018
        %v1083 = vunpack.c.l.b16 %v1019
        %v1084 = vunpack.c.l.b16 %v1020
        %v1085 = vunpack.c.l.b16 %v1021
        %v1086 = vunpack.c.l.b16 %v1022
        %v1087 = vunpack.c.l.b16 %v1023
        %v1088 = vunpack.c.l.b16 %v1024
        %v1089 = vunpack.c.l.b16 %v1025
        %v1090 = vunpack.c.l.b16 %v1026
        %v1091 = vunpack.c.l.b16 %v1027
        %v1092 = vpack.c.b16 %v1061, %v1060
        %v1093 = vpack.c.b16 %v1063, %v1062
        %v1094 = vpack.c.b16 %v1065, %v1064
        %v1095 = vpack.c.b16 %v1067, %v1066
        %v1096 = vpack.c.b16 %v1069, %v1068
        %v1097 = vpack.c.b16 %v1071, %v1070
        %v1098 = vpack.c.b16 %v1073, %v1072
        %v1099 = vpack.c.b16 %v1075, %v1074
        %v1100 = vpack.c.b16 %v1077, %v1076
        %v1101 = vpack.c.b16 %v1079, %v1078
        %v1102 = vpack.c.b16 %v1081, %v1080
        %v1103 = vpack.c.b16 %v1083, %v1082
        %v1104 = vpack.c.b16 %v1085, %v1084
        %v1105 = vpack.c.b16 %v1087, %v1086
        %v1106 = vpack.c.b16 %v1089, %v1088
        %v1107 = vpack.c.b16 %v1091, %v1090
        %1124 = vst [vmem:[#allocation3] sm:$0xff] %v1092
        %1125 = vst [vmem:[#allocation3 + $0x48] sm:$0xff] %v1093
        %1126 = vst [vmem:[#allocation3 + $0x90] sm:$0xff] %v1094
        %1127 = vst [vmem:[#allocation3 + $0xd8] sm:$0xff] %v1095
        %1128 = vst [vmem:[#allocation3 + $0x120] sm:$0xff] %v1096
        %1129 = vst [vmem:[#allocation3 + $0x168] sm:$0xff] %v1097
        %1130 = vst [vmem:[#allocation3 + $0x1b0] sm:$0xff] %v1098
        %1131 = vst [vmem:[#allocation3 + $0x1f8] sm:$0xff] %v1099
        %1132 = vst [vmem:[#allocation3 + $0x240] sm:$0xff] %v1100
        %1133 = vst [vmem:[#allocation3 + $0x288] sm:$0xff] %v1101
        %1134 = vst [vmem:[#allocation3 + $0x2d0] sm:$0xff] %v1102
        %1135 = vst [vmem:[#allocation3 + $0x318] sm:$0xff] %v1103
        %1136 = vst [vmem:[#allocation3 + $0x360] sm:$0xff] %v1104
        %1137 = vst [vmem:[#allocation3 + $0x3a8] sm:$0xff] %v1105
        %1138 = vst [vmem:[#allocation3 + $0x3f0] sm:$0xff] %v1106
        %1139 = vst [vmem:[#allocation3 + $0x438] sm:$0xff] %v1107
        %v1140 = vld [vmem:[#allocation2] sm:$0xf]
        %v1141 = vld [vmem:[#allocation2 + $0x4] sm:$0xf]
        %v1142 = vld [vmem:[#allocation2 + $0x8] sm:$0x1]
        %v1143 = vld [vmem:[#allocation2 + $0xc] sm:$0xf]
        %v1144 = vld [vmem:[#allocation2 + $0x10] sm:$0xf]
        %v1145 = vld [vmem:[#allocation2 + $0x14] sm:$0x1]
        %v1146 = vld [vmem:[#allocation2 + $0x18] sm:$0xf]
        %v1147 = vld [vmem:[#allocation2 + $0x1c] sm:$0xf]
        %v1148 = vld [vmem:[#allocation2 + $0x20] sm:$0x1]
        %v1149 = vld [vmem:[#allocation2 + $0x24] sm:$0xf]
        %v1150 = vld [vmem:[#allocation2 + $0x28] sm:$0xf]
        %v1151 = vld [vmem:[#allocation2 + $0x2c] sm:$0x1]
        %v1152 = vld [vmem:[#allocation2 + $0x30] sm:$0xf]
        %v1153 = vld [vmem:[#allocation2 + $0x34] sm:$0xf]
        %v1154 = vld [vmem:[#allocation2 + $0x38] sm:$0x1]
        %v1155 = vld [vmem:[#allocation2 + $0x3c] sm:$0xf]
        %v1156 = vld [vmem:[#allocation2 + $0x40] sm:$0xf]
        %v1157 = vld [vmem:[#allocation2 + $0x44] sm:$0x1]
        %v1158 = vld [vmem:[#allocation2 + $0x48] sm:$0xf]
        %v1159 = vld [vmem:[#allocation2 + $0x4c] sm:$0xf]
        %v1160 = vld [vmem:[#allocation2 + $0x50] sm:$0x1]
        %v1161 = vld [vmem:[#allocation2 + $0x54] sm:$0xf]
        %v1162 = vld [vmem:[#allocation2 + $0x58] sm:$0xf]
        %v1163 = vld [vmem:[#allocation2 + $0x5c] sm:$0x1]
        %v1164 = vld [vmem:[#allocation2 + $0x60] sm:$0xf]
        %v1165 = vld [vmem:[#allocation2 + $0x64] sm:$0xf]
        %v1166 = vld [vmem:[#allocation2 + $0x68] sm:$0x1]
        %v1167 = vld [vmem:[#allocation2 + $0x6c] sm:$0xf]
        %v1168 = vld [vmem:[#allocation2 + $0x70] sm:$0xf]
        %v1169 = vld [vmem:[#allocation2 + $0x74] sm:$0x1]
        %v1170 = vld [vmem:[#allocation2 + $0x78] sm:$0xf]
        %v1171 = vld [vmem:[#allocation2 + $0x7c] sm:$0xf]
        %v1172 = vld [vmem:[#allocation2 + $0x80] sm:$0x1]
        %v1173 = vld [vmem:[#allocation2 + $0x84] sm:$0xf]
        %v1174 = vld [vmem:[#allocation2 + $0x88] sm:$0xf]
        %v1175 = vld [vmem:[#allocation2 + $0x8c] sm:$0x1]
        %v1176 = vld [vmem:[#allocation2 + $0x90] sm:$0xf]
        %v1177 = vld [vmem:[#allocation2 + $0x94] sm:$0xf]
        %v1178 = vld [vmem:[#allocation2 + $0x98] sm:$0x1]
        %v1179 = vld [vmem:[#allocation2 + $0x9c] sm:$0xf]
        %v1180 = vld [vmem:[#allocation2 + $0xa0] sm:$0xf]
        %v1181 = vld [vmem:[#allocation2 + $0xa4] sm:$0x1]
        %v1182 = vld [vmem:[#allocation2 + $0xa8] sm:$0xf]
        %v1183 = vld [vmem:[#allocation2 + $0xac] sm:$0xf]
        %v1184 = vld [vmem:[#allocation2 + $0xb0] sm:$0x1]
        %v1185 = vld [vmem:[#allocation2 + $0xb4] sm:$0xf]
        %v1186 = vld [vmem:[#allocation2 + $0xb8] sm:$0xf]
        %v1187 = vld [vmem:[#allocation2 + $0xbc] sm:$0x1]
        %v1236 = vunpack.c.l.b16 %v1140
        %v1237 = vunpack.c.l.b16 %v1141
        %v1238 = vunpack.c.l.b16 %v1142
        %v1239 = vunpack.c.l.b16 %v1143
        %v1240 = vunpack.c.l.b16 %v1144
        %v1241 = vunpack.c.l.b16 %v1145
        %v1242 = vunpack.c.l.b16 %v1146
        %v1243 = vunpack.c.l.b16 %v1147
        %v1244 = vunpack.c.l.b16 %v1148
        %v1245 = vunpack.c.l.b16 %v1149
        %v1246 = vunpack.c.l.b16 %v1150
        %v1247 = vunpack.c.l.b16 %v1151
        %v1248 = vunpack.c.l.b16 %v1152
        %v1249 = vunpack.c.l.b16 %v1153
        %v1250 = vunpack.c.l.b16 %v1154
        %v1251 = vunpack.c.l.b16 %v1155
        %v1252 = vunpack.c.l.b16 %v1156
        %v1253 = vunpack.c.l.b16 %v1157
        %v1254 = vunpack.c.l.b16 %v1158
        %v1255 = vunpack.c.l.b16 %v1159
        %v1256 = vunpack.c.l.b16 %v1160
        %v1257 = vunpack.c.l.b16 %v1161
        %v1258 = vunpack.c.l.b16 %v1162
        %v1259 = vunpack.c.l.b16 %v1163
        %v1260 = vunpack.c.l.b16 %v1164
        %v1261 = vunpack.c.l.b16 %v1165
        %v1262 = vunpack.c.l.b16 %v1166
        %v1263 = vunpack.c.l.b16 %v1167
        %v1264 = vunpack.c.l.b16 %v1168
        %v1265 = vunpack.c.l.b16 %v1169
        %v1266 = vunpack.c.l.b16 %v1170
        %v1267 = vunpack.c.l.b16 %v1171
        %v1268 = vunpack.c.l.b16 %v1172
        %v1269 = vunpack.c.l.b16 %v1173
        %v1270 = vunpack.c.l.b16 %v1174
        %v1271 = vunpack.c.l.b16 %v1175
        %v1272 = vunpack.c.l.b16 %v1176
        %v1273 = vunpack.c.l.b16 %v1177
        %v1274 = vunpack.c.l.b16 %v1178
        %v1275 = vunpack.c.l.b16 %v1179
        %v1276 = vunpack.c.l.b16 %v1180
        %v1277 = vunpack.c.l.b16 %v1181
        %v1278 = vunpack.c.l.b16 %v1182
        %v1279 = vunpack.c.l.b16 %v1183
        %v1280 = vunpack.c.l.b16 %v1184
        %v1281 = vunpack.c.l.b16 %v1185
        %v1282 = vunpack.c.l.b16 %v1186
        %v1283 = vunpack.c.l.b16 %v1187
        %v1284 = vpack.c.b16 %v1237, %v1236
        %v1285 = vpack.c.b16 %v1238, %v1238
        %v1286 = vpack.c.b16 %v1240, %v1239
        %v1287 = vpack.c.b16 %v1241, %v1241
        %v1288 = vpack.c.b16 %v1243, %v1242
        %v1289 = vpack.c.b16 %v1244, %v1244
        %v1290 = vpack.c.b16 %v1246, %v1245
        %v1291 = vpack.c.b16 %v1247, %v1247
        %v1292 = vpack.c.b16 %v1249, %v1248
        %v1293 = vpack.c.b16 %v1250, %v1250
        %v1294 = vpack.c.b16 %v1252, %v1251
        %v1295 = vpack.c.b16 %v1253, %v1253
        %v1296 = vpack.c.b16 %v1255, %v1254
        %v1297 = vpack.c.b16 %v1256, %v1256
        %v1298 = vpack.c.b16 %v1258, %v1257
        %v1299 = vpack.c.b16 %v1259, %v1259
        %v1300 = vpack.c.b16 %v1261, %v1260
        %v1301 = vpack.c.b16 %v1262, %v1262
        %v1302 = vpack.c.b16 %v1264, %v1263
        %v1303 = vpack.c.b16 %v1265, %v1265
        %v1304 = vpack.c.b16 %v1267, %v1266
        %v1305 = vpack.c.b16 %v1268, %v1268
        %v1306 = vpack.c.b16 %v1270, %v1269
        %v1307 = vpack.c.b16 %v1271, %v1271
        %v1308 = vpack.c.b16 %v1273, %v1272
        %v1309 = vpack.c.b16 %v1274, %v1274
        %v1310 = vpack.c.b16 %v1276, %v1275
        %v1311 = vpack.c.b16 %v1277, %v1277
        %v1312 = vpack.c.b16 %v1279, %v1278
        %v1313 = vpack.c.b16 %v1280, %v1280
        %v1314 = vpack.c.b16 %v1282, %v1281
        %v1315 = vpack.c.b16 %v1283, %v1283
        %vm1316 = vsmask.f32 7424
        %v1318 = vshrl.u32 %v1284, 16
        %v1320 = vshll.u32 %v1284, 16
        %v1322 = vrot.slane %v1320, 1
        %v1323 = vor.u32 %v1318, %v1322
        %v1325 = vshll.u32 %v1285, 16
        %v1327 = vrot.slane %v1325, 1
        %v1328 = vsel %vm1316, %v1323, %v1327
        %v1330 = vshrl.u32 %v1286, 16
        %v1332 = vshll.u32 %v1286, 16
        %v1334 = vrot.slane %v1332, 1
        %v1335 = vor.u32 %v1330, %v1334
        %v1337 = vshll.u32 %v1287, 16
        %v1339 = vrot.slane %v1337, 1
        %v1340 = vsel %vm1316, %v1335, %v1339
        %v1342 = vshrl.u32 %v1288, 16
        %v1344 = vshll.u32 %v1288, 16
        %v1346 = vrot.slane %v1344, 1
        %v1347 = vor.u32 %v1342, %v1346
        %v1349 = vshll.u32 %v1289, 16
        %v1351 = vrot.slane %v1349, 1
        %v1352 = vsel %vm1316, %v1347, %v1351
        %v1354 = vshrl.u32 %v1290, 16
        %v1356 = vshll.u32 %v1290, 16
        %v1358 = vrot.slane %v1356, 1
        %v1359 = vor.u32 %v1354, %v1358
        %v1361 = vshll.u32 %v1291, 16
        %v1363 = vrot.slane %v1361, 1
        %v1364 = vsel %vm1316, %v1359, %v1363
        %v1366 = vshrl.u32 %v1292, 16
        %v1368 = vshll.u32 %v1292, 16
        %v1370 = vrot.slane %v1368, 1
        %v1371 = vor.u32 %v1366, %v1370
        %v1373 = vshll.u32 %v1293, 16
        %v1375 = vrot.slane %v1373, 1
        %v1376 = vsel %vm1316, %v1371, %v1375
        %v1378 = vshrl.u32 %v1294, 16
        %v1380 = vshll.u32 %v1294, 16
        %v1382 = vrot.slane %v1380, 1
        %v1383 = vor.u32 %v1378, %v1382
        %v1385 = vshll.u32 %v1295, 16
        %v1387 = vrot.slane %v1385, 1
        %v1388 = vsel %vm1316, %v1383, %v1387
        %v1390 = vshrl.u32 %v1296, 16
        %v1392 = vshll.u32 %v1296, 16
        %v1394 = vrot.slane %v1392, 1
        %v1395 = vor.u32 %v1390, %v1394
        %v1397 = vshll.u32 %v1297, 16
        %v1399 = vrot.slane %v1397, 1
        %v1400 = vsel %vm1316, %v1395, %v1399
        %v1402 = vshrl.u32 %v1298, 16
        %v1404 = vshll.u32 %v1298, 16
        %v1406 = vrot.slane %v1404, 1
        %v1407 = vor.u32 %v1402, %v1406
        %v1409 = vshll.u32 %v1299, 16
        %v1411 = vrot.slane %v1409, 1
        %v1412 = vsel %vm1316, %v1407, %v1411
        %v1414 = vshrl.u32 %v1300, 16
        %v1416 = vshll.u32 %v1300, 16
        %v1418 = vrot.slane %v1416, 1
        %v1419 = vor.u32 %v1414, %v1418
        %v1421 = vshll.u32 %v1301, 16
        %v1423 = vrot.slane %v1421, 1
        %v1424 = vsel %vm1316, %v1419, %v1423
        %v1426 = vshrl.u32 %v1302, 16
        %v1428 = vshll.u32 %v1302, 16
        %v1430 = vrot.slane %v1428, 1
        %v1431 = vor.u32 %v1426, %v1430
        %v1433 = vshll.u32 %v1303, 16
        %v1435 = vrot.slane %v1433, 1
        %v1436 = vsel %vm1316, %v1431, %v1435
        %v1438 = vshrl.u32 %v1304, 16
        %v1440 = vshll.u32 %v1304, 16
        %v1442 = vrot.slane %v1440, 1
        %v1443 = vor.u32 %v1438, %v1442
        %v1445 = vshll.u32 %v1305, 16
        %v1447 = vrot.slane %v1445, 1
        %v1448 = vsel %vm1316, %v1443, %v1447
        %v1450 = vshrl.u32 %v1306, 16
        %v1452 = vshll.u32 %v1306, 16
        %v1454 = vrot.slane %v1452, 1
        %v1455 = vor.u32 %v1450, %v1454
        %v1457 = vshll.u32 %v1307, 16
        %v1459 = vrot.slane %v1457, 1
        %v1460 = vsel %vm1316, %v1455, %v1459
        %v1462 = vshrl.u32 %v1308, 16
        %v1464 = vshll.u32 %v1308, 16
        %v1466 = vrot.slane %v1464, 1
        %v1467 = vor.u32 %v1462, %v1466
        %v1469 = vshll.u32 %v1309, 16
        %v1471 = vrot.slane %v1469, 1
        %v1472 = vsel %vm1316, %v1467, %v1471
        %v1474 = vshrl.u32 %v1310, 16
        %v1476 = vshll.u32 %v1310, 16
        %v1478 = vrot.slane %v1476, 1
        %v1479 = vor.u32 %v1474, %v1478
        %v1481 = vshll.u32 %v1311, 16
        %v1483 = vrot.slane %v1481, 1
        %v1484 = vsel %vm1316, %v1479, %v1483
        %v1486 = vshrl.u32 %v1312, 16
        %v1488 = vshll.u32 %v1312, 16
        %v1490 = vrot.slane %v1488, 1
        %v1491 = vor.u32 %v1486, %v1490
        %v1493 = vshll.u32 %v1313, 16
        %v1495 = vrot.slane %v1493, 1
        %v1496 = vsel %vm1316, %v1491, %v1495
        %v1498 = vshrl.u32 %v1314, 16
        %v1500 = vshll.u32 %v1314, 16
        %v1502 = vrot.slane %v1500, 1
        %v1503 = vor.u32 %v1498, %v1502
        %v1505 = vshll.u32 %v1315, 16
        %v1507 = vrot.slane %v1505, 1
        %v1508 = vsel %vm1316, %v1503, %v1507
        %1525 = vst [vmem:[#allocation3 + $0x8] sm:$0xff] %v1328
        %1526 = vst [vmem:[#allocation3 + $0x50] sm:$0xff] %v1340
        %1527 = vst [vmem:[#allocation3 + $0x98] sm:$0xff] %v1352
        %1528 = vst [vmem:[#allocation3 + $0xe0] sm:$0xff] %v1364
        %1529 = vst [vmem:[#allocation3 + $0x128] sm:$0xff] %v1376
        %1530 = vst [vmem:[#allocation3 + $0x170] sm:$0xff] %v1388
        %1531 = vst [vmem:[#allocation3 + $0x1b8] sm:$0xff] %v1400
        %1532 = vst [vmem:[#allocation3 + $0x200] sm:$0xff] %v1412
        %1533 = vst [vmem:[#allocation3 + $0x248] sm:$0xff] %v1424
        %1534 = vst [vmem:[#allocation3 + $0x290] sm:$0xff] %v1436
        %1535 = vst [vmem:[#allocation3 + $0x2d8] sm:$0xff] %v1448
        %1536 = vst [vmem:[#allocation3 + $0x320] sm:$0xff] %v1460
        %1537 = vst [vmem:[#allocation3 + $0x368] sm:$0xff] %v1472
        %1538 = vst [vmem:[#allocation3 + $0x3b0] sm:$0xff] %v1484
        %1539 = vst [vmem:[#allocation3 + $0x3f8] sm:$0xff] %v1496
        %1540 = vst [vmem:[#allocation3 + $0x440] sm:$0xff] %v1508
        %v1541 = vld [vmem:[#allocation2] sm:$0xe]
        %v1542 = vld [vmem:[#allocation2 + $0x4] sm:$0xf]
        %v1543 = vld [vmem:[#allocation2 + $0x8] sm:$0x1]
        %v1544 = vld [vmem:[#allocation2 + $0xc] sm:$0xe]
        %v1545 = vld [vmem:[#allocation2 + $0x10] sm:$0xf]
        %v1546 = vld [vmem:[#allocation2 + $0x14] sm:$0x1]
        %v1547 = vld [vmem:[#allocation2 + $0x18] sm:$0xe]
        %v1548 = vld [vmem:[#allocation2 + $0x1c] sm:$0xf]
        %v1549 = vld [vmem:[#allocation2 + $0x20] sm:$0x1]
        %v1550 = vld [vmem:[#allocation2 + $0x24] sm:$0xe]
        %v1551 = vld [vmem:[#allocation2 + $0x28] sm:$0xf]
        %v1552 = vld [vmem:[#allocation2 + $0x2c] sm:$0x1]
        %v1553 = vld [vmem:[#allocation2 + $0x30] sm:$0xe]
        %v1554 = vld [vmem:[#allocation2 + $0x34] sm:$0xf]
        %v1555 = vld [vmem:[#allocation2 + $0x38] sm:$0x1]
        %v1556 = vld [vmem:[#allocation2 + $0x3c] sm:$0xe]
        %v1557 = vld [vmem:[#allocation2 + $0x40] sm:$0xf]
        %v1558 = vld [vmem:[#allocation2 + $0x44] sm:$0x1]
        %v1559 = vld [vmem:[#allocation2 + $0x48] sm:$0xe]
        %v1560 = vld [vmem:[#allocation2 + $0x4c] sm:$0xf]
        %v1561 = vld [vmem:[#allocation2 + $0x50] sm:$0x1]
        %v1562 = vld [vmem:[#allocation2 + $0x54] sm:$0xe]
        %v1563 = vld [vmem:[#allocation2 + $0x58] sm:$0xf]
        %v1564 = vld [vmem:[#allocation2 + $0x5c] sm:$0x1]
        %v1565 = vld [vmem:[#allocation2 + $0x60] sm:$0xe]
        %v1566 = vld [vmem:[#allocation2 + $0x64] sm:$0xf]
        %v1567 = vld [vmem:[#allocation2 + $0x68] sm:$0x1]
        %v1568 = vld [vmem:[#allocation2 + $0x6c] sm:$0xe]
        %v1569 = vld [vmem:[#allocation2 + $0x70] sm:$0xf]
        %v1570 = vld [vmem:[#allocation2 + $0x74] sm:$0x1]
        %v1571 = vld [vmem:[#allocation2 + $0x78] sm:$0xe]
        %v1572 = vld [vmem:[#allocation2 + $0x7c] sm:$0xf]
        %v1573 = vld [vmem:[#allocation2 + $0x80] sm:$0x1]
        %v1574 = vld [vmem:[#allocation2 + $0x84] sm:$0xe]
        %v1575 = vld [vmem:[#allocation2 + $0x88] sm:$0xf]
        %v1576 = vld [vmem:[#allocation2 + $0x8c] sm:$0x1]
        %v1577 = vld [vmem:[#allocation2 + $0x90] sm:$0xe]
        %v1578 = vld [vmem:[#allocation2 + $0x94] sm:$0xf]
        %v1579 = vld [vmem:[#allocation2 + $0x98] sm:$0x1]
        %v1580 = vld [vmem:[#allocation2 + $0x9c] sm:$0xe]
        %v1581 = vld [vmem:[#allocation2 + $0xa0] sm:$0xf]
        %v1582 = vld [vmem:[#allocation2 + $0xa4] sm:$0x1]
        %v1583 = vld [vmem:[#allocation2 + $0xa8] sm:$0xe]
        %v1584 = vld [vmem:[#allocation2 + $0xac] sm:$0xf]
        %v1585 = vld [vmem:[#allocation2 + $0xb0] sm:$0x1]
        %v1586 = vld [vmem:[#allocation2 + $0xb4] sm:$0xe]
        %v1587 = vld [vmem:[#allocation2 + $0xb8] sm:$0xf]
        %v1588 = vld [vmem:[#allocation2 + $0xbc] sm:$0x1]
        %v1637 = vunpack.c.l.b16 %v1541
        %v1638 = vunpack.c.l.b16 %v1542
        %v1639 = vunpack.c.l.b16 %v1543
        %v1640 = vunpack.c.l.b16 %v1544
        %v1641 = vunpack.c.l.b16 %v1545
        %v1642 = vunpack.c.l.b16 %v1546
        %v1643 = vunpack.c.l.b16 %v1547
        %v1644 = vunpack.c.l.b16 %v1548
        %v1645 = vunpack.c.l.b16 %v1549
        %v1646 = vunpack.c.l.b16 %v1550
        %v1647 = vunpack.c.l.b16 %v1551
        %v1648 = vunpack.c.l.b16 %v1552
        %v1649 = vunpack.c.l.b16 %v1553
        %v1650 = vunpack.c.l.b16 %v1554
        %v1651 = vunpack.c.l.b16 %v1555
        %v1652 = vunpack.c.l.b16 %v1556
        %v1653 = vunpack.c.l.b16 %v1557
        %v1654 = vunpack.c.l.b16 %v1558
        %v1655 = vunpack.c.l.b16 %v1559
        %v1656 = vunpack.c.l.b16 %v1560
        %v1657 = vunpack.c.l.b16 %v1561
        %v1658 = vunpack.c.l.b16 %v1562
        %v1659 = vunpack.c.l.b16 %v1563
        %v1660 = vunpack.c.l.b16 %v1564
        %v1661 = vunpack.c.l.b16 %v1565
        %v1662 = vunpack.c.l.b16 %v1566
        %v1663 = vunpack.c.l.b16 %v1567
        %v1664 = vunpack.c.l.b16 %v1568
        %v1665 = vunpack.c.l.b16 %v1569
        %v1666 = vunpack.c.l.b16 %v1570
        %v1667 = vunpack.c.l.b16 %v1571
        %v1668 = vunpack.c.l.b16 %v1572
        %v1669 = vunpack.c.l.b16 %v1573
        %v1670 = vunpack.c.l.b16 %v1574
        %v1671 = vunpack.c.l.b16 %v1575
        %v1672 = vunpack.c.l.b16 %v1576
        %v1673 = vunpack.c.l.b16 %v1577
        %v1674 = vunpack.c.l.b16 %v1578
        %v1675 = vunpack.c.l.b16 %v1579
        %v1676 = vunpack.c.l.b16 %v1580
        %v1677 = vunpack.c.l.b16 %v1581
        %v1678 = vunpack.c.l.b16 %v1582
        %v1679 = vunpack.c.l.b16 %v1583
        %v1680 = vunpack.c.l.b16 %v1584
        %v1681 = vunpack.c.l.b16 %v1585
        %v1682 = vunpack.c.l.b16 %v1586
        %v1683 = vunpack.c.l.b16 %v1587
        %v1684 = vunpack.c.l.b16 %v1588
        %v1685 = vpack.c.b16 %v1638, %v1637
        %v1686 = vpack.c.b16 %v1639, %v1639
        %v1687 = vpack.c.b16 %v1641, %v1640
        %v1688 = vpack.c.b16 %v1642, %v1642
        %v1689 = vpack.c.b16 %v1644, %v1643
        %v1690 = vpack.c.b16 %v1645, %v1645
        %v1691 = vpack.c.b16 %v1647, %v1646
        %v1692 = vpack.c.b16 %v1648, %v1648
        %v1693 = vpack.c.b16 %v1650, %v1649
        %v1694 = vpack.c.b16 %v1651, %v1651
        %v1695 = vpack.c.b16 %v1653, %v1652
        %v1696 = vpack.c.b16 %v1654, %v1654
        %v1697 = vpack.c.b16 %v1656, %v1655
        %v1698 = vpack.c.b16 %v1657, %v1657
        %v1699 = vpack.c.b16 %v1659, %v1658
        %v1700 = vpack.c.b16 %v1660, %v1660
        %v1701 = vpack.c.b16 %v1662, %v1661
        %v1702 = vpack.c.b16 %v1663, %v1663
        %v1703 = vpack.c.b16 %v1665, %v1664
        %v1704 = vpack.c.b16 %v1666, %v1666
        %v1705 = vpack.c.b16 %v1668, %v1667
        %v1706 = vpack.c.b16 %v1669, %v1669
        %v1707 = vpack.c.b16 %v1671, %v1670
        %v1708 = vpack.c.b16 %v1672, %v1672
        %v1709 = vpack.c.b16 %v1674, %v1673
        %v1710 = vpack.c.b16 %v1675, %v1675
        %v1711 = vpack.c.b16 %v1677, %v1676
        %v1712 = vpack.c.b16 %v1678, %v1678
        %v1713 = vpack.c.b16 %v1680, %v1679
        %v1714 = vpack.c.b16 %v1681, %v1681
        %v1715 = vpack.c.b16 %v1683, %v1682
        %v1716 = vpack.c.b16 %v1684, %v1684
        %vm1717 = vcmask 1046528
        %v1718 = vrot.slane %v1685, 1
        %v1719 = vrot.slane %v1686, 1
        %v1720 = vsel %vm1717, %v1718, %v1719
        %v1721 = vrot.slane %v1687, 1
        %v1722 = vrot.slane %v1688, 1
        %v1723 = vsel %vm1717, %v1721, %v1722
        %v1724 = vrot.slane %v1689, 1
        %v1725 = vrot.slane %v1690, 1
        %v1726 = vsel %vm1717, %v1724, %v1725
        %v1727 = vrot.slane %v1691, 1
        %v1728 = vrot.slane %v1692, 1
        %v1729 = vsel %vm1717, %v1727, %v1728
        %v1730 = vrot.slane %v1693, 1
        %v1731 = vrot.slane %v1694, 1
        %v1732 = vsel %vm1717, %v1730, %v1731
        %v1733 = vrot.slane %v1695, 1
        %v1734 = vrot.slane %v1696, 1
        %v1735 = vsel %vm1717, %v1733, %v1734
        %v1736 = vrot.slane %v1697, 1
        %v1737 = vrot.slane %v1698, 1
        %v1738 = vsel %vm1717, %v1736, %v1737
        %v1739 = vrot.slane %v1699, 1
        %v1740 = vrot.slane %v1700, 1
        %v1741 = vsel %vm1717, %v1739, %v1740
        %v1742 = vrot.slane %v1701, 1
        %v1743 = vrot.slane %v1702, 1
        %v1744 = vsel %vm1717, %v1742, %v1743
        %v1745 = vrot.slane %v1703, 1
        %v1746 = vrot.slane %v1704, 1
        %v1747 = vsel %vm1717, %v1745, %v1746
        %v1748 = vrot.slane %v1705, 1
        %v1749 = vrot.slane %v1706, 1
        %v1750 = vsel %vm1717, %v1748, %v1749
        %v1751 = vrot.slane %v1707, 1
        %v1752 = vrot.slane %v1708, 1
        %v1753 = vsel %vm1717, %v1751, %v1752
        %v1754 = vrot.slane %v1709, 1
        %v1755 = vrot.slane %v1710, 1
        %v1756 = vsel %vm1717, %v1754, %v1755
        %v1757 = vrot.slane %v1711, 1
        %v1758 = vrot.slane %v1712, 1
        %v1759 = vsel %vm1717, %v1757, %v1758
        %v1760 = vrot.slane %v1713, 1
        %v1761 = vrot.slane %v1714, 1
        %v1762 = vsel %vm1717, %v1760, %v1761
        %v1763 = vrot.slane %v1715, 1
        %v1764 = vrot.slane %v1716, 1
        %v1765 = vsel %vm1717, %v1763, %v1764
        %1782 = vst [vmem:[#allocation3 + $0x10] sm:$0xff] %v1720
        %1783 = vst [vmem:[#allocation3 + $0x58] sm:$0xff] %v1723
        %1784 = vst [vmem:[#allocation3 + $0xa0] sm:$0xff] %v1726
        %1785 = vst [vmem:[#allocation3 + $0xe8] sm:$0xff] %v1729
        %1786 = vst [vmem:[#allocation3 + $0x130] sm:$0xff] %v1732
        %1787 = vst [vmem:[#allocation3 + $0x178] sm:$0xff] %v1735
        %1788 = vst [vmem:[#allocation3 + $0x1c0] sm:$0xff] %v1738
        %1789 = vst [vmem:[#allocation3 + $0x208] sm:$0xff] %v1741
        %1790 = vst [vmem:[#allocation3 + $0x250] sm:$0xff] %v1744
        %1791 = vst [vmem:[#allocation3 + $0x298] sm:$0xff] %v1747
        %1792 = vst [vmem:[#allocation3 + $0x2e0] sm:$0xff] %v1750
        %1793 = vst [vmem:[#allocation3 + $0x328] sm:$0xff] %v1753
        %1794 = vst [vmem:[#allocation3 + $0x370] sm:$0xff] %v1756
        %1795 = vst [vmem:[#allocation3 + $0x3b8] sm:$0xff] %v1759
        %1796 = vst [vmem:[#allocation3 + $0x400] sm:$0xff] %v1762
        %1797 = vst [vmem:[#allocation3 + $0x448] sm:$0xff] %v1765
        %v1798 = vld [vmem:[%s670] sm:$0xf]
        %v1799 = vld [vmem:[%s670 + $0x4] sm:$0xf]
        %v1800 = vld [vmem:[%s670 + $0xc] sm:$0xf]
        %v1801 = vld [vmem:[%s670 + $0x10] sm:$0xf]
        %v1802 = vld [vmem:[%s670 + $0x18] sm:$0xf]
        %v1803 = vld [vmem:[%s670 + $0x1c] sm:$0xf]
        %v1804 = vld [vmem:[%s670 + $0x24] sm:$0xf]
        %v1805 = vld [vmem:[%s670 + $0x28] sm:$0xf]
        %v1806 = vld [vmem:[%s670 + $0x30] sm:$0xf]
        %v1807 = vld [vmem:[%s670 + $0x34] sm:$0xf]
        %v1808 = vld [vmem:[%s670 + $0x3c] sm:$0xf]
        %v1809 = vld [vmem:[%s670 + $0x40] sm:$0xf]
        %v1810 = vld [vmem:[%s670 + $0x48] sm:$0xf]
        %v1811 = vld [vmem:[%s670 + $0x4c] sm:$0xf]
        %v1812 = vld [vmem:[%s670 + $0x54] sm:$0xf]
        %v1813 = vld [vmem:[%s670 + $0x58] sm:$0xf]
        %v1814 = vld [vmem:[%s670 + $0x60] sm:$0xf]
        %v1815 = vld [vmem:[%s670 + $0x64] sm:$0xf]
        %v1816 = vld [vmem:[%s670 + $0x6c] sm:$0xf]
        %v1817 = vld [vmem:[%s670 + $0x70] sm:$0xf]
        %v1818 = vld [vmem:[%s670 + $0x78] sm:$0xf]
        %v1819 = vld [vmem:[%s670 + $0x7c] sm:$0xf]
        %v1820 = vld [vmem:[%s670 + $0x84] sm:$0xf]
        %v1821 = vld [vmem:[%s670 + $0x88] sm:$0xf]
        %v1822 = vld [vmem:[%s670 + $0x90] sm:$0xf]
        %v1823 = vld [vmem:[%s670 + $0x94] sm:$0xf]
        %v1824 = vld [vmem:[%s670 + $0x9c] sm:$0xf]
        %v1825 = vld [vmem:[%s670 + $0xa0] sm:$0xf]
        %v1826 = vld [vmem:[%s670 + $0xa8] sm:$0xf]
        %v1827 = vld [vmem:[%s670 + $0xac] sm:$0xf]
        %v1828 = vld [vmem:[%s670 + $0xb4] sm:$0xf]
        %v1829 = vld [vmem:[%s670 + $0xb8] sm:$0xf]
        %v1862 = vunpack.c.l.b16 %v1798
        %v1863 = vunpack.c.l.b16 %v1799
        %v1864 = vunpack.c.l.b16 %v1800
        %v1865 = vunpack.c.l.b16 %v1801
        %v1866 = vunpack.c.l.b16 %v1802
        %v1867 = vunpack.c.l.b16 %v1803
        %v1868 = vunpack.c.l.b16 %v1804
        %v1869 = vunpack.c.l.b16 %v1805
        %v1870 = vunpack.c.l.b16 %v1806
        %v1871 = vunpack.c.l.b16 %v1807
        %v1872 = vunpack.c.l.b16 %v1808
        %v1873 = vunpack.c.l.b16 %v1809
        %v1874 = vunpack.c.l.b16 %v1810
        %v1875 = vunpack.c.l.b16 %v1811
        %v1876 = vunpack.c.l.b16 %v1812
        %v1877 = vunpack.c.l.b16 %v1813
        %v1878 = vunpack.c.l.b16 %v1814
        %v1879 = vunpack.c.l.b16 %v1815
        %v1880 = vunpack.c.l.b16 %v1816
        %v1881 = vunpack.c.l.b16 %v1817
        %v1882 = vunpack.c.l.b16 %v1818
        %v1883 = vunpack.c.l.b16 %v1819
        %v1884 = vunpack.c.l.b16 %v1820
        %v1885 = vunpack.c.l.b16 %v1821
        %v1886 = vunpack.c.l.b16 %v1822
        %v1887 = vunpack.c.l.b16 %v1823
        %v1888 = vunpack.c.l.b16 %v1824
        %v1889 = vunpack.c.l.b16 %v1825
        %v1890 = vunpack.c.l.b16 %v1826
        %v1891 = vunpack.c.l.b16 %v1827
        %v1892 = vunpack.c.l.b16 %v1828
        %v1893 = vunpack.c.l.b16 %v1829
        %v1894 = vpack.c.b16 %v1863, %v1862
        %v1895 = vpack.c.b16 %v1865, %v1864
        %v1896 = vpack.c.b16 %v1867, %v1866
        %v1897 = vpack.c.b16 %v1869, %v1868
        %v1898 = vpack.c.b16 %v1871, %v1870
        %v1899 = vpack.c.b16 %v1873, %v1872
        %v1900 = vpack.c.b16 %v1875, %v1874
        %v1901 = vpack.c.b16 %v1877, %v1876
        %v1902 = vpack.c.b16 %v1879, %v1878
        %v1903 = vpack.c.b16 %v1881, %v1880
        %v1904 = vpack.c.b16 %v1883, %v1882
        %v1905 = vpack.c.b16 %v1885, %v1884
        %v1906 = vpack.c.b16 %v1887, %v1886
        %v1907 = vpack.c.b16 %v1889, %v1888
        %v1908 = vpack.c.b16 %v1891, %v1890
        %v1909 = vpack.c.b16 %v1893, %v1892
        %1926 = vst [vmem:[#allocation3 + $0x18] sm:$0xff] %v1894
        %1927 = vst [vmem:[#allocation3 + $0x60] sm:$0xff] %v1895
        %1928 = vst [vmem:[#allocation3 + $0xa8] sm:$0xff] %v1896
        %1929 = vst [vmem:[#allocation3 + $0xf0] sm:$0xff] %v1897
        %1930 = vst [vmem:[#allocation3 + $0x138] sm:$0xff] %v1898
        %1931 = vst [vmem:[#allocation3 + $0x180] sm:$0xff] %v1899
        %1932 = vst [vmem:[#allocation3 + $0x1c8] sm:$0xff] %v1900
        %1933 = vst [vmem:[#allocation3 + $0x210] sm:$0xff] %v1901
        %1934 = vst [vmem:[#allocation3 + $0x258] sm:$0xff] %v1902
        %1935 = vst [vmem:[#allocation3 + $0x2a0] sm:$0xff] %v1903
        %1936 = vst [vmem:[#allocation3 + $0x2e8] sm:$0xff] %v1904
        %1937 = vst [vmem:[#allocation3 + $0x330] sm:$0xff] %v1905
        %1938 = vst [vmem:[#allocation3 + $0x378] sm:$0xff] %v1906
        %1939 = vst [vmem:[#allocation3 + $0x3c0] sm:$0xff] %v1907
        %1940 = vst [vmem:[#allocation3 + $0x408] sm:$0xff] %v1908
        %1941 = vst [vmem:[#allocation3 + $0x450] sm:$0xff] %v1909
        %v1942 = vld [vmem:[%s670] sm:$0xf]
        %v1943 = vld [vmem:[%s670 + $0x4] sm:$0xf]
        %v1944 = vld [vmem:[%s670 + $0x8] sm:$0x1]
        %v1945 = vld [vmem:[%s670 + $0xc] sm:$0xf]
        %v1946 = vld [vmem:[%s670 + $0x10] sm:$0xf]
        %v1947 = vld [vmem:[%s670 + $0x14] sm:$0x1]
        %v1948 = vld [vmem:[%s670 + $0x18] sm:$0xf]
        %v1949 = vld [vmem:[%s670 + $0x1c] sm:$0xf]
        %v1950 = vld [vmem:[%s670 + $0x20] sm:$0x1]
        %v1951 = vld [vmem:[%s670 + $0x24] sm:$0xf]
        %v1952 = vld [vmem:[%s670 + $0x28] sm:$0xf]
        %v1953 = vld [vmem:[%s670 + $0x2c] sm:$0x1]
        %v1954 = vld [vmem:[%s670 + $0x30] sm:$0xf]
        %v1955 = vld [vmem:[%s670 + $0x34] sm:$0xf]
        %v1956 = vld [vmem:[%s670 + $0x38] sm:$0x1]
        %v1957 = vld [vmem:[%s670 + $0x3c] sm:$0xf]
        %v1958 = vld [vmem:[%s670 + $0x40] sm:$0xf]
        %v1959 = vld [vmem:[%s670 + $0x44] sm:$0x1]
        %v1960 = vld [vmem:[%s670 + $0x48] sm:$0xf]
        %v1961 = vld [vmem:[%s670 + $0x4c] sm:$0xf]
        %v1962 = vld [vmem:[%s670 + $0x50] sm:$0x1]
        %v1963 = vld [vmem:[%s670 + $0x54] sm:$0xf]
        %v1964 = vld [vmem:[%s670 + $0x58] sm:$0xf]
        %v1965 = vld [vmem:[%s670 + $0x5c] sm:$0x1]
        %v1966 = vld [vmem:[%s670 + $0x60] sm:$0xf]
        %v1967 = vld [vmem:[%s670 + $0x64] sm:$0xf]
        %v1968 = vld [vmem:[%s670 + $0x68] sm:$0x1]
        %v1969 = vld [vmem:[%s670 + $0x6c] sm:$0xf]
        %v1970 = vld [vmem:[%s670 + $0x70] sm:$0xf]
        %v1971 = vld [vmem:[%s670 + $0x74] sm:$0x1]
        %v1972 = vld [vmem:[%s670 + $0x78] sm:$0xf]
        %v1973 = vld [vmem:[%s670 + $0x7c] sm:$0xf]
        %v1974 = vld [vmem:[%s670 + $0x80] sm:$0x1]
        %v1975 = vld [vmem:[%s670 + $0x84] sm:$0xf]
        %v1976 = vld [vmem:[%s670 + $0x88] sm:$0xf]
        %v1977 = vld [vmem:[%s670 + $0x8c] sm:$0x1]
        %v1978 = vld [vmem:[%s670 + $0x90] sm:$0xf]
        %v1979 = vld [vmem:[%s670 + $0x94] sm:$0xf]
        %v1980 = vld [vmem:[%s670 + $0x98] sm:$0x1]
        %v1981 = vld [vmem:[%s670 + $0x9c] sm:$0xf]
        %v1982 = vld [vmem:[%s670 + $0xa0] sm:$0xf]
        %v1983 = vld [vmem:[%s670 + $0xa4] sm:$0x1]
        %v1984 = vld [vmem:[%s670 + $0xa8] sm:$0xf]
        %v1985 = vld [vmem:[%s670 + $0xac] sm:$0xf]
        %v1986 = vld [vmem:[%s670 + $0xb0] sm:$0x1]
        %v1987 = vld [vmem:[%s670 + $0xb4] sm:$0xf]
        %v1988 = vld [vmem:[%s670 + $0xb8] sm:$0xf]
        %v1989 = vld [vmem:[%s670 + $0xbc] sm:$0x1]
        %v2038 = vunpack.c.l.b16 %v1942
        %v2039 = vunpack.c.l.b16 %v1943
        %v2040 = vunpack.c.l.b16 %v1944
        %v2041 = vunpack.c.l.b16 %v1945
        %v2042 = vunpack.c.l.b16 %v1946
        %v2043 = vunpack.c.l.b16 %v1947
        %v2044 = vunpack.c.l.b16 %v1948
        %v2045 = vunpack.c.l.b16 %v1949
        %v2046 = vunpack.c.l.b16 %v1950
        %v2047 = vunpack.c.l.b16 %v1951
        %v2048 = vunpack.c.l.b16 %v1952
        %v2049 = vunpack.c.l.b16 %v1953
        %v2050 = vunpack.c.l.b16 %v1954
        %v2051 = vunpack.c.l.b16 %v1955
        %v2052 = vunpack.c.l.b16 %v1956
        %v2053 = vunpack.c.l.b16 %v1957
        %v2054 = vunpack.c.l.b16 %v1958
        %v2055 = vunpack.c.l.b16 %v1959
        %v2056 = vunpack.c.l.b16 %v1960
        %v2057 = vunpack.c.l.b16 %v1961
        %v2058 = vunpack.c.l.b16 %v1962
        %v2059 = vunpack.c.l.b16 %v1963
        %v2060 = vunpack.c.l.b16 %v1964
        %v2061 = vunpack.c.l.b16 %v1965
        %v2062 = vunpack.c.l.b16 %v1966
        %v2063 = vunpack.c.l.b16 %v1967
        %v2064 = vunpack.c.l.b16 %v1968
        %v2065 = vunpack.c.l.b16 %v1969
        %v2066 = vunpack.c.l.b16 %v1970
        %v2067 = vunpack.c.l.b16 %v1971
        %v2068 = vunpack.c.l.b16 %v1972
        %v2069 = vunpack.c.l.b16 %v1973
        %v2070 = vunpack.c.l.b16 %v1974
        %v2071 = vunpack.c.l.b16 %v1975
        %v2072 = vunpack.c.l.b16 %v1976
        %v2073 = vunpack.c.l.b16 %v1977
        %v2074 = vunpack.c.l.b16 %v1978
        %v2075 = vunpack.c.l.b16 %v1979
        %v2076 = vunpack.c.l.b16 %v1980
        %v2077 = vunpack.c.l.b16 %v1981
        %v2078 = vunpack.c.l.b16 %v1982
        %v2079 = vunpack.c.l.b16 %v1983
        %v2080 = vunpack.c.l.b16 %v1984
        %v2081 = vunpack.c.l.b16 %v1985
        %v2082 = vunpack.c.l.b16 %v1986
        %v2083 = vunpack.c.l.b16 %v1987
        %v2084 = vunpack.c.l.b16 %v1988
        %v2085 = vunpack.c.l.b16 %v1989
        %v2086 = vpack.c.b16 %v2039, %v2038
        %v2087 = vpack.c.b16 %v2040, %v2040
        %v2088 = vpack.c.b16 %v2042, %v2041
        %v2089 = vpack.c.b16 %v2043, %v2043
        %v2090 = vpack.c.b16 %v2045, %v2044
        %v2091 = vpack.c.b16 %v2046, %v2046
        %v2092 = vpack.c.b16 %v2048, %v2047
        %v2093 = vpack.c.b16 %v2049, %v2049
        %v2094 = vpack.c.b16 %v2051, %v2050
        %v2095 = vpack.c.b16 %v2052, %v2052
        %v2096 = vpack.c.b16 %v2054, %v2053
        %v2097 = vpack.c.b16 %v2055, %v2055
        %v2098 = vpack.c.b16 %v2057, %v2056
        %v2099 = vpack.c.b16 %v2058, %v2058
        %v2100 = vpack.c.b16 %v2060, %v2059
        %v2101 = vpack.c.b16 %v2061, %v2061
        %v2102 = vpack.c.b16 %v2063, %v2062
        %v2103 = vpack.c.b16 %v2064, %v2064
        %v2104 = vpack.c.b16 %v2066, %v2065
        %v2105 = vpack.c.b16 %v2067, %v2067
        %v2106 = vpack.c.b16 %v2069, %v2068
        %v2107 = vpack.c.b16 %v2070, %v2070
        %v2108 = vpack.c.b16 %v2072, %v2071
        %v2109 = vpack.c.b16 %v2073, %v2073
        %v2110 = vpack.c.b16 %v2075, %v2074
        %v2111 = vpack.c.b16 %v2076, %v2076
        %v2112 = vpack.c.b16 %v2078, %v2077
        %v2113 = vpack.c.b16 %v2079, %v2079
        %v2114 = vpack.c.b16 %v2081, %v2080
        %v2115 = vpack.c.b16 %v2082, %v2082
        %v2116 = vpack.c.b16 %v2084, %v2083
        %v2117 = vpack.c.b16 %v2085, %v2085
        %v2119 = vshrl.u32 %v2086, 16
        %v2121 = vshll.u32 %v2086, 16
        %v2123 = vrot.slane %v2121, 1
        %v2124 = vor.u32 %v2119, %v2123
        %v2126 = vshll.u32 %v2087, 16
        %v2128 = vrot.slane %v2126, 1
        %v2129 = vsel %vm1316, %v2124, %v2128
        %v2131 = vshrl.u32 %v2088, 16
        %v2133 = vshll.u32 %v2088, 16
        %v2135 = vrot.slane %v2133, 1
        %v2136 = vor.u32 %v2131, %v2135
        %v2138 = vshll.u32 %v2089, 16
        %v2140 = vrot.slane %v2138, 1
        %v2141 = vsel %vm1316, %v2136, %v2140
        %v2143 = vshrl.u32 %v2090, 16
        %v2145 = vshll.u32 %v2090, 16
        %v2147 = vrot.slane %v2145, 1
        %v2148 = vor.u32 %v2143, %v2147
        %v2150 = vshll.u32 %v2091, 16
        %v2152 = vrot.slane %v2150, 1
        %v2153 = vsel %vm1316, %v2148, %v2152
        %v2155 = vshrl.u32 %v2092, 16
        %v2157 = vshll.u32 %v2092, 16
        %v2159 = vrot.slane %v2157, 1
        %v2160 = vor.u32 %v2155, %v2159
        %v2162 = vshll.u32 %v2093, 16
        %v2164 = vrot.slane %v2162, 1
        %v2165 = vsel %vm1316, %v2160, %v2164
        %v2167 = vshrl.u32 %v2094, 16
        %v2169 = vshll.u32 %v2094, 16
        %v2171 = vrot.slane %v2169, 1
        %v2172 = vor.u32 %v2167, %v2171
        %v2174 = vshll.u32 %v2095, 16
        %v2176 = vrot.slane %v2174, 1
        %v2177 = vsel %vm1316, %v2172, %v2176
        %v2179 = vshrl.u32 %v2096, 16
        %v2181 = vshll.u32 %v2096, 16
        %v2183 = vrot.slane %v2181, 1
        %v2184 = vor.u32 %v2179, %v2183
        %v2186 = vshll.u32 %v2097, 16
        %v2188 = vrot.slane %v2186, 1
        %v2189 = vsel %vm1316, %v2184, %v2188
        %v2191 = vshrl.u32 %v2098, 16
        %v2193 = vshll.u32 %v2098, 16
        %v2195 = vrot.slane %v2193, 1
        %v2196 = vor.u32 %v2191, %v2195
        %v2198 = vshll.u32 %v2099, 16
        %v2200 = vrot.slane %v2198, 1
        %v2201 = vsel %vm1316, %v2196, %v2200
        %v2203 = vshrl.u32 %v2100, 16
        %v2205 = vshll.u32 %v2100, 16
        %v2207 = vrot.slane %v2205, 1
        %v2208 = vor.u32 %v2203, %v2207
        %v2210 = vshll.u32 %v2101, 16
        %v2212 = vrot.slane %v2210, 1
        %v2213 = vsel %vm1316, %v2208, %v2212
        %v2215 = vshrl.u32 %v2102, 16
        %v2217 = vshll.u32 %v2102, 16
        %v2219 = vrot.slane %v2217, 1
        %v2220 = vor.u32 %v2215, %v2219
        %v2222 = vshll.u32 %v2103, 16
        %v2224 = vrot.slane %v2222, 1
        %v2225 = vsel %vm1316, %v2220, %v2224
        %v2227 = vshrl.u32 %v2104, 16
        %v2229 = vshll.u32 %v2104, 16
        %v2231 = vrot.slane %v2229, 1
        %v2232 = vor.u32 %v2227, %v2231
        %v2234 = vshll.u32 %v2105, 16
        %v2236 = vrot.slane %v2234, 1
        %v2237 = vsel %vm1316, %v2232, %v2236
        %v2239 = vshrl.u32 %v2106, 16
        %v2241 = vshll.u32 %v2106, 16
        %v2243 = vrot.slane %v2241, 1
        %v2244 = vor.u32 %v2239, %v2243
        %v2246 = vshll.u32 %v2107, 16
        %v2248 = vrot.slane %v2246, 1
        %v2249 = vsel %vm1316, %v2244, %v2248
        %v2251 = vshrl.u32 %v2108, 16
        %v2253 = vshll.u32 %v2108, 16
        %v2255 = vrot.slane %v2253, 1
        %v2256 = vor.u32 %v2251, %v2255
        %v2258 = vshll.u32 %v2109, 16
        %v2260 = vrot.slane %v2258, 1
        %v2261 = vsel %vm1316, %v2256, %v2260
        %v2263 = vshrl.u32 %v2110, 16
        %v2265 = vshll.u32 %v2110, 16
        %v2267 = vrot.slane %v2265, 1
        %v2268 = vor.u32 %v2263, %v2267
        %v2270 = vshll.u32 %v2111, 16
        %v2272 = vrot.slane %v2270, 1
        %v2273 = vsel %vm1316, %v2268, %v2272
        %v2275 = vshrl.u32 %v2112, 16
        %v2277 = vshll.u32 %v2112, 16
        %v2279 = vrot.slane %v2277, 1
        %v2280 = vor.u32 %v2275, %v2279
        %v2282 = vshll.u32 %v2113, 16
        %v2284 = vrot.slane %v2282, 1
        %v2285 = vsel %vm1316, %v2280, %v2284
        %v2287 = vshrl.u32 %v2114, 16
        %v2289 = vshll.u32 %v2114, 16
        %v2291 = vrot.slane %v2289, 1
        %v2292 = vor.u32 %v2287, %v2291
        %v2294 = vshll.u32 %v2115, 16
        %v2296 = vrot.slane %v2294, 1
        %v2297 = vsel %vm1316, %v2292, %v2296
        %v2299 = vshrl.u32 %v2116, 16
        %v2301 = vshll.u32 %v2116, 16
        %v2303 = vrot.slane %v2301, 1
        %v2304 = vor.u32 %v2299, %v2303
        %v2306 = vshll.u32 %v2117, 16
        %v2308 = vrot.slane %v2306, 1
        %v2309 = vsel %vm1316, %v2304, %v2308
        %2326 = vst [vmem:[#allocation3 + $0x20] sm:$0xff] %v2129
        %2327 = vst [vmem:[#allocation3 + $0x68] sm:$0xff] %v2141
        %2328 = vst [vmem:[#allocation3 + $0xb0] sm:$0xff] %v2153
        %2329 = vst [vmem:[#allocation3 + $0xf8] sm:$0xff] %v2165
        %2330 = vst [vmem:[#allocation3 + $0x140] sm:$0xff] %v2177
        %2331 = vst [vmem:[#allocation3 + $0x188] sm:$0xff] %v2189
        %2332 = vst [vmem:[#allocation3 + $0x1d0] sm:$0xff] %v2201
        %2333 = vst [vmem:[#allocation3 + $0x218] sm:$0xff] %v2213
        %2334 = vst [vmem:[#allocation3 + $0x260] sm:$0xff] %v2225
        %2335 = vst [vmem:[#allocation3 + $0x2a8] sm:$0xff] %v2237
        %2336 = vst [vmem:[#allocation3 + $0x2f0] sm:$0xff] %v2249
        %2337 = vst [vmem:[#allocation3 + $0x338] sm:$0xff] %v2261
        %2338 = vst [vmem:[#allocation3 + $0x380] sm:$0xff] %v2273
        %2339 = vst [vmem:[#allocation3 + $0x3c8] sm:$0xff] %v2285
        %2340 = vst [vmem:[#allocation3 + $0x410] sm:$0xff] %v2297
        %2341 = vst [vmem:[#allocation3 + $0x458] sm:$0xff] %v2309
        %v2342 = vld [vmem:[%s670] sm:$0xe]
        %v2343 = vld [vmem:[%s670 + $0x4] sm:$0xf]
        %v2344 = vld [vmem:[%s670 + $0x8] sm:$0x1]
        %v2345 = vld [vmem:[%s670 + $0xc] sm:$0xe]
        %v2346 = vld [vmem:[%s670 + $0x10] sm:$0xf]
        %v2347 = vld [vmem:[%s670 + $0x14] sm:$0x1]
        %v2348 = vld [vmem:[%s670 + $0x18] sm:$0xe]
        %v2349 = vld [vmem:[%s670 + $0x1c] sm:$0xf]
        %v2350 = vld [vmem:[%s670 + $0x20] sm:$0x1]
        %v2351 = vld [vmem:[%s670 + $0x24] sm:$0xe]
        %v2352 = vld [vmem:[%s670 + $0x28] sm:$0xf]
        %v2353 = vld [vmem:[%s670 + $0x2c] sm:$0x1]
        %v2354 = vld [vmem:[%s670 + $0x30] sm:$0xe]
        %v2355 = vld [vmem:[%s670 + $0x34] sm:$0xf]
        %v2356 = vld [vmem:[%s670 + $0x38] sm:$0x1]
        %v2357 = vld [vmem:[%s670 + $0x3c] sm:$0xe]
        %v2358 = vld [vmem:[%s670 + $0x40] sm:$0xf]
        %v2359 = vld [vmem:[%s670 + $0x44] sm:$0x1]
        %v2360 = vld [vmem:[%s670 + $0x48] sm:$0xe]
        %v2361 = vld [vmem:[%s670 + $0x4c] sm:$0xf]
        %v2362 = vld [vmem:[%s670 + $0x50] sm:$0x1]
        %v2363 = vld [vmem:[%s670 + $0x54] sm:$0xe]
        %v2364 = vld [vmem:[%s670 + $0x58] sm:$0xf]
        %v2365 = vld [vmem:[%s670 + $0x5c] sm:$0x1]
        %v2366 = vld [vmem:[%s670 + $0x60] sm:$0xe]
        %v2367 = vld [vmem:[%s670 + $0x64] sm:$0xf]
        %v2368 = vld [vmem:[%s670 + $0x68] sm:$0x1]
        %v2369 = vld [vmem:[%s670 + $0x6c] sm:$0xe]
        %v2370 = vld [vmem:[%s670 + $0x70] sm:$0xf]
        %v2371 = vld [vmem:[%s670 + $0x74] sm:$0x1]
        %v2372 = vld [vmem:[%s670 + $0x78] sm:$0xe]
        %v2373 = vld [vmem:[%s670 + $0x7c] sm:$0xf]
        %v2374 = vld [vmem:[%s670 + $0x80] sm:$0x1]
        %v2375 = vld [vmem:[%s670 + $0x84] sm:$0xe]
        %v2376 = vld [vmem:[%s670 + $0x88] sm:$0xf]
        %v2377 = vld [vmem:[%s670 + $0x8c] sm:$0x1]
        %v2378 = vld [vmem:[%s670 + $0x90] sm:$0xe]
        %v2379 = vld [vmem:[%s670 + $0x94] sm:$0xf]
        %v2380 = vld [vmem:[%s670 + $0x98] sm:$0x1]
        %v2381 = vld [vmem:[%s670 + $0x9c] sm:$0xe]
        %v2382 = vld [vmem:[%s670 + $0xa0] sm:$0xf]
        %v2383 = vld [vmem:[%s670 + $0xa4] sm:$0x1]
        %v2384 = vld [vmem:[%s670 + $0xa8] sm:$0xe]
        %v2385 = vld [vmem:[%s670 + $0xac] sm:$0xf]
        %v2386 = vld [vmem:[%s670 + $0xb0] sm:$0x1]
        %v2387 = vld [vmem:[%s670 + $0xb4] sm:$0xe]
        %v2388 = vld [vmem:[%s670 + $0xb8] sm:$0xf]
        %v2389 = vld [vmem:[%s670 + $0xbc] sm:$0x1]
        %v2438 = vunpack.c.l.b16 %v2342
        %v2439 = vunpack.c.l.b16 %v2343
        %v2440 = vunpack.c.l.b16 %v2344
        %v2441 = vunpack.c.l.b16 %v2345
        %v2442 = vunpack.c.l.b16 %v2346
        %v2443 = vunpack.c.l.b16 %v2347
        %v2444 = vunpack.c.l.b16 %v2348
        %v2445 = vunpack.c.l.b16 %v2349
        %v2446 = vunpack.c.l.b16 %v2350
        %v2447 = vunpack.c.l.b16 %v2351
        %v2448 = vunpack.c.l.b16 %v2352
        %v2449 = vunpack.c.l.b16 %v2353
        %v2450 = vunpack.c.l.b16 %v2354
        %v2451 = vunpack.c.l.b16 %v2355
        %v2452 = vunpack.c.l.b16 %v2356
        %v2453 = vunpack.c.l.b16 %v2357
        %v2454 = vunpack.c.l.b16 %v2358
        %v2455 = vunpack.c.l.b16 %v2359
        %v2456 = vunpack.c.l.b16 %v2360
        %v2457 = vunpack.c.l.b16 %v2361
        %v2458 = vunpack.c.l.b16 %v2362
        %v2459 = vunpack.c.l.b16 %v2363
        %v2460 = vunpack.c.l.b16 %v2364
        %v2461 = vunpack.c.l.b16 %v2365
        %v2462 = vunpack.c.l.b16 %v2366
        %v2463 = vunpack.c.l.b16 %v2367
        %v2464 = vunpack.c.l.b16 %v2368
        %v2465 = vunpack.c.l.b16 %v2369
        %v2466 = vunpack.c.l.b16 %v2370
        %v2467 = vunpack.c.l.b16 %v2371
        %v2468 = vunpack.c.l.b16 %v2372
        %v2469 = vunpack.c.l.b16 %v2373
        %v2470 = vunpack.c.l.b16 %v2374
        %v2471 = vunpack.c.l.b16 %v2375
        %v2472 = vunpack.c.l.b16 %v2376
        %v2473 = vunpack.c.l.b16 %v2377
        %v2474 = vunpack.c.l.b16 %v2378
        %v2475 = vunpack.c.l.b16 %v2379
        %v2476 = vunpack.c.l.b16 %v2380
        %v2477 = vunpack.c.l.b16 %v2381
        %v2478 = vunpack.c.l.b16 %v2382
        %v2479 = vunpack.c.l.b16 %v2383
        %v2480 = vunpack.c.l.b16 %v2384
        %v2481 = vunpack.c.l.b16 %v2385
        %v2482 = vunpack.c.l.b16 %v2386
        %v2483 = vunpack.c.l.b16 %v2387
        %v2484 = vunpack.c.l.b16 %v2388
        %v2485 = vunpack.c.l.b16 %v2389
        %v2486 = vpack.c.b16 %v2439, %v2438
        %v2487 = vpack.c.b16 %v2440, %v2440
        %v2488 = vpack.c.b16 %v2442, %v2441
        %v2489 = vpack.c.b16 %v2443, %v2443
        %v2490 = vpack.c.b16 %v2445, %v2444
        %v2491 = vpack.c.b16 %v2446, %v2446
        %v2492 = vpack.c.b16 %v2448, %v2447
        %v2493 = vpack.c.b16 %v2449, %v2449
        %v2494 = vpack.c.b16 %v2451, %v2450
        %v2495 = vpack.c.b16 %v2452, %v2452
        %v2496 = vpack.c.b16 %v2454, %v2453
        %v2497 = vpack.c.b16 %v2455, %v2455
        %v2498 = vpack.c.b16 %v2457, %v2456
        %v2499 = vpack.c.b16 %v2458, %v2458
        %v2500 = vpack.c.b16 %v2460, %v2459
        %v2501 = vpack.c.b16 %v2461, %v2461
        %v2502 = vpack.c.b16 %v2463, %v2462
        %v2503 = vpack.c.b16 %v2464, %v2464
        %v2504 = vpack.c.b16 %v2466, %v2465
        %v2505 = vpack.c.b16 %v2467, %v2467
        %v2506 = vpack.c.b16 %v2469, %v2468
        %v2507 = vpack.c.b16 %v2470, %v2470
        %v2508 = vpack.c.b16 %v2472, %v2471
        %v2509 = vpack.c.b16 %v2473, %v2473
        %v2510 = vpack.c.b16 %v2475, %v2474
        %v2511 = vpack.c.b16 %v2476, %v2476
        %v2512 = vpack.c.b16 %v2478, %v2477
        %v2513 = vpack.c.b16 %v2479, %v2479
        %v2514 = vpack.c.b16 %v2481, %v2480
        %v2515 = vpack.c.b16 %v2482, %v2482
        %v2516 = vpack.c.b16 %v2484, %v2483
        %v2517 = vpack.c.b16 %v2485, %v2485
        %v2518 = vrot.slane %v2486, 1
        %v2519 = vrot.slane %v2487, 1
        %v2520 = vsel %vm1717, %v2518, %v2519
        %v2521 = vrot.slane %v2488, 1
        %v2522 = vrot.slane %v2489, 1
        %v2523 = vsel %vm1717, %v2521, %v2522
        %v2524 = vrot.slane %v2490, 1
        %v2525 = vrot.slane %v2491, 1
        %v2526 = vsel %vm1717, %v2524, %v2525
        %v2527 = vrot.slane %v2492, 1
        %v2528 = vrot.slane %v2493, 1
        %v2529 = vsel %vm1717, %v2527, %v2528
        %v2530 = vrot.slane %v2494, 1
        %v2531 = vrot.slane %v2495, 1
        %v2532 = vsel %vm1717, %v2530, %v2531
        %v2533 = vrot.slane %v2496, 1
        %v2534 = vrot.slane %v2497, 1
        %v2535 = vsel %vm1717, %v2533, %v2534
        %v2536 = vrot.slane %v2498, 1
        %v2537 = vrot.slane %v2499, 1
        %v2538 = vsel %vm1717, %v2536, %v2537
        %v2539 = vrot.slane %v2500, 1
        %v2540 = vrot.slane %v2501, 1
        %v2541 = vsel %vm1717, %v2539, %v2540
        %v2542 = vrot.slane %v2502, 1
        %v2543 = vrot.slane %v2503, 1
        %v2544 = vsel %vm1717, %v2542, %v2543
        %v2545 = vrot.slane %v2504, 1
        %v2546 = vrot.slane %v2505, 1
        %v2547 = vsel %vm1717, %v2545, %v2546
        %v2548 = vrot.slane %v2506, 1
        %v2549 = vrot.slane %v2507, 1
        %v2550 = vsel %vm1717, %v2548, %v2549
        %v2551 = vrot.slane %v2508, 1
        %v2552 = vrot.slane %v2509, 1
        %v2553 = vsel %vm1717, %v2551, %v2552
        %v2554 = vrot.slane %v2510, 1
        %v2555 = vrot.slane %v2511, 1
        %v2556 = vsel %vm1717, %v2554, %v2555
        %v2557 = vrot.slane %v2512, 1
        %v2558 = vrot.slane %v2513, 1
        %v2559 = vsel %vm1717, %v2557, %v2558
        %v2560 = vrot.slane %v2514, 1
        %v2561 = vrot.slane %v2515, 1
        %v2562 = vsel %vm1717, %v2560, %v2561
        %v2563 = vrot.slane %v2516, 1
        %v2564 = vrot.slane %v2517, 1
        %v2565 = vsel %vm1717, %v2563, %v2564
        %2582 = vst [vmem:[#allocation3 + $0x28] sm:$0xff] %v2520
        %2583 = vst [vmem:[#allocation3 + $0x70] sm:$0xff] %v2523
        %2584 = vst [vmem:[#allocation3 + $0xb8] sm:$0xff] %v2526
        %2585 = vst [vmem:[#allocation3 + $0x100] sm:$0xff] %v2529
        %2586 = vst [vmem:[#allocation3 + $0x148] sm:$0xff] %v2532
        %2587 = vst [vmem:[#allocation3 + $0x190] sm:$0xff] %v2535
        %2588 = vst [vmem:[#allocation3 + $0x1d8] sm:$0xff] %v2538
        %2589 = vst [vmem:[#allocation3 + $0x220] sm:$0xff] %v2541
        %2590 = vst [vmem:[#allocation3 + $0x268] sm:$0xff] %v2544
        %2591 = vst [vmem:[#allocation3 + $0x2b0] sm:$0xff] %v2547
        %2592 = vst [vmem:[#allocation3 + $0x2f8] sm:$0xff] %v2550
        %2593 = vst [vmem:[#allocation3 + $0x340] sm:$0xff] %v2553
        %2594 = vst [vmem:[#allocation3 + $0x388] sm:$0xff] %v2556
        %2595 = vst [vmem:[#allocation3 + $0x3d0] sm:$0xff] %v2559
        %2596 = vst [vmem:[#allocation3 + $0x418] sm:$0xff] %v2562
        %2597 = vst [vmem:[#allocation3 + $0x460] sm:$0xff] %v2565
        %v2598 = vld [vmem:[%s981] sm:$0xf]
        %v2599 = vld [vmem:[%s981 + $0x4] sm:$0xf]
        %v2600 = vld [vmem:[%s981 + $0xc] sm:$0xf]
        %v2601 = vld [vmem:[%s981 + $0x10] sm:$0xf]
        %v2602 = vld [vmem:[%s981 + $0x18] sm:$0xf]
        %v2603 = vld [vmem:[%s981 + $0x1c] sm:$0xf]
        %v2604 = vld [vmem:[%s981 + $0x24] sm:$0xf]
        %v2605 = vld [vmem:[%s981 + $0x28] sm:$0xf]
        %v2606 = vld [vmem:[%s981 + $0x30] sm:$0xf]
        %v2607 = vld [vmem:[%s981 + $0x34] sm:$0xf]
        %v2608 = vld [vmem:[%s981 + $0x3c] sm:$0xf]
        %v2609 = vld [vmem:[%s981 + $0x40] sm:$0xf]
        %v2610 = vld [vmem:[%s981 + $0x48] sm:$0xf]
        %v2611 = vld [vmem:[%s981 + $0x4c] sm:$0xf]
        %v2612 = vld [vmem:[%s981 + $0x54] sm:$0xf]
        %v2613 = vld [vmem:[%s981 + $0x58] sm:$0xf]
        %v2614 = vld [vmem:[%s981 + $0x60] sm:$0xf]
        %v2615 = vld [vmem:[%s981 + $0x64] sm:$0xf]
        %v2616 = vld [vmem:[%s981 + $0x6c] sm:$0xf]
        %v2617 = vld [vmem:[%s981 + $0x70] sm:$0xf]
        %v2618 = vld [vmem:[%s981 + $0x78] sm:$0xf]
        %v2619 = vld [vmem:[%s981 + $0x7c] sm:$0xf]
        %v2620 = vld [vmem:[%s981 + $0x84] sm:$0xf]
        %v2621 = vld [vmem:[%s981 + $0x88] sm:$0xf]
        %v2622 = vld [vmem:[%s981 + $0x90] sm:$0xf]
        %v2623 = vld [vmem:[%s981 + $0x94] sm:$0xf]
        %v2624 = vld [vmem:[%s981 + $0x9c] sm:$0xf]
        %v2625 = vld [vmem:[%s981 + $0xa0] sm:$0xf]
        %v2626 = vld [vmem:[%s981 + $0xa8] sm:$0xf]
        %v2627 = vld [vmem:[%s981 + $0xac] sm:$0xf]
        %v2628 = vld [vmem:[%s981 + $0xb4] sm:$0xf]
        %v2629 = vld [vmem:[%s981 + $0xb8] sm:$0xf]
        %v2662 = vunpack.c.l.b16 %v2598
        %v2663 = vunpack.c.l.b16 %v2599
        %v2664 = vunpack.c.l.b16 %v2600
        %v2665 = vunpack.c.l.b16 %v2601
        %v2666 = vunpack.c.l.b16 %v2602
        %v2667 = vunpack.c.l.b16 %v2603
        %v2668 = vunpack.c.l.b16 %v2604
        %v2669 = vunpack.c.l.b16 %v2605
        %v2670 = vunpack.c.l.b16 %v2606
        %v2671 = vunpack.c.l.b16 %v2607
        %v2672 = vunpack.c.l.b16 %v2608
        %v2673 = vunpack.c.l.b16 %v2609
        %v2674 = vunpack.c.l.b16 %v2610
        %v2675 = vunpack.c.l.b16 %v2611
        %v2676 = vunpack.c.l.b16 %v2612
        %v2677 = vunpack.c.l.b16 %v2613
        %v2678 = vunpack.c.l.b16 %v2614
        %v2679 = vunpack.c.l.b16 %v2615
        %v2680 = vunpack.c.l.b16 %v2616
        %v2681 = vunpack.c.l.b16 %v2617
        %v2682 = vunpack.c.l.b16 %v2618
        %v2683 = vunpack.c.l.b16 %v2619
        %v2684 = vunpack.c.l.b16 %v2620
        %v2685 = vunpack.c.l.b16 %v2621
        %v2686 = vunpack.c.l.b16 %v2622
        %v2687 = vunpack.c.l.b16 %v2623
        %v2688 = vunpack.c.l.b16 %v2624
        %v2689 = vunpack.c.l.b16 %v2625
        %v2690 = vunpack.c.l.b16 %v2626
        %v2691 = vunpack.c.l.b16 %v2627
        %v2692 = vunpack.c.l.b16 %v2628
        %v2693 = vunpack.c.l.b16 %v2629
        %v2694 = vpack.c.b16 %v2663, %v2662
        %v2695 = vpack.c.b16 %v2665, %v2664
        %v2696 = vpack.c.b16 %v2667, %v2666
        %v2697 = vpack.c.b16 %v2669, %v2668
        %v2698 = vpack.c.b16 %v2671, %v2670
        %v2699 = vpack.c.b16 %v2673, %v2672
        %v2700 = vpack.c.b16 %v2675, %v2674
        %v2701 = vpack.c.b16 %v2677, %v2676
        %v2702 = vpack.c.b16 %v2679, %v2678
        %v2703 = vpack.c.b16 %v2681, %v2680
        %v2704 = vpack.c.b16 %v2683, %v2682
        %v2705 = vpack.c.b16 %v2685, %v2684
        %v2706 = vpack.c.b16 %v2687, %v2686
        %v2707 = vpack.c.b16 %v2689, %v2688
        %v2708 = vpack.c.b16 %v2691, %v2690
        %v2709 = vpack.c.b16 %v2693, %v2692
        %2726 = vst [vmem:[#allocation3 + $0x30] sm:$0xff] %v2694
        %2727 = vst [vmem:[#allocation3 + $0x78] sm:$0xff] %v2695
        %2728 = vst [vmem:[#allocation3 + $0xc0] sm:$0xff] %v2696
        %2729 = vst [vmem:[#allocation3 + $0x108] sm:$0xff] %v2697
        %2730 = vst [vmem:[#allocation3 + $0x150] sm:$0xff] %v2698
        %2731 = vst [vmem:[#allocation3 + $0x198] sm:$0xff] %v2699
        %2732 = vst [vmem:[#allocation3 + $0x1e0] sm:$0xff] %v2700
        %2733 = vst [vmem:[#allocation3 + $0x228] sm:$0xff] %v2701
        %2734 = vst [vmem:[#allocation3 + $0x270] sm:$0xff] %v2702
        %2735 = vst [vmem:[#allocation3 + $0x2b8] sm:$0xff] %v2703
        %2736 = vst [vmem:[#allocation3 + $0x300] sm:$0xff] %v2704
        %2737 = vst [vmem:[#allocation3 + $0x348] sm:$0xff] %v2705
        %2738 = vst [vmem:[#allocation3 + $0x390] sm:$0xff] %v2706
        %2739 = vst [vmem:[#allocation3 + $0x3d8] sm:$0xff] %v2707
        %2740 = vst [vmem:[#allocation3 + $0x420] sm:$0xff] %v2708
        %2741 = vst [vmem:[#allocation3 + $0x468] sm:$0xff] %v2709
        %v2742 = vld [vmem:[%s981] sm:$0xf]
        %v2743 = vld [vmem:[%s981 + $0x4] sm:$0xf]
        %v2744 = vld [vmem:[%s981 + $0x8] sm:$0x1]
        %v2745 = vld [vmem:[%s981 + $0xc] sm:$0xf]
        %v2746 = vld [vmem:[%s981 + $0x10] sm:$0xf]
        %v2747 = vld [vmem:[%s981 + $0x14] sm:$0x1]
        %v2748 = vld [vmem:[%s981 + $0x18] sm:$0xf]
        %v2749 = vld [vmem:[%s981 + $0x1c] sm:$0xf]
        %v2750 = vld [vmem:[%s981 + $0x20] sm:$0x1]
        %v2751 = vld [vmem:[%s981 + $0x24] sm:$0xf]
        %v2752 = vld [vmem:[%s981 + $0x28] sm:$0xf]
        %v2753 = vld [vmem:[%s981 + $0x2c] sm:$0x1]
        %v2754 = vld [vmem:[%s981 + $0x30] sm:$0xf]
        %v2755 = vld [vmem:[%s981 + $0x34] sm:$0xf]
        %v2756 = vld [vmem:[%s981 + $0x38] sm:$0x1]
        %v2757 = vld [vmem:[%s981 + $0x3c] sm:$0xf]
        %v2758 = vld [vmem:[%s981 + $0x40] sm:$0xf]
        %v2759 = vld [vmem:[%s981 + $0x44] sm:$0x1]
        %v2760 = vld [vmem:[%s981 + $0x48] sm:$0xf]
        %v2761 = vld [vmem:[%s981 + $0x4c] sm:$0xf]
        %v2762 = vld [vmem:[%s981 + $0x50] sm:$0x1]
        %v2763 = vld [vmem:[%s981 + $0x54] sm:$0xf]
        %v2764 = vld [vmem:[%s981 + $0x58] sm:$0xf]
        %v2765 = vld [vmem:[%s981 + $0x5c] sm:$0x1]
        %v2766 = vld [vmem:[%s981 + $0x60] sm:$0xf]
        %v2767 = vld [vmem:[%s981 + $0x64] sm:$0xf]
        %v2768 = vld [vmem:[%s981 + $0x68] sm:$0x1]
        %v2769 = vld [vmem:[%s981 + $0x6c] sm:$0xf]
        %v2770 = vld [vmem:[%s981 + $0x70] sm:$0xf]
        %v2771 = vld [vmem:[%s981 + $0x74] sm:$0x1]
        %v2772 = vld [vmem:[%s981 + $0x78] sm:$0xf]
        %v2773 = vld [vmem:[%s981 + $0x7c] sm:$0xf]
        %v2774 = vld [vmem:[%s981 + $0x80] sm:$0x1]
        %v2775 = vld [vmem:[%s981 + $0x84] sm:$0xf]
        %v2776 = vld [vmem:[%s981 + $0x88] sm:$0xf]
        %v2777 = vld [vmem:[%s981 + $0x8c] sm:$0x1]
        %v2778 = vld [vmem:[%s981 + $0x90] sm:$0xf]
        %v2779 = vld [vmem:[%s981 + $0x94] sm:$0xf]
        %v2780 = vld [vmem:[%s981 + $0x98] sm:$0x1]
        %v2781 = vld [vmem:[%s981 + $0x9c] sm:$0xf]
        %v2782 = vld [vmem:[%s981 + $0xa0] sm:$0xf]
        %v2783 = vld [vmem:[%s981 + $0xa4] sm:$0x1]
        %v2784 = vld [vmem:[%s981 + $0xa8] sm:$0xf]
        %v2785 = vld [vmem:[%s981 + $0xac] sm:$0xf]
        %v2786 = vld [vmem:[%s981 + $0xb0] sm:$0x1]
        %v2787 = vld [vmem:[%s981 + $0xb4] sm:$0xf]
        %v2788 = vld [vmem:[%s981 + $0xb8] sm:$0xf]
        %v2789 = vld [vmem:[%s981 + $0xbc] sm:$0x1]
        %v2838 = vunpack.c.l.b16 %v2742
        %v2839 = vunpack.c.l.b16 %v2743
        %v2840 = vunpack.c.l.b16 %v2744
        %v2841 = vunpack.c.l.b16 %v2745
        %v2842 = vunpack.c.l.b16 %v2746
        %v2843 = vunpack.c.l.b16 %v2747
        %v2844 = vunpack.c.l.b16 %v2748
        %v2845 = vunpack.c.l.b16 %v2749
        %v2846 = vunpack.c.l.b16 %v2750
        %v2847 = vunpack.c.l.b16 %v2751
        %v2848 = vunpack.c.l.b16 %v2752
        %v2849 = vunpack.c.l.b16 %v2753
        %v2850 = vunpack.c.l.b16 %v2754
        %v2851 = vunpack.c.l.b16 %v2755
        %v2852 = vunpack.c.l.b16 %v2756
        %v2853 = vunpack.c.l.b16 %v2757
        %v2854 = vunpack.c.l.b16 %v2758
        %v2855 = vunpack.c.l.b16 %v2759
        %v2856 = vunpack.c.l.b16 %v2760
        %v2857 = vunpack.c.l.b16 %v2761
        %v2858 = vunpack.c.l.b16 %v2762
        %v2859 = vunpack.c.l.b16 %v2763
        %v2860 = vunpack.c.l.b16 %v2764
        %v2861 = vunpack.c.l.b16 %v2765
        %v2862 = vunpack.c.l.b16 %v2766
        %v2863 = vunpack.c.l.b16 %v2767
        %v2864 = vunpack.c.l.b16 %v2768
        %v2865 = vunpack.c.l.b16 %v2769
        %v2866 = vunpack.c.l.b16 %v2770
        %v2867 = vunpack.c.l.b16 %v2771
        %v2868 = vunpack.c.l.b16 %v2772
        %v2869 = vunpack.c.l.b16 %v2773
        %v2870 = vunpack.c.l.b16 %v2774
        %v2871 = vunpack.c.l.b16 %v2775
        %v2872 = vunpack.c.l.b16 %v2776
        %v2873 = vunpack.c.l.b16 %v2777
        %v2874 = vunpack.c.l.b16 %v2778
        %v2875 = vunpack.c.l.b16 %v2779
        %v2876 = vunpack.c.l.b16 %v2780
        %v2877 = vunpack.c.l.b16 %v2781
        %v2878 = vunpack.c.l.b16 %v2782
        %v2879 = vunpack.c.l.b16 %v2783
        %v2880 = vunpack.c.l.b16 %v2784
        %v2881 = vunpack.c.l.b16 %v2785
        %v2882 = vunpack.c.l.b16 %v2786
        %v2883 = vunpack.c.l.b16 %v2787
        %v2884 = vunpack.c.l.b16 %v2788
        %v2885 = vunpack.c.l.b16 %v2789
        %v2886 = vpack.c.b16 %v2839, %v2838
        %v2887 = vpack.c.b16 %v2840, %v2840
        %v2888 = vpack.c.b16 %v2842, %v2841
        %v2889 = vpack.c.b16 %v2843, %v2843
        %v2890 = vpack.c.b16 %v2845, %v2844
        %v2891 = vpack.c.b16 %v2846, %v2846
        %v2892 = vpack.c.b16 %v2848, %v2847
        %v2893 = vpack.c.b16 %v2849, %v2849
        %v2894 = vpack.c.b16 %v2851, %v2850
        %v2895 = vpack.c.b16 %v2852, %v2852
        %v2896 = vpack.c.b16 %v2854, %v2853
        %v2897 = vpack.c.b16 %v2855, %v2855
        %v2898 = vpack.c.b16 %v2857, %v2856
        %v2899 = vpack.c.b16 %v2858, %v2858
        %v2900 = vpack.c.b16 %v2860, %v2859
        %v2901 = vpack.c.b16 %v2861, %v2861
        %v2902 = vpack.c.b16 %v2863, %v2862
        %v2903 = vpack.c.b16 %v2864, %v2864
        %v2904 = vpack.c.b16 %v2866, %v2865
        %v2905 = vpack.c.b16 %v2867, %v2867
        %v2906 = vpack.c.b16 %v2869, %v2868
        %v2907 = vpack.c.b16 %v2870, %v2870
        %v2908 = vpack.c.b16 %v2872, %v2871
        %v2909 = vpack.c.b16 %v2873, %v2873
        %v2910 = vpack.c.b16 %v2875, %v2874
        %v2911 = vpack.c.b16 %v2876, %v2876
        %v2912 = vpack.c.b16 %v2878, %v2877
        %v2913 = vpack.c.b16 %v2879, %v2879
        %v2914 = vpack.c.b16 %v2881, %v2880
        %v2915 = vpack.c.b16 %v2882, %v2882
        %v2916 = vpack.c.b16 %v2884, %v2883
        %v2917 = vpack.c.b16 %v2885, %v2885
        %v2919 = vshrl.u32 %v2886, 16
        %v2921 = vshll.u32 %v2886, 16
        %v2923 = vrot.slane %v2921, 1
        %v2924 = vor.u32 %v2919, %v2923
        %v2926 = vshll.u32 %v2887, 16
        %v2928 = vrot.slane %v2926, 1
        %v2929 = vsel %vm1316, %v2924, %v2928
        %v2931 = vshrl.u32 %v2888, 16
        %v2933 = vshll.u32 %v2888, 16
        %v2935 = vrot.slane %v2933, 1
        %v2936 = vor.u32 %v2931, %v2935
        %v2938 = vshll.u32 %v2889, 16
        %v2940 = vrot.slane %v2938, 1
        %v2941 = vsel %vm1316, %v2936, %v2940
        %v2943 = vshrl.u32 %v2890, 16
        %v2945 = vshll.u32 %v2890, 16
        %v2947 = vrot.slane %v2945, 1
        %v2948 = vor.u32 %v2943, %v2947
        %v2950 = vshll.u32 %v2891, 16
        %v2952 = vrot.slane %v2950, 1
        %v2953 = vsel %vm1316, %v2948, %v2952
        %v2955 = vshrl.u32 %v2892, 16
        %v2957 = vshll.u32 %v2892, 16
        %v2959 = vrot.slane %v2957, 1
        %v2960 = vor.u32 %v2955, %v2959
        %v2962 = vshll.u32 %v2893, 16
        %v2964 = vrot.slane %v2962, 1
        %v2965 = vsel %vm1316, %v2960, %v2964
        %v2967 = vshrl.u32 %v2894, 16
        %v2969 = vshll.u32 %v2894, 16
        %v2971 = vrot.slane %v2969, 1
        %v2972 = vor.u32 %v2967, %v2971
        %v2974 = vshll.u32 %v2895, 16
        %v2976 = vrot.slane %v2974, 1
        %v2977 = vsel %vm1316, %v2972, %v2976
        %v2979 = vshrl.u32 %v2896, 16
        %v2981 = vshll.u32 %v2896, 16
        %v2983 = vrot.slane %v2981, 1
        %v2984 = vor.u32 %v2979, %v2983
        %v2986 = vshll.u32 %v2897, 16
        %v2988 = vrot.slane %v2986, 1
        %v2989 = vsel %vm1316, %v2984, %v2988
        %v2991 = vshrl.u32 %v2898, 16
        %v2993 = vshll.u32 %v2898, 16
        %v2995 = vrot.slane %v2993, 1
        %v2996 = vor.u32 %v2991, %v2995
        %v2998 = vshll.u32 %v2899, 16
        %v3000 = vrot.slane %v2998, 1
        %v3001 = vsel %vm1316, %v2996, %v3000
        %v3003 = vshrl.u32 %v2900, 16
        %v3005 = vshll.u32 %v2900, 16
        %v3007 = vrot.slane %v3005, 1
        %v3008 = vor.u32 %v3003, %v3007
        %v3010 = vshll.u32 %v2901, 16
        %v3012 = vrot.slane %v3010, 1
        %v3013 = vsel %vm1316, %v3008, %v3012
        %v3015 = vshrl.u32 %v2902, 16
        %v3017 = vshll.u32 %v2902, 16
        %v3019 = vrot.slane %v3017, 1
        %v3020 = vor.u32 %v3015, %v3019
        %v3022 = vshll.u32 %v2903, 16
        %v3024 = vrot.slane %v3022, 1
        %v3025 = vsel %vm1316, %v3020, %v3024
        %v3027 = vshrl.u32 %v2904, 16
        %v3029 = vshll.u32 %v2904, 16
        %v3031 = vrot.slane %v3029, 1
        %v3032 = vor.u32 %v3027, %v3031
        %v3034 = vshll.u32 %v2905, 16
        %v3036 = vrot.slane %v3034, 1
        %v3037 = vsel %vm1316, %v3032, %v3036
        %v3039 = vshrl.u32 %v2906, 16
        %v3041 = vshll.u32 %v2906, 16
        %v3043 = vrot.slane %v3041, 1
        %v3044 = vor.u32 %v3039, %v3043
        %v3046 = vshll.u32 %v2907, 16
        %v3048 = vrot.slane %v3046, 1
        %v3049 = vsel %vm1316, %v3044, %v3048
        %v3051 = vshrl.u32 %v2908, 16
        %v3053 = vshll.u32 %v2908, 16
        %v3055 = vrot.slane %v3053, 1
        %v3056 = vor.u32 %v3051, %v3055
        %v3058 = vshll.u32 %v2909, 16
        %v3060 = vrot.slane %v3058, 1
        %v3061 = vsel %vm1316, %v3056, %v3060
        %v3063 = vshrl.u32 %v2910, 16
        %v3065 = vshll.u32 %v2910, 16
        %v3067 = vrot.slane %v3065, 1
        %v3068 = vor.u32 %v3063, %v3067
        %v3070 = vshll.u32 %v2911, 16
        %v3072 = vrot.slane %v3070, 1
        %v3073 = vsel %vm1316, %v3068, %v3072
        %v3075 = vshrl.u32 %v2912, 16
        %v3077 = vshll.u32 %v2912, 16
        %v3079 = vrot.slane %v3077, 1
        %v3080 = vor.u32 %v3075, %v3079
        %v3082 = vshll.u32 %v2913, 16
        %v3084 = vrot.slane %v3082, 1
        %v3085 = vsel %vm1316, %v3080, %v3084
        %v3087 = vshrl.u32 %v2914, 16
        %v3089 = vshll.u32 %v2914, 16
        %v3091 = vrot.slane %v3089, 1
        %v3092 = vor.u32 %v3087, %v3091
        %v3094 = vshll.u32 %v2915, 16
        %v3096 = vrot.slane %v3094, 1
        %v3097 = vsel %vm1316, %v3092, %v3096
        %v3099 = vshrl.u32 %v2916, 16
        %v3101 = vshll.u32 %v2916, 16
        %v3103 = vrot.slane %v3101, 1
        %v3104 = vor.u32 %v3099, %v3103
        %v3106 = vshll.u32 %v2917, 16
        %v3108 = vrot.slane %v3106, 1
        %v3109 = vsel %vm1316, %v3104, %v3108
        %3126 = vst [vmem:[#allocation3 + $0x38] sm:$0xff] %v2929
        %3127 = vst [vmem:[#allocation3 + $0x80] sm:$0xff] %v2941
        %3128 = vst [vmem:[#allocation3 + $0xc8] sm:$0xff] %v2953
        %3129 = vst [vmem:[#allocation3 + $0x110] sm:$0xff] %v2965
        %3130 = vst [vmem:[#allocation3 + $0x158] sm:$0xff] %v2977
        %3131 = vst [vmem:[#allocation3 + $0x1a0] sm:$0xff] %v2989
        %3132 = vst [vmem:[#allocation3 + $0x1e8] sm:$0xff] %v3001
        %3133 = vst [vmem:[#allocation3 + $0x230] sm:$0xff] %v3013
        %3134 = vst [vmem:[#allocation3 + $0x278] sm:$0xff] %v3025
        %3135 = vst [vmem:[#allocation3 + $0x2c0] sm:$0xff] %v3037
        %3136 = vst [vmem:[#allocation3 + $0x308] sm:$0xff] %v3049
        %3137 = vst [vmem:[#allocation3 + $0x350] sm:$0xff] %v3061
        %3138 = vst [vmem:[#allocation3 + $0x398] sm:$0xff] %v3073
        %3139 = vst [vmem:[#allocation3 + $0x3e0] sm:$0xff] %v3085
        %3140 = vst [vmem:[#allocation3 + $0x428] sm:$0xff] %v3097
        %3141 = vst [vmem:[#allocation3 + $0x470] sm:$0xff] %v3109
        %v3142 = vld [vmem:[%s981] sm:$0xe]
        %v3143 = vld [vmem:[%s981 + $0x4] sm:$0xf]
        %v3144 = vld [vmem:[%s981 + $0x8] sm:$0x1]
        %v3145 = vld [vmem:[%s981 + $0xc] sm:$0xe]
        %v3146 = vld [vmem:[%s981 + $0x10] sm:$0xf]
        %v3147 = vld [vmem:[%s981 + $0x14] sm:$0x1]
        %v3148 = vld [vmem:[%s981 + $0x18] sm:$0xe]
        %v3149 = vld [vmem:[%s981 + $0x1c] sm:$0xf]
        %v3150 = vld [vmem:[%s981 + $0x20] sm:$0x1]
        %v3151 = vld [vmem:[%s981 + $0x24] sm:$0xe]
        %v3152 = vld [vmem:[%s981 + $0x28] sm:$0xf]
        %v3153 = vld [vmem:[%s981 + $0x2c] sm:$0x1]
        %v3154 = vld [vmem:[%s981 + $0x30] sm:$0xe]
        %v3155 = vld [vmem:[%s981 + $0x34] sm:$0xf]
        %v3156 = vld [vmem:[%s981 + $0x38] sm:$0x1]
        %v3157 = vld [vmem:[%s981 + $0x3c] sm:$0xe]
        %v3158 = vld [vmem:[%s981 + $0x40] sm:$0xf]
        %v3159 = vld [vmem:[%s981 + $0x44] sm:$0x1]
        %v3160 = vld [vmem:[%s981 + $0x48] sm:$0xe]
        %v3161 = vld [vmem:[%s981 + $0x4c] sm:$0xf]
        %v3162 = vld [vmem:[%s981 + $0x50] sm:$0x1]
        %v3163 = vld [vmem:[%s981 + $0x54] sm:$0xe]
        %v3164 = vld [vmem:[%s981 + $0x58] sm:$0xf]
        %v3165 = vld [vmem:[%s981 + $0x5c] sm:$0x1]
        %v3166 = vld [vmem:[%s981 + $0x60] sm:$0xe]
        %v3167 = vld [vmem:[%s981 + $0x64] sm:$0xf]
        %v3168 = vld [vmem:[%s981 + $0x68] sm:$0x1]
        %v3169 = vld [vmem:[%s981 + $0x6c] sm:$0xe]
        %v3170 = vld [vmem:[%s981 + $0x70] sm:$0xf]
        %v3171 = vld [vmem:[%s981 + $0x74] sm:$0x1]
        %v3172 = vld [vmem:[%s981 + $0x78] sm:$0xe]
        %v3173 = vld [vmem:[%s981 + $0x7c] sm:$0xf]
        %v3174 = vld [vmem:[%s981 + $0x80] sm:$0x1]
        %v3175 = vld [vmem:[%s981 + $0x84] sm:$0xe]
        %v3176 = vld [vmem:[%s981 + $0x88] sm:$0xf]
        %v3177 = vld [vmem:[%s981 + $0x8c] sm:$0x1]
        %v3178 = vld [vmem:[%s981 + $0x90] sm:$0xe]
        %v3179 = vld [vmem:[%s981 + $0x94] sm:$0xf]
        %v3180 = vld [vmem:[%s981 + $0x98] sm:$0x1]
        %v3181 = vld [vmem:[%s981 + $0x9c] sm:$0xe]
        %v3182 = vld [vmem:[%s981 + $0xa0] sm:$0xf]
        %v3183 = vld [vmem:[%s981 + $0xa4] sm:$0x1]
        %v3184 = vld [vmem:[%s981 + $0xa8] sm:$0xe]
        %v3185 = vld [vmem:[%s981 + $0xac] sm:$0xf]
        %v3186 = vld [vmem:[%s981 + $0xb0] sm:$0x1]
        %v3187 = vld [vmem:[%s981 + $0xb4] sm:$0xe]
        %v3188 = vld [vmem:[%s981 + $0xb8] sm:$0xf]
        %v3189 = vld [vmem:[%s981 + $0xbc] sm:$0x1]
        %v3238 = vunpack.c.l.b16 %v3142
        %v3239 = vunpack.c.l.b16 %v3143
        %v3240 = vunpack.c.l.b16 %v3144
        %v3241 = vunpack.c.l.b16 %v3145
        %v3242 = vunpack.c.l.b16 %v3146
        %v3243 = vunpack.c.l.b16 %v3147
        %v3244 = vunpack.c.l.b16 %v3148
        %v3245 = vunpack.c.l.b16 %v3149
        %v3246 = vunpack.c.l.b16 %v3150
        %v3247 = vunpack.c.l.b16 %v3151
        %v3248 = vunpack.c.l.b16 %v3152
        %v3249 = vunpack.c.l.b16 %v3153
        %v3250 = vunpack.c.l.b16 %v3154
        %v3251 = vunpack.c.l.b16 %v3155
        %v3252 = vunpack.c.l.b16 %v3156
        %v3253 = vunpack.c.l.b16 %v3157
        %v3254 = vunpack.c.l.b16 %v3158
        %v3255 = vunpack.c.l.b16 %v3159
        %v3256 = vunpack.c.l.b16 %v3160
        %v3257 = vunpack.c.l.b16 %v3161
        %v3258 = vunpack.c.l.b16 %v3162
        %v3259 = vunpack.c.l.b16 %v3163
        %v3260 = vunpack.c.l.b16 %v3164
        %v3261 = vunpack.c.l.b16 %v3165
        %v3262 = vunpack.c.l.b16 %v3166
        %v3263 = vunpack.c.l.b16 %v3167
        %v3264 = vunpack.c.l.b16 %v3168
        %v3265 = vunpack.c.l.b16 %v3169
        %v3266 = vunpack.c.l.b16 %v3170
        %v3267 = vunpack.c.l.b16 %v3171
        %v3268 = vunpack.c.l.b16 %v3172
        %v3269 = vunpack.c.l.b16 %v3173
        %v3270 = vunpack.c.l.b16 %v3174
        %v3271 = vunpack.c.l.b16 %v3175
        %v3272 = vunpack.c.l.b16 %v3176
        %v3273 = vunpack.c.l.b16 %v3177
        %v3274 = vunpack.c.l.b16 %v3178
        %v3275 = vunpack.c.l.b16 %v3179
        %v3276 = vunpack.c.l.b16 %v3180
        %v3277 = vunpack.c.l.b16 %v3181
        %v3278 = vunpack.c.l.b16 %v3182
        %v3279 = vunpack.c.l.b16 %v3183
        %v3280 = vunpack.c.l.b16 %v3184
        %v3281 = vunpack.c.l.b16 %v3185
        %v3282 = vunpack.c.l.b16 %v3186
        %v3283 = vunpack.c.l.b16 %v3187
        %v3284 = vunpack.c.l.b16 %v3188
        %v3285 = vunpack.c.l.b16 %v3189
        %v3286 = vpack.c.b16 %v3239, %v3238
        %v3287 = vpack.c.b16 %v3240, %v3240
        %v3288 = vpack.c.b16 %v3242, %v3241
        %v3289 = vpack.c.b16 %v3243, %v3243
        %v3290 = vpack.c.b16 %v3245, %v3244
        %v3291 = vpack.c.b16 %v3246, %v3246
        %v3292 = vpack.c.b16 %v3248, %v3247
        %v3293 = vpack.c.b16 %v3249, %v3249
        %v3294 = vpack.c.b16 %v3251, %v3250
        %v3295 = vpack.c.b16 %v3252, %v3252
        %v3296 = vpack.c.b16 %v3254, %v3253
        %v3297 = vpack.c.b16 %v3255, %v3255
        %v3298 = vpack.c.b16 %v3257, %v3256
        %v3299 = vpack.c.b16 %v3258, %v3258
        %v3300 = vpack.c.b16 %v3260, %v3259
        %v3301 = vpack.c.b16 %v3261, %v3261
        %v3302 = vpack.c.b16 %v3263, %v3262
        %v3303 = vpack.c.b16 %v3264, %v3264
        %v3304 = vpack.c.b16 %v3266, %v3265
        %v3305 = vpack.c.b16 %v3267, %v3267
        %v3306 = vpack.c.b16 %v3269, %v3268
        %v3307 = vpack.c.b16 %v3270, %v3270
        %v3308 = vpack.c.b16 %v3272, %v3271
        %v3309 = vpack.c.b16 %v3273, %v3273
        %v3310 = vpack.c.b16 %v3275, %v3274
        %v3311 = vpack.c.b16 %v3276, %v3276
        %v3312 = vpack.c.b16 %v3278, %v3277
        %v3313 = vpack.c.b16 %v3279, %v3279
        %v3314 = vpack.c.b16 %v3281, %v3280
        %v3315 = vpack.c.b16 %v3282, %v3282
        %v3316 = vpack.c.b16 %v3284, %v3283
        %v3317 = vpack.c.b16 %v3285, %v3285
        %v3318 = vrot.slane %v3286, 1
        %v3319 = vrot.slane %v3287, 1
        %v3320 = vsel %vm1717, %v3318, %v3319
        %v3321 = vrot.slane %v3288, 1
        %v3322 = vrot.slane %v3289, 1
        %v3323 = vsel %vm1717, %v3321, %v3322
        %v3324 = vrot.slane %v3290, 1
        %v3325 = vrot.slane %v3291, 1
        %v3326 = vsel %vm1717, %v3324, %v3325
        %v3327 = vrot.slane %v3292, 1
        %v3328 = vrot.slane %v3293, 1
        %v3329 = vsel %vm1717, %v3327, %v3328
        %v3330 = vrot.slane %v3294, 1
        %v3331 = vrot.slane %v3295, 1
        %v3332 = vsel %vm1717, %v3330, %v3331
        %v3333 = vrot.slane %v3296, 1
        %v3334 = vrot.slane %v3297, 1
        %v3335 = vsel %vm1717, %v3333, %v3334
        %v3336 = vrot.slane %v3298, 1
        %v3337 = vrot.slane %v3299, 1
        %v3338 = vsel %vm1717, %v3336, %v3337
        %v3339 = vrot.slane %v3300, 1
        %v3340 = vrot.slane %v3301, 1
        %v3341 = vsel %vm1717, %v3339, %v3340
        %v3342 = vrot.slane %v3302, 1
        %v3343 = vrot.slane %v3303, 1
        %v3344 = vsel %vm1717, %v3342, %v3343
        %v3345 = vrot.slane %v3304, 1
        %v3346 = vrot.slane %v3305, 1
        %v3347 = vsel %vm1717, %v3345, %v3346
        %v3348 = vrot.slane %v3306, 1
        %v3349 = vrot.slane %v3307, 1
        %v3350 = vsel %vm1717, %v3348, %v3349
        %v3351 = vrot.slane %v3308, 1
        %v3352 = vrot.slane %v3309, 1
        %v3353 = vsel %vm1717, %v3351, %v3352
        %v3354 = vrot.slane %v3310, 1
        %v3355 = vrot.slane %v3311, 1
        %v3356 = vsel %vm1717, %v3354, %v3355
        %v3357 = vrot.slane %v3312, 1
        %v3358 = vrot.slane %v3313, 1
        %v3359 = vsel %vm1717, %v3357, %v3358
        %v3360 = vrot.slane %v3314, 1
        %v3361 = vrot.slane %v3315, 1
        %v3362 = vsel %vm1717, %v3360, %v3361
        %v3363 = vrot.slane %v3316, 1
        %v3364 = vrot.slane %v3317, 1
        %v3365 = vsel %vm1717, %v3363, %v3364
        %3382 = vst [vmem:[#allocation3 + $0x40] sm:$0xff] %v3320
        %3383 = vst [vmem:[#allocation3 + $0x88] sm:$0xff] %v3323
        %3384 = vst [vmem:[#allocation3 + $0xd0] sm:$0xff] %v3326
        %3385 = vst [vmem:[#allocation3 + $0x118] sm:$0xff] %v3329
        %3386 = vst [vmem:[#allocation3 + $0x160] sm:$0xff] %v3332
        %3387 = vst [vmem:[#allocation3 + $0x1a8] sm:$0xff] %v3335
        %3388 = vst [vmem:[#allocation3 + $0x1f0] sm:$0xff] %v3338
        %3389 = vst [vmem:[#allocation3 + $0x238] sm:$0xff] %v3341
        %3390 = vst [vmem:[#allocation3 + $0x280] sm:$0xff] %v3344
        %3391 = vst [vmem:[#allocation3 + $0x2c8] sm:$0xff] %v3347
        %3392 = vst [vmem:[#allocation3 + $0x310] sm:$0xff] %v3350
        %3393 = vst [vmem:[#allocation3 + $0x358] sm:$0xff] %v3353
        %3394 = vst [vmem:[#allocation3 + $0x3a0] sm:$0xff] %v3356
        %3395 = vst [vmem:[#allocation3 + $0x3e8] sm:$0xff] %v3359
        %3396 = vst [vmem:[#allocation3 + $0x430] sm:$0xff] %v3362
        %3397 = vst [vmem:[#allocation3 + $0x478] sm:$0xff] %v3365
        %v3398 = vld [vmem:[#allocation3] sm:$0xff]
        %v3399 = vld [vmem:[#allocation3 + $0x8] sm:$0xff]
        %v3400 = vld [vmem:[#allocation3 + $0x10] sm:$0xff]
        %v3401 = vld [vmem:[#allocation3 + $0x18] sm:$0xff]
        %v3402 = vld [vmem:[#allocation3 + $0x20] sm:$0xff]
        %v3403 = vld [vmem:[#allocation3 + $0x28] sm:$0xff]
        %v3404 = vld [vmem:[#allocation3 + $0x30] sm:$0xff]
        %v3405 = vld [vmem:[#allocation3 + $0x38] sm:$0xff]
        %v3406 = vld [vmem:[#allocation3 + $0x40] sm:$0xff]
        %v3407 = vld [vmem:[#allocation3 + $0x48] sm:$0xff]
        %v3408 = vld [vmem:[#allocation3 + $0x50] sm:$0xff]
        %v3409 = vld [vmem:[#allocation3 + $0x58] sm:$0xff]
        %v3410 = vld [vmem:[#allocation3 + $0x60] sm:$0xff]
        %v3411 = vld [vmem:[#allocation3 + $0x68] sm:$0xff]
        %v3412 = vld [vmem:[#allocation3 + $0x70] sm:$0xff]
        %v3413 = vld [vmem:[#allocation3 + $0x78] sm:$0xff]
        %v3414 = vld [vmem:[#allocation3 + $0x80] sm:$0xff]
        %v3415 = vld [vmem:[#allocation3 + $0x88] sm:$0xff]
        %v3416 = vld [vmem:[#allocation3 + $0x90] sm:$0xff]
        %v3417 = vld [vmem:[#allocation3 + $0x98] sm:$0xff]
        %v3418 = vld [vmem:[#allocation3 + $0xa0] sm:$0xff]
        %v3419 = vld [vmem:[#allocation3 + $0xa8] sm:$0xff]
        %v3420 = vld [vmem:[#allocation3 + $0xb0] sm:$0xff]
        %v3421 = vld [vmem:[#allocation3 + $0xb8] sm:$0xff]
        %v3422 = vld [vmem:[#allocation3 + $0xc0] sm:$0xff]
        %v3423 = vld [vmem:[#allocation3 + $0xc8] sm:$0xff]
        %v3424 = vld [vmem:[#allocation3 + $0xd0] sm:$0xff]
        %v3425 = vld [vmem:[#allocation3 + $0xd8] sm:$0xff]
        %v3426 = vld [vmem:[#allocation3 + $0xe0] sm:$0xff]
        %v3427 = vld [vmem:[#allocation3 + $0xe8] sm:$0xff]
        %v3428 = vld [vmem:[#allocation3 + $0xf0] sm:$0xff]
        %v3429 = vld [vmem:[#allocation3 + $0xf8] sm:$0xff]
        %v3430 = vld [vmem:[#allocation3 + $0x100] sm:$0xff]
        %v3431 = vld [vmem:[#allocation3 + $0x108] sm:$0xff]
        %v3432 = vld [vmem:[#allocation3 + $0x110] sm:$0xff]
        %v3433 = vld [vmem:[#allocation3 + $0x118] sm:$0xff]
        %v3434 = vld [vmem:[#allocation3 + $0x120] sm:$0xff]
        %v3435 = vld [vmem:[#allocation3 + $0x128] sm:$0xff]
        %v3436 = vld [vmem:[#allocation3 + $0x130] sm:$0xff]
        %v3437 = vld [vmem:[#allocation3 + $0x138] sm:$0xff]
        %v3438 = vld [vmem:[#allocation3 + $0x140] sm:$0xff]
        %v3439 = vld [vmem:[#allocation3 + $0x148] sm:$0xff]
        %v3440 = vld [vmem:[#allocation3 + $0x150] sm:$0xff]
        %v3441 = vld [vmem:[#allocation3 + $0x158] sm:$0xff]
        %v3442 = vld [vmem:[#allocation3 + $0x160] sm:$0xff]
        %v3443 = vld [vmem:[#allocation3 + $0x168] sm:$0xff]
        %v3444 = vld [vmem:[#allocation3 + $0x170] sm:$0xff]
        %v3445 = vld [vmem:[#allocation3 + $0x178] sm:$0xff]
        %v3446 = vld [vmem:[#allocation3 + $0x180] sm:$0xff]
        %v3447 = vld [vmem:[#allocation3 + $0x188] sm:$0xff]
        %v3448 = vld [vmem:[#allocation3 + $0x190] sm:$0xff]
        %v3449 = vld [vmem:[#allocation3 + $0x198] sm:$0xff]
        %v3450 = vld [vmem:[#allocation3 + $0x1a0] sm:$0xff]
        %v3451 = vld [vmem:[#allocation3 + $0x1a8] sm:$0xff]
        %v3452 = vld [vmem:[#allocation3 + $0x1b0] sm:$0xff]
        %v3453 = vld [vmem:[#allocation3 + $0x1b8] sm:$0xff]
        %v3454 = vld [vmem:[#allocation3 + $0x1c0] sm:$0xff]
        %v3455 = vld [vmem:[#allocation3 + $0x1c8] sm:$0xff]
        %v3456 = vld [vmem:[#allocation3 + $0x1d0] sm:$0xff]
        %v3457 = vld [vmem:[#allocation3 + $0x1d8] sm:$0xff]
        %v3458 = vld [vmem:[#allocation3 + $0x1e0] sm:$0xff]
        %v3459 = vld [vmem:[#allocation3 + $0x1e8] sm:$0xff]
        %v3460 = vld [vmem:[#allocation3 + $0x1f0] sm:$0xff]
        %v3461 = vld [vmem:[#allocation3 + $0x1f8] sm:$0xff]
        %v3462 = vld [vmem:[#allocation3 + $0x200] sm:$0xff]
        %v3463 = vld [vmem:[#allocation3 + $0x208] sm:$0xff]
        %v3464 = vld [vmem:[#allocation3 + $0x210] sm:$0xff]
        %v3465 = vld [vmem:[#allocation3 + $0x218] sm:$0xff]
        %v3466 = vld [vmem:[#allocation3 + $0x220] sm:$0xff]
        %v3467 = vld [vmem:[#allocation3 + $0x228] sm:$0xff]
        %v3468 = vld [vmem:[#allocation3 + $0x230] sm:$0xff]
        %v3469 = vld [vmem:[#allocation3 + $0x238] sm:$0xff]
        %v3470 = vld [vmem:[#allocation3 + $0x240] sm:$0xff]
        %v3471 = vld [vmem:[#allocation3 + $0x248] sm:$0xff]
        %v3472 = vld [vmem:[#allocation3 + $0x250] sm:$0xff]
        %v3473 = vld [vmem:[#allocation3 + $0x258] sm:$0xff]
        %v3474 = vld [vmem:[#allocation3 + $0x260] sm:$0xff]
        %v3475 = vld [vmem:[#allocation3 + $0x268] sm:$0xff]
        %v3476 = vld [vmem:[#allocation3 + $0x270] sm:$0xff]
        %v3477 = vld [vmem:[#allocation3 + $0x278] sm:$0xff]
        %v3478 = vld [vmem:[#allocation3 + $0x280] sm:$0xff]
        %v3479 = vld [vmem:[#allocation3 + $0x288] sm:$0xff]
        %v3480 = vld [vmem:[#allocation3 + $0x290] sm:$0xff]
        %v3481 = vld [vmem:[#allocation3 + $0x298] sm:$0xff]
        %v3482 = vld [vmem:[#allocation3 + $0x2a0] sm:$0xff]
        %v3483 = vld [vmem:[#allocation3 + $0x2a8] sm:$0xff]
        %v3484 = vld [vmem:[#allocation3 + $0x2b0] sm:$0xff]
        %v3485 = vld [vmem:[#allocation3 + $0x2b8] sm:$0xff]
        %v3486 = vld [vmem:[#allocation3 + $0x2c0] sm:$0xff]
        %v3487 = vld [vmem:[#allocation3 + $0x2c8] sm:$0xff]
        %v3488 = vld [vmem:[#allocation3 + $0x2d0] sm:$0xff]
        %v3489 = vld [vmem:[#allocation3 + $0x2d8] sm:$0xff]
        %v3490 = vld [vmem:[#allocation3 + $0x2e0] sm:$0xff]
        %v3491 = vld [vmem:[#allocation3 + $0x2e8] sm:$0xff]
        %v3492 = vld [vmem:[#allocation3 + $0x2f0] sm:$0xff]
        %v3493 = vld [vmem:[#allocation3 + $0x2f8] sm:$0xff]
        %v3494 = vld [vmem:[#allocation3 + $0x300] sm:$0xff]
        %v3495 = vld [vmem:[#allocation3 + $0x308] sm:$0xff]
        %v3496 = vld [vmem:[#allocation3 + $0x310] sm:$0xff]
        %v3497 = vld [vmem:[#allocation3 + $0x318] sm:$0xff]
        %v3498 = vld [vmem:[#allocation3 + $0x320] sm:$0xff]
        %v3499 = vld [vmem:[#allocation3 + $0x328] sm:$0xff]
        %v3500 = vld [vmem:[#allocation3 + $0x330] sm:$0xff]
        %v3501 = vld [vmem:[#allocation3 + $0x338] sm:$0xff]
        %v3502 = vld [vmem:[#allocation3 + $0x340] sm:$0xff]
        %v3503 = vld [vmem:[#allocation3 + $0x348] sm:$0xff]
        %v3504 = vld [vmem:[#allocation3 + $0x350] sm:$0xff]
        %v3505 = vld [vmem:[#allocation3 + $0x358] sm:$0xff]
        %v3506 = vld [vmem:[#allocation3 + $0x360] sm:$0xff]
        %v3507 = vld [vmem:[#allocation3 + $0x368] sm:$0xff]
        %v3508 = vld [vmem:[#allocation3 + $0x370] sm:$0xff]
        %v3509 = vld [vmem:[#allocation3 + $0x378] sm:$0xff]
        %v3510 = vld [vmem:[#allocation3 + $0x380] sm:$0xff]
        %v3511 = vld [vmem:[#allocation3 + $0x388] sm:$0xff]
        %v3512 = vld [vmem:[#allocation3 + $0x390] sm:$0xff]
        %v3513 = vld [vmem:[#allocation3 + $0x398] sm:$0xff]
        %v3514 = vld [vmem:[#allocation3 + $0x3a0] sm:$0xff]
        %v3515 = vld [vmem:[#allocation3 + $0x3a8] sm:$0xff]
        %v3516 = vld [vmem:[#allocation3 + $0x3b0] sm:$0xff]
        %v3517 = vld [vmem:[#allocation3 + $0x3b8] sm:$0xff]
        %v3518 = vld [vmem:[#allocation3 + $0x3c0] sm:$0xff]
        %v3519 = vld [vmem:[#allocation3 + $0x3c8] sm:$0xff]
        %v3520 = vld [vmem:[#allocation3 + $0x3d0] sm:$0xff]
        %v3521 = vld [vmem:[#allocation3 + $0x3d8] sm:$0xff]
        %v3522 = vld [vmem:[#allocation3 + $0x3e0] sm:$0xff]
        %v3523 = vld [vmem:[#allocation3 + $0x3e8] sm:$0xff]
        %v3524 = vld [vmem:[#allocation3 + $0x3f0] sm:$0xff]
        %v3525 = vld [vmem:[#allocation3 + $0x3f8] sm:$0xff]
        %v3526 = vld [vmem:[#allocation3 + $0x400] sm:$0xff]
        %v3527 = vld [vmem:[#allocation3 + $0x408] sm:$0xff]
        %v3528 = vld [vmem:[#allocation3 + $0x410] sm:$0xff]
        %v3529 = vld [vmem:[#allocation3 + $0x418] sm:$0xff]
        %v3530 = vld [vmem:[#allocation3 + $0x420] sm:$0xff]
        %v3531 = vld [vmem:[#allocation3 + $0x428] sm:$0xff]
        %v3532 = vld [vmem:[#allocation3 + $0x430] sm:$0xff]
        %v3533 = vld [vmem:[#allocation3 + $0x438] sm:$0xff]
        %v3534 = vld [vmem:[#allocation3 + $0x440] sm:$0xff]
        %v3535 = vld [vmem:[#allocation3 + $0x448] sm:$0xff]
        %v3536 = vld [vmem:[#allocation3 + $0x450] sm:$0xff]
        %v3537 = vld [vmem:[#allocation3 + $0x458] sm:$0xff]
        %v3538 = vld [vmem:[#allocation3 + $0x460] sm:$0xff]
        %v3539 = vld [vmem:[#allocation3 + $0x468] sm:$0xff]
        %v3540 = vld [vmem:[#allocation3 + $0x470] sm:$0xff]
        %v3541 = vld [vmem:[#allocation3 + $0x478] sm:$0xff]
        %v3542 = vld [vmem:[#allocation7] sm:$0xf]
        %v3543 = vld [vmem:[#allocation7 + $0x4] sm:$0xf]
        %v3544 = vld [vmem:[#allocation7 + $0x8] sm:$0xf]
        %v3545 = vld [vmem:[#allocation7 + $0xc] sm:$0xf]
        %v3546 = vld [vmem:[#allocation7 + $0x10] sm:$0xf]
        %v3547 = vld [vmem:[#allocation7 + $0x14] sm:$0xf]
        %v3548 = vld [vmem:[#allocation7 + $0x18] sm:$0xf]
        %v3549 = vld [vmem:[#allocation7 + $0x1c] sm:$0xf]
        %v3550 = vld [vmem:[#allocation7 + $0x20] sm:$0xf]
        %v3551 = vld [vmem:[#allocation7 + $0x24] sm:$0xf]
        %v3552 = vld [vmem:[#allocation7 + $0x28] sm:$0xf]
        %v3553 = vld [vmem:[#allocation7 + $0x2c] sm:$0xf]
        %v3554 = vld [vmem:[#allocation7 + $0x30] sm:$0xf]
        %v3555 = vld [vmem:[#allocation7 + $0x34] sm:$0xf]
        %v3556 = vld [vmem:[#allocation7 + $0x38] sm:$0xf]
        %v3557 = vld [vmem:[#allocation7 + $0x3c] sm:$0xf]
        %v3558 = vld [vmem:[#allocation7 + $0x40] sm:$0xf]
        %v3559 = vld [vmem:[#allocation7 + $0x44] sm:$0xf]
        %v3560 = vld [vmem:[#allocation7 + $0x48] sm:$0xf]
        %v3561 = vld [vmem:[#allocation7 + $0x4c] sm:$0xf]
        %v3562 = vld [vmem:[#allocation7 + $0x50] sm:$0xf]
        %v3563 = vld [vmem:[#allocation7 + $0x54] sm:$0xf]
        %v3564 = vld [vmem:[#allocation7 + $0x58] sm:$0xf]
        %v3565 = vld [vmem:[#allocation7 + $0x5c] sm:$0xf]
        %v3566 = vld [vmem:[#allocation7 + $0x60] sm:$0xf]
        %v3567 = vld [vmem:[#allocation7 + $0x64] sm:$0xf]
        %v3568 = vld [vmem:[#allocation7 + $0x68] sm:$0xf]
        %v3569 = vld [vmem:[#allocation7 + $0x6c] sm:$0xf]
        %v3570 = vld [vmem:[#allocation7 + $0x70] sm:$0xf]
        %v3571 = vld [vmem:[#allocation7 + $0x74] sm:$0xf]
        %v3572 = vld [vmem:[#allocation7 + $0x78] sm:$0xf]
        %v3573 = vld [vmem:[#allocation7 + $0x7c] sm:$0xf]
        %v3574 = vld [vmem:[#allocation7 + $0x80] sm:$0xf]
        %v3575 = vld [vmem:[#allocation7 + $0x84] sm:$0xf]
        %v3576 = vld [vmem:[#allocation7 + $0x88] sm:$0xf]
        %v3577 = vld [vmem:[#allocation7 + $0x8c] sm:$0xf]
        %v3578 = vld [vmem:[#allocation7 + $0x90] sm:$0xf]
        %v3579 = vld [vmem:[#allocation7 + $0x94] sm:$0xf]
        %v3580 = vld [vmem:[#allocation7 + $0x98] sm:$0xf]
        %v3581 = vld [vmem:[#allocation7 + $0x9c] sm:$0xf]
        %v3582 = vld [vmem:[#allocation7 + $0xa0] sm:$0xf]
        %v3583 = vld [vmem:[#allocation7 + $0xa4] sm:$0xf]
        %v3584 = vld [vmem:[#allocation7 + $0xa8] sm:$0xf]
        %v3585 = vld [vmem:[#allocation7 + $0xac] sm:$0xf]
        %v3586 = vld [vmem:[#allocation7 + $0xb0] sm:$0xf]
        %v3587 = vld [vmem:[#allocation7 + $0xb4] sm:$0xf]
        %v3588 = vld [vmem:[#allocation7 + $0xb8] sm:$0xf]
        %v3589 = vld [vmem:[#allocation7 + $0xbc] sm:$0xf]
        %v3590 = vld [vmem:[#allocation7 + $0xc0] sm:$0xf]
        %v3591 = vld [vmem:[#allocation7 + $0xc4] sm:$0xf]
        %v3592 = vld [vmem:[#allocation7 + $0xc8] sm:$0xf]
        %v3593 = vld [vmem:[#allocation7 + $0xcc] sm:$0xf]
        %v3594 = vld [vmem:[#allocation7 + $0xd0] sm:$0xf]
        %v3595 = vld [vmem:[#allocation7 + $0xd4] sm:$0xf]
        %v3596 = vld [vmem:[#allocation7 + $0xd8] sm:$0xf]
        %v3597 = vld [vmem:[#allocation7 + $0xdc] sm:$0xf]
        %v3598 = vld [vmem:[#allocation7 + $0xe0] sm:$0xf]
        %v3599 = vld [vmem:[#allocation7 + $0xe4] sm:$0xf]
        %v3600 = vld [vmem:[#allocation7 + $0xe8] sm:$0xf]
        %v3601 = vld [vmem:[#allocation7 + $0xec] sm:$0xf]
        %v3602 = vld [vmem:[#allocation7 + $0xf0] sm:$0xf]
        %v3603 = vld [vmem:[#allocation7 + $0xf4] sm:$0xf]
        %v3604 = vld [vmem:[#allocation7 + $0xf8] sm:$0xf]
        %v3605 = vld [vmem:[#allocation7 + $0xfc] sm:$0xf]
        %v3606 = vld [vmem:[#allocation7 + $0x100] sm:$0xf]
        %v3607 = vld [vmem:[#allocation7 + $0x104] sm:$0xf]
        %v3608 = vld [vmem:[#allocation7 + $0x108] sm:$0xf]
        %v3609 = vld [vmem:[#allocation7 + $0x10c] sm:$0xf]
        %v3610 = vld [vmem:[#allocation7 + $0x110] sm:$0xf]
        %v3611 = vld [vmem:[#allocation7 + $0x114] sm:$0xf]
        %v3612 = vld [vmem:[#allocation7 + $0x118] sm:$0xf]
        %v3613 = vld [vmem:[#allocation7 + $0x11c] sm:$0xf]
        %v3614 = vld [vmem:[#allocation7 + $0x120] sm:$0xf]
        %v3615 = vld [vmem:[#allocation7 + $0x124] sm:$0xf]
        %v3616 = vld [vmem:[#allocation7 + $0x128] sm:$0xf]
        %v3617 = vld [vmem:[#allocation7 + $0x12c] sm:$0xf]
        %v3618 = vld [vmem:[#allocation7 + $0x130] sm:$0xf]
        %v3619 = vld [vmem:[#allocation7 + $0x134] sm:$0xf]
        %v3620 = vld [vmem:[#allocation7 + $0x138] sm:$0xf]
        %v3621 = vld [vmem:[#allocation7 + $0x13c] sm:$0xf]
        %v3622 = vld [vmem:[#allocation7 + $0x140] sm:$0xf]
        %v3623 = vld [vmem:[#allocation7 + $0x144] sm:$0xf]
        %v3624 = vld [vmem:[#allocation7 + $0x148] sm:$0xf]
        %v3625 = vld [vmem:[#allocation7 + $0x14c] sm:$0xf]
        %v3626 = vld [vmem:[#allocation7 + $0x150] sm:$0xf]
        %v3627 = vld [vmem:[#allocation7 + $0x154] sm:$0xf]
        %v3628 = vld [vmem:[#allocation7 + $0x158] sm:$0xf]
        %v3629 = vld [vmem:[#allocation7 + $0x15c] sm:$0xf]
        %v3630 = vld [vmem:[#allocation7 + $0x160] sm:$0xf]
        %v3631 = vld [vmem:[#allocation7 + $0x164] sm:$0xf]
        %v3632 = vld [vmem:[#allocation7 + $0x168] sm:$0xf]
        %v3633 = vld [vmem:[#allocation7 + $0x16c] sm:$0xf]
        %v3634 = vld [vmem:[#allocation7 + $0x170] sm:$0xf]
        %v3635 = vld [vmem:[#allocation7 + $0x174] sm:$0xf]
        %v3636 = vld [vmem:[#allocation7 + $0x178] sm:$0xf]
        %v3637 = vld [vmem:[#allocation7 + $0x17c] sm:$0xf]
        %v3638 = vld [vmem:[#allocation7 + $0x180] sm:$0xf]
        %v3639 = vld [vmem:[#allocation7 + $0x184] sm:$0xf]
        %v3640 = vld [vmem:[#allocation7 + $0x188] sm:$0xf]
        %v3641 = vld [vmem:[#allocation7 + $0x18c] sm:$0xf]
        %v3642 = vld [vmem:[#allocation7 + $0x190] sm:$0xf]
        %v3643 = vld [vmem:[#allocation7 + $0x194] sm:$0xf]
        %v3644 = vld [vmem:[#allocation7 + $0x198] sm:$0xf]
        %v3645 = vld [vmem:[#allocation7 + $0x19c] sm:$0xf]
        %v3646 = vld [vmem:[#allocation7 + $0x1a0] sm:$0xf]
        %v3647 = vld [vmem:[#allocation7 + $0x1a4] sm:$0xf]
        %v3648 = vld [vmem:[#allocation7 + $0x1a8] sm:$0xf]
        %v3649 = vld [vmem:[#allocation7 + $0x1ac] sm:$0xf]
        %v3650 = vld [vmem:[#allocation7 + $0x1b0] sm:$0xf]
        %v3651 = vld [vmem:[#allocation7 + $0x1b4] sm:$0xf]
        %v3652 = vld [vmem:[#allocation7 + $0x1b8] sm:$0xf]
        %v3653 = vld [vmem:[#allocation7 + $0x1bc] sm:$0xf]
        %v3654 = vld [vmem:[#allocation7 + $0x1c0] sm:$0xf]
        %v3655 = vld [vmem:[#allocation7 + $0x1c4] sm:$0xf]
        %v3656 = vld [vmem:[#allocation7 + $0x1c8] sm:$0xf]
        %v3657 = vld [vmem:[#allocation7 + $0x1cc] sm:$0xf]
        %v3658 = vld [vmem:[#allocation7 + $0x1d0] sm:$0xf]
        %v3659 = vld [vmem:[#allocation7 + $0x1d4] sm:$0xf]
        %v3660 = vld [vmem:[#allocation7 + $0x1d8] sm:$0xf]
        %v3661 = vld [vmem:[#allocation7 + $0x1dc] sm:$0xf]
        %v3662 = vld [vmem:[#allocation7 + $0x1e0] sm:$0xf]
        %v3663 = vld [vmem:[#allocation7 + $0x1e4] sm:$0xf]
        %v3664 = vld [vmem:[#allocation7 + $0x1e8] sm:$0xf]
        %v3665 = vld [vmem:[#allocation7 + $0x1ec] sm:$0xf]
        %v3666 = vld [vmem:[#allocation7 + $0x1f0] sm:$0xf]
        %v3667 = vld [vmem:[#allocation7 + $0x1f4] sm:$0xf]
        %v3668 = vld [vmem:[#allocation7 + $0x1f8] sm:$0xf]
        %v3669 = vld [vmem:[#allocation7 + $0x1fc] sm:$0xf]
        %v3670 = vld [vmem:[#allocation7 + $0x200] sm:$0xf]
        %v3671 = vld [vmem:[#allocation7 + $0x204] sm:$0xf]
        %v3672 = vld [vmem:[#allocation7 + $0x208] sm:$0xf]
        %v3673 = vld [vmem:[#allocation7 + $0x20c] sm:$0xf]
        %v3674 = vld [vmem:[#allocation7 + $0x210] sm:$0xf]
        %v3675 = vld [vmem:[#allocation7 + $0x214] sm:$0xf]
        %v3676 = vld [vmem:[#allocation7 + $0x218] sm:$0xf]
        %v3677 = vld [vmem:[#allocation7 + $0x21c] sm:$0xf]
        %v3678 = vld [vmem:[#allocation7 + $0x220] sm:$0xf]
        %v3679 = vld [vmem:[#allocation7 + $0x224] sm:$0xf]
        %v3680 = vld [vmem:[#allocation7 + $0x228] sm:$0xf]
        %v3681 = vld [vmem:[#allocation7 + $0x22c] sm:$0xf]
        %v3682 = vld [vmem:[#allocation7 + $0x230] sm:$0xf]
        %v3683 = vld [vmem:[#allocation7 + $0x234] sm:$0xf]
        %v3684 = vld [vmem:[#allocation7 + $0x238] sm:$0xf]
        %v3685 = vld [vmem:[#allocation7 + $0x23c] sm:$0xf]
        %v3830 = vunpack.c.l.b16 %v3542
        %v3831 = vunpack.c.l.b16 %v3543
        %v3832 = vunpack.c.l.b16 %v3544
        %v3833 = vunpack.c.l.b16 %v3545
        %v3834 = vunpack.c.l.b16 %v3546
        %v3835 = vunpack.c.l.b16 %v3547
        %v3836 = vunpack.c.l.b16 %v3548
        %v3837 = vunpack.c.l.b16 %v3549
        %v3838 = vunpack.c.l.b16 %v3550
        %v3839 = vunpack.c.l.b16 %v3551
        %v3840 = vunpack.c.l.b16 %v3552
        %v3841 = vunpack.c.l.b16 %v3553
        %v3842 = vunpack.c.l.b16 %v3554
        %v3843 = vunpack.c.l.b16 %v3555
        %v3844 = vunpack.c.l.b16 %v3556
        %v3845 = vunpack.c.l.b16 %v3557
        %v3846 = vunpack.c.l.b16 %v3558
        %v3847 = vunpack.c.l.b16 %v3559
        %v3848 = vunpack.c.l.b16 %v3560
        %v3849 = vunpack.c.l.b16 %v3561
        %v3850 = vunpack.c.l.b16 %v3562
        %v3851 = vunpack.c.l.b16 %v3563
        %v3852 = vunpack.c.l.b16 %v3564
        %v3853 = vunpack.c.l.b16 %v3565
        %v3854 = vunpack.c.l.b16 %v3566
        %v3855 = vunpack.c.l.b16 %v3567
        %v3856 = vunpack.c.l.b16 %v3568
        %v3857 = vunpack.c.l.b16 %v3569
        %v3858 = vunpack.c.l.b16 %v3570
        %v3859 = vunpack.c.l.b16 %v3571
        %v3860 = vunpack.c.l.b16 %v3572
        %v3861 = vunpack.c.l.b16 %v3573
        %v3862 = vunpack.c.l.b16 %v3574
        %v3863 = vunpack.c.l.b16 %v3575
        %v3864 = vunpack.c.l.b16 %v3576
        %v3865 = vunpack.c.l.b16 %v3577
        %v3866 = vunpack.c.l.b16 %v3578
        %v3867 = vunpack.c.l.b16 %v3579
        %v3868 = vunpack.c.l.b16 %v3580
        %v3869 = vunpack.c.l.b16 %v3581
        %v3870 = vunpack.c.l.b16 %v3582
        %v3871 = vunpack.c.l.b16 %v3583
        %v3872 = vunpack.c.l.b16 %v3584
        %v3873 = vunpack.c.l.b16 %v3585
        %v3874 = vunpack.c.l.b16 %v3586
        %v3875 = vunpack.c.l.b16 %v3587
        %v3876 = vunpack.c.l.b16 %v3588
        %v3877 = vunpack.c.l.b16 %v3589
        %v3878 = vunpack.c.l.b16 %v3590
        %v3879 = vunpack.c.l.b16 %v3591
        %v3880 = vunpack.c.l.b16 %v3592
        %v3881 = vunpack.c.l.b16 %v3593
        %v3882 = vunpack.c.l.b16 %v3594
        %v3883 = vunpack.c.l.b16 %v3595
        %v3884 = vunpack.c.l.b16 %v3596
        %v3885 = vunpack.c.l.b16 %v3597
        %v3886 = vunpack.c.l.b16 %v3598
        %v3887 = vunpack.c.l.b16 %v3599
        %v3888 = vunpack.c.l.b16 %v3600
        %v3889 = vunpack.c.l.b16 %v3601
        %v3890 = vunpack.c.l.b16 %v3602
        %v3891 = vunpack.c.l.b16 %v3603
        %v3892 = vunpack.c.l.b16 %v3604
        %v3893 = vunpack.c.l.b16 %v3605
        %v3894 = vunpack.c.l.b16 %v3606
        %v3895 = vunpack.c.l.b16 %v3607
        %v3896 = vunpack.c.l.b16 %v3608
        %v3897 = vunpack.c.l.b16 %v3609
        %v3898 = vunpack.c.l.b16 %v3610
        %v3899 = vunpack.c.l.b16 %v3611
        %v3900 = vunpack.c.l.b16 %v3612
        %v3901 = vunpack.c.l.b16 %v3613
        %v3902 = vunpack.c.l.b16 %v3614
        %v3903 = vunpack.c.l.b16 %v3615
        %v3904 = vunpack.c.l.b16 %v3616
        %v3905 = vunpack.c.l.b16 %v3617
        %v3906 = vunpack.c.l.b16 %v3618
        %v3907 = vunpack.c.l.b16 %v3619
        %v3908 = vunpack.c.l.b16 %v3620
        %v3909 = vunpack.c.l.b16 %v3621
        %v3910 = vunpack.c.l.b16 %v3622
        %v3911 = vunpack.c.l.b16 %v3623
        %v3912 = vunpack.c.l.b16 %v3624
        %v3913 = vunpack.c.l.b16 %v3625
        %v3914 = vunpack.c.l.b16 %v3626
        %v3915 = vunpack.c.l.b16 %v3627
        %v3916 = vunpack.c.l.b16 %v3628
        %v3917 = vunpack.c.l.b16 %v3629
        %v3918 = vunpack.c.l.b16 %v3630
        %v3919 = vunpack.c.l.b16 %v3631
        %v3920 = vunpack.c.l.b16 %v3632
        %v3921 = vunpack.c.l.b16 %v3633
        %v3922 = vunpack.c.l.b16 %v3634
        %v3923 = vunpack.c.l.b16 %v3635
        %v3924 = vunpack.c.l.b16 %v3636
        %v3925 = vunpack.c.l.b16 %v3637
        %v3926 = vunpack.c.l.b16 %v3638
        %v3927 = vunpack.c.l.b16 %v3639
        %v3928 = vunpack.c.l.b16 %v3640
        %v3929 = vunpack.c.l.b16 %v3641
        %v3930 = vunpack.c.l.b16 %v3642
        %v3931 = vunpack.c.l.b16 %v3643
        %v3932 = vunpack.c.l.b16 %v3644
        %v3933 = vunpack.c.l.b16 %v3645
        %v3934 = vunpack.c.l.b16 %v3646
        %v3935 = vunpack.c.l.b16 %v3647
        %v3936 = vunpack.c.l.b16 %v3648
        %v3937 = vunpack.c.l.b16 %v3649
        %v3938 = vunpack.c.l.b16 %v3650
        %v3939 = vunpack.c.l.b16 %v3651
        %v3940 = vunpack.c.l.b16 %v3652
        %v3941 = vunpack.c.l.b16 %v3653
        %v3942 = vunpack.c.l.b16 %v3654
        %v3943 = vunpack.c.l.b16 %v3655
        %v3944 = vunpack.c.l.b16 %v3656
        %v3945 = vunpack.c.l.b16 %v3657
        %v3946 = vunpack.c.l.b16 %v3658
        %v3947 = vunpack.c.l.b16 %v3659
        %v3948 = vunpack.c.l.b16 %v3660
        %v3949 = vunpack.c.l.b16 %v3661
        %v3950 = vunpack.c.l.b16 %v3662
        %v3951 = vunpack.c.l.b16 %v3663
        %v3952 = vunpack.c.l.b16 %v3664
        %v3953 = vunpack.c.l.b16 %v3665
        %v3954 = vunpack.c.l.b16 %v3666
        %v3955 = vunpack.c.l.b16 %v3667
        %v3956 = vunpack.c.l.b16 %v3668
        %v3957 = vunpack.c.l.b16 %v3669
        %v3958 = vunpack.c.l.b16 %v3670
        %v3959 = vunpack.c.l.b16 %v3671
        %v3960 = vunpack.c.l.b16 %v3672
        %v3961 = vunpack.c.l.b16 %v3673
        %v3962 = vunpack.c.l.b16 %v3674
        %v3963 = vunpack.c.l.b16 %v3675
        %v3964 = vunpack.c.l.b16 %v3676
        %v3965 = vunpack.c.l.b16 %v3677
        %v3966 = vunpack.c.l.b16 %v3678
        %v3967 = vunpack.c.l.b16 %v3679
        %v3968 = vunpack.c.l.b16 %v3680
        %v3969 = vunpack.c.l.b16 %v3681
        %v3970 = vunpack.c.l.b16 %v3682
        %v3971 = vunpack.c.l.b16 %v3683
        %v3972 = vunpack.c.l.b16 %v3684
        %v3973 = vunpack.c.l.b16 %v3685
        %v3974 = vpack.c.b16 %v3831, %v3830
        %v3975 = vpack.c.b16 %v3833, %v3832
        %v3976 = vpack.c.b16 %v3835, %v3834
        %v3977 = vpack.c.b16 %v3837, %v3836
        %v3978 = vpack.c.b16 %v3839, %v3838
        %v3979 = vpack.c.b16 %v3841, %v3840
        %v3980 = vpack.c.b16 %v3843, %v3842
        %v3981 = vpack.c.b16 %v3845, %v3844
        %v3982 = vpack.c.b16 %v3847, %v3846
        %v3983 = vpack.c.b16 %v3849, %v3848
        %v3984 = vpack.c.b16 %v3851, %v3850
        %v3985 = vpack.c.b16 %v3853, %v3852
        %v3986 = vpack.c.b16 %v3855, %v3854
        %v3987 = vpack.c.b16 %v3857, %v3856
        %v3988 = vpack.c.b16 %v3859, %v3858
        %v3989 = vpack.c.b16 %v3861, %v3860
        %v3990 = vpack.c.b16 %v3863, %v3862
        %v3991 = vpack.c.b16 %v3865, %v3864
        %v3992 = vpack.c.b16 %v3867, %v3866
        %v3993 = vpack.c.b16 %v3869, %v3868
        %v3994 = vpack.c.b16 %v3871, %v3870
        %v3995 = vpack.c.b16 %v3873, %v3872
        %v3996 = vpack.c.b16 %v3875, %v3874
        %v3997 = vpack.c.b16 %v3877, %v3876
        %v3998 = vpack.c.b16 %v3879, %v3878
        %v3999 = vpack.c.b16 %v3881, %v3880
        %v4000 = vpack.c.b16 %v3883, %v3882
        %v4001 = vpack.c.b16 %v3885, %v3884
        %v4002 = vpack.c.b16 %v3887, %v3886
        %v4003 = vpack.c.b16 %v3889, %v3888
        %v4004 = vpack.c.b16 %v3891, %v3890
        %v4005 = vpack.c.b16 %v3893, %v3892
        %v4006 = vpack.c.b16 %v3895, %v3894
        %v4007 = vpack.c.b16 %v3897, %v3896
        %v4008 = vpack.c.b16 %v3899, %v3898
        %v4009 = vpack.c.b16 %v3901, %v3900
        %v4010 = vpack.c.b16 %v3903, %v3902
        %v4011 = vpack.c.b16 %v3905, %v3904
        %v4012 = vpack.c.b16 %v3907, %v3906
        %v4013 = vpack.c.b16 %v3909, %v3908
        %v4014 = vpack.c.b16 %v3911, %v3910
        %v4015 = vpack.c.b16 %v3913, %v3912
        %v4016 = vpack.c.b16 %v3915, %v3914
        %v4017 = vpack.c.b16 %v3917, %v3916
        %v4018 = vpack.c.b16 %v3919, %v3918
        %v4019 = vpack.c.b16 %v3921, %v3920
        %v4020 = vpack.c.b16 %v3923, %v3922
        %v4021 = vpack.c.b16 %v3925, %v3924
        %v4022 = vpack.c.b16 %v3927, %v3926
        %v4023 = vpack.c.b16 %v3929, %v3928
        %v4024 = vpack.c.b16 %v3931, %v3930
        %v4025 = vpack.c.b16 %v3933, %v3932
        %v4026 = vpack.c.b16 %v3935, %v3934
        %v4027 = vpack.c.b16 %v3937, %v3936
        %v4028 = vpack.c.b16 %v3939, %v3938
        %v4029 = vpack.c.b16 %v3941, %v3940
        %v4030 = vpack.c.b16 %v3943, %v3942
        %v4031 = vpack.c.b16 %v3945, %v3944
        %v4032 = vpack.c.b16 %v3947, %v3946
        %v4033 = vpack.c.b16 %v3949, %v3948
        %v4034 = vpack.c.b16 %v3951, %v3950
        %v4035 = vpack.c.b16 %v3953, %v3952
        %v4036 = vpack.c.b16 %v3955, %v3954
        %v4037 = vpack.c.b16 %v3957, %v3956
        %v4038 = vpack.c.b16 %v3959, %v3958
        %v4039 = vpack.c.b16 %v3961, %v3960
        %v4040 = vpack.c.b16 %v3963, %v3962
        %v4041 = vpack.c.b16 %v3965, %v3964
        %v4042 = vpack.c.b16 %v3967, %v3966
        %v4043 = vpack.c.b16 %v3969, %v3968
        %v4044 = vpack.c.b16 %v3971, %v3970
        %v4045 = vpack.c.b16 %v3973, %v3972
        %4118 = vmatprep.subr.bf16.mxu0 0
        %4119 = vmatpush1.bf16.msra.mxu0 %v3974
        %4120 = vmatprep.subr.bf16.mxu0 0
        %4121 = vmatpush1.bf16.msra.mxu0 %v3975
        %4122 = vmatprep.subr.bf16.mxu0 0
        %4123 = vmatpush1.bf16.msra.mxu0 %v3976
        %4124 = vmatprep.subr.bf16.mxu0 0
        %4125 = vmatpush1.bf16.msra.mxu0 %v3977
        %4126 = vmatprep.subr.bf16.mxu0 0
        %4127 = vmatpush1.bf16.msra.mxu0 %v3978
        %4128 = vmatprep.subr.bf16.mxu0 0
        %4129 = vmatpush1.bf16.msra.mxu0 %v3979
        %4130 = vmatprep.subr.bf16.mxu0 0
        %4131 = vmatpush1.bf16.msra.mxu0 %v3980
        %4132 = vmatprep.subr.bf16.mxu0 0
        %4133 = vmatpush1.bf16.msra.mxu0 %v3981
        %4134 = vmatprep.subr.bf16.mxu0 0
        %4135 = vmatpush1.bf16.msra.mxu0 %v3982
        %4136 = vmatprep.subr.bf16.mxu0 0
        %4137 = vmatpush1.bf16.msra.mxu0 %v3983
        %4138 = vmatprep.subr.bf16.mxu0 0
        %4139 = vmatpush1.bf16.msra.mxu0 %v3984
        %4140 = vmatprep.subr.bf16.mxu0 0
        %4141 = vmatpush1.bf16.msra.mxu0 %v3985
        %4142 = vmatprep.subr.bf16.mxu0 0
        %4143 = vmatpush1.bf16.msra.mxu0 %v3986
        %4144 = vmatprep.subr.bf16.mxu0 0
        %4145 = vmatpush1.bf16.msra.mxu0 %v3987
        %4146 = vmatprep.subr.bf16.mxu0 0
        %4147 = vmatpush1.bf16.msra.mxu0 %v3988
        %4148 = vmatprep.subr.bf16.mxu0 0
        %4149 = vmatpush1.bf16.msra.mxu0 %v3989
        %4150 = vmatprep.mubr.bf16.mxu0 %v3399
        %4151 = vmatmul.mubr.bf16.gmra.mrb[0].mxu0 %v3398
        %v4152 = vpop.f32.mrb[0].mxu0
        %v4153 = vadd.f32 0.0, %v4152
        %v4154 = vpop.f32.mrb[0].mxu0
        %v4155 = vpop.f32.mrb[0].mxu0
        %v4156 = vadd.f32 0.0, %v4155
        %v4157 = vpop.f32.mrb[0].mxu0
        %4158 = vmatprep.mubr.bf16.mxu0 %v3408
        %4159 = vmatmul.mubr.bf16.gmra.mrb[0].mxu0 %v3407
        %v4160 = vpop.f32.mrb[0].mxu0
        %v4161 = vadd.f32 0.0, %v4160
        %v4162 = vpop.f32.mrb[0].mxu0
        %v4163 = vpop.f32.mrb[0].mxu0
        %v4164 = vadd.f32 0.0, %v4163
        %v4165 = vpop.f32.mrb[0].mxu0
        %4166 = vmatprep.mubr.bf16.mxu0 %v3417
        %4167 = vmatmul.mubr.bf16.gmra.mrb[0].mxu0 %v3416
        %v4168 = vpop.f32.mrb[0].mxu0
        %v4169 = vadd.f32 0.0, %v4168
        %v4170 = vpop.f32.mrb[0].mxu0
        %v4171 = vpop.f32.mrb[0].mxu0
        %v4172 = vadd.f32 0.0, %v4171
        %v4173 = vpop.f32.mrb[0].mxu0
        %4174 = vmatprep.mubr.bf16.mxu0 %v3426
        %4175 = vmatmul.mubr.bf16.gmra.mrb[0].mxu0 %v3425
        %v4176 = vpop.f32.mrb[0].mxu0
        %v4177 = vadd.f32 0.0, %v4176
        %v4178 = vpop.f32.mrb[0].mxu0
        %v4179 = vpop.f32.mrb[0].mxu0
        %v4180 = vadd.f32 0.0, %v4179
        %v4181 = vpop.f32.mrb[0].mxu0
        %4182 = vmatprep.mubr.bf16.mxu0 %v3435
        %4183 = vmatmul.mubr.bf16.gmra.mrb[0].mxu0 %v3434
        %v4184 = vpop.f32.mrb[0].mxu0
        %v4185 = vadd.f32 0.0, %v4184
        %v4186 = vpop.f32.mrb[0].mxu0
        %v4187 = vpop.f32.mrb[0].mxu0
        %v4188 = vadd.f32 0.0, %v4187
        %v4189 = vpop.f32.mrb[0].mxu0
        %4190 = vmatprep.mubr.bf16.mxu0 %v3444
        %4191 = vmatmul.mubr.bf16.gmra.mrb[0].mxu0 %v3443
        %v4192 = vpop.f32.mrb[0].mxu0
        %v4193 = vadd.f32 0.0, %v4192
        %v4194 = vpop.f32.mrb[0].mxu0
        %v4195 = vpop.f32.mrb[0].mxu0
        %v4196 = vadd.f32 0.0, %v4195
        %v4197 = vpop.f32.mrb[0].mxu0
        %4198 = vmatprep.mubr.bf16.mxu0 %v3453
        %4199 = vmatmul.mubr.bf16.gmra.mrb[0].mxu0 %v3452
        %v4200 = vpop.f32.mrb[0].mxu0
        %v4201 = vadd.f32 0.0, %v4200
        %v4202 = vpop.f32.mrb[0].mxu0
        %v4203 = vpop.f32.mrb[0].mxu0
        %v4204 = vadd.f32 0.0, %v4203
        %v4205 = vpop.f32.mrb[0].mxu0
        %4206 = vmatprep.mubr.bf16.mxu0 %v3462
        %4207 = vmatmul.mubr.bf16.gmra.mrb[0].mxu0 %v3461
        %v4208 = vpop.f32.mrb[0].mxu0
        %v4209 = vadd.f32 0.0, %v4208
        %v4210 = vpop.f32.mrb[0].mxu0
        %v4211 = vpop.f32.mrb[0].mxu0
        %v4212 = vadd.f32 0.0, %v4211
        %v4213 = vpop.f32.mrb[0].mxu0
        %4214 = vmatprep.mubr.bf16.mxu0 %v3471
        %4215 = vmatmul.mubr.bf16.gmra.mrb[0].mxu0 %v3470
        %v4216 = vpop.f32.mrb[0].mxu0
        %v4217 = vadd.f32 0.0, %v4216
        %v4218 = vpop.f32.mrb[0].mxu0
        %v4219 = vpop.f32.mrb[0].mxu0
        %v4220 = vadd.f32 0.0, %v4219
        %v4221 = vpop.f32.mrb[0].mxu0
        %4222 = vmatprep.mubr.bf16.mxu0 %v3480
        %4223 = vmatmul.mubr.bf16.gmra.mrb[0].mxu0 %v3479
        %v4224 = vpop.f32.mrb[0].mxu0
        %v4225 = vadd.f32 0.0, %v4224
        %v4226 = vpop.f32.mrb[0].mxu0
        %v4227 = vpop.f32.mrb[0].mxu0
        %v4228 = vadd.f32 0.0, %v4227
        %v4229 = vpop.f32.mrb[0].mxu0
        %4230 = vmatprep.mubr.bf16.mxu0 %v3489
        %4231 = vmatmul.mubr.bf16.gmra.mrb[0].mxu0 %v3488
        %v4232 = vpop.f32.mrb[0].mxu0
        %v4233 = vadd.f32 0.0, %v4232
        %v4234 = vpop.f32.mrb[0].mxu0
        %v4235 = vpop.f32.mrb[0].mxu0
        %v4236 = vadd.f32 0.0, %v4235
        %v4237 = vpop.f32.mrb[0].mxu0
        %4238 = vmatprep.mubr.bf16.mxu0 %v3498
        %4239 = vmatmul.mubr.bf16.gmra.mrb[0].mxu0 %v3497
        %v4240 = vpop.f32.mrb[0].mxu0
        %v4241 = vadd.f32 0.0, %v4240
        %v4242 = vpop.f32.mrb[0].mxu0
        %v4243 = vpop.f32.mrb[0].mxu0
        %v4244 = vadd.f32 0.0, %v4243
        %v4245 = vpop.f32.mrb[0].mxu0
        %4246 = vmatprep.mubr.bf16.mxu0 %v3507
        %4247 = vmatmul.mubr.bf16.gmra.mrb[0].mxu0 %v3506
        %v4248 = vpop.f32.mrb[0].mxu0
        %v4249 = vadd.f32 0.0, %v4248
        %v4250 = vpop.f32.mrb[0].mxu0
        %v4251 = vpop.f32.mrb[0].mxu0
        %v4252 = vadd.f32 0.0, %v4251
        %v4253 = vpop.f32.mrb[0].mxu0
        %4254 = vmatprep.mubr.bf16.mxu0 %v3516
        %4255 = vmatmul.mubr.bf16.gmra.mrb[0].mxu0 %v3515
        %v4256 = vpop.f32.mrb[0].mxu0
        %v4257 = vadd.f32 0.0, %v4256
        %v4258 = vpop.f32.mrb[0].mxu0
        %v4259 = vpop.f32.mrb[0].mxu0
        %v4260 = vadd.f32 0.0, %v4259
        %v4261 = vpop.f32.mrb[0].mxu0
        %4262 = vmatprep.mubr.bf16.mxu0 %v3525
        %4263 = vmatmul.mubr.bf16.gmra.mrb[0].mxu0 %v3524
        %v4264 = vpop.f32.mrb[0].mxu0
        %v4265 = vadd.f32 0.0, %v4264
        %v4266 = vpop.f32.mrb[0].mxu0
        %v4267 = vpop.f32.mrb[0].mxu0
        %v4268 = vadd.f32 0.0, %v4267
        %v4269 = vpop.f32.mrb[0].mxu0
        %4270 = vmatprep.mubr.bf16.mxu0 %v3534
        %4271 = vmatmul.mubr.bf16.gmra.mrb[0].mxu0 %v3533
        %v4272 = vpop.f32.mrb[0].mxu0
        %v4273 = vadd.f32 0.0, %v4272
        %v4274 = vpop.f32.mrb[0].mxu0
        %v4275 = vpop.f32.mrb[0].mxu0
        %v4276 = vadd.f32 0.0, %v4275
        %v4277 = vpop.f32.mrb[0].mxu0
        %4278 = vdwg.mxu0
        %4279 = vmatprep.subr.bf16.mxu0 0
        %4280 = vmatpush1.bf16.msra.mxu0 %v3990
        %4281 = vmatprep.subr.bf16.mxu0 0
        %4282 = vmatpush1.bf16.msra.mxu0 %v3991
        %4283 = vmatprep.subr.bf16.mxu0 0
        %4284 = vmatpush1.bf16.msra.mxu0 %v3992
        %4285 = vmatprep.subr.bf16.mxu0 0
        %4286 = vmatpush1.bf16.msra.mxu0 %v3993
        %4287 = vmatprep.subr.bf16.mxu0 0
        %4288 = vmatpush1.bf16.msra.mxu0 %v3994
        %4289 = vmatprep.subr.bf16.mxu0 0
        %4290 = vmatpush1.bf16.msra.mxu0 %v3995
        %4291 = vmatprep.subr.bf16.mxu0 0
        %4292 = vmatpush1.bf16.msra.mxu0 %v3996
        %4293 = vmatprep.subr.bf16.mxu0 0
        %4294 = vmatpush1.bf16.msra.mxu0 %v3997
        %4295 = vmatprep.subr.bf16.mxu0 0
        %4296 = vmatpush1.bf16.msra.mxu0 %v3998
        %4297 = vmatprep.subr.bf16.mxu0 0
        %4298 = vmatpush1.bf16.msra.mxu0 %v3999
        %4299 = vmatprep.subr.bf16.mxu0 0
        %4300 = vmatpush1.bf16.msra.mxu0 %v4000
        %4301 = vmatprep.subr.bf16.mxu0 0
        %4302 = vmatpush1.bf16.msra.mxu0 %v4001
        %4303 = vmatprep.subr.bf16.mxu0 0
        %4304 = vmatpush1.bf16.msra.mxu0 %v4002
        %4305 = vmatprep.subr.bf16.mxu0 0
        %4306 = vmatpush1.bf16.msra.mxu0 %v4003
        %4307 = vmatprep.subr.bf16.mxu0 0
        %4308 = vmatpush1.bf16.msra.mxu0 %v4004
        %4309 = vmatprep.subr.bf16.mxu0 0
        %4310 = vmatpush1.bf16.msra.mxu0 %v4005
        %4311 = vmatprep.mubr.bf16.mxu0 %v3401
        %4312 = vmatmul.mubr.bf16.gmra.mrb[0].mxu0 %v3400
        %v4313 = vpop.f32.mrb[0].mxu0
        %v4314 = vadd.f32 %v4153, %v4313
        %v4315 = vpop.f32.mrb[0].mxu0
        %v4316 = vpop.f32.mrb[0].mxu0
        %v4317 = vadd.f32 %v4156, %v4316
        %v4318 = vpop.f32.mrb[0].mxu0
        %4319 = vmatprep.mubr.bf16.mxu0 %v3410
        %4320 = vmatmul.mubr.bf16.gmra.mrb[0].mxu0 %v3409
        %v4321 = vpop.f32.mrb[0].mxu0
        %v4322 = vadd.f32 %v4161, %v4321
        %v4323 = vpop.f32.mrb[0].mxu0
        %v4324 = vpop.f32.mrb[0].mxu0
        %v4325 = vadd.f32 %v4164, %v4324
        %v4326 = vpop.f32.mrb[0].mxu0
        %4327 = vmatprep.mubr.bf16.mxu0 %v3419
        %4328 = vmatmul.mubr.bf16.gmra.mrb[0].mxu0 %v3418
        %v4329 = vpop.f32.mrb[0].mxu0
        %v4330 = vadd.f32 %v4169, %v4329
        %v4331 = vpop.f32.mrb[0].mxu0
        %v4332 = vpop.f32.mrb[0].mxu0
        %v4333 = vadd.f32 %v4172, %v4332
        %v4334 = vpop.f32.mrb[0].mxu0
        %4335 = vmatprep.mubr.bf16.mxu0 %v3428
        %4336 = vmatmul.mubr.bf16.gmra.mrb[0].mxu0 %v3427
        %v4337 = vpop.f32.mrb[0].mxu0
        %v4338 = vadd.f32 %v4177, %v4337
        %v4339 = vpop.f32.mrb[0].mxu0
        %v4340 = vpop.f32.mrb[0].mxu0
        %v4341 = vadd.f32 %v4180, %v4340
        %v4342 = vpop.f32.mrb[0].mxu0
        %4343 = vmatprep.mubr.bf16.mxu0 %v3437
        %4344 = vmatmul.mubr.bf16.gmra.mrb[0].mxu0 %v3436
        %v4345 = vpop.f32.mrb[0].mxu0
        %v4346 = vadd.f32 %v4185, %v4345
        %v4347 = vpop.f32.mrb[0].mxu0
        %v4348 = vpop.f32.mrb[0].mxu0
        %v4349 = vadd.f32 %v4188, %v4348
        %v4350 = vpop.f32.mrb[0].mxu0
        %4351 = vmatprep.mubr.bf16.mxu0 %v3446
        %4352 = vmatmul.mubr.bf16.gmra.mrb[0].mxu0 %v3445
        %v4353 = vpop.f32.mrb[0].mxu0
        %v4354 = vadd.f32 %v4193, %v4353
        %v4355 = vpop.f32.mrb[0].mxu0
        %v4356 = vpop.f32.mrb[0].mxu0
        %v4357 = vadd.f32 %v4196, %v4356
        %v4358 = vpop.f32.mrb[0].mxu0
        %4359 = vmatprep.mubr.bf16.mxu0 %v3455
        %4360 = vmatmul.mubr.bf16.gmra.mrb[0].mxu0 %v3454
        %v4361 = vpop.f32.mrb[0].mxu0
        %v4362 = vadd.f32 %v4201, %v4361
        %v4363 = vpop.f32.mrb[0].mxu0
        %v4364 = vpop.f32.mrb[0].mxu0
        %v4365 = vadd.f32 %v4204, %v4364
        %v4366 = vpop.f32.mrb[0].mxu0
        %4367 = vmatprep.mubr.bf16.mxu0 %v3464
        %4368 = vmatmul.mubr.bf16.gmra.mrb[0].mxu0 %v3463
        %v4369 = vpop.f32.mrb[0].mxu0
        %v4370 = vadd.f32 %v4209, %v4369
        %v4371 = vpop.f32.mrb[0].mxu0
        %v4372 = vpop.f32.mrb[0].mxu0
        %v4373 = vadd.f32 %v4212, %v4372
        %v4374 = vpop.f32.mrb[0].mxu0
        %4375 = vmatprep.mubr.bf16.mxu0 %v3473
        %4376 = vmatmul.mubr.bf16.gmra.mrb[0].mxu0 %v3472
        %v4377 = vpop.f32.mrb[0].mxu0
        %v4378 = vadd.f32 %v4217, %v4377
        %v4379 = vpop.f32.mrb[0].mxu0
        %v4380 = vpop.f32.mrb[0].mxu0
        %v4381 = vadd.f32 %v4220, %v4380
        %v4382 = vpop.f32.mrb[0].mxu0
        %4383 = vmatprep.mubr.bf16.mxu0 %v3482
        %4384 = vmatmul.mubr.bf16.gmra.mrb[0].mxu0 %v3481
        %v4385 = vpop.f32.mrb[0].mxu0
        %v4386 = vadd.f32 %v4225, %v4385
        %v4387 = vpop.f32.mrb[0].mxu0
        %v4388 = vpop.f32.mrb[0].mxu0
        %v4389 = vadd.f32 %v4228, %v4388
        %v4390 = vpop.f32.mrb[0].mxu0
        %4391 = vmatprep.mubr.bf16.mxu0 %v3491
        %4392 = vmatmul.mubr.bf16.gmra.mrb[0].mxu0 %v3490
        %v4393 = vpop.f32.mrb[0].mxu0
        %v4394 = vadd.f32 %v4233, %v4393
        %v4395 = vpop.f32.mrb[0].mxu0
        %v4396 = vpop.f32.mrb[0].mxu0
        %v4397 = vadd.f32 %v4236, %v4396
        %v4398 = vpop.f32.mrb[0].mxu0
        %4399 = vmatprep.mubr.bf16.mxu0 %v3500
        %4400 = vmatmul.mubr.bf16.gmra.mrb[0].mxu0 %v3499
        %v4401 = vpop.f32.mrb[0].mxu0
        %v4402 = vadd.f32 %v4241, %v4401
        %v4403 = vpop.f32.mrb[0].mxu0
        %v4404 = vpop.f32.mrb[0].mxu0
        %v4405 = vadd.f32 %v4244, %v4404
        %v4406 = vpop.f32.mrb[0].mxu0
        %4407 = vmatprep.mubr.bf16.mxu0 %v3509
        %4408 = vmatmul.mubr.bf16.gmra.mrb[0].mxu0 %v3508
        %v4409 = vpop.f32.mrb[0].mxu0
        %v4410 = vadd.f32 %v4249, %v4409
        %v4411 = vpop.f32.mrb[0].mxu0
        %v4412 = vpop.f32.mrb[0].mxu0
        %v4413 = vadd.f32 %v4252, %v4412
        %v4414 = vpop.f32.mrb[0].mxu0
        %4415 = vmatprep.mubr.bf16.mxu0 %v3518
        %4416 = vmatmul.mubr.bf16.gmra.mrb[0].mxu0 %v3517
        %v4417 = vpop.f32.mrb[0].mxu0
        %v4418 = vadd.f32 %v4257, %v4417
        %v4419 = vpop.f32.mrb[0].mxu0
        %v4420 = vpop.f32.mrb[0].mxu0
        %v4421 = vadd.f32 %v4260, %v4420
        %v4422 = vpop.f32.mrb[0].mxu0
        %4423 = vmatprep.mubr.bf16.mxu0 %v3527
        %4424 = vmatmul.mubr.bf16.gmra.mrb[0].mxu0 %v3526
        %v4425 = vpop.f32.mrb[0].mxu0
        %v4426 = vadd.f32 %v4265, %v4425
        %v4427 = vpop.f32.mrb[0].mxu0
        %v4428 = vpop.f32.mrb[0].mxu0
        %v4429 = vadd.f32 %v4268, %v4428
        %v4430 = vpop.f32.mrb[0].mxu0
        %4431 = vmatprep.mubr.bf16.mxu0 %v3536
        %4432 = vmatmul.mubr.bf16.gmra.mrb[0].mxu0 %v3535
        %v4433 = vpop.f32.mrb[0].mxu0
        %v4434 = vadd.f32 %v4273, %v4433
        %v4435 = vpop.f32.mrb[0].mxu0
        %v4436 = vpop.f32.mrb[0].mxu0
        %v4437 = vadd.f32 %v4276, %v4436
        %v4438 = vpop.f32.mrb[0].mxu0
        %4439 = vdwg.mxu0
        %4440 = vmatprep.subr.bf16.mxu0 0
        %4441 = vmatpush1.bf16.msra.mxu0 %v4006
        %4442 = vmatprep.subr.bf16.mxu0 0
        %4443 = vmatpush1.bf16.msra.mxu0 %v4007
        %4444 = vmatprep.subr.bf16.mxu0 0
        %4445 = vmatpush1.bf16.msra.mxu0 %v4008
        %4446 = vmatprep.subr.bf16.mxu0 0
        %4447 = vmatpush1.bf16.msra.mxu0 %v4009
        %4448 = vmatprep.subr.bf16.mxu0 0
        %4449 = vmatpush1.bf16.msra.mxu0 %v4010
        %4450 = vmatprep.subr.bf16.mxu0 0
        %4451 = vmatpush1.bf16.msra.mxu0 %v4011
        %4452 = vmatprep.subr.bf16.mxu0 0
        %4453 = vmatpush1.bf16.msra.mxu0 %v4012
        %4454 = vmatprep.subr.bf16.mxu0 0
        %4455 = vmatpush1.bf16.msra.mxu0 %v4013
        %4456 = vmatprep.subr.bf16.mxu0 0
        %4457 = vmatpush1.bf16.msra.mxu0 %v4014
        %4458 = vmatprep.subr.bf16.mxu0 0
        %4459 = vmatpush1.bf16.msra.mxu0 %v4015
        %4460 = vmatprep.subr.bf16.mxu0 0
        %4461 = vmatpush1.bf16.msra.mxu0 %v4016
        %4462 = vmatprep.subr.bf16.mxu0 0
        %4463 = vmatpush1.bf16.msra.mxu0 %v4017
        %4464 = vmatprep.subr.bf16.mxu0 0
        %4465 = vmatpush1.bf16.msra.mxu0 %v4018
        %4466 = vmatprep.subr.bf16.mxu0 0
        %4467 = vmatpush1.bf16.msra.mxu0 %v4019
        %4468 = vmatprep.subr.bf16.mxu0 0
        %4469 = vmatpush1.bf16.msra.mxu0 %v4020
        %4470 = vmatprep.subr.bf16.mxu0 0
        %4471 = vmatpush1.bf16.msra.mxu0 %v4021
        %4472 = vmatprep.mubr.bf16.mxu0 %v3403
        %4473 = vmatmul.mubr.bf16.gmra.mrb[0].mxu0 %v3402
        %v4474 = vpop.f32.mrb[0].mxu0
        %v4475 = vadd.f32 %v4314, %v4474
        %v4476 = vpop.f32.mrb[0].mxu0
        %v4477 = vpop.f32.mrb[0].mxu0
        %v4478 = vadd.f32 %v4317, %v4477
        %v4479 = vpop.f32.mrb[0].mxu0
        %4480 = vmatprep.mubr.bf16.mxu0 %v3412
        %4481 = vmatmul.mubr.bf16.gmra.mrb[0].mxu0 %v3411
        %v4482 = vpop.f32.mrb[0].mxu0
        %v4483 = vadd.f32 %v4322, %v4482
        %v4484 = vpop.f32.mrb[0].mxu0
        %v4485 = vpop.f32.mrb[0].mxu0
        %v4486 = vadd.f32 %v4325, %v4485
        %v4487 = vpop.f32.mrb[0].mxu0
        %4488 = vmatprep.mubr.bf16.mxu0 %v3421
        %4489 = vmatmul.mubr.bf16.gmra.mrb[0].mxu0 %v3420
        %v4490 = vpop.f32.mrb[0].mxu0
        %v4491 = vadd.f32 %v4330, %v4490
        %v4492 = vpop.f32.mrb[0].mxu0
        %v4493 = vpop.f32.mrb[0].mxu0
        %v4494 = vadd.f32 %v4333, %v4493
        %v4495 = vpop.f32.mrb[0].mxu0
        %4496 = vmatprep.mubr.bf16.mxu0 %v3430
        %4497 = vmatmul.mubr.bf16.gmra.mrb[0].mxu0 %v3429
        %v4498 = vpop.f32.mrb[0].mxu0
        %v4499 = vadd.f32 %v4338, %v4498
        %v4500 = vpop.f32.mrb[0].mxu0
        %v4501 = vpop.f32.mrb[0].mxu0
        %v4502 = vadd.f32 %v4341, %v4501
        %v4503 = vpop.f32.mrb[0].mxu0
        %4504 = vmatprep.mubr.bf16.mxu0 %v3439
        %4505 = vmatmul.mubr.bf16.gmra.mrb[0].mxu0 %v3438
        %v4506 = vpop.f32.mrb[0].mxu0
        %v4507 = vadd.f32 %v4346, %v4506
        %v4508 = vpop.f32.mrb[0].mxu0
        %v4509 = vpop.f32.mrb[0].mxu0
        %v4510 = vadd.f32 %v4349, %v4509
        %v4511 = vpop.f32.mrb[0].mxu0
        %4512 = vmatprep.mubr.bf16.mxu0 %v3448
        %4513 = vmatmul.mubr.bf16.gmra.mrb[0].mxu0 %v3447
        %v4514 = vpop.f32.mrb[0].mxu0
        %v4515 = vadd.f32 %v4354, %v4514
        %v4516 = vpop.f32.mrb[0].mxu0
        %v4517 = vpop.f32.mrb[0].mxu0
        %v4518 = vadd.f32 %v4357, %v4517
        %v4519 = vpop.f32.mrb[0].mxu0
        %4520 = vmatprep.mubr.bf16.mxu0 %v3457
        %4521 = vmatmul.mubr.bf16.gmra.mrb[0].mxu0 %v3456
        %v4522 = vpop.f32.mrb[0].mxu0
        %v4523 = vadd.f32 %v4362, %v4522
        %v4524 = vpop.f32.mrb[0].mxu0
        %v4525 = vpop.f32.mrb[0].mxu0
        %v4526 = vadd.f32 %v4365, %v4525
        %v4527 = vpop.f32.mrb[0].mxu0
        %4528 = vmatprep.mubr.bf16.mxu0 %v3466
        %4529 = vmatmul.mubr.bf16.gmra.mrb[0].mxu0 %v3465
        %v4530 = vpop.f32.mrb[0].mxu0
        %v4531 = vadd.f32 %v4370, %v4530
        %v4532 = vpop.f32.mrb[0].mxu0
        %v4533 = vpop.f32.mrb[0].mxu0
        %v4534 = vadd.f32 %v4373, %v4533
        %v4535 = vpop.f32.mrb[0].mxu0
        %4536 = vmatprep.mubr.bf16.mxu0 %v3475
        %4537 = vmatmul.mubr.bf16.gmra.mrb[0].mxu0 %v3474
        %v4538 = vpop.f32.mrb[0].mxu0
        %v4539 = vadd.f32 %v4378, %v4538
        %v4540 = vpop.f32.mrb[0].mxu0
        %v4541 = vpop.f32.mrb[0].mxu0
        %v4542 = vadd.f32 %v4381, %v4541
        %v4543 = vpop.f32.mrb[0].mxu0
        %4544 = vmatprep.mubr.bf16.mxu0 %v3484
        %4545 = vmatmul.mubr.bf16.gmra.mrb[0].mxu0 %v3483
        %v4546 = vpop.f32.mrb[0].mxu0
        %v4547 = vadd.f32 %v4386, %v4546
        %v4548 = vpop.f32.mrb[0].mxu0
        %v4549 = vpop.f32.mrb[0].mxu0
        %v4550 = vadd.f32 %v4389, %v4549
        %v4551 = vpop.f32.mrb[0].mxu0
        %4552 = vmatprep.mubr.bf16.mxu0 %v3493
        %4553 = vmatmul.mubr.bf16.gmra.mrb[0].mxu0 %v3492
        %v4554 = vpop.f32.mrb[0].mxu0
        %v4555 = vadd.f32 %v4394, %v4554
        %v4556 = vpop.f32.mrb[0].mxu0
        %v4557 = vpop.f32.mrb[0].mxu0
        %v4558 = vadd.f32 %v4397, %v4557
        %v4559 = vpop.f32.mrb[0].mxu0
        %4560 = vmatprep.mubr.bf16.mxu0 %v3502
        %4561 = vmatmul.mubr.bf16.gmra.mrb[0].mxu0 %v3501
        %v4562 = vpop.f32.mrb[0].mxu0
        %v4563 = vadd.f32 %v4402, %v4562
        %v4564 = vpop.f32.mrb[0].mxu0
        %v4565 = vpop.f32.mrb[0].mxu0
        %v4566 = vadd.f32 %v4405, %v4565
        %v4567 = vpop.f32.mrb[0].mxu0
        %4568 = vmatprep.mubr.bf16.mxu0 %v3511
        %4569 = vmatmul.mubr.bf16.gmra.mrb[0].mxu0 %v3510
        %v4570 = vpop.f32.mrb[0].mxu0
        %v4571 = vadd.f32 %v4410, %v4570
        %v4572 = vpop.f32.mrb[0].mxu0
        %v4573 = vpop.f32.mrb[0].mxu0
        %v4574 = vadd.f32 %v4413, %v4573
        %v4575 = vpop.f32.mrb[0].mxu0
        %4576 = vmatprep.mubr.bf16.mxu0 %v3520
        %4577 = vmatmul.mubr.bf16.gmra.mrb[0].mxu0 %v3519
        %v4578 = vpop.f32.mrb[0].mxu0
        %v4579 = vadd.f32 %v4418, %v4578
        %v4580 = vpop.f32.mrb[0].mxu0
        %v4581 = vpop.f32.mrb[0].mxu0
        %v4582 = vadd.f32 %v4421, %v4581
        %v4583 = vpop.f32.mrb[0].mxu0
        %4584 = vmatprep.mubr.bf16.mxu0 %v3529
        %4585 = vmatmul.mubr.bf16.gmra.mrb[0].mxu0 %v3528
        %v4586 = vpop.f32.mrb[0].mxu0
        %v4587 = vadd.f32 %v4426, %v4586
        %v4588 = vpop.f32.mrb[0].mxu0
        %v4589 = vpop.f32.mrb[0].mxu0
        %v4590 = vadd.f32 %v4429, %v4589
        %v4591 = vpop.f32.mrb[0].mxu0
        %4592 = vmatprep.mubr.bf16.mxu0 %v3538
        %4593 = vmatmul.mubr.bf16.gmra.mrb[0].mxu0 %v3537
        %v4594 = vpop.f32.mrb[0].mxu0
        %v4595 = vadd.f32 %v4434, %v4594
        %v4596 = vpop.f32.mrb[0].mxu0
        %v4597 = vpop.f32.mrb[0].mxu0
        %v4598 = vadd.f32 %v4437, %v4597
        %v4599 = vpop.f32.mrb[0].mxu0
        %4600 = vdwg.mxu0
        %4601 = vmatprep.subr.bf16.mxu0 0
        %4602 = vmatpush1.bf16.msra.mxu0 %v4022
        %4603 = vmatprep.subr.bf16.mxu0 0
        %4604 = vmatpush1.bf16.msra.mxu0 %v4023
        %4605 = vmatprep.subr.bf16.mxu0 0
        %4606 = vmatpush1.bf16.msra.mxu0 %v4024
        %4607 = vmatprep.subr.bf16.mxu0 0
        %4608 = vmatpush1.bf16.msra.mxu0 %v4025
        %4609 = vmatprep.subr.bf16.mxu0 0
        %4610 = vmatpush1.bf16.msra.mxu0 %v4026
        %4611 = vmatprep.subr.bf16.mxu0 0
        %4612 = vmatpush1.bf16.msra.mxu0 %v4027
        %4613 = vmatprep.subr.bf16.mxu0 0
        %4614 = vmatpush1.bf16.msra.mxu0 %v4028
        %4615 = vmatprep.subr.bf16.mxu0 0
        %4616 = vmatpush1.bf16.msra.mxu0 %v4029
        %4617 = vmatprep.subr.bf16.mxu0 0
        %4618 = vmatpush1.bf16.msra.mxu0 %v4030
        %4619 = vmatprep.subr.bf16.mxu0 0
        %4620 = vmatpush1.bf16.msra.mxu0 %v4031
        %4621 = vmatprep.subr.bf16.mxu0 0
        %4622 = vmatpush1.bf16.msra.mxu0 %v4032
        %4623 = vmatprep.subr.bf16.mxu0 0
        %4624 = vmatpush1.bf16.msra.mxu0 %v4033
        %4625 = vmatprep.subr.bf16.mxu0 0
        %4626 = vmatpush1.bf16.msra.mxu0 %v4034
        %4627 = vmatprep.subr.bf16.mxu0 0
        %4628 = vmatpush1.bf16.msra.mxu0 %v4035
        %4629 = vmatprep.subr.bf16.mxu0 0
        %4630 = vmatpush1.bf16.msra.mxu0 %v4036
        %4631 = vmatprep.subr.bf16.mxu0 0
        %4632 = vmatpush1.bf16.msra.mxu0 %v4037
        %4633 = vmatprep.mubr.bf16.mxu0 %v3405
        %4634 = vmatmul.mubr.bf16.gmra.mrb[0].mxu0 %v3404
        %v4635 = vpop.f32.mrb[0].mxu0
        %v4636 = vadd.f32 %v4475, %v4635
        %v4637 = vpop.f32.mrb[0].mxu0
        %v4638 = vpop.f32.mrb[0].mxu0
        %v4639 = vadd.f32 %v4478, %v4638
        %v4640 = vpop.f32.mrb[0].mxu0
        %4641 = vmatprep.mubr.bf16.mxu0 %v3414
        %4642 = vmatmul.mubr.bf16.gmra.mrb[0].mxu0 %v3413
        %v4643 = vpop.f32.mrb[0].mxu0
        %v4644 = vadd.f32 %v4483, %v4643
        %v4645 = vpop.f32.mrb[0].mxu0
        %v4646 = vpop.f32.mrb[0].mxu0
        %v4647 = vadd.f32 %v4486, %v4646
        %v4648 = vpop.f32.mrb[0].mxu0
        %4649 = vmatprep.mubr.bf16.mxu0 %v3423
        %4650 = vmatmul.mubr.bf16.gmra.mrb[0].mxu0 %v3422
        %v4651 = vpop.f32.mrb[0].mxu0
        %v4652 = vadd.f32 %v4491, %v4651
        %v4653 = vpop.f32.mrb[0].mxu0
        %v4654 = vpop.f32.mrb[0].mxu0
        %v4655 = vadd.f32 %v4494, %v4654
        %v4656 = vpop.f32.mrb[0].mxu0
        %4657 = vmatprep.mubr.bf16.mxu0 %v3432
        %4658 = vmatmul.mubr.bf16.gmra.mrb[0].mxu0 %v3431
        %v4659 = vpop.f32.mrb[0].mxu0
        %v4660 = vadd.f32 %v4499, %v4659
        %v4661 = vpop.f32.mrb[0].mxu0
        %v4662 = vpop.f32.mrb[0].mxu0
        %v4663 = vadd.f32 %v4502, %v4662
        %v4664 = vpop.f32.mrb[0].mxu0
        %4665 = vmatprep.mubr.bf16.mxu0 %v3441
        %4666 = vmatmul.mubr.bf16.gmra.mrb[0].mxu0 %v3440
        %v4667 = vpop.f32.mrb[0].mxu0
        %v4668 = vadd.f32 %v4507, %v4667
        %v4669 = vpop.f32.mrb[0].mxu0
        %v4670 = vpop.f32.mrb[0].mxu0
        %v4671 = vadd.f32 %v4510, %v4670
        %v4672 = vpop.f32.mrb[0].mxu0
        %4673 = vmatprep.mubr.bf16.mxu0 %v3450
        %4674 = vmatmul.mubr.bf16.gmra.mrb[0].mxu0 %v3449
        %v4675 = vpop.f32.mrb[0].mxu0
        %v4676 = vadd.f32 %v4515, %v4675
        %v4677 = vpop.f32.mrb[0].mxu0
        %v4678 = vpop.f32.mrb[0].mxu0
        %v4679 = vadd.f32 %v4518, %v4678
        %v4680 = vpop.f32.mrb[0].mxu0
        %4681 = vmatprep.mubr.bf16.mxu0 %v3459
        %4682 = vmatmul.mubr.bf16.gmra.mrb[0].mxu0 %v3458
        %v4683 = vpop.f32.mrb[0].mxu0
        %v4684 = vadd.f32 %v4523, %v4683
        %v4685 = vpop.f32.mrb[0].mxu0
        %v4686 = vpop.f32.mrb[0].mxu0
        %v4687 = vadd.f32 %v4526, %v4686
        %v4688 = vpop.f32.mrb[0].mxu0
        %4689 = vmatprep.mubr.bf16.mxu0 %v3468
        %4690 = vmatmul.mubr.bf16.gmra.mrb[0].mxu0 %v3467
        %v4691 = vpop.f32.mrb[0].mxu0
        %v4692 = vadd.f32 %v4531, %v4691
        %v4693 = vpop.f32.mrb[0].mxu0
        %v4694 = vpop.f32.mrb[0].mxu0
        %v4695 = vadd.f32 %v4534, %v4694
        %v4696 = vpop.f32.mrb[0].mxu0
        %4697 = vmatprep.mubr.bf16.mxu0 %v3477
        %4698 = vmatmul.mubr.bf16.gmra.mrb[0].mxu0 %v3476
        %v4699 = vpop.f32.mrb[0].mxu0
        %v4700 = vadd.f32 %v4539, %v4699
        %v4701 = vpop.f32.mrb[0].mxu0
        %v4702 = vpop.f32.mrb[0].mxu0
        %v4703 = vadd.f32 %v4542, %v4702
        %v4704 = vpop.f32.mrb[0].mxu0
        %4705 = vmatprep.mubr.bf16.mxu0 %v3486
        %4706 = vmatmul.mubr.bf16.gmra.mrb[0].mxu0 %v3485
        %v4707 = vpop.f32.mrb[0].mxu0
        %v4708 = vadd.f32 %v4547, %v4707
        %v4709 = vpop.f32.mrb[0].mxu0
        %v4710 = vpop.f32.mrb[0].mxu0
        %v4711 = vadd.f32 %v4550, %v4710
        %v4712 = vpop.f32.mrb[0].mxu0
        %4713 = vmatprep.mubr.bf16.mxu0 %v3495
        %4714 = vmatmul.mubr.bf16.gmra.mrb[0].mxu0 %v3494
        %v4715 = vpop.f32.mrb[0].mxu0
        %v4716 = vadd.f32 %v4555, %v4715
        %v4717 = vpop.f32.mrb[0].mxu0
        %v4718 = vpop.f32.mrb[0].mxu0
        %v4719 = vadd.f32 %v4558, %v4718
        %v4720 = vpop.f32.mrb[0].mxu0
        %4721 = vmatprep.mubr.bf16.mxu0 %v3504
        %4722 = vmatmul.mubr.bf16.gmra.mrb[0].mxu0 %v3503
        %v4723 = vpop.f32.mrb[0].mxu0
        %v4724 = vadd.f32 %v4563, %v4723
        %v4725 = vpop.f32.mrb[0].mxu0
        %v4726 = vpop.f32.mrb[0].mxu0
        %v4727 = vadd.f32 %v4566, %v4726
        %v4728 = vpop.f32.mrb[0].mxu0
        %4729 = vmatprep.mubr.bf16.mxu0 %v3513
        %4730 = vmatmul.mubr.bf16.gmra.mrb[0].mxu0 %v3512
        %v4731 = vpop.f32.mrb[0].mxu0
        %v4732 = vadd.f32 %v4571, %v4731
        %v4733 = vpop.f32.mrb[0].mxu0
        %v4734 = vpop.f32.mrb[0].mxu0
        %v4735 = vadd.f32 %v4574, %v4734
        %v4736 = vpop.f32.mrb[0].mxu0
        %4737 = vmatprep.mubr.bf16.mxu0 %v3522
        %4738 = vmatmul.mubr.bf16.gmra.mrb[0].mxu0 %v3521
        %v4739 = vpop.f32.mrb[0].mxu0
        %v4740 = vadd.f32 %v4579, %v4739
        %v4741 = vpop.f32.mrb[0].mxu0
        %v4742 = vpop.f32.mrb[0].mxu0
        %v4743 = vadd.f32 %v4582, %v4742
        %v4744 = vpop.f32.mrb[0].mxu0
        %4745 = vmatprep.mubr.bf16.mxu0 %v3531
        %4746 = vmatmul.mubr.bf16.gmra.mrb[0].mxu0 %v3530
        %v4747 = vpop.f32.mrb[0].mxu0
        %v4748 = vadd.f32 %v4587, %v4747
        %v4749 = vpop.f32.mrb[0].mxu0
        %v4750 = vpop.f32.mrb[0].mxu0
        %v4751 = vadd.f32 %v4590, %v4750
        %v4752 = vpop.f32.mrb[0].mxu0
        %4753 = vmatprep.mubr.bf16.mxu0 %v3540
        %4754 = vmatmul.mubr.bf16.gmra.mrb[0].mxu0 %v3539
        %v4755 = vpop.f32.mrb[0].mxu0
        %v4756 = vadd.f32 %v4595, %v4755
        %v4757 = vpop.f32.mrb[0].mxu0
        %v4758 = vpop.f32.mrb[0].mxu0
        %v4759 = vadd.f32 %v4598, %v4758
        %v4760 = vpop.f32.mrb[0].mxu0
        %4761 = vdwg.mxu0
        %4762 = vmatprep.subr.bf16.mxu0 0
        %4763 = vmatpush1.bf16.msra.mxu0 %v4038
        %4764 = vmatprep.subr.bf16.mxu0 0
        %4765 = vmatpush1.bf16.msra.mxu0 %v4039
        %4766 = vmatprep.subr.bf16.mxu0 0
        %4767 = vmatpush1.bf16.msra.mxu0 %v4040
        %4768 = vmatprep.subr.bf16.mxu0 0
        %4769 = vmatpush1.bf16.msra.mxu0 %v4041
        %4770 = vmatprep.subr.bf16.mxu0 0
        %4771 = vmatpush1.bf16.msra.mxu0 %v4042
        %4772 = vmatprep.subr.bf16.mxu0 0
        %4773 = vmatpush1.bf16.msra.mxu0 %v4043
        %4774 = vmatprep.subr.bf16.mxu0 0
        %4775 = vmatpush1.bf16.msra.mxu0 %v4044
        %4776 = vmatprep.subr.bf16.mxu0 0
        %4777 = vmatpush1.bf16.msra.mxu0 %v4045
        %4778 = vmatprep.subr.bf16.mxu0 0
        %4779 = vmatpush1.bf16.msra.mxu0 0
        %4780 = vmatprep.subr.bf16.mxu0 0
        %4781 = vmatpush1.bf16.msra.mxu0 0
        %4782 = vmatprep.subr.bf16.mxu0 0
        %4783 = vmatpush1.bf16.msra.mxu0 0
        %4784 = vmatprep.subr.bf16.mxu0 0
        %4785 = vmatpush1.bf16.msra.mxu0 0
        %4786 = vmatprep.subr.bf16.mxu0 0
        %4787 = vmatpush1.bf16.msra.mxu0 0
        %4788 = vmatprep.subr.bf16.mxu0 0
        %4789 = vmatpush1.bf16.msra.mxu0 0
        %4790 = vmatprep.subr.bf16.mxu0 0
        %4791 = vmatpush1.bf16.msra.mxu0 0
        %4792 = vmatprep.subr.bf16.mxu0 0
        %4793 = vmatpush1.bf16.msra.mxu0 0
        %4794 = vmatprep.mubr.bf16.mxu0 0
        %4795 = vmatmul.mubr.bf16.gmra.mrb[0].mxu0 %v3406
        %v4796 = vpop.f32.mrb[0].mxu0
        %v4797 = vadd.f32 %v4636, %v4796
        %v4798 = vpop.f32.mrb[0].mxu0
        %v4799 = vpop.f32.mrb[0].mxu0
        %v4800 = vadd.f32 %v4639, %v4799
        %v4801 = vpop.f32.mrb[0].mxu0
        %4802 = vmatprep.mubr.bf16.mxu0 0
        %4803 = vmatmul.mubr.bf16.gmra.mrb[0].mxu0 %v3415
        %v4804 = vpop.f32.mrb[0].mxu0
        %v4805 = vadd.f32 %v4644, %v4804
        %v4806 = vpop.f32.mrb[0].mxu0
        %v4807 = vpop.f32.mrb[0].mxu0
        %v4808 = vadd.f32 %v4647, %v4807
        %v4809 = vpop.f32.mrb[0].mxu0
        %4810 = vmatprep.mubr.bf16.mxu0 0
        %4811 = vmatmul.mubr.bf16.gmra.mrb[0].mxu0 %v3424
        %v4812 = vpop.f32.mrb[0].mxu0
        %v4813 = vadd.f32 %v4652, %v4812
        %v4814 = vpop.f32.mrb[0].mxu0
        %v4815 = vpop.f32.mrb[0].mxu0
        %v4816 = vadd.f32 %v4655, %v4815
        %v4817 = vpop.f32.mrb[0].mxu0
        %4818 = vmatprep.mubr.bf16.mxu0 0
        %4819 = vmatmul.mubr.bf16.gmra.mrb[0].mxu0 %v3433
        %v4820 = vpop.f32.mrb[0].mxu0
        %v4821 = vadd.f32 %v4660, %v4820
        %v4822 = vpop.f32.mrb[0].mxu0
        %v4823 = vpop.f32.mrb[0].mxu0
        %v4824 = vadd.f32 %v4663, %v4823
        %v4825 = vpop.f32.mrb[0].mxu0
        %4826 = vmatprep.mubr.bf16.mxu0 0
        %4827 = vmatmul.mubr.bf16.gmra.mrb[0].mxu0 %v3442
        %v4828 = vpop.f32.mrb[0].mxu0
        %v4829 = vadd.f32 %v4668, %v4828
        %v4830 = vpop.f32.mrb[0].mxu0
        %v4831 = vpop.f32.mrb[0].mxu0
        %v4832 = vadd.f32 %v4671, %v4831
        %v4833 = vpop.f32.mrb[0].mxu0
        %4834 = vmatprep.mubr.bf16.mxu0 0
        %4835 = vmatmul.mubr.bf16.gmra.mrb[0].mxu0 %v3451
        %v4836 = vpop.f32.mrb[0].mxu0
        %v4837 = vadd.f32 %v4676, %v4836
        %v4838 = vpop.f32.mrb[0].mxu0
        %v4839 = vpop.f32.mrb[0].mxu0
        %v4840 = vadd.f32 %v4679, %v4839
        %v4841 = vpop.f32.mrb[0].mxu0
        %4842 = vmatprep.mubr.bf16.mxu0 0
        %4843 = vmatmul.mubr.bf16.gmra.mrb[0].mxu0 %v3460
        %v4844 = vpop.f32.mrb[0].mxu0
        %v4845 = vadd.f32 %v4684, %v4844
        %v4846 = vpop.f32.mrb[0].mxu0
        %v4847 = vpop.f32.mrb[0].mxu0
        %v4848 = vadd.f32 %v4687, %v4847
        %v4849 = vpop.f32.mrb[0].mxu0
        %4850 = vmatprep.mubr.bf16.mxu0 0
        %4851 = vmatmul.mubr.bf16.gmra.mrb[0].mxu0 %v3469
        %v4852 = vpop.f32.mrb[0].mxu0
        %v4853 = vadd.f32 %v4692, %v4852
        %v4854 = vpop.f32.mrb[0].mxu0
        %v4855 = vpop.f32.mrb[0].mxu0
        %v4856 = vadd.f32 %v4695, %v4855
        %v4857 = vpop.f32.mrb[0].mxu0
        %4858 = vmatprep.mubr.bf16.mxu0 0
        %4859 = vmatmul.mubr.bf16.gmra.mrb[0].mxu0 %v3478
        %v4860 = vpop.f32.mrb[0].mxu0
        %v4861 = vadd.f32 %v4700, %v4860
        %v4862 = vpop.f32.mrb[0].mxu0
        %v4863 = vpop.f32.mrb[0].mxu0
        %v4864 = vadd.f32 %v4703, %v4863
        %v4865 = vpop.f32.mrb[0].mxu0
        %4866 = vmatprep.mubr.bf16.mxu0 0
        %4867 = vmatmul.mubr.bf16.gmra.mrb[0].mxu0 %v3487
        %v4868 = vpop.f32.mrb[0].mxu0
        %v4869 = vadd.f32 %v4708, %v4868
        %v4870 = vpop.f32.mrb[0].mxu0
        %v4871 = vpop.f32.mrb[0].mxu0
        %v4872 = vadd.f32 %v4711, %v4871
        %v4873 = vpop.f32.mrb[0].mxu0
        %4874 = vmatprep.mubr.bf16.mxu0 0
        %4875 = vmatmul.mubr.bf16.gmra.mrb[0].mxu0 %v3496
        %v4876 = vpop.f32.mrb[0].mxu0
        %v4877 = vadd.f32 %v4716, %v4876
        %v4878 = vpop.f32.mrb[0].mxu0
        %v4879 = vpop.f32.mrb[0].mxu0
        %v4880 = vadd.f32 %v4719, %v4879
        %v4881 = vpop.f32.mrb[0].mxu0
        %4882 = vmatprep.mubr.bf16.mxu0 0
        %4883 = vmatmul.mubr.bf16.gmra.mrb[0].mxu0 %v3505
        %v4884 = vpop.f32.mrb[0].mxu0
        %v4885 = vadd.f32 %v4724, %v4884
        %v4886 = vpop.f32.mrb[0].mxu0
        %v4887 = vpop.f32.mrb[0].mxu0
        %v4888 = vadd.f32 %v4727, %v4887
        %v4889 = vpop.f32.mrb[0].mxu0
        %4890 = vmatprep.mubr.bf16.mxu0 0
        %4891 = vmatmul.mubr.bf16.gmra.mrb[0].mxu0 %v3514
        %v4892 = vpop.f32.mrb[0].mxu0
        %v4893 = vadd.f32 %v4732, %v4892
        %v4894 = vpop.f32.mrb[0].mxu0
        %v4895 = vpop.f32.mrb[0].mxu0
        %v4896 = vadd.f32 %v4735, %v4895
        %v4897 = vpop.f32.mrb[0].mxu0
        %4898 = vmatprep.mubr.bf16.mxu0 0
        %4899 = vmatmul.mubr.bf16.gmra.mrb[0].mxu0 %v3523
        %v4900 = vpop.f32.mrb[0].mxu0
        %v4901 = vadd.f32 %v4740, %v4900
        %v4902 = vpop.f32.mrb[0].mxu0
        %v4903 = vpop.f32.mrb[0].mxu0
        %v4904 = vadd.f32 %v4743, %v4903
        %v4905 = vpop.f32.mrb[0].mxu0
        %4906 = vmatprep.mubr.bf16.mxu0 0
        %4907 = vmatmul.mubr.bf16.gmra.mrb[0].mxu0 %v3532
        %v4908 = vpop.f32.mrb[0].mxu0
        %v4909 = vadd.f32 %v4748, %v4908
        %v4910 = vpop.f32.mrb[0].mxu0
        %v4911 = vpop.f32.mrb[0].mxu0
        %v4912 = vadd.f32 %v4751, %v4911
        %v4913 = vpop.f32.mrb[0].mxu0
        %4914 = vmatprep.mubr.bf16.mxu0 0
        %4915 = vmatmul.mubr.bf16.gmra.mrb[0].mxu0 %v3541
        %v4916 = vpop.f32.mrb[0].mxu0
        %v4917 = vadd.f32 %v4756, %v4916
        %v4918 = vpop.f32.mrb[0].mxu0
        %v4919 = vpop.f32.mrb[0].mxu0
        %v4920 = vadd.f32 %v4759, %v4919
        %v4921 = vpop.f32.mrb[0].mxu0
        %4922 = vdwg.mxu0
        %v4923 = vadd.f32 %v4797, %v4800
        %v4924 = vadd.f32 %v4923, %v4805
        %v4925 = vadd.f32 %v4924, %v4808
        %v4926 = vadd.f32 %v4925, %v4813
        %v4927 = vadd.f32 %v4926, %v4816
        %v4928 = vadd.f32 %v4927, %v4821
        %v4929 = vadd.f32 %v4928, %v4824
        %v4930 = vadd.f32 %v4929, %v4829
        %v4931 = vadd.f32 %v4930, %v4832
        %v4932 = vadd.f32 %v4931, %v4837
        %v4933 = vadd.f32 %v4932, %v4840
        %v4934 = vadd.f32 %v4933, %v4845
        %v4935 = vadd.f32 %v4934, %v4848
        %v4936 = vadd.f32 %v4935, %v4853
        %v4937 = vadd.f32 %v4936, %v4856
        %v4938 = vadd.f32 %v4937, %v4861
        %v4939 = vadd.f32 %v4938, %v4864
        %v4940 = vadd.f32 %v4939, %v4869
        %v4941 = vadd.f32 %v4940, %v4872
        %v4942 = vadd.f32 %v4941, %v4877
        %v4943 = vadd.f32 %v4942, %v4880
        %v4944 = vadd.f32 %v4943, %v4885
        %v4945 = vadd.f32 %v4944, %v4888
        %v4946 = vadd.f32 %v4945, %v4893
        %v4947 = vadd.f32 %v4946, %v4896
        %v4948 = vadd.f32 %v4947, %v4901
        %v4949 = vadd.f32 %v4948, %v4904
        %v4950 = vadd.f32 %v4949, %v4909
        %v4951 = vadd.f32 %v4950, %v4912
        %v4952 = vadd.f32 %v4951, %v4917
        %v4953 = vadd.f32 %v4952, %v4920
        %v4954 = vrot.slane %v4953, 4
        %v4955 = vadd.f32 %v4953, %v4954
        %v4956 = vrot.slane %v4955, 2
        %v4957 = vadd.f32 %v4955, %v4956
        %v4958 = vrot.slane %v4957, 1
        %v4959 = vadd.f32 %v4957, %v4958
        %v4960 = vmul.f32 %v4797, %v4797
        %v4961 = vmul.f32 %v4800, %v4800
        %v4962 = vmul.f32 %v4805, %v4805
        %v4963 = vmul.f32 %v4808, %v4808
        %v4964 = vmul.f32 %v4813, %v4813
        %v4965 = vmul.f32 %v4816, %v4816
        %v4966 = vmul.f32 %v4821, %v4821
        %v4967 = vmul.f32 %v4824, %v4824
        %v4968 = vmul.f32 %v4829, %v4829
        %v4969 = vmul.f32 %v4832, %v4832
        %v4970 = vmul.f32 %v4837, %v4837
        %v4971 = vmul.f32 %v4840, %v4840
        %v4972 = vmul.f32 %v4845, %v4845
        %v4973 = vmul.f32 %v4848, %v4848
        %v4974 = vmul.f32 %v4853, %v4853
        %v4975 = vmul.f32 %v4856, %v4856
        %v4976 = vmul.f32 %v4861, %v4861
        %v4977 = vmul.f32 %v4864, %v4864
        %v4978 = vmul.f32 %v4869, %v4869
        %v4979 = vmul.f32 %v4872, %v4872
        %v4980 = vmul.f32 %v4877, %v4877
        %v4981 = vmul.f32 %v4880, %v4880
        %v4982 = vmul.f32 %v4885, %v4885
        %v4983 = vmul.f32 %v4888, %v4888
        %v4984 = vmul.f32 %v4893, %v4893
        %v4985 = vmul.f32 %v4896, %v4896
        %v4986 = vmul.f32 %v4901, %v4901
        %v4987 = vmul.f32 %v4904, %v4904
        %v4988 = vmul.f32 %v4909, %v4909
        %v4989 = vmul.f32 %v4912, %v4912
        %v4990 = vmul.f32 %v4917, %v4917
        %v4991 = vmul.f32 %v4920, %v4920
        %v4992 = vadd.f32 %v4960, %v4961
        %v4993 = vadd.f32 %v4992, %v4962
        %v4994 = vadd.f32 %v4993, %v4963
        %v4995 = vadd.f32 %v4994, %v4964
        %v4996 = vadd.f32 %v4995, %v4965
        %v4997 = vadd.f32 %v4996, %v4966
        %v4998 = vadd.f32 %v4997, %v4967
        %v4999 = vadd.f32 %v4998, %v4968
        %v5000 = vadd.f32 %v4999, %v4969
        %v5001 = vadd.f32 %v5000, %v4970
        %v5002 = vadd.f32 %v5001, %v4971
        %v5003 = vadd.f32 %v5002, %v4972
        %v5004 = vadd.f32 %v5003, %v4973
        %v5005 = vadd.f32 %v5004, %v4974
        %v5006 = vadd.f32 %v5005, %v4975
        %v5007 = vadd.f32 %v5006, %v4976
        %v5008 = vadd.f32 %v5007, %v4977
        %v5009 = vadd.f32 %v5008, %v4978
        %v5010 = vadd.f32 %v5009, %v4979
        %v5011 = vadd.f32 %v5010, %v4980
        %v5012 = vadd.f32 %v5011, %v4981
        %v5013 = vadd.f32 %v5012, %v4982
        %v5014 = vadd.f32 %v5013, %v4983
        %v5015 = vadd.f32 %v5014, %v4984
        %v5016 = vadd.f32 %v5015, %v4985
        %v5017 = vadd.f32 %v5016, %v4986
        %v5018 = vadd.f32 %v5017, %v4987
        %v5019 = vadd.f32 %v5018, %v4988
        %v5020 = vadd.f32 %v5019, %v4989
        %v5021 = vadd.f32 %v5020, %v4990
        %v5022 = vadd.f32 %v5021, %v4991
        %v5023 = vrot.slane %v5022, 4
        %v5024 = vadd.f32 %v5022, %v5023
        %v5025 = vrot.slane %v5024, 2
        %v5026 = vadd.f32 %v5024, %v5025
        %v5027 = vrot.slane %v5026, 1
        %v5028 = vadd.f32 %v5026, %v5027
        %v5029 = vmul.f32 %v4959, 0.00390625
        %v5030 = vmul.f32 %v5028, 0.00390625
        %v5031 = vmul.f32 %v5029, %v5029
        %v5032 = vsub.f32 %v5030, %v5031
        %v5033 = vmax.f32 %v5032, 0.0
        %v5034 = vsub.f32 %v4797, %v5029
        %v5035 = vsub.f32 %v4800, %v5029
        %v5036 = vsub.f32 %v4805, %v5029
        %v5037 = vsub.f32 %v4808, %v5029
        %v5038 = vsub.f32 %v4813, %v5029
        %v5039 = vsub.f32 %v4816, %v5029
        %v5040 = vsub.f32 %v4821, %v5029
        %v5041 = vsub.f32 %v4824, %v5029
        %v5042 = vsub.f32 %v4829, %v5029
        %v5043 = vsub.f32 %v4832, %v5029
        %v5044 = vsub.f32 %v4837, %v5029
        %v5045 = vsub.f32 %v4840, %v5029
        %v5046 = vsub.f32 %v4845, %v5029
        %v5047 = vsub.f32 %v4848, %v5029
        %v5048 = vsub.f32 %v4853, %v5029
        %v5049 = vsub.f32 %v4856, %v5029
        %v5050 = vsub.f32 %v4861, %v5029
        %v5051 = vsub.f32 %v4864, %v5029
        %v5052 = vsub.f32 %v4869, %v5029
        %v5053 = vsub.f32 %v4872, %v5029
        %v5054 = vsub.f32 %v4877, %v5029
        %v5055 = vsub.f32 %v4880, %v5029
        %v5056 = vsub.f32 %v4885, %v5029
        %v5057 = vsub.f32 %v4888, %v5029
        %v5058 = vsub.f32 %v4893, %v5029
        %v5059 = vsub.f32 %v4896, %v5029
        %v5060 = vsub.f32 %v4901, %v5029
        %v5061 = vsub.f32 %v4904, %v5029
        %v5062 = vsub.f32 %v4909, %v5029
        %v5063 = vsub.f32 %v4912, %v5029
        %v5064 = vsub.f32 %v4917, %v5029
        %v5065 = vsub.f32 %v4920, %v5029
        %v5066 = vadd.f32 %v5033, 1e-05
        %v5067 = vrsqrt.pop %v5066
        %v5068 = vmul.f32 %v5034, %v5067
        %v5069 = vmul.f32 %v5035, %v5067
        %v5070 = vmul.f32 %v5036, %v5067
        %v5071 = vmul.f32 %v5037, %v5067
        %v5072 = vmul.f32 %v5038, %v5067
        %v5073 = vmul.f32 %v5039, %v5067
        %v5074 = vmul.f32 %v5040, %v5067
        %v5075 = vmul.f32 %v5041, %v5067
        %v5076 = vmul.f32 %v5042, %v5067
        %v5077 = vmul.f32 %v5043, %v5067
        %v5078 = vmul.f32 %v5044, %v5067
        %v5079 = vmul.f32 %v5045, %v5067
        %v5080 = vmul.f32 %v5046, %v5067
        %v5081 = vmul.f32 %v5047, %v5067
        %v5082 = vmul.f32 %v5048, %v5067
        %v5083 = vmul.f32 %v5049, %v5067
        %v5084 = vmul.f32 %v5050, %v5067
        %v5085 = vmul.f32 %v5051, %v5067
        %v5086 = vmul.f32 %v5052, %v5067
        %v5087 = vmul.f32 %v5053, %v5067
        %v5088 = vmul.f32 %v5054, %v5067
        %v5089 = vmul.f32 %v5055, %v5067
        %v5090 = vmul.f32 %v5056, %v5067
        %v5091 = vmul.f32 %v5057, %v5067
        %v5092 = vmul.f32 %v5058, %v5067
        %v5093 = vmul.f32 %v5059, %v5067
        %v5094 = vmul.f32 %v5060, %v5067
        %v5095 = vmul.f32 %v5061, %v5067
        %v5096 = vmul.f32 %v5062, %v5067
        %v5097 = vmul.f32 %v5063, %v5067
        %v5098 = vmul.f32 %v5064, %v5067
        %v5099 = vmul.f32 %v5065, %v5067
        %v5100 = vmul.f32 %v5068, 0.5
        %v5101 = vmul.f32 %v5069, 0.5
        %v5102 = vmul.f32 %v5070, 0.5
        %v5103 = vmul.f32 %v5071, 0.5
        %v5104 = vmul.f32 %v5072, 0.5
        %v5105 = vmul.f32 %v5073, 0.5
        %v5106 = vmul.f32 %v5074, 0.5
        %v5107 = vmul.f32 %v5075, 0.5
        %v5108 = vmul.f32 %v5076, 0.5
        %v5109 = vmul.f32 %v5077, 0.5
        %v5110 = vmul.f32 %v5078, 0.5
        %v5111 = vmul.f32 %v5079, 0.5
        %v5112 = vmul.f32 %v5080, 0.5
        %v5113 = vmul.f32 %v5081, 0.5
        %v5114 = vmul.f32 %v5082, 0.5
        %v5115 = vmul.f32 %v5083, 0.5
        %v5116 = vmul.f32 %v5084, 0.5
        %v5117 = vmul.f32 %v5085, 0.5
        %v5118 = vmul.f32 %v5086, 0.5
        %v5119 = vmul.f32 %v5087, 0.5
        %v5120 = vmul.f32 %v5088, 0.5
        %v5121 = vmul.f32 %v5089, 0.5
        %v5122 = vmul.f32 %v5090, 0.5
        %v5123 = vmul.f32 %v5091, 0.5
        %v5124 = vmul.f32 %v5092, 0.5
        %v5125 = vmul.f32 %v5093, 0.5
        %v5126 = vmul.f32 %v5094, 0.5
        %v5127 = vmul.f32 %v5095, 0.5
        %v5128 = vmul.f32 %v5096, 0.5
        %v5129 = vmul.f32 %v5097, 0.5
        %v5130 = vmul.f32 %v5098, 0.5
        %v5131 = vmul.f32 %v5099, 0.5
        %v5132 = vmul.f32 %v5068, 0.70710677
        %v5133 = vmul.f32 %v5069, 0.70710677
        %v5134 = vmul.f32 %v5070, 0.70710677
        %v5135 = vmul.f32 %v5071, 0.70710677
        %v5136 = vmul.f32 %v5072, 0.70710677
        %v5137 = vmul.f32 %v5073, 0.70710677
        %v5138 = vmul.f32 %v5074, 0.70710677
        %v5139 = vmul.f32 %v5075, 0.70710677
        %v5140 = vmul.f32 %v5076, 0.70710677
        %v5141 = vmul.f32 %v5077, 0.70710677
        %v5142 = vmul.f32 %v5078, 0.70710677
        %v5143 = vmul.f32 %v5079, 0.70710677
        %v5144 = vmul.f32 %v5080, 0.70710677
        %v5145 = vmul.f32 %v5081, 0.70710677
        %v5146 = vmul.f32 %v5082, 0.70710677
        %v5147 = vmul.f32 %v5083, 0.70710677
        %v5148 = vmul.f32 %v5084, 0.70710677
        %v5149 = vmul.f32 %v5085, 0.70710677
        %v5150 = vmul.f32 %v5086, 0.70710677
        %v5151 = vmul.f32 %v5087, 0.70710677
        %v5152 = vmul.f32 %v5088, 0.70710677
        %v5153 = vmul.f32 %v5089, 0.70710677
        %v5154 = vmul.f32 %v5090, 0.70710677
        %v5155 = vmul.f32 %v5091, 0.70710677
        %v5156 = vmul.f32 %v5092, 0.70710677
        %v5157 = vmul.f32 %v5093, 0.70710677
        %v5158 = vmul.f32 %v5094, 0.70710677
        %v5159 = vmul.f32 %v5095, 0.70710677
        %v5160 = vmul.f32 %v5096, 0.70710677
        %v5161 = vmul.f32 %v5097, 0.70710677
        %v5162 = vmul.f32 %v5098, 0.70710677
        %v5163 = vmul.f32 %v5099, 0.70710677
        %vm5164 = vcmp.ge.f32.partialorder %v5132, 0.0
        %vm5165 = vcmp.ge.f32.partialorder %v5133, 0.0
        %vm5166 = vcmp.ge.f32.partialorder %v5134, 0.0
        %vm5167 = vcmp.ge.f32.partialorder %v5135, 0.0
        %vm5168 = vcmp.ge.f32.partialorder %v5136, 0.0
        %vm5169 = vcmp.ge.f32.partialorder %v5137, 0.0
        %vm5170 = vcmp.ge.f32.partialorder %v5138, 0.0
        %vm5171 = vcmp.ge.f32.partialorder %v5139, 0.0
        %vm5172 = vcmp.ge.f32.partialorder %v5140, 0.0
        %vm5173 = vcmp.ge.f32.partialorder %v5141, 0.0
        %vm5174 = vcmp.ge.f32.partialorder %v5142, 0.0
        %vm5175 = vcmp.ge.f32.partialorder %v5143, 0.0
        %vm5176 = vcmp.ge.f32.partialorder %v5144, 0.0
        %vm5177 = vcmp.ge.f32.partialorder %v5145, 0.0
        %vm5178 = vcmp.ge.f32.partialorder %v5146, 0.0
        %vm5179 = vcmp.ge.f32.partialorder %v5147, 0.0
        %vm5180 = vcmp.ge.f32.partialorder %v5148, 0.0
        %vm5181 = vcmp.ge.f32.partialorder %v5149, 0.0
        %vm5182 = vcmp.ge.f32.partialorder %v5150, 0.0
        %vm5183 = vcmp.ge.f32.partialorder %v5151, 0.0
        %vm5184 = vcmp.ge.f32.partialorder %v5152, 0.0
        %vm5185 = vcmp.ge.f32.partialorder %v5153, 0.0
        %vm5186 = vcmp.ge.f32.partialorder %v5154, 0.0
        %vm5187 = vcmp.ge.f32.partialorder %v5155, 0.0
        %vm5188 = vcmp.ge.f32.partialorder %v5156, 0.0
        %vm5189 = vcmp.ge.f32.partialorder %v5157, 0.0
        %vm5190 = vcmp.ge.f32.partialorder %v5158, 0.0
        %vm5191 = vcmp.ge.f32.partialorder %v5159, 0.0
        %vm5192 = vcmp.ge.f32.partialorder %v5160, 0.0
        %vm5193 = vcmp.ge.f32.partialorder %v5161, 0.0
        %vm5194 = vcmp.ge.f32.partialorder %v5162, 0.0
        %vm5195 = vcmp.ge.f32.partialorder %v5163, 0.0
        %v5196 = vsel %vm5164, 1.0, -1.0
        %v5197 = vsel %vm5165, 1.0, -1.0
        %v5198 = vsel %vm5166, 1.0, -1.0
        %v5199 = vsel %vm5167, 1.0, -1.0
        %v5200 = vsel %vm5168, 1.0, -1.0
        %v5201 = vsel %vm5169, 1.0, -1.0
        %v5202 = vsel %vm5170, 1.0, -1.0
        %v5203 = vsel %vm5171, 1.0, -1.0
        %v5204 = vsel %vm5172, 1.0, -1.0
        %v5205 = vsel %vm5173, 1.0, -1.0
        %v5206 = vsel %vm5174, 1.0, -1.0
        %v5207 = vsel %vm5175, 1.0, -1.0
        %v5208 = vsel %vm5176, 1.0, -1.0
        %v5209 = vsel %vm5177, 1.0, -1.0
        %v5210 = vsel %vm5178, 1.0, -1.0
        %v5211 = vsel %vm5179, 1.0, -1.0
        %v5212 = vsel %vm5180, 1.0, -1.0
        %v5213 = vsel %vm5181, 1.0, -1.0
        %v5214 = vsel %vm5182, 1.0, -1.0
        %v5215 = vsel %vm5183, 1.0, -1.0
        %v5216 = vsel %vm5184, 1.0, -1.0
        %v5217 = vsel %vm5185, 1.0, -1.0
        %v5218 = vsel %vm5186, 1.0, -1.0
        %v5219 = vsel %vm5187, 1.0, -1.0
        %v5220 = vsel %vm5188, 1.0, -1.0
        %v5221 = vsel %vm5189, 1.0, -1.0
        %v5222 = vsel %vm5190, 1.0, -1.0
        %v5223 = vsel %vm5191, 1.0, -1.0
        %v5224 = vsel %vm5192, 1.0, -1.0
        %v5225 = vsel %vm5193, 1.0, -1.0
        %v5226 = vsel %vm5194, 1.0, -1.0
        %v5227 = vsel %vm5195, 1.0, -1.0
        %v5228 = vand.u32 2147483647, %v5132
        %v5229 = vand.u32 2147483647, %v5133
        %v5230 = vand.u32 2147483647, %v5134
        %v5231 = vand.u32 2147483647, %v5135
        %v5232 = vand.u32 2147483647, %v5136
        %v5233 = vand.u32 2147483647, %v5137
        %v5234 = vand.u32 2147483647, %v5138
        %v5235 = vand.u32 2147483647, %v5139
        %v5236 = vand.u32 2147483647, %v5140
        %v5237 = vand.u32 2147483647, %v5141
        %v5238 = vand.u32 2147483647, %v5142
        %v5239 = vand.u32 2147483647, %v5143
        %v5240 = vand.u32 2147483647, %v5144
        %v5241 = vand.u32 2147483647, %v5145
        %v5242 = vand.u32 2147483647, %v5146
        %v5243 = vand.u32 2147483647, %v5147
        %v5244 = vand.u32 2147483647, %v5148
        %v5245 = vand.u32 2147483647, %v5149
        %v5246 = vand.u32 2147483647, %v5150
        %v5247 = vand.u32 2147483647, %v5151
        %v5248 = vand.u32 2147483647, %v5152
        %v5249 = vand.u32 2147483647, %v5153
        %v5250 = vand.u32 2147483647, %v5154
        %v5251 = vand.u32 2147483647, %v5155
        %v5252 = vand.u32 2147483647, %v5156
        %v5253 = vand.u32 2147483647, %v5157
        %v5254 = vand.u32 2147483647, %v5158
        %v5255 = vand.u32 2147483647, %v5159
        %v5256 = vand.u32 2147483647, %v5160
        %v5257 = vand.u32 2147483647, %v5161
        %v5258 = vand.u32 2147483647, %v5162
        %v5259 = vand.u32 2147483647, %v5163
        %v5260 = vmul.f32 %v5228, 0.3275911
        %v5261 = vmul.f32 %v5229, 0.3275911
        %v5262 = vmul.f32 %v5230, 0.3275911
        %v5263 = vmul.f32 %v5231, 0.3275911
        %v5264 = vmul.f32 %v5232, 0.3275911
        %v5265 = vmul.f32 %v5233, 0.3275911
        %v5266 = vmul.f32 %v5234, 0.3275911
        %v5267 = vmul.f32 %v5235, 0.3275911
        %v5268 = vmul.f32 %v5236, 0.3275911
        %v5269 = vmul.f32 %v5237, 0.3275911
        %v5270 = vmul.f32 %v5238, 0.3275911
        %v5271 = vmul.f32 %v5239, 0.3275911
        %v5272 = vmul.f32 %v5240, 0.3275911
        %v5273 = vmul.f32 %v5241, 0.3275911
        %v5274 = vmul.f32 %v5242, 0.3275911
        %v5275 = vmul.f32 %v5243, 0.3275911
        %v5276 = vmul.f32 %v5244, 0.3275911
        %v5277 = vmul.f32 %v5245, 0.3275911
        %v5278 = vmul.f32 %v5246, 0.3275911
        %v5279 = vmul.f32 %v5247, 0.3275911
        %v5280 = vmul.f32 %v5248, 0.3275911
        %v5281 = vmul.f32 %v5249, 0.3275911
        %v5282 = vmul.f32 %v5250, 0.3275911
        %v5283 = vmul.f32 %v5251, 0.3275911
        %v5284 = vmul.f32 %v5252, 0.3275911
        %v5285 = vmul.f32 %v5253, 0.3275911
        %v5286 = vmul.f32 %v5254, 0.3275911
        %v5287 = vmul.f32 %v5255, 0.3275911
        %v5288 = vmul.f32 %v5256, 0.3275911
        %v5289 = vmul.f32 %v5257, 0.3275911
        %v5290 = vmul.f32 %v5258, 0.3275911
        %v5291 = vmul.f32 %v5259, 0.3275911
        %v5292 = vadd.f32 %v5260, 1.0
        %v5293 = vadd.f32 %v5261, 1.0
        %v5294 = vadd.f32 %v5262, 1.0
        %v5295 = vadd.f32 %v5263, 1.0
        %v5296 = vadd.f32 %v5264, 1.0
        %v5297 = vadd.f32 %v5265, 1.0
        %v5298 = vadd.f32 %v5266, 1.0
        %v5299 = vadd.f32 %v5267, 1.0
        %v5300 = vadd.f32 %v5268, 1.0
        %v5301 = vadd.f32 %v5269, 1.0
        %v5302 = vadd.f32 %v5270, 1.0
        %v5303 = vadd.f32 %v5271, 1.0
        %v5304 = vadd.f32 %v5272, 1.0
        %v5305 = vadd.f32 %v5273, 1.0
        %v5306 = vadd.f32 %v5274, 1.0
        %v5307 = vadd.f32 %v5275, 1.0
        %v5308 = vadd.f32 %v5276, 1.0
        %v5309 = vadd.f32 %v5277, 1.0
        %v5310 = vadd.f32 %v5278, 1.0
        %v5311 = vadd.f32 %v5279, 1.0
        %v5312 = vadd.f32 %v5280, 1.0
        %v5313 = vadd.f32 %v5281, 1.0
        %v5314 = vadd.f32 %v5282, 1.0
        %v5315 = vadd.f32 %v5283, 1.0
        %v5316 = vadd.f32 %v5284, 1.0
        %v5317 = vadd.f32 %v5285, 1.0
        %v5318 = vadd.f32 %v5286, 1.0
        %v5319 = vadd.f32 %v5287, 1.0
        %v5320 = vadd.f32 %v5288, 1.0
        %v5321 = vadd.f32 %v5289, 1.0
        %v5322 = vadd.f32 %v5290, 1.0
        %v5323 = vadd.f32 %v5291, 1.0
        %v5324 = vrcp.pop %v5292
        %v5325 = vrcp.pop %v5293
        %v5326 = vrcp.pop %v5294
        %v5327 = vrcp.pop %v5295
        %v5328 = vrcp.pop %v5296
        %v5329 = vrcp.pop %v5297
        %v5330 = vrcp.pop %v5298
        %v5331 = vrcp.pop %v5299
        %v5332 = vrcp.pop %v5300
        %v5333 = vrcp.pop %v5301
        %v5334 = vrcp.pop %v5302
        %v5335 = vrcp.pop %v5303
        %v5336 = vrcp.pop %v5304
        %v5337 = vrcp.pop %v5305
        %v5338 = vrcp.pop %v5306
        %v5339 = vrcp.pop %v5307
        %v5340 = vrcp.pop %v5308
        %v5341 = vrcp.pop %v5309
        %v5342 = vrcp.pop %v5310
        %v5343 = vrcp.pop %v5311
        %v5344 = vrcp.pop %v5312
        %v5345 = vrcp.pop %v5313
        %v5346 = vrcp.pop %v5314
        %v5347 = vrcp.pop %v5315
        %v5348 = vrcp.pop %v5316
        %v5349 = vrcp.pop %v5317
        %v5350 = vrcp.pop %v5318
        %v5351 = vrcp.pop %v5319
        %v5352 = vrcp.pop %v5320
        %v5353 = vrcp.pop %v5321
        %v5354 = vrcp.pop %v5322
        %v5355 = vrcp.pop %v5323
        %v5356 = vmul.f32 %v5324, 1.0614054
        %v5357 = vmul.f32 %v5325, 1.0614054
        %v5358 = vmul.f32 %v5326, 1.0614054
        %v5359 = vmul.f32 %v5327, 1.0614054
        %v5360 = vmul.f32 %v5328, 1.0614054
        %v5361 = vmul.f32 %v5329, 1.0614054
        %v5362 = vmul.f32 %v5330, 1.0614054
        %v5363 = vmul.f32 %v5331, 1.0614054
        %v5364 = vmul.f32 %v5332, 1.0614054
        %v5365 = vmul.f32 %v5333, 1.0614054
        %v5366 = vmul.f32 %v5334, 1.0614054
        %v5367 = vmul.f32 %v5335, 1.0614054
        %v5368 = vmul.f32 %v5336, 1.0614054
        %v5369 = vmul.f32 %v5337, 1.0614054
        %v5370 = vmul.f32 %v5338, 1.0614054
        %v5371 = vmul.f32 %v5339, 1.0614054
        %v5372 = vmul.f32 %v5340, 1.0614054
        %v5373 = vmul.f32 %v5341, 1.0614054
        %v5374 = vmul.f32 %v5342, 1.0614054
        %v5375 = vmul.f32 %v5343, 1.0614054
        %v5376 = vmul.f32 %v5344, 1.0614054
        %v5377 = vmul.f32 %v5345, 1.0614054
        %v5378 = vmul.f32 %v5346, 1.0614054
        %v5379 = vmul.f32 %v5347, 1.0614054
        %v5380 = vmul.f32 %v5348, 1.0614054
        %v5381 = vmul.f32 %v5349, 1.0614054
        %v5382 = vmul.f32 %v5350, 1.0614054
        %v5383 = vmul.f32 %v5351, 1.0614054
        %v5384 = vmul.f32 %v5352, 1.0614054
        %v5385 = vmul.f32 %v5353, 1.0614054
        %v5386 = vmul.f32 %v5354, 1.0614054
        %v5387 = vmul.f32 %v5355, 1.0614054
        %v5388 = vadd.f32 %v5356, -1.4531521
        %v5389 = vadd.f32 %v5357, -1.4531521
        %v5390 = vadd.f32 %v5358, -1.4531521
        %v5391 = vadd.f32 %v5359, -1.4531521
        %v5392 = vadd.f32 %v5360, -1.4531521
        %v5393 = vadd.f32 %v5361, -1.4531521
        %v5394 = vadd.f32 %v5362, -1.4531521
        %v5395 = vadd.f32 %v5363, -1.4531521
        %v5396 = vadd.f32 %v5364, -1.4531521
        %v5397 = vadd.f32 %v5365, -1.4531521
        %v5398 = vadd.f32 %v5366, -1.4531521
        %v5399 = vadd.f32 %v5367, -1.4531521
        %v5400 = vadd.f32 %v5368, -1.4531521
        %v5401 = vadd.f32 %v5369, -1.4531521
        %v5402 = vadd.f32 %v5370, -1.4531521
        %v5403 = vadd.f32 %v5371, -1.4531521
        %v5404 = vadd.f32 %v5372, -1.4531521
        %v5405 = vadd.f32 %v5373, -1.4531521
        %v5406 = vadd.f32 %v5374, -1.4531521
        %v5407 = vadd.f32 %v5375, -1.4531521
        %v5408 = vadd.f32 %v5376, -1.4531521
        %v5409 = vadd.f32 %v5377, -1.4531521
        %v5410 = vadd.f32 %v5378, -1.4531521
        %v5411 = vadd.f32 %v5379, -1.4531521
        %v5412 = vadd.f32 %v5380, -1.4531521
        %v5413 = vadd.f32 %v5381, -1.4531521
        %v5414 = vadd.f32 %v5382, -1.4531521
        %v5415 = vadd.f32 %v5383, -1.4531521
        %v5416 = vadd.f32 %v5384, -1.4531521
        %v5417 = vadd.f32 %v5385, -1.4531521
        %v5418 = vadd.f32 %v5386, -1.4531521
        %v5419 = vadd.f32 %v5387, -1.4531521
        %v5420 = vmul.f32 %v5388, %v5324
        %v5421 = vmul.f32 %v5389, %v5325
        %v5422 = vmul.f32 %v5390, %v5326
        %v5423 = vmul.f32 %v5391, %v5327
        %v5424 = vmul.f32 %v5392, %v5328
        %v5425 = vmul.f32 %v5393, %v5329
        %v5426 = vmul.f32 %v5394, %v5330
        %v5427 = vmul.f32 %v5395, %v5331
        %v5428 = vmul.f32 %v5396, %v5332
        %v5429 = vmul.f32 %v5397, %v5333
        %v5430 = vmul.f32 %v5398, %v5334
        %v5431 = vmul.f32 %v5399, %v5335
        %v5432 = vmul.f32 %v5400, %v5336
        %v5433 = vmul.f32 %v5401, %v5337
        %v5434 = vmul.f32 %v5402, %v5338
        %v5435 = vmul.f32 %v5403, %v5339
        %v5436 = vmul.f32 %v5404, %v5340
        %v5437 = vmul.f32 %v5405, %v5341
        %v5438 = vmul.f32 %v5406, %v5342
        %v5439 = vmul.f32 %v5407, %v5343
        %v5440 = vmul.f32 %v5408, %v5344
        %v5441 = vmul.f32 %v5409, %v5345
        %v5442 = vmul.f32 %v5410, %v5346
        %v5443 = vmul.f32 %v5411, %v5347
        %v5444 = vmul.f32 %v5412, %v5348
        %v5445 = vmul.f32 %v5413, %v5349
        %v5446 = vmul.f32 %v5414, %v5350
        %v5447 = vmul.f32 %v5415, %v5351
        %v5448 = vmul.f32 %v5416, %v5352
        %v5449 = vmul.f32 %v5417, %v5353
        %v5450 = vmul.f32 %v5418, %v5354
        %v5451 = vmul.f32 %v5419, %v5355
        %v5452 = vadd.f32 %v5420, 1.4214138
        %v5453 = vadd.f32 %v5421, 1.4214138
        %v5454 = vadd.f32 %v5422, 1.4214138
        %v5455 = vadd.f32 %v5423, 1.4214138
        %v5456 = vadd.f32 %v5424, 1.4214138
        %v5457 = vadd.f32 %v5425, 1.4214138
        %v5458 = vadd.f32 %v5426, 1.4214138
        %v5459 = vadd.f32 %v5427, 1.4214138
        %v5460 = vadd.f32 %v5428, 1.4214138
        %v5461 = vadd.f32 %v5429, 1.4214138
        %v5462 = vadd.f32 %v5430, 1.4214138
        %v5463 = vadd.f32 %v5431, 1.4214138
        %v5464 = vadd.f32 %v5432, 1.4214138
        %v5465 = vadd.f32 %v5433, 1.4214138
        %v5466 = vadd.f32 %v5434, 1.4214138
        %v5467 = vadd.f32 %v5435, 1.4214138
        %v5468 = vadd.f32 %v5436, 1.4214138
        %v5469 = vadd.f32 %v5437, 1.4214138
        %v5470 = vadd.f32 %v5438, 1.4214138
        %v5471 = vadd.f32 %v5439, 1.4214138
        %v5472 = vadd.f32 %v5440, 1.4214138
        %v5473 = vadd.f32 %v5441, 1.4214138
        %v5474 = vadd.f32 %v5442, 1.4214138
        %v5475 = vadd.f32 %v5443, 1.4214138
        %v5476 = vadd.f32 %v5444, 1.4214138
        %v5477 = vadd.f32 %v5445, 1.4214138
        %v5478 = vadd.f32 %v5446, 1.4214138
        %v5479 = vadd.f32 %v5447, 1.4214138
        %v5480 = vadd.f32 %v5448, 1.4214138
        %v5481 = vadd.f32 %v5449, 1.4214138
        %v5482 = vadd.f32 %v5450, 1.4214138
        %v5483 = vadd.f32 %v5451, 1.4214138
        %v5484 = vmul.f32 %v5452, %v5324
        %v5485 = vmul.f32 %v5453, %v5325
        %v5486 = vmul.f32 %v5454, %v5326
        %v5487 = vmul.f32 %v5455, %v5327
        %v5488 = vmul.f32 %v5456, %v5328
        %v5489 = vmul.f32 %v5457, %v5329
        %v5490 = vmul.f32 %v5458, %v5330
        %v5491 = vmul.f32 %v5459, %v5331
        %v5492 = vmul.f32 %v5460, %v5332
        %v5493 = vmul.f32 %v5461, %v5333
        %v5494 = vmul.f32 %v5462, %v5334
        %v5495 = vmul.f32 %v5463, %v5335
        %v5496 = vmul.f32 %v5464, %v5336
        %v5497 = vmul.f32 %v5465, %v5337
        %v5498 = vmul.f32 %v5466, %v5338
        %v5499 = vmul.f32 %v5467, %v5339
        %v5500 = vmul.f32 %v5468, %v5340
        %v5501 = vmul.f32 %v5469, %v5341
        %v5502 = vmul.f32 %v5470, %v5342
        %v5503 = vmul.f32 %v5471, %v5343
        %v5504 = vmul.f32 %v5472, %v5344
        %v5505 = vmul.f32 %v5473, %v5345
        %v5506 = vmul.f32 %v5474, %v5346
        %v5507 = vmul.f32 %v5475, %v5347
        %v5508 = vmul.f32 %v5476, %v5348
        %v5509 = vmul.f32 %v5477, %v5349
        %v5510 = vmul.f32 %v5478, %v5350
        %v5511 = vmul.f32 %v5479, %v5351
        %v5512 = vmul.f32 %v5480, %v5352
        %v5513 = vmul.f32 %v5481, %v5353
        %v5514 = vmul.f32 %v5482, %v5354
        %v5515 = vmul.f32 %v5483, %v5355
        %v5516 = vadd.f32 %v5484, -0.28449672
        %v5517 = vadd.f32 %v5485, -0.28449672
        %v5518 = vadd.f32 %v5486, -0.28449672
        %v5519 = vadd.f32 %v5487, -0.28449672
        %v5520 = vadd.f32 %v5488, -0.28449672
        %v5521 = vadd.f32 %v5489, -0.28449672
        %v5522 = vadd.f32 %v5490, -0.28449672
        %v5523 = vadd.f32 %v5491, -0.28449672
        %v5524 = vadd.f32 %v5492, -0.28449672
        %v5525 = vadd.f32 %v5493, -0.28449672
        %v5526 = vadd.f32 %v5494, -0.28449672
        %v5527 = vadd.f32 %v5495, -0.28449672
        %v5528 = vadd.f32 %v5496, -0.28449672
        %v5529 = vadd.f32 %v5497, -0.28449672
        %v5530 = vadd.f32 %v5498, -0.28449672
        %v5531 = vadd.f32 %v5499, -0.28449672
        %v5532 = vadd.f32 %v5500, -0.28449672
        %v5533 = vadd.f32 %v5501, -0.28449672
        %v5534 = vadd.f32 %v5502, -0.28449672
        %v5535 = vadd.f32 %v5503, -0.28449672
        %v5536 = vadd.f32 %v5504, -0.28449672
        %v5537 = vadd.f32 %v5505, -0.28449672
        %v5538 = vadd.f32 %v5506, -0.28449672
        %v5539 = vadd.f32 %v5507, -0.28449672
        %v5540 = vadd.f32 %v5508, -0.28449672
        %v5541 = vadd.f32 %v5509, -0.28449672
        %v5542 = vadd.f32 %v5510, -0.28449672
        %v5543 = vadd.f32 %v5511, -0.28449672
        %v5544 = vadd.f32 %v5512, -0.28449672
        %v5545 = vadd.f32 %v5513, -0.28449672
        %v5546 = vadd.f32 %v5514, -0.28449672
        %v5547 = vadd.f32 %v5515, -0.28449672
        %v5548 = vmul.f32 %v5516, %v5324
        %v5549 = vmul.f32 %v5517, %v5325
        %v5550 = vmul.f32 %v5518, %v5326
        %v5551 = vmul.f32 %v5519, %v5327
        %v5552 = vmul.f32 %v5520, %v5328
        %v5553 = vmul.f32 %v5521, %v5329
        %v5554 = vmul.f32 %v5522, %v5330
        %v5555 = vmul.f32 %v5523, %v5331
        %v5556 = vmul.f32 %v5524, %v5332
        %v5557 = vmul.f32 %v5525, %v5333
        %v5558 = vmul.f32 %v5526, %v5334
        %v5559 = vmul.f32 %v5527, %v5335
        %v5560 = vmul.f32 %v5528, %v5336
        %v5561 = vmul.f32 %v5529, %v5337
        %v5562 = vmul.f32 %v5530, %v5338
        %v5563 = vmul.f32 %v5531, %v5339
        %v5564 = vmul.f32 %v5532, %v5340
        %v5565 = vmul.f32 %v5533, %v5341
        %v5566 = vmul.f32 %v5534, %v5342
        %v5567 = vmul.f32 %v5535, %v5343
        %v5568 = vmul.f32 %v5536, %v5344
        %v5569 = vmul.f32 %v5537, %v5345
        %v5570 = vmul.f32 %v5538, %v5346
        %v5571 = vmul.f32 %v5539, %v5347
        %v5572 = vmul.f32 %v5540, %v5348
        %v5573 = vmul.f32 %v5541, %v5349
        %v5574 = vmul.f32 %v5542, %v5350
        %v5575 = vmul.f32 %v5543, %v5351
        %v5576 = vmul.f32 %v5544, %v5352
        %v5577 = vmul.f32 %v5545, %v5353
        %v5578 = vmul.f32 %v5546, %v5354
        %v5579 = vmul.f32 %v5547, %v5355
        %v5580 = vadd.f32 %v5548, 0.2548296
        %v5581 = vadd.f32 %v5549, 0.2548296
        %v5582 = vadd.f32 %v5550, 0.2548296
        %v5583 = vadd.f32 %v5551, 0.2548296
        %v5584 = vadd.f32 %v5552, 0.2548296
        %v5585 = vadd.f32 %v5553, 0.2548296
        %v5586 = vadd.f32 %v5554, 0.2548296
        %v5587 = vadd.f32 %v5555, 0.2548296
        %v5588 = vadd.f32 %v5556, 0.2548296
        %v5589 = vadd.f32 %v5557, 0.2548296
        %v5590 = vadd.f32 %v5558, 0.2548296
        %v5591 = vadd.f32 %v5559, 0.2548296
        %v5592 = vadd.f32 %v5560, 0.2548296
        %v5593 = vadd.f32 %v5561, 0.2548296
        %v5594 = vadd.f32 %v5562, 0.2548296
        %v5595 = vadd.f32 %v5563, 0.2548296
        %v5596 = vadd.f32 %v5564, 0.2548296
        %v5597 = vadd.f32 %v5565, 0.2548296
        %v5598 = vadd.f32 %v5566, 0.2548296
        %v5599 = vadd.f32 %v5567, 0.2548296
        %v5600 = vadd.f32 %v5568, 0.2548296
        %v5601 = vadd.f32 %v5569, 0.2548296
        %v5602 = vadd.f32 %v5570, 0.2548296
        %v5603 = vadd.f32 %v5571, 0.2548296
        %v5604 = vadd.f32 %v5572, 0.2548296
        %v5605 = vadd.f32 %v5573, 0.2548296
        %v5606 = vadd.f32 %v5574, 0.2548296
        %v5607 = vadd.f32 %v5575, 0.2548296
        %v5608 = vadd.f32 %v5576, 0.2548296
        %v5609 = vadd.f32 %v5577, 0.2548296
        %v5610 = vadd.f32 %v5578, 0.2548296
        %v5611 = vadd.f32 %v5579, 0.2548296
        %v5612 = vmul.f32 %v5580, %v5324
        %v5613 = vmul.f32 %v5581, %v5325
        %v5614 = vmul.f32 %v5582, %v5326
        %v5615 = vmul.f32 %v5583, %v5327
        %v5616 = vmul.f32 %v5584, %v5328
        %v5617 = vmul.f32 %v5585, %v5329
        %v5618 = vmul.f32 %v5586, %v5330
        %v5619 = vmul.f32 %v5587, %v5331
        %v5620 = vmul.f32 %v5588, %v5332
        %v5621 = vmul.f32 %v5589, %v5333
        %v5622 = vmul.f32 %v5590, %v5334
        %v5623 = vmul.f32 %v5591, %v5335
        %v5624 = vmul.f32 %v5592, %v5336
        %v5625 = vmul.f32 %v5593, %v5337
        %v5626 = vmul.f32 %v5594, %v5338
        %v5627 = vmul.f32 %v5595, %v5339
        %v5628 = vmul.f32 %v5596, %v5340
        %v5629 = vmul.f32 %v5597, %v5341
        %v5630 = vmul.f32 %v5598, %v5342
        %v5631 = vmul.f32 %v5599, %v5343
        %v5632 = vmul.f32 %v5600, %v5344
        %v5633 = vmul.f32 %v5601, %v5345
        %v5634 = vmul.f32 %v5602, %v5346
        %v5635 = vmul.f32 %v5603, %v5347
        %v5636 = vmul.f32 %v5604, %v5348
        %v5637 = vmul.f32 %v5605, %v5349
        %v5638 = vmul.f32 %v5606, %v5350
        %v5639 = vmul.f32 %v5607, %v5351
        %v5640 = vmul.f32 %v5608, %v5352
        %v5641 = vmul.f32 %v5609, %v5353
        %v5642 = vmul.f32 %v5610, %v5354
        %v5643 = vmul.f32 %v5611, %v5355
        %v5644 = vsub.f32 0.0, %v5228
        %v5645 = vsub.f32 0.0, %v5229
        %v5646 = vsub.f32 0.0, %v5230
        %v5647 = vsub.f32 0.0, %v5231
        %v5648 = vsub.f32 0.0, %v5232
        %v5649 = vsub.f32 0.0, %v5233
        %v5650 = vsub.f32 0.0, %v5234
        %v5651 = vsub.f32 0.0, %v5235
        %v5652 = vsub.f32 0.0, %v5236
        %v5653 = vsub.f32 0.0, %v5237
        %v5654 = vsub.f32 0.0, %v5238
        %v5655 = vsub.f32 0.0, %v5239
        %v5656 = vsub.f32 0.0, %v5240
        %v5657 = vsub.f32 0.0, %v5241
        %v5658 = vsub.f32 0.0, %v5242
        %v5659 = vsub.f32 0.0, %v5243
        %v5660 = vsub.f32 0.0, %v5244
        %v5661 = vsub.f32 0.0, %v5245
        %v5662 = vsub.f32 0.0, %v5246
        %v5663 = vsub.f32 0.0, %v5247
        %v5664 = vsub.f32 0.0, %v5248
        %v5665 = vsub.f32 0.0, %v5249
        %v5666 = vsub.f32 0.0, %v5250
        %v5667 = vsub.f32 0.0, %v5251
        %v5668 = vsub.f32 0.0, %v5252
        %v5669 = vsub.f32 0.0, %v5253
        %v5670 = vsub.f32 0.0, %v5254
        %v5671 = vsub.f32 0.0, %v5255
        %v5672 = vsub.f32 0.0, %v5256
        %v5673 = vsub.f32 0.0, %v5257
        %v5674 = vsub.f32 0.0, %v5258
        %v5675 = vsub.f32 0.0, %v5259
        %v5676 = vmul.f32 %v5644, %v5228
        %v5677 = vmul.f32 %v5645, %v5229
        %v5678 = vmul.f32 %v5646, %v5230
        %v5679 = vmul.f32 %v5647, %v5231
        %v5680 = vmul.f32 %v5648, %v5232
        %v5681 = vmul.f32 %v5649, %v5233
        %v5682 = vmul.f32 %v5650, %v5234
        %v5683 = vmul.f32 %v5651, %v5235
        %v5684 = vmul.f32 %v5652, %v5236
        %v5685 = vmul.f32 %v5653, %v5237
        %v5686 = vmul.f32 %v5654, %v5238
        %v5687 = vmul.f32 %v5655, %v5239
        %v5688 = vmul.f32 %v5656, %v5240
        %v5689 = vmul.f32 %v5657, %v5241
        %v5690 = vmul.f32 %v5658, %v5242
        %v5691 = vmul.f32 %v5659, %v5243
        %v5692 = vmul.f32 %v5660, %v5244
        %v5693 = vmul.f32 %v5661, %v5245
        %v5694 = vmul.f32 %v5662, %v5246
        %v5695 = vmul.f32 %v5663, %v5247
        %v5696 = vmul.f32 %v5664, %v5248
        %v5697 = vmul.f32 %v5665, %v5249
        %v5698 = vmul.f32 %v5666, %v5250
        %v5699 = vmul.f32 %v5667, %v5251
        %v5700 = vmul.f32 %v5668, %v5252
        %v5701 = vmul.f32 %v5669, %v5253
        %v5702 = vmul.f32 %v5670, %v5254
        %v5703 = vmul.f32 %v5671, %v5255
        %v5704 = vmul.f32 %v5672, %v5256
        %v5705 = vmul.f32 %v5673, %v5257
        %v5706 = vmul.f32 %v5674, %v5258
        %v5707 = vmul.f32 %v5675, %v5259
        %v5708 = vmul.f32 %v5676, 1.442695
        %v5709 = vpow.pop %v5708
        %v5710 = vmul.f32 %v5677, 1.442695
        %v5711 = vpow.pop %v5710
        %v5712 = vmul.f32 %v5678, 1.442695
        %v5713 = vpow.pop %v5712
        %v5714 = vmul.f32 %v5679, 1.442695
        %v5715 = vpow.pop %v5714
        %v5716 = vmul.f32 %v5680, 1.442695
        %v5717 = vpow.pop %v5716
        %v5718 = vmul.f32 %v5681, 1.442695
        %v5719 = vpow.pop %v5718
        %v5720 = vmul.f32 %v5682, 1.442695
        %v5721 = vpow.pop %v5720
        %v5722 = vmul.f32 %v5683, 1.442695
        %v5723 = vpow.pop %v5722
        %v5724 = vmul.f32 %v5684, 1.442695
        %v5725 = vpow.pop %v5724
        %v5726 = vmul.f32 %v5685, 1.442695
        %v5727 = vpow.pop %v5726
        %v5728 = vmul.f32 %v5686, 1.442695
        %v5729 = vpow.pop %v5728
        %v5730 = vmul.f32 %v5687, 1.442695
        %v5731 = vpow.pop %v5730
        %v5732 = vmul.f32 %v5688, 1.442695
        %v5733 = vpow.pop %v5732
        %v5734 = vmul.f32 %v5689, 1.442695
        %v5735 = vpow.pop %v5734
        %v5736 = vmul.f32 %v5690, 1.442695
        %v5737 = vpow.pop %v5736
        %v5738 = vmul.f32 %v5691, 1.442695
        %v5739 = vpow.pop %v5738
        %v5740 = vmul.f32 %v5692, 1.442695
        %v5741 = vpow.pop %v5740
        %v5742 = vmul.f32 %v5693, 1.442695
        %v5743 = vpow.pop %v5742
        %v5744 = vmul.f32 %v5694, 1.442695
        %v5745 = vpow.pop %v5744
        %v5746 = vmul.f32 %v5695, 1.442695
        %v5747 = vpow.pop %v5746
        %v5748 = vmul.f32 %v5696, 1.442695
        %v5749 = vpow.pop %v5748
        %v5750 = vmul.f32 %v5697, 1.442695
        %v5751 = vpow.pop %v5750
        %v5752 = vmul.f32 %v5698, 1.442695
        %v5753 = vpow.pop %v5752
        %v5754 = vmul.f32 %v5699, 1.442695
        %v5755 = vpow.pop %v5754
        %v5756 = vmul.f32 %v5700, 1.442695
        %v5757 = vpow.pop %v5756
        %v5758 = vmul.f32 %v5701, 1.442695
        %v5759 = vpow.pop %v5758
        %v5760 = vmul.f32 %v5702, 1.442695
        %v5761 = vpow.pop %v5760
        %v5762 = vmul.f32 %v5703, 1.442695
        %v5763 = vpow.pop %v5762
        %v5764 = vmul.f32 %v5704, 1.442695
        %v5765 = vpow.pop %v5764
        %v5766 = vmul.f32 %v5705, 1.442695
        %v5767 = vpow.pop %v5766
        %v5768 = vmul.f32 %v5706, 1.442695
        %v5769 = vpow.pop %v5768
        %v5770 = vmul.f32 %v5707, 1.442695
        %v5771 = vpow.pop %v5770
        %v5772 = vmul.f32 %v5612, %v5709
        %v5773 = vmul.f32 %v5613, %v5711
        %v5774 = vmul.f32 %v5614, %v5713
        %v5775 = vmul.f32 %v5615, %v5715
        %v5776 = vmul.f32 %v5616, %v5717
        %v5777 = vmul.f32 %v5617, %v5719
        %v5778 = vmul.f32 %v5618, %v5721
        %v5779 = vmul.f32 %v5619, %v5723
        %v5780 = vmul.f32 %v5620, %v5725
        %v5781 = vmul.f32 %v5621, %v5727
        %v5782 = vmul.f32 %v5622, %v5729
        %v5783 = vmul.f32 %v5623, %v5731
        %v5784 = vmul.f32 %v5624, %v5733
        %v5785 = vmul.f32 %v5625, %v5735
        %v5786 = vmul.f32 %v5626, %v5737
        %v5787 = vmul.f32 %v5627, %v5739
        %v5788 = vmul.f32 %v5628, %v5741
        %v5789 = vmul.f32 %v5629, %v5743
        %v5790 = vmul.f32 %v5630, %v5745
        %v5791 = vmul.f32 %v5631, %v5747
        %v5792 = vmul.f32 %v5632, %v5749
        %v5793 = vmul.f32 %v5633, %v5751
        %v5794 = vmul.f32 %v5634, %v5753
        %v5795 = vmul.f32 %v5635, %v5755
        %v5796 = vmul.f32 %v5636, %v5757
        %v5797 = vmul.f32 %v5637, %v5759
        %v5798 = vmul.f32 %v5638, %v5761
        %v5799 = vmul.f32 %v5639, %v5763
        %v5800 = vmul.f32 %v5640, %v5765
        %v5801 = vmul.f32 %v5641, %v5767
        %v5802 = vmul.f32 %v5642, %v5769
        %v5803 = vmul.f32 %v5643, %v5771
        %v5804 = vsub.f32 1.0, %v5772
        %v5805 = vsub.f32 1.0, %v5773
        %v5806 = vsub.f32 1.0, %v5774
        %v5807 = vsub.f32 1.0, %v5775
        %v5808 = vsub.f32 1.0, %v5776
        %v5809 = vsub.f32 1.0, %v5777
        %v5810 = vsub.f32 1.0, %v5778
        %v5811 = vsub.f32 1.0, %v5779
        %v5812 = vsub.f32 1.0, %v5780
        %v5813 = vsub.f32 1.0, %v5781
        %v5814 = vsub.f32 1.0, %v5782
        %v5815 = vsub.f32 1.0, %v5783
        %v5816 = vsub.f32 1.0, %v5784
        %v5817 = vsub.f32 1.0, %v5785
        %v5818 = vsub.f32 1.0, %v5786
        %v5819 = vsub.f32 1.0, %v5787
        %v5820 = vsub.f32 1.0, %v5788
        %v5821 = vsub.f32 1.0, %v5789
        %v5822 = vsub.f32 1.0, %v5790
        %v5823 = vsub.f32 1.0, %v5791
        %v5824 = vsub.f32 1.0, %v5792
        %v5825 = vsub.f32 1.0, %v5793
        %v5826 = vsub.f32 1.0, %v5794
        %v5827 = vsub.f32 1.0, %v5795
        %v5828 = vsub.f32 1.0, %v5796
        %v5829 = vsub.f32 1.0, %v5797
        %v5830 = vsub.f32 1.0, %v5798
        %v5831 = vsub.f32 1.0, %v5799
        %v5832 = vsub.f32 1.0, %v5800
        %v5833 = vsub.f32 1.0, %v5801
        %v5834 = vsub.f32 1.0, %v5802
        %v5835 = vsub.f32 1.0, %v5803
        %v5836 = vmul.f32 %v5196, %v5804
        %v5837 = vmul.f32 %v5197, %v5805
        %v5838 = vmul.f32 %v5198, %v5806
        %v5839 = vmul.f32 %v5199, %v5807
        %v5840 = vmul.f32 %v5200, %v5808
        %v5841 = vmul.f32 %v5201, %v5809
        %v5842 = vmul.f32 %v5202, %v5810
        %v5843 = vmul.f32 %v5203, %v5811
        %v5844 = vmul.f32 %v5204, %v5812
        %v5845 = vmul.f32 %v5205, %v5813
        %v5846 = vmul.f32 %v5206, %v5814
        %v5847 = vmul.f32 %v5207, %v5815
        %v5848 = vmul.f32 %v5208, %v5816
        %v5849 = vmul.f32 %v5209, %v5817
        %v5850 = vmul.f32 %v5210, %v5818
        %v5851 = vmul.f32 %v5211, %v5819
        %v5852 = vmul.f32 %v5212, %v5820
        %v5853 = vmul.f32 %v5213, %v5821
        %v5854 = vmul.f32 %v5214, %v5822
        %v5855 = vmul.f32 %v5215, %v5823
        %v5856 = vmul.f32 %v5216, %v5824
        %v5857 = vmul.f32 %v5217, %v5825
        %v5858 = vmul.f32 %v5218, %v5826
        %v5859 = vmul.f32 %v5219, %v5827
        %v5860 = vmul.f32 %v5220, %v5828
        %v5861 = vmul.f32 %v5221, %v5829
        %v5862 = vmul.f32 %v5222, %v5830
        %v5863 = vmul.f32 %v5223, %v5831
        %v5864 = vmul.f32 %v5224, %v5832
        %v5865 = vmul.f32 %v5225, %v5833
        %v5866 = vmul.f32 %v5226, %v5834
        %v5867 = vmul.f32 %v5227, %v5835
        %v5868 = vadd.f32 %v5836, 1.0
        %v5869 = vadd.f32 %v5837, 1.0
        %v5870 = vadd.f32 %v5838, 1.0
        %v5871 = vadd.f32 %v5839, 1.0
        %v5872 = vadd.f32 %v5840, 1.0
        %v5873 = vadd.f32 %v5841, 1.0
        %v5874 = vadd.f32 %v5842, 1.0
        %v5875 = vadd.f32 %v5843, 1.0
        %v5876 = vadd.f32 %v5844, 1.0
        %v5877 = vadd.f32 %v5845, 1.0
        %v5878 = vadd.f32 %v5846, 1.0
        %v5879 = vadd.f32 %v5847, 1.0
        %v5880 = vadd.f32 %v5848, 1.0
        %v5881 = vadd.f32 %v5849, 1.0
        %v5882 = vadd.f32 %v5850, 1.0
        %v5883 = vadd.f32 %v5851, 1.0
        %v5884 = vadd.f32 %v5852, 1.0
        %v5885 = vadd.f32 %v5853, 1.0
        %v5886 = vadd.f32 %v5854, 1.0
        %v5887 = vadd.f32 %v5855, 1.0
        %v5888 = vadd.f32 %v5856, 1.0
        %v5889 = vadd.f32 %v5857, 1.0
        %v5890 = vadd.f32 %v5858, 1.0
        %v5891 = vadd.f32 %v5859, 1.0
        %v5892 = vadd.f32 %v5860, 1.0
        %v5893 = vadd.f32 %v5861, 1.0
        %v5894 = vadd.f32 %v5862, 1.0
        %v5895 = vadd.f32 %v5863, 1.0
        %v5896 = vadd.f32 %v5864, 1.0
        %v5897 = vadd.f32 %v5865, 1.0
        %v5898 = vadd.f32 %v5866, 1.0
        %v5899 = vadd.f32 %v5867, 1.0
        %v5900 = vmul.f32 %v5100, %v5868
        %v5901 = vmul.f32 %v5101, %v5869
        %v5902 = vmul.f32 %v5102, %v5870
        %v5903 = vmul.f32 %v5103, %v5871
        %v5904 = vmul.f32 %v5104, %v5872
        %v5905 = vmul.f32 %v5105, %v5873
        %v5906 = vmul.f32 %v5106, %v5874
        %v5907 = vmul.f32 %v5107, %v5875
        %v5908 = vmul.f32 %v5108, %v5876
        %v5909 = vmul.f32 %v5109, %v5877
        %v5910 = vmul.f32 %v5110, %v5878
        %v5911 = vmul.f32 %v5111, %v5879
        %v5912 = vmul.f32 %v5112, %v5880
        %v5913 = vmul.f32 %v5113, %v5881
        %v5914 = vmul.f32 %v5114, %v5882
        %v5915 = vmul.f32 %v5115, %v5883
        %v5916 = vmul.f32 %v5116, %v5884
        %v5917 = vmul.f32 %v5117, %v5885
        %v5918 = vmul.f32 %v5118, %v5886
        %v5919 = vmul.f32 %v5119, %v5887
        %v5920 = vmul.f32 %v5120, %v5888
        %v5921 = vmul.f32 %v5121, %v5889
        %v5922 = vmul.f32 %v5122, %v5890
        %v5923 = vmul.f32 %v5123, %v5891
        %v5924 = vmul.f32 %v5124, %v5892
        %v5925 = vmul.f32 %v5125, %v5893
        %v5926 = vmul.f32 %v5126, %v5894
        %v5927 = vmul.f32 %v5127, %v5895
        %v5928 = vmul.f32 %v5128, %v5896
        %v5929 = vmul.f32 %v5129, %v5897
        %v5930 = vmul.f32 %v5130, %v5898
        %v5931 = vmul.f32 %v5131, %v5899
        %v5932 = vpack.c.bf16 %v5901, %v5900
        %v5933 = vpack.c.bf16 %v5903, %v5902
        %v5934 = vpack.c.bf16 %v5905, %v5904
        %v5935 = vpack.c.bf16 %v5907, %v5906
        %v5936 = vpack.c.bf16 %v5909, %v5908
        %v5937 = vpack.c.bf16 %v5911, %v5910
        %v5938 = vpack.c.bf16 %v5913, %v5912
        %v5939 = vpack.c.bf16 %v5915, %v5914
        %v5940 = vpack.c.bf16 %v5917, %v5916
        %v5941 = vpack.c.bf16 %v5919, %v5918
        %v5942 = vpack.c.bf16 %v5921, %v5920
        %v5943 = vpack.c.bf16 %v5923, %v5922
        %v5944 = vpack.c.bf16 %v5925, %v5924
        %v5945 = vpack.c.bf16 %v5927, %v5926
        %v5946 = vpack.c.bf16 %v5929, %v5928
        %v5947 = vpack.c.bf16 %v5931, %v5930
        %v5964 = vunpack.c.l.b16 %v5932
        %v5965 = vunpack.c.h.b16 %v5932
        %v5966 = vunpack.c.l.b16 %v5933
        %v5967 = vunpack.c.h.b16 %v5933
        %v5968 = vunpack.c.l.b16 %v5934
        %v5969 = vunpack.c.h.b16 %v5934
        %v5970 = vunpack.c.l.b16 %v5935
        %v5971 = vunpack.c.h.b16 %v5935
        %v5972 = vunpack.c.l.b16 %v5936
        %v5973 = vunpack.c.h.b16 %v5936
        %v5974 = vunpack.c.l.b16 %v5937
        %v5975 = vunpack.c.h.b16 %v5937
        %v5976 = vunpack.c.l.b16 %v5938
        %v5977 = vunpack.c.h.b16 %v5938
        %v5978 = vunpack.c.l.b16 %v5939
        %v5979 = vunpack.c.h.b16 %v5939
        %v5980 = vunpack.c.l.b16 %v5940
        %v5981 = vunpack.c.h.b16 %v5940
        %v5982 = vunpack.c.l.b16 %v5941
        %v5983 = vunpack.c.h.b16 %v5941
        %v5984 = vunpack.c.l.b16 %v5942
        %v5985 = vunpack.c.h.b16 %v5942
        %v5986 = vunpack.c.l.b16 %v5943
        %v5987 = vunpack.c.h.b16 %v5943
        %v5988 = vunpack.c.l.b16 %v5944
        %v5989 = vunpack.c.h.b16 %v5944
        %v5990 = vunpack.c.l.b16 %v5945
        %v5991 = vunpack.c.h.b16 %v5945
        %v5992 = vunpack.c.l.b16 %v5946
        %v5993 = vunpack.c.h.b16 %v5946
        %v5994 = vunpack.c.l.b16 %v5947
        %v5995 = vunpack.c.h.b16 %v5947
        %v5996 = vpack.c.b16 %v5964, %v5964
        %v5997 = vpack.c.b16 %v5965, %v5965
        %v5998 = vpack.c.b16 %v5966, %v5966
        %v5999 = vpack.c.b16 %v5967, %v5967
        %v6000 = vpack.c.b16 %v5968, %v5968
        %v6001 = vpack.c.b16 %v5969, %v5969
        %v6002 = vpack.c.b16 %v5970, %v5970
        %v6003 = vpack.c.b16 %v5971, %v5971
        %v6004 = vpack.c.b16 %v5972, %v5972
        %v6005 = vpack.c.b16 %v5973, %v5973
        %v6006 = vpack.c.b16 %v5974, %v5974
        %v6007 = vpack.c.b16 %v5975, %v5975
        %v6008 = vpack.c.b16 %v5976, %v5976
        %v6009 = vpack.c.b16 %v5977, %v5977
        %v6010 = vpack.c.b16 %v5978, %v5978
        %v6011 = vpack.c.b16 %v5979, %v5979
        %v6012 = vpack.c.b16 %v5980, %v5980
        %v6013 = vpack.c.b16 %v5981, %v5981
        %v6014 = vpack.c.b16 %v5982, %v5982
        %v6015 = vpack.c.b16 %v5983, %v5983
        %v6016 = vpack.c.b16 %v5984, %v5984
        %v6017 = vpack.c.b16 %v5985, %v5985
        %v6018 = vpack.c.b16 %v5986, %v5986
        %v6019 = vpack.c.b16 %v5987, %v5987
        %v6020 = vpack.c.b16 %v5988, %v5988
        %v6021 = vpack.c.b16 %v5989, %v5989
        %v6022 = vpack.c.b16 %v5990, %v5990
        %v6023 = vpack.c.b16 %v5991, %v5991
        %v6024 = vpack.c.b16 %v5992, %v5992
        %v6025 = vpack.c.b16 %v5993, %v5993
        %v6026 = vpack.c.b16 %v5994, %v5994
        %v6027 = vpack.c.b16 %v5995, %v5995
        %v6029 = vshrl.u32 %v5996, 16
        %v6031 = vrot.slane %v6029, 7
        %v6032 = vshll.u32 %v5996, 16
        %v6034 = vor.u32 %v6031, %v6032
        %v6035 = vrot.slane %v6031, 4
        %v6037 = vshrl.u32 %v5997, 16
        %v6039 = vrot.slane %v6037, 7
        %v6040 = vshll.u32 %v5997, 16
        %v6042 = vor.u32 %v6039, %v6040
        %v6043 = vsel %vm349, %v6035, %v6042
        %v6044 = vrot.slane %v6039, 4
        %v6046 = vshrl.u32 %v5998, 16
        %v6048 = vrot.slane %v6046, 7
        %v6049 = vshll.u32 %v5998, 16
        %v6051 = vor.u32 %v6048, %v6049
        %v6052 = vrot.slane %v6048, 4
        %v6054 = vshrl.u32 %v5999, 16
        %v6056 = vrot.slane %v6054, 7
        %v6057 = vshll.u32 %v5999, 16
        %v6059 = vor.u32 %v6056, %v6057
        %v6060 = vsel %vm349, %v6052, %v6059
        %v6061 = vrot.slane %v6056, 4
        %v6063 = vshrl.u32 %v6000, 16
        %v6065 = vrot.slane %v6063, 7
        %v6066 = vshll.u32 %v6000, 16
        %v6068 = vor.u32 %v6065, %v6066
        %v6069 = vrot.slane %v6065, 4
        %v6071 = vshrl.u32 %v6001, 16
        %v6073 = vrot.slane %v6071, 7
        %v6074 = vshll.u32 %v6001, 16
        %v6076 = vor.u32 %v6073, %v6074
        %v6077 = vsel %vm349, %v6069, %v6076
        %v6078 = vrot.slane %v6073, 4
        %v6080 = vshrl.u32 %v6002, 16
        %v6082 = vrot.slane %v6080, 7
        %v6083 = vshll.u32 %v6002, 16
        %v6085 = vor.u32 %v6082, %v6083
        %v6086 = vrot.slane %v6082, 4
        %v6088 = vshrl.u32 %v6003, 16
        %v6090 = vrot.slane %v6088, 7
        %v6091 = vshll.u32 %v6003, 16
        %v6093 = vor.u32 %v6090, %v6091
        %v6094 = vsel %vm349, %v6086, %v6093
        %v6095 = vrot.slane %v6090, 4
        %v6097 = vshrl.u32 %v6004, 16
        %v6099 = vrot.slane %v6097, 7
        %v6100 = vshll.u32 %v6004, 16
        %v6102 = vor.u32 %v6099, %v6100
        %v6103 = vrot.slane %v6099, 4
        %v6105 = vshrl.u32 %v6005, 16
        %v6107 = vrot.slane %v6105, 7
        %v6108 = vshll.u32 %v6005, 16
        %v6110 = vor.u32 %v6107, %v6108
        %v6111 = vsel %vm349, %v6103, %v6110
        %v6112 = vrot.slane %v6107, 4
        %v6114 = vshrl.u32 %v6006, 16
        %v6116 = vrot.slane %v6114, 7
        %v6117 = vshll.u32 %v6006, 16
        %v6119 = vor.u32 %v6116, %v6117
        %v6120 = vrot.slane %v6116, 4
        %v6122 = vshrl.u32 %v6007, 16
        %v6124 = vrot.slane %v6122, 7
        %v6125 = vshll.u32 %v6007, 16
        %v6127 = vor.u32 %v6124, %v6125
        %v6128 = vsel %vm349, %v6120, %v6127
        %v6129 = vrot.slane %v6124, 4
        %v6131 = vshrl.u32 %v6008, 16
        %v6133 = vrot.slane %v6131, 7
        %v6134 = vshll.u32 %v6008, 16
        %v6136 = vor.u32 %v6133, %v6134
        %v6137 = vrot.slane %v6133, 4
        %v6139 = vshrl.u32 %v6009, 16
        %v6141 = vrot.slane %v6139, 7
        %v6142 = vshll.u32 %v6009, 16
        %v6144 = vor.u32 %v6141, %v6142
        %v6145 = vsel %vm349, %v6137, %v6144
        %v6146 = vrot.slane %v6141, 4
        %v6148 = vshrl.u32 %v6010, 16
        %v6150 = vrot.slane %v6148, 7
        %v6151 = vshll.u32 %v6010, 16
        %v6153 = vor.u32 %v6150, %v6151
        %v6154 = vrot.slane %v6150, 4
        %v6156 = vshrl.u32 %v6011, 16
        %v6158 = vrot.slane %v6156, 7
        %v6159 = vshll.u32 %v6011, 16
        %v6161 = vor.u32 %v6158, %v6159
        %v6162 = vsel %vm349, %v6154, %v6161
        %v6163 = vrot.slane %v6158, 4
        %v6165 = vshrl.u32 %v6012, 16
        %v6167 = vrot.slane %v6165, 7
        %v6168 = vshll.u32 %v6012, 16
        %v6170 = vor.u32 %v6167, %v6168
        %v6171 = vrot.slane %v6167, 4
        %v6173 = vshrl.u32 %v6013, 16
        %v6175 = vrot.slane %v6173, 7
        %v6176 = vshll.u32 %v6013, 16
        %v6178 = vor.u32 %v6175, %v6176
        %v6179 = vsel %vm349, %v6171, %v6178
        %v6180 = vrot.slane %v6175, 4
        %v6182 = vshrl.u32 %v6014, 16
        %v6184 = vrot.slane %v6182, 7
        %v6185 = vshll.u32 %v6014, 16
        %v6187 = vor.u32 %v6184, %v6185
        %v6188 = vrot.slane %v6184, 4
        %v6190 = vshrl.u32 %v6015, 16
        %v6192 = vrot.slane %v6190, 7
        %v6193 = vshll.u32 %v6015, 16
        %v6195 = vor.u32 %v6192, %v6193
        %v6196 = vsel %vm349, %v6188, %v6195
        %v6197 = vrot.slane %v6192, 4
        %v6199 = vshrl.u32 %v6016, 16
        %v6201 = vrot.slane %v6199, 7
        %v6202 = vshll.u32 %v6016, 16
        %v6204 = vor.u32 %v6201, %v6202
        %v6205 = vrot.slane %v6201, 4
        %v6207 = vshrl.u32 %v6017, 16
        %v6209 = vrot.slane %v6207, 7
        %v6210 = vshll.u32 %v6017, 16
        %v6212 = vor.u32 %v6209, %v6210
        %v6213 = vsel %vm349, %v6205, %v6212
        %v6214 = vrot.slane %v6209, 4
        %v6216 = vshrl.u32 %v6018, 16
        %v6218 = vrot.slane %v6216, 7
        %v6219 = vshll.u32 %v6018, 16
        %v6221 = vor.u32 %v6218, %v6219
        %v6222 = vrot.slane %v6218, 4
        %v6224 = vshrl.u32 %v6019, 16
        %v6226 = vrot.slane %v6224, 7
        %v6227 = vshll.u32 %v6019, 16
        %v6229 = vor.u32 %v6226, %v6227
        %v6230 = vsel %vm349, %v6222, %v6229
        %v6231 = vrot.slane %v6226, 4
        %v6233 = vshrl.u32 %v6020, 16
        %v6235 = vrot.slane %v6233, 7
        %v6236 = vshll.u32 %v6020, 16
        %v6238 = vor.u32 %v6235, %v6236
        %v6239 = vrot.slane %v6235, 4
        %v6241 = vshrl.u32 %v6021, 16
        %v6243 = vrot.slane %v6241, 7
        %v6244 = vshll.u32 %v6021, 16
        %v6246 = vor.u32 %v6243, %v6244
        %v6247 = vsel %vm349, %v6239, %v6246
        %v6248 = vrot.slane %v6243, 4
        %v6250 = vshrl.u32 %v6022, 16
        %v6252 = vrot.slane %v6250, 7
        %v6253 = vshll.u32 %v6022, 16
        %v6255 = vor.u32 %v6252, %v6253
        %v6256 = vrot.slane %v6252, 4
        %v6258 = vshrl.u32 %v6023, 16
        %v6260 = vrot.slane %v6258, 7
        %v6261 = vshll.u32 %v6023, 16
        %v6263 = vor.u32 %v6260, %v6261
        %v6264 = vsel %vm349, %v6256, %v6263
        %v6265 = vrot.slane %v6260, 4
        %v6267 = vshrl.u32 %v6024, 16
        %v6269 = vrot.slane %v6267, 7
        %v6270 = vshll.u32 %v6024, 16
        %v6272 = vor.u32 %v6269, %v6270
        %v6273 = vrot.slane %v6269, 4
        %v6275 = vshrl.u32 %v6025, 16
        %v6277 = vrot.slane %v6275, 7
        %v6278 = vshll.u32 %v6025, 16
        %v6280 = vor.u32 %v6277, %v6278
        %v6281 = vsel %vm349, %v6273, %v6280
        %v6282 = vrot.slane %v6277, 4
        %v6284 = vshrl.u32 %v6026, 16
        %v6286 = vrot.slane %v6284, 7
        %v6287 = vshll.u32 %v6026, 16
        %v6289 = vor.u32 %v6286, %v6287
        %v6290 = vrot.slane %v6286, 4
        %v6292 = vshrl.u32 %v6027, 16
        %v6294 = vrot.slane %v6292, 7
        %v6295 = vshll.u32 %v6027, 16
        %v6297 = vor.u32 %v6294, %v6295
        %v6298 = vsel %vm349, %v6290, %v6297
        %v6299 = vrot.slane %v6294, 4
        %v6348 = vld [vmem:[%s670] sm:$0xf]
        %v6349 = vsel %vm673, %v6034, %v6348
        %6350 = vst [vmem:[%s670] sm:$0xf] %v6349
        %6351 = vst [vmem:[%s670 + $0x4] sm:$0xf] %v6043
        %v6352 = vld [vmem:[%s670 + $0x8] sm:$0x1]
        %v6353 = vsel %vm679, %v6044, %v6352
        %6354 = vst [vmem:[%s670 + $0x8] sm:$0x1] %v6353
        %v6355 = vld [vmem:[%s670 + $0xc] sm:$0xf]
        %v6356 = vsel %vm673, %v6051, %v6355
        %6357 = vst [vmem:[%s670 + $0xc] sm:$0xf] %v6356
        %6358 = vst [vmem:[%s670 + $0x10] sm:$0xf] %v6060
        %v6359 = vld [vmem:[%s670 + $0x14] sm:$0x1]
        %v6360 = vsel %vm679, %v6061, %v6359
        %6361 = vst [vmem:[%s670 + $0x14] sm:$0x1] %v6360
        %v6362 = vld [vmem:[%s670 + $0x18] sm:$0xf]
        %v6363 = vsel %vm673, %v6068, %v6362
        %6364 = vst [vmem:[%s670 + $0x18] sm:$0xf] %v6363
        %6365 = vst [vmem:[%s670 + $0x1c] sm:$0xf] %v6077
        %v6366 = vld [vmem:[%s670 + $0x20] sm:$0x1]
        %v6367 = vsel %vm679, %v6078, %v6366
        %6368 = vst [vmem:[%s670 + $0x20] sm:$0x1] %v6367
        %v6369 = vld [vmem:[%s670 + $0x24] sm:$0xf]
        %v6370 = vsel %vm673, %v6085, %v6369
        %6371 = vst [vmem:[%s670 + $0x24] sm:$0xf] %v6370
        %6372 = vst [vmem:[%s670 + $0x28] sm:$0xf] %v6094
        %v6373 = vld [vmem:[%s670 + $0x2c] sm:$0x1]
        %v6374 = vsel %vm679, %v6095, %v6373
        %6375 = vst [vmem:[%s670 + $0x2c] sm:$0x1] %v6374
        %v6376 = vld [vmem:[%s670 + $0x30] sm:$0xf]
        %v6377 = vsel %vm673, %v6102, %v6376
        %6378 = vst [vmem:[%s670 + $0x30] sm:$0xf] %v6377
        %6379 = vst [vmem:[%s670 + $0x34] sm:$0xf] %v6111
        %v6380 = vld [vmem:[%s670 + $0x38] sm:$0x1]
        %v6381 = vsel %vm679, %v6112, %v6380
        %6382 = vst [vmem:[%s670 + $0x38] sm:$0x1] %v6381
        %v6383 = vld [vmem:[%s670 + $0x3c] sm:$0xf]
        %v6384 = vsel %vm673, %v6119, %v6383
        %6385 = vst [vmem:[%s670 + $0x3c] sm:$0xf] %v6384
        %6386 = vst [vmem:[%s670 + $0x40] sm:$0xf] %v6128
        %v6387 = vld [vmem:[%s670 + $0x44] sm:$0x1]
        %v6388 = vsel %vm679, %v6129, %v6387
        %6389 = vst [vmem:[%s670 + $0x44] sm:$0x1] %v6388
        %v6390 = vld [vmem:[%s670 + $0x48] sm:$0xf]
        %v6391 = vsel %vm673, %v6136, %v6390
        %6392 = vst [vmem:[%s670 + $0x48] sm:$0xf] %v6391
        %6393 = vst [vmem:[%s670 + $0x4c] sm:$0xf] %v6145
        %v6394 = vld [vmem:[%s670 + $0x50] sm:$0x1]
        %v6395 = vsel %vm679, %v6146, %v6394
        %6396 = vst [vmem:[%s670 + $0x50] sm:$0x1] %v6395
        %v6397 = vld [vmem:[%s670 + $0x54] sm:$0xf]
        %v6398 = vsel %vm673, %v6153, %v6397
        %6399 = vst [vmem:[%s670 + $0x54] sm:$0xf] %v6398
        %6400 = vst [vmem:[%s670 + $0x58] sm:$0xf] %v6162
        %v6401 = vld [vmem:[%s670 + $0x5c] sm:$0x1]
        %v6402 = vsel %vm679, %v6163, %v6401
        %6403 = vst [vmem:[%s670 + $0x5c] sm:$0x1] %v6402
        %v6404 = vld [vmem:[%s670 + $0x60] sm:$0xf]
        %v6405 = vsel %vm673, %v6170, %v6404
        %6406 = vst [vmem:[%s670 + $0x60] sm:$0xf] %v6405
        %6407 = vst [vmem:[%s670 + $0x64] sm:$0xf] %v6179
        %v6408 = vld [vmem:[%s670 + $0x68] sm:$0x1]
        %v6409 = vsel %vm679, %v6180, %v6408
        %6410 = vst [vmem:[%s670 + $0x68] sm:$0x1] %v6409
        %v6411 = vld [vmem:[%s670 + $0x6c] sm:$0xf]
        %v6412 = vsel %vm673, %v6187, %v6411
        %6413 = vst [vmem:[%s670 + $0x6c] sm:$0xf] %v6412
        %6414 = vst [vmem:[%s670 + $0x70] sm:$0xf] %v6196
        %v6415 = vld [vmem:[%s670 + $0x74] sm:$0x1]
        %v6416 = vsel %vm679, %v6197, %v6415
        %6417 = vst [vmem:[%s670 + $0x74] sm:$0x1] %v6416
        %v6418 = vld [vmem:[%s670 + $0x78] sm:$0xf]
        %v6419 = vsel %vm673, %v6204, %v6418
        %6420 = vst [vmem:[%s670 + $0x78] sm:$0xf] %v6419
        %6421 = vst [vmem:[%s670 + $0x7c] sm:$0xf] %v6213
        %v6422 = vld [vmem:[%s670 + $0x80] sm:$0x1]
        %v6423 = vsel %vm679, %v6214, %v6422
        %6424 = vst [vmem:[%s670 + $0x80] sm:$0x1] %v6423
        %v6425 = vld [vmem:[%s670 + $0x84] sm:$0xf]
        %v6426 = vsel %vm673, %v6221, %v6425
        %6427 = vst [vmem:[%s670 + $0x84] sm:$0xf] %v6426
        %6428 = vst [vmem:[%s670 + $0x88] sm:$0xf] %v6230
        %v6429 = vld [vmem:[%s670 + $0x8c] sm:$0x1]
        %v6430 = vsel %vm679, %v6231, %v6429
        %6431 = vst [vmem:[%s670 + $0x8c] sm:$0x1] %v6430
        %v6432 = vld [vmem:[%s670 + $0x90] sm:$0xf]
        %v6433 = vsel %vm673, %v6238, %v6432
        %6434 = vst [vmem:[%s670 + $0x90] sm:$0xf] %v6433
        %6435 = vst [vmem:[%s670 + $0x94] sm:$0xf] %v6247
        %v6436 = vld [vmem:[%s670 + $0x98] sm:$0x1]
        %v6437 = vsel %vm679, %v6248, %v6436
        %6438 = vst [vmem:[%s670 + $0x98] sm:$0x1] %v6437
        %v6439 = vld [vmem:[%s670 + $0x9c] sm:$0xf]
        %v6440 = vsel %vm673, %v6255, %v6439
        %6441 = vst [vmem:[%s670 + $0x9c] sm:$0xf] %v6440
        %6442 = vst [vmem:[%s670 + $0xa0] sm:$0xf] %v6264
        %v6443 = vld [vmem:[%s670 + $0xa4] sm:$0x1]
        %v6444 = vsel %vm679, %v6265, %v6443
        %6445 = vst [vmem:[%s670 + $0xa4] sm:$0x1] %v6444
        %v6446 = vld [vmem:[%s670 + $0xa8] sm:$0xf]
        %v6447 = vsel %vm673, %v6272, %v6446
        %6448 = vst [vmem:[%s670 + $0xa8] sm:$0xf] %v6447
        %6449 = vst [vmem:[%s670 + $0xac] sm:$0xf] %v6281
        %v6450 = vld [vmem:[%s670 + $0xb0] sm:$0x1]
        %v6451 = vsel %vm679, %v6282, %v6450
        %6452 = vst [vmem:[%s670 + $0xb0] sm:$0x1] %v6451
        %v6453 = vld [vmem:[%s670 + $0xb4] sm:$0xf]
        %v6454 = vsel %vm673, %v6289, %v6453
        %6455 = vst [vmem:[%s670 + $0xb4] sm:$0xf] %v6454
        %6456 = vst [vmem:[%s670 + $0xb8] sm:$0xf] %v6298
        %v6457 = vld [vmem:[%s670 + $0xbc] sm:$0x1]
        %v6458 = vsel %vm679, %v6299, %v6457
        %6459 = vst [vmem:[%s670 + $0xbc] sm:$0x1] %v6458
        %v6460 = vrot.slane %v6029, 4
        %v6461 = vrot.slane %v6460, 4
        %v6462 = vrot.slane %v6046, 4
        %v6463 = vrot.slane %v6462, 4
        %v6464 = vrot.slane %v6063, 4
        %v6465 = vrot.slane %v6464, 4
        %v6466 = vrot.slane %v6080, 4
        %v6467 = vrot.slane %v6466, 4
        %v6468 = vrot.slane %v6097, 4
        %v6469 = vrot.slane %v6468, 4
        %v6470 = vrot.slane %v6114, 4
        %v6471 = vrot.slane %v6470, 4
        %v6472 = vrot.slane %v6131, 4
        %v6473 = vrot.slane %v6472, 4
        %v6474 = vrot.slane %v6148, 4
        %v6475 = vrot.slane %v6474, 4
        %v6476 = vrot.slane %v6165, 4
        %v6477 = vrot.slane %v6476, 4
        %v6478 = vrot.slane %v6182, 4
        %v6479 = vrot.slane %v6478, 4
        %v6480 = vrot.slane %v6199, 4
        %v6481 = vrot.slane %v6480, 4
        %v6482 = vrot.slane %v6216, 4
        %v6483 = vrot.slane %v6482, 4
        %v6484 = vrot.slane %v6233, 4
        %v6485 = vrot.slane %v6484, 4
        %v6486 = vrot.slane %v6250, 4
        %v6487 = vrot.slane %v6486, 4
        %v6488 = vrot.slane %v6267, 4
        %v6489 = vrot.slane %v6488, 4
        %v6490 = vrot.slane %v6284, 4
        %v6491 = vrot.slane %v6490, 4
        %v6508 = vld [vmem:[%s670] sm:$0x1]
        %v6509 = vsel %vm679, %v6461, %v6508
        %6510 = vst [vmem:[%s670] sm:$0x1] %v6509
        %v6511 = vld [vmem:[%s670 + $0xc] sm:$0x1]
        %v6512 = vsel %vm679, %v6463, %v6511
        %6513 = vst [vmem:[%s670 + $0xc] sm:$0x1] %v6512
        %v6514 = vld [vmem:[%s670 + $0x18] sm:$0x1]
        %v6515 = vsel %vm679, %v6465, %v6514
        %6516 = vst [vmem:[%s670 + $0x18] sm:$0x1] %v6515
        %v6517 = vld [vmem:[%s670 + $0x24] sm:$0x1]
        %v6518 = vsel %vm679, %v6467, %v6517
        %6519 = vst [vmem:[%s670 + $0x24] sm:$0x1] %v6518
        %v6520 = vld [vmem:[%s670 + $0x30] sm:$0x1]
        %v6521 = vsel %vm679, %v6469, %v6520
        %6522 = vst [vmem:[%s670 + $0x30] sm:$0x1] %v6521
        %v6523 = vld [vmem:[%s670 + $0x3c] sm:$0x1]
        %v6524 = vsel %vm679, %v6471, %v6523
        %6525 = vst [vmem:[%s670 + $0x3c] sm:$0x1] %v6524
        %v6526 = vld [vmem:[%s670 + $0x48] sm:$0x1]
        %v6527 = vsel %vm679, %v6473, %v6526
        %6528 = vst [vmem:[%s670 + $0x48] sm:$0x1] %v6527
        %v6529 = vld [vmem:[%s670 + $0x54] sm:$0x1]
        %v6530 = vsel %vm679, %v6475, %v6529
        %6531 = vst [vmem:[%s670 + $0x54] sm:$0x1] %v6530
        %v6532 = vld [vmem:[%s670 + $0x60] sm:$0x1]
        %v6533 = vsel %vm679, %v6477, %v6532
        %6534 = vst [vmem:[%s670 + $0x60] sm:$0x1] %v6533
        %v6535 = vld [vmem:[%s670 + $0x6c] sm:$0x1]
        %v6536 = vsel %vm679, %v6479, %v6535
        %6537 = vst [vmem:[%s670 + $0x6c] sm:$0x1] %v6536
        %v6538 = vld [vmem:[%s670 + $0x78] sm:$0x1]
        %v6539 = vsel %vm679, %v6481, %v6538
        %6540 = vst [vmem:[%s670 + $0x78] sm:$0x1] %v6539
        %v6541 = vld [vmem:[%s670 + $0x84] sm:$0x1]
        %v6542 = vsel %vm679, %v6483, %v6541
        %6543 = vst [vmem:[%s670 + $0x84] sm:$0x1] %v6542
        %v6544 = vld [vmem:[%s670 + $0x90] sm:$0x1]
        %v6545 = vsel %vm679, %v6485, %v6544
        %6546 = vst [vmem:[%s670 + $0x90] sm:$0x1] %v6545
        %v6547 = vld [vmem:[%s670 + $0x9c] sm:$0x1]
        %v6548 = vsel %vm679, %v6487, %v6547
        %6549 = vst [vmem:[%s670 + $0x9c] sm:$0x1] %v6548
        %v6550 = vld [vmem:[%s670 + $0xa8] sm:$0x1]
        %v6551 = vsel %vm679, %v6489, %v6550
        %6552 = vst [vmem:[%s670 + $0xa8] sm:$0x1] %v6551
        %v6553 = vld [vmem:[%s670 + $0xb4] sm:$0x1]
        %v6554 = vsel %vm679, %v6491, %v6553
        %6555 = vst [vmem:[%s670 + $0xb4] sm:$0x1] %v6554
        %v6556 = vrot.slane %v6040, 7
        %v6557 = vrot.slane %v6556, 4
        %v6558 = vrot.slane %v6057, 7
        %v6559 = vrot.slane %v6558, 4
        %v6560 = vrot.slane %v6074, 7
        %v6561 = vrot.slane %v6560, 4
        %v6562 = vrot.slane %v6091, 7
        %v6563 = vrot.slane %v6562, 4
        %v6564 = vrot.slane %v6108, 7
        %v6565 = vrot.slane %v6564, 4
        %v6566 = vrot.slane %v6125, 7
        %v6567 = vrot.slane %v6566, 4
        %v6568 = vrot.slane %v6142, 7
        %v6569 = vrot.slane %v6568, 4
        %v6570 = vrot.slane %v6159, 7
        %v6571 = vrot.slane %v6570, 4
        %v6572 = vrot.slane %v6176, 7
        %v6573 = vrot.slane %v6572, 4
        %v6574 = vrot.slane %v6193, 7
        %v6575 = vrot.slane %v6574, 4
        %v6576 = vrot.slane %v6210, 7
        %v6577 = vrot.slane %v6576, 4
        %v6578 = vrot.slane %v6227, 7
        %v6579 = vrot.slane %v6578, 4
        %v6580 = vrot.slane %v6244, 7
        %v6581 = vrot.slane %v6580, 4
        %v6582 = vrot.slane %v6261, 7
        %v6583 = vrot.slane %v6582, 4
        %v6584 = vrot.slane %v6278, 7
        %v6585 = vrot.slane %v6584, 4
        %v6586 = vrot.slane %v6295, 7
        %v6587 = vrot.slane %v6586, 4
        %v6604 = vld [vmem:[%s670 + $0x8] sm:$0x1]
        %v6605 = vsel %vm932, %v6557, %v6604
        %6606 = vst [vmem:[%s670 + $0x8] sm:$0x1] %v6605
        %v6607 = vld [vmem:[%s670 + $0x14] sm:$0x1]
        %v6608 = vsel %vm932, %v6559, %v6607
        %6609 = vst [vmem:[%s670 + $0x14] sm:$0x1] %v6608
        %v6610 = vld [vmem:[%s670 + $0x20] sm:$0x1]
        %v6611 = vsel %vm932, %v6561, %v6610
        %6612 = vst [vmem:[%s670 + $0x20] sm:$0x1] %v6611
        %v6613 = vld [vmem:[%s670 + $0x2c] sm:$0x1]
        %v6614 = vsel %vm932, %v6563, %v6613
        %6615 = vst [vmem:[%s670 + $0x2c] sm:$0x1] %v6614
        %v6616 = vld [vmem:[%s670 + $0x38] sm:$0x1]
        %v6617 = vsel %vm932, %v6565, %v6616
        %6618 = vst [vmem:[%s670 + $0x38] sm:$0x1] %v6617
        %v6619 = vld [vmem:[%s670 + $0x44] sm:$0x1]
        %v6620 = vsel %vm932, %v6567, %v6619
        %6621 = vst [vmem:[%s670 + $0x44] sm:$0x1] %v6620
        %v6622 = vld [vmem:[%s670 + $0x50] sm:$0x1]
        %v6623 = vsel %vm932, %v6569, %v6622
        %6624 = vst [vmem:[%s670 + $0x50] sm:$0x1] %v6623
        %v6625 = vld [vmem:[%s670 + $0x5c] sm:$0x1]
        %v6626 = vsel %vm932, %v6571, %v6625
        %6627 = vst [vmem:[%s670 + $0x5c] sm:$0x1] %v6626
        %v6628 = vld [vmem:[%s670 + $0x68] sm:$0x1]
        %v6629 = vsel %vm932, %v6573, %v6628
        %6630 = vst [vmem:[%s670 + $0x68] sm:$0x1] %v6629
        %v6631 = vld [vmem:[%s670 + $0x74] sm:$0x1]
        %v6632 = vsel %vm932, %v6575, %v6631
        %6633 = vst [vmem:[%s670 + $0x74] sm:$0x1] %v6632
        %v6634 = vld [vmem:[%s670 + $0x80] sm:$0x1]
        %v6635 = vsel %vm932, %v6577, %v6634
        %6636 = vst [vmem:[%s670 + $0x80] sm:$0x1] %v6635
        %v6637 = vld [vmem:[%s670 + $0x8c] sm:$0x1]
        %v6638 = vsel %vm932, %v6579, %v6637
        %6639 = vst [vmem:[%s670 + $0x8c] sm:$0x1] %v6638
        %v6640 = vld [vmem:[%s670 + $0x98] sm:$0x1]
        %v6641 = vsel %vm932, %v6581, %v6640
        %6642 = vst [vmem:[%s670 + $0x98] sm:$0x1] %v6641
        %v6643 = vld [vmem:[%s670 + $0xa4] sm:$0x1]
        %v6644 = vsel %vm932, %v6583, %v6643
        %6645 = vst [vmem:[%s670 + $0xa4] sm:$0x1] %v6644
        %v6646 = vld [vmem:[%s670 + $0xb0] sm:$0x1]
        %v6647 = vsel %vm932, %v6585, %v6646
        %6648 = vst [vmem:[%s670 + $0xb0] sm:$0x1] %v6647
        %v6649 = vld [vmem:[%s670 + $0xbc] sm:$0x1]
        %v6650 = vsel %vm932, %v6587, %v6649
        %6651 = vst [vmem:[%s670 + $0xbc] sm:$0x1] %v6650
        %v6652 = vld [vmem:[%s981] sm:$0xf]
        %v6653 = vld [vmem:[%s981 + $0x4] sm:$0xf]
        %v6654 = vld [vmem:[%s981 + $0x8] sm:$0x1]
        %6655 = vst [vmem:[#allocation2] sm:$0xf] %v6652
        %6656 = vst [vmem:[#allocation2 + $0x4] sm:$0xf] %v6653
        %6657 = vst [vmem:[#allocation2 + $0x8] sm:$0x1] %v6654
        %v6658 = vld [vmem:[%s988] sm:$0xf]
        %v6659 = vld [vmem:[%s988 + $0x4] sm:$0xf]
        %v6660 = vld [vmem:[%s988 + $0x8] sm:$0x1]
        %6661 = vst [vmem:[%s992] sm:$0xf] %v6658
        %6662 = vst [vmem:[%s992 + $0x4] sm:$0xf] %v6659
        %6663 = vst [vmem:[%s992 + $0x8] sm:$0x1] %v6660
        %v6664 = vld [vmem:[#allocation2] sm:$0xf]
        %v6665 = vld [vmem:[#allocation2 + $0x4] sm:$0xf]
        %v6666 = vld [vmem:[#allocation2 + $0xc] sm:$0xf]
        %v6667 = vld [vmem:[#allocation2 + $0x10] sm:$0xf]
        %v6668 = vld [vmem:[#allocation2 + $0x18] sm:$0xf]
        %v6669 = vld [vmem:[#allocation2 + $0x1c] sm:$0xf]
        %v6670 = vld [vmem:[#allocation2 + $0x24] sm:$0xf]
        %v6671 = vld [vmem:[#allocation2 + $0x28] sm:$0xf]
        %v6672 = vld [vmem:[#allocation2 + $0x30] sm:$0xf]
        %v6673 = vld [vmem:[#allocation2 + $0x34] sm:$0xf]
        %v6674 = vld [vmem:[#allocation2 + $0x3c] sm:$0xf]
        %v6675 = vld [vmem:[#allocation2 + $0x40] sm:$0xf]
        %v6676 = vld [vmem:[#allocation2 + $0x48] sm:$0xf]
        %v6677 = vld [vmem:[#allocation2 + $0x4c] sm:$0xf]
        %v6678 = vld [vmem:[#allocation2 + $0x54] sm:$0xf]
        %v6679 = vld [vmem:[#allocation2 + $0x58] sm:$0xf]
        %v6680 = vld [vmem:[#allocation2 + $0x60] sm:$0xf]
        %v6681 = vld [vmem:[#allocation2 + $0x64] sm:$0xf]
        %v6682 = vld [vmem:[#allocation2 + $0x6c] sm:$0xf]
        %v6683 = vld [vmem:[#allocation2 + $0x70] sm:$0xf]
        %v6684 = vld [vmem:[#allocation2 + $0x78] sm:$0xf]
        %v6685 = vld [vmem:[#allocation2 + $0x7c] sm:$0xf]
        %v6686 = vld [vmem:[#allocation2 + $0x84] sm:$0xf]
        %v6687 = vld [vmem:[#allocation2 + $0x88] sm:$0xf]
        %v6688 = vld [vmem:[#allocation2 + $0x90] sm:$0xf]
        %v6689 = vld [vmem:[#allocation2 + $0x94] sm:$0xf]
        %v6690 = vld [vmem:[#allocation2 + $0x9c] sm:$0xf]
        %v6691 = vld [vmem:[#allocation2 + $0xa0] sm:$0xf]
        %v6692 = vld [vmem:[#allocation2 + $0xa8] sm:$0xf]
        %v6693 = vld [vmem:[#allocation2 + $0xac] sm:$0xf]
        %v6694 = vld [vmem:[#allocation2 + $0xb4] sm:$0xf]
        %v6695 = vld [vmem:[#allocation2 + $0xb8] sm:$0xf]
        %v6728 = vunpack.c.l.b16 %v6664
        %v6729 = vunpack.c.l.b16 %v6665
        %v6730 = vunpack.c.l.b16 %v6666
        %v6731 = vunpack.c.l.b16 %v6667
        %v6732 = vunpack.c.l.b16 %v6668
        %v6733 = vunpack.c.l.b16 %v6669
        %v6734 = vunpack.c.l.b16 %v6670
        %v6735 = vunpack.c.l.b16 %v6671
        %v6736 = vunpack.c.l.b16 %v6672
        %v6737 = vunpack.c.l.b16 %v6673
        %v6738 = vunpack.c.l.b16 %v6674
        %v6739 = vunpack.c.l.b16 %v6675
        %v6740 = vunpack.c.l.b16 %v6676
        %v6741 = vunpack.c.l.b16 %v6677
        %v6742 = vunpack.c.l.b16 %v6678
        %v6743 = vunpack.c.l.b16 %v6679
        %v6744 = vunpack.c.l.b16 %v6680
        %v6745 = vunpack.c.l.b16 %v6681
        %v6746 = vunpack.c.l.b16 %v6682
        %v6747 = vunpack.c.l.b16 %v6683
        %v6748 = vunpack.c.l.b16 %v6684
        %v6749 = vunpack.c.l.b16 %v6685
        %v6750 = vunpack.c.l.b16 %v6686
        %v6751 = vunpack.c.l.b16 %v6687
        %v6752 = vunpack.c.l.b16 %v6688
        %v6753 = vunpack.c.l.b16 %v6689
        %v6754 = vunpack.c.l.b16 %v6690
        %v6755 = vunpack.c.l.b16 %v6691
        %v6756 = vunpack.c.l.b16 %v6692
        %v6757 = vunpack.c.l.b16 %v6693
        %v6758 = vunpack.c.l.b16 %v6694
        %v6759 = vunpack.c.l.b16 %v6695
        %v6760 = vpack.c.b16 %v6729, %v6728
        %v6761 = vpack.c.b16 %v6731, %v6730
        %v6762 = vpack.c.b16 %v6733, %v6732
        %v6763 = vpack.c.b16 %v6735, %v6734
        %v6764 = vpack.c.b16 %v6737, %v6736
        %v6765 = vpack.c.b16 %v6739, %v6738
        %v6766 = vpack.c.b16 %v6741, %v6740
        %v6767 = vpack.c.b16 %v6743, %v6742
        %v6768 = vpack.c.b16 %v6745, %v6744
        %v6769 = vpack.c.b16 %v6747, %v6746
        %v6770 = vpack.c.b16 %v6749, %v6748
        %v6771 = vpack.c.b16 %v6751, %v6750
        %v6772 = vpack.c.b16 %v6753, %v6752
        %v6773 = vpack.c.b16 %v6755, %v6754
        %v6774 = vpack.c.b16 %v6757, %v6756
        %v6775 = vpack.c.b16 %v6759, %v6758
        %6792 = vst [vmem:[#allocation3] sm:$0xff] %v6760
        %6793 = vst [vmem:[#allocation3 + $0x48] sm:$0xff] %v6761
        %6794 = vst [vmem:[#allocation3 + $0x90] sm:$0xff] %v6762
        %6795 = vst [vmem:[#allocation3 + $0xd8] sm:$0xff] %v6763
        %6796 = vst [vmem:[#allocation3 + $0x120] sm:$0xff] %v6764
        %6797 = vst [vmem:[#allocation3 + $0x168] sm:$0xff] %v6765
        %6798 = vst [vmem:[#allocation3 + $0x1b0] sm:$0xff] %v6766
        %6799 = vst [vmem:[#allocation3 + $0x1f8] sm:$0xff] %v6767
        %6800 = vst [vmem:[#allocation3 + $0x240] sm:$0xff] %v6768
        %6801 = vst [vmem:[#allocation3 + $0x288] sm:$0xff] %v6769
        %6802 = vst [vmem:[#allocation3 + $0x2d0] sm:$0xff] %v6770
        %6803 = vst [vmem:[#allocation3 + $0x318] sm:$0xff] %v6771
        %6804 = vst [vmem:[#allocation3 + $0x360] sm:$0xff] %v6772
        %6805 = vst [vmem:[#allocation3 + $0x3a8] sm:$0xff] %v6773
        %6806 = vst [vmem:[#allocation3 + $0x3f0] sm:$0xff] %v6774
        %6807 = vst [vmem:[#allocation3 + $0x438] sm:$0xff] %v6775
        %v6808 = vld [vmem:[#allocation2] sm:$0xf]
        %v6809 = vld [vmem:[#allocation2 + $0x4] sm:$0xf]
        %v6810 = vld [vmem:[#allocation2 + $0x8] sm:$0x1]
        %v6811 = vld [vmem:[#allocation2 + $0xc] sm:$0xf]
        %v6812 = vld [vmem:[#allocation2 + $0x10] sm:$0xf]
        %v6813 = vld [vmem:[#allocation2 + $0x14] sm:$0x1]
        %v6814 = vld [vmem:[#allocation2 + $0x18] sm:$0xf]
        %v6815 = vld [vmem:[#allocation2 + $0x1c] sm:$0xf]
        %v6816 = vld [vmem:[#allocation2 + $0x20] sm:$0x1]
        %v6817 = vld [vmem:[#allocation2 + $0x24] sm:$0xf]
        %v6818 = vld [vmem:[#allocation2 + $0x28] sm:$0xf]
        %v6819 = vld [vmem:[#allocation2 + $0x2c] sm:$0x1]
        %v6820 = vld [vmem:[#allocation2 + $0x30] sm:$0xf]
        %v6821 = vld [vmem:[#allocation2 + $0x34] sm:$0xf]
        %v6822 = vld [vmem:[#allocation2 + $0x38] sm:$0x1]
        %v6823 = vld [vmem:[#allocation2 + $0x3c] sm:$0xf]
        %v6824 = vld [vmem:[#allocation2 + $0x40] sm:$0xf]
        %v6825 = vld [vmem:[#allocation2 + $0x44] sm:$0x1]
        %v6826 = vld [vmem:[#allocation2 + $0x48] sm:$0xf]
        %v6827 = vld [vmem:[#allocation2 + $0x4c] sm:$0xf]
        %v6828 = vld [vmem:[#allocation2 + $0x50] sm:$0x1]
        %v6829 = vld [vmem:[#allocation2 + $0x54] sm:$0xf]
        %v6830 = vld [vmem:[#allocation2 + $0x58] sm:$0xf]
        %v6831 = vld [vmem:[#allocation2 + $0x5c] sm:$0x1]
        %v6832 = vld [vmem:[#allocation2 + $0x60] sm:$0xf]
        %v6833 = vld [vmem:[#allocation2 + $0x64] sm:$0xf]
        %v6834 = vld [vmem:[#allocation2 + $0x68] sm:$0x1]
        %v6835 = vld [vmem:[#allocation2 + $0x6c] sm:$0xf]
        %v6836 = vld [vmem:[#allocation2 + $0x70] sm:$0xf]
        %v6837 = vld [vmem:[#allocation2 + $0x74] sm:$0x1]
        %v6838 = vld [vmem:[#allocation2 + $0x78] sm:$0xf]
        %v6839 = vld [vmem:[#allocation2 + $0x7c] sm:$0xf]
        %v6840 = vld [vmem:[#allocation2 + $0x80] sm:$0x1]
        %v6841 = vld [vmem:[#allocation2 + $0x84] sm:$0xf]
        %v6842 = vld [vmem:[#allocation2 + $0x88] sm:$0xf]
        %v6843 = vld [vmem:[#allocation2 + $0x8c] sm:$0x1]
        %v6844 = vld [vmem:[#allocation2 + $0x90] sm:$0xf]
        %v6845 = vld [vmem:[#allocation2 + $0x94] sm:$0xf]
        %v6846 = vld [vmem:[#allocation2 + $0x98] sm:$0x1]
        %v6847 = vld [vmem:[#allocation2 + $0x9c] sm:$0xf]
        %v6848 = vld [vmem:[#allocation2 + $0xa0] sm:$0xf]
        %v6849 = vld [vmem:[#allocation2 + $0xa4] sm:$0x1]
        %v6850 = vld [vmem:[#allocation2 + $0xa8] sm:$0xf]
        %v6851 = vld [vmem:[#allocation2 + $0xac] sm:$0xf]
        %v6852 = vld [vmem:[#allocation2 + $0xb0] sm:$0x1]
        %v6853 = vld [vmem:[#allocation2 + $0xb4] sm:$0xf]
        %v6854 = vld [vmem:[#allocation2 + $0xb8] sm:$0xf]
        %v6855 = vld [vmem:[#allocation2 + $0xbc] sm:$0x1]
        %v6904 = vunpack.c.l.b16 %v6808
        %v6905 = vunpack.c.l.b16 %v6809
        %v6906 = vunpack.c.l.b16 %v6810
        %v6907 = vunpack.c.l.b16 %v6811
        %v6908 = vunpack.c.l.b16 %v6812
        %v6909 = vunpack.c.l.b16 %v6813
        %v6910 = vunpack.c.l.b16 %v6814
        %v6911 = vunpack.c.l.b16 %v6815
        %v6912 = vunpack.c.l.b16 %v6816
        %v6913 = vunpack.c.l.b16 %v6817
        %v6914 = vunpack.c.l.b16 %v6818
        %v6915 = vunpack.c.l.b16 %v6819
        %v6916 = vunpack.c.l.b16 %v6820
        %v6917 = vunpack.c.l.b16 %v6821
        %v6918 = vunpack.c.l.b16 %v6822
        %v6919 = vunpack.c.l.b16 %v6823
        %v6920 = vunpack.c.l.b16 %v6824
        %v6921 = vunpack.c.l.b16 %v6825
        %v6922 = vunpack.c.l.b16 %v6826
        %v6923 = vunpack.c.l.b16 %v6827
        %v6924 = vunpack.c.l.b16 %v6828
        %v6925 = vunpack.c.l.b16 %v6829
        %v6926 = vunpack.c.l.b16 %v6830
        %v6927 = vunpack.c.l.b16 %v6831
        %v6928 = vunpack.c.l.b16 %v6832
        %v6929 = vunpack.c.l.b16 %v6833
        %v6930 = vunpack.c.l.b16 %v6834
        %v6931 = vunpack.c.l.b16 %v6835
        %v6932 = vunpack.c.l.b16 %v6836
        %v6933 = vunpack.c.l.b16 %v6837
        %v6934 = vunpack.c.l.b16 %v6838
        %v6935 = vunpack.c.l.b16 %v6839
        %v6936 = vunpack.c.l.b16 %v6840
        %v6937 = vunpack.c.l.b16 %v6841
        %v6938 = vunpack.c.l.b16 %v6842
        %v6939 = vunpack.c.l.b16 %v6843
        %v6940 = vunpack.c.l.b16 %v6844
        %v6941 = vunpack.c.l.b16 %v6845
        %v6942 = vunpack.c.l.b16 %v6846
        %v6943 = vunpack.c.l.b16 %v6847
        %v6944 = vunpack.c.l.b16 %v6848
        %v6945 = vunpack.c.l.b16 %v6849
        %v6946 = vunpack.c.l.b16 %v6850
        %v6947 = vunpack.c.l.b16 %v6851
        %v6948 = vunpack.c.l.b16 %v6852
        %v6949 = vunpack.c.l.b16 %v6853
        %v6950 = vunpack.c.l.b16 %v6854
        %v6951 = vunpack.c.l.b16 %v6855
        %v6952 = vpack.c.b16 %v6905, %v6904
        %v6953 = vpack.c.b16 %v6906, %v6906
        %v6954 = vpack.c.b16 %v6908, %v6907
        %v6955 = vpack.c.b16 %v6909, %v6909
        %v6956 = vpack.c.b16 %v6911, %v6910
        %v6957 = vpack.c.b16 %v6912, %v6912
        %v6958 = vpack.c.b16 %v6914, %v6913
        %v6959 = vpack.c.b16 %v6915, %v6915
        %v6960 = vpack.c.b16 %v6917, %v6916
        %v6961 = vpack.c.b16 %v6918, %v6918
        %v6962 = vpack.c.b16 %v6920, %v6919
        %v6963 = vpack.c.b16 %v6921, %v6921
        %v6964 = vpack.c.b16 %v6923, %v6922
        %v6965 = vpack.c.b16 %v6924, %v6924
        %v6966 = vpack.c.b16 %v6926, %v6925
        %v6967 = vpack.c.b16 %v6927, %v6927
        %v6968 = vpack.c.b16 %v6929, %v6928
        %v6969 = vpack.c.b16 %v6930, %v6930
        %v6970 = vpack.c.b16 %v6932, %v6931
        %v6971 = vpack.c.b16 %v6933, %v6933
        %v6972 = vpack.c.b16 %v6935, %v6934
        %v6973 = vpack.c.b16 %v6936, %v6936
        %v6974 = vpack.c.b16 %v6938, %v6937
        %v6975 = vpack.c.b16 %v6939, %v6939
        %v6976 = vpack.c.b16 %v6941, %v6940
        %v6977 = vpack.c.b16 %v6942, %v6942
        %v6978 = vpack.c.b16 %v6944, %v6943
        %v6979 = vpack.c.b16 %v6945, %v6945
        %v6980 = vpack.c.b16 %v6947, %v6946
        %v6981 = vpack.c.b16 %v6948, %v6948
        %v6982 = vpack.c.b16 %v6950, %v6949
        %v6983 = vpack.c.b16 %v6951, %v6951
        %v6985 = vshrl.u32 %v6952, 16
        %v6987 = vshll.u32 %v6952, 16
        %v6989 = vrot.slane %v6987, 1
        %v6990 = vor.u32 %v6985, %v6989
        %v6992 = vshll.u32 %v6953, 16
        %v6994 = vrot.slane %v6992, 1
        %v6995 = vsel %vm1316, %v6990, %v6994
        %v6997 = vshrl.u32 %v6954, 16
        %v6999 = vshll.u32 %v6954, 16
        %v7001 = vrot.slane %v6999, 1
        %v7002 = vor.u32 %v6997, %v7001
        %v7004 = vshll.u32 %v6955, 16
        %v7006 = vrot.slane %v7004, 1
        %v7007 = vsel %vm1316, %v7002, %v7006
        %v7009 = vshrl.u32 %v6956, 16
        %v7011 = vshll.u32 %v6956, 16
        %v7013 = vrot.slane %v7011, 1
        %v7014 = vor.u32 %v7009, %v7013
        %v7016 = vshll.u32 %v6957, 16
        %v7018 = vrot.slane %v7016, 1
        %v7019 = vsel %vm1316, %v7014, %v7018
        %v7021 = vshrl.u32 %v6958, 16
        %v7023 = vshll.u32 %v6958, 16
        %v7025 = vrot.slane %v7023, 1
        %v7026 = vor.u32 %v7021, %v7025
        %v7028 = vshll.u32 %v6959, 16
        %v7030 = vrot.slane %v7028, 1
        %v7031 = vsel %vm1316, %v7026, %v7030
        %v7033 = vshrl.u32 %v6960, 16
        %v7035 = vshll.u32 %v6960, 16
        %v7037 = vrot.slane %v7035, 1
        %v7038 = vor.u32 %v7033, %v7037
        %v7040 = vshll.u32 %v6961, 16
        %v7042 = vrot.slane %v7040, 1
        %v7043 = vsel %vm1316, %v7038, %v7042
        %v7045 = vshrl.u32 %v6962, 16
        %v7047 = vshll.u32 %v6962, 16
        %v7049 = vrot.slane %v7047, 1
        %v7050 = vor.u32 %v7045, %v7049
        %v7052 = vshll.u32 %v6963, 16
        %v7054 = vrot.slane %v7052, 1
        %v7055 = vsel %vm1316, %v7050, %v7054
        %v7057 = vshrl.u32 %v6964, 16
        %v7059 = vshll.u32 %v6964, 16
        %v7061 = vrot.slane %v7059, 1
        %v7062 = vor.u32 %v7057, %v7061
        %v7064 = vshll.u32 %v6965, 16
        %v7066 = vrot.slane %v7064, 1
        %v7067 = vsel %vm1316, %v7062, %v7066
        %v7069 = vshrl.u32 %v6966, 16
        %v7071 = vshll.u32 %v6966, 16
        %v7073 = vrot.slane %v7071, 1
        %v7074 = vor.u32 %v7069, %v7073
        %v7076 = vshll.u32 %v6967, 16
        %v7078 = vrot.slane %v7076, 1
        %v7079 = vsel %vm1316, %v7074, %v7078
        %v7081 = vshrl.u32 %v6968, 16
        %v7083 = vshll.u32 %v6968, 16
        %v7085 = vrot.slane %v7083, 1
        %v7086 = vor.u32 %v7081, %v7085
        %v7088 = vshll.u32 %v6969, 16
        %v7090 = vrot.slane %v7088, 1
        %v7091 = vsel %vm1316, %v7086, %v7090
        %v7093 = vshrl.u32 %v6970, 16
        %v7095 = vshll.u32 %v6970, 16
        %v7097 = vrot.slane %v7095, 1
        %v7098 = vor.u32 %v7093, %v7097
        %v7100 = vshll.u32 %v6971, 16
        %v7102 = vrot.slane %v7100, 1
        %v7103 = vsel %vm1316, %v7098, %v7102
        %v7105 = vshrl.u32 %v6972, 16
        %v7107 = vshll.u32 %v6972, 16
        %v7109 = vrot.slane %v7107, 1
        %v7110 = vor.u32 %v7105, %v7109
        %v7112 = vshll.u32 %v6973, 16
        %v7114 = vrot.slane %v7112, 1
        %v7115 = vsel %vm1316, %v7110, %v7114
        %v7117 = vshrl.u32 %v6974, 16
        %v7119 = vshll.u32 %v6974, 16
        %v7121 = vrot.slane %v7119, 1
        %v7122 = vor.u32 %v7117, %v7121
        %v7124 = vshll.u32 %v6975, 16
        %v7126 = vrot.slane %v7124, 1
        %v7127 = vsel %vm1316, %v7122, %v7126
        %v7129 = vshrl.u32 %v6976, 16
        %v7131 = vshll.u32 %v6976, 16
        %v7133 = vrot.slane %v7131, 1
        %v7134 = vor.u32 %v7129, %v7133
        %v7136 = vshll.u32 %v6977, 16
        %v7138 = vrot.slane %v7136, 1
        %v7139 = vsel %vm1316, %v7134, %v7138
        %v7141 = vshrl.u32 %v6978, 16
        %v7143 = vshll.u32 %v6978, 16
        %v7145 = vrot.slane %v7143, 1
        %v7146 = vor.u32 %v7141, %v7145
        %v7148 = vshll.u32 %v6979, 16
        %v7150 = vrot.slane %v7148, 1
        %v7151 = vsel %vm1316, %v7146, %v7150
        %v7153 = vshrl.u32 %v6980, 16
        %v7155 = vshll.u32 %v6980, 16
        %v7157 = vrot.slane %v7155, 1
        %v7158 = vor.u32 %v7153, %v7157
        %v7160 = vshll.u32 %v6981, 16
        %v7162 = vrot.slane %v7160, 1
        %v7163 = vsel %vm1316, %v7158, %v7162
        %v7165 = vshrl.u32 %v6982, 16
        %v7167 = vshll.u32 %v6982, 16
        %v7169 = vrot.slane %v7167, 1
        %v7170 = vor.u32 %v7165, %v7169
        %v7172 = vshll.u32 %v6983, 16
        %v7174 = vrot.slane %v7172, 1
        %v7175 = vsel %vm1316, %v7170, %v7174
        %7192 = vst [vmem:[#allocation3 + $0x8] sm:$0xff] %v6995
        %7193 = vst [vmem:[#allocation3 + $0x50] sm:$0xff] %v7007
        %7194 = vst [vmem:[#allocation3 + $0x98] sm:$0xff] %v7019
        %7195 = vst [vmem:[#allocation3 + $0xe0] sm:$0xff] %v7031
        %7196 = vst [vmem:[#allocation3 + $0x128] sm:$0xff] %v7043
        %7197 = vst [vmem:[#allocation3 + $0x170] sm:$0xff] %v7055
        %7198 = vst [vmem:[#allocation3 + $0x1b8] sm:$0xff] %v7067
        %7199 = vst [vmem:[#allocation3 + $0x200] sm:$0xff] %v7079
        %7200 = vst [vmem:[#allocation3 + $0x248] sm:$0xff] %v7091
        %7201 = vst [vmem:[#allocation3 + $0x290] sm:$0xff] %v7103
        %7202 = vst [vmem:[#allocation3 + $0x2d8] sm:$0xff] %v7115
        %7203 = vst [vmem:[#allocation3 + $0x320] sm:$0xff] %v7127
        %7204 = vst [vmem:[#allocation3 + $0x368] sm:$0xff] %v7139
        %7205 = vst [vmem:[#allocation3 + $0x3b0] sm:$0xff] %v7151
        %7206 = vst [vmem:[#allocation3 + $0x3f8] sm:$0xff] %v7163
        %7207 = vst [vmem:[#allocation3 + $0x440] sm:$0xff] %v7175
        %v7208 = vld [vmem:[#allocation2] sm:$0xe]
        %v7209 = vld [vmem:[#allocation2 + $0x4] sm:$0xf]
        %v7210 = vld [vmem:[#allocation2 + $0x8] sm:$0x1]
        %v7211 = vld [vmem:[#allocation2 + $0xc] sm:$0xe]
        %v7212 = vld [vmem:[#allocation2 + $0x10] sm:$0xf]
        %v7213 = vld [vmem:[#allocation2 + $0x14] sm:$0x1]
        %v7214 = vld [vmem:[#allocation2 + $0x18] sm:$0xe]
        %v7215 = vld [vmem:[#allocation2 + $0x1c] sm:$0xf]
        %v7216 = vld [vmem:[#allocation2 + $0x20] sm:$0x1]
        %v7217 = vld [vmem:[#allocation2 + $0x24] sm:$0xe]
        %v7218 = vld [vmem:[#allocation2 + $0x28] sm:$0xf]
        %v7219 = vld [vmem:[#allocation2 + $0x2c] sm:$0x1]
        %v7220 = vld [vmem:[#allocation2 + $0x30] sm:$0xe]
        %v7221 = vld [vmem:[#allocation2 + $0x34] sm:$0xf]
        %v7222 = vld [vmem:[#allocation2 + $0x38] sm:$0x1]
        %v7223 = vld [vmem:[#allocation2 + $0x3c] sm:$0xe]
        %v7224 = vld [vmem:[#allocation2 + $0x40] sm:$0xf]
        %v7225 = vld [vmem:[#allocation2 + $0x44] sm:$0x1]
        %v7226 = vld [vmem:[#allocation2 + $0x48] sm:$0xe]
        %v7227 = vld [vmem:[#allocation2 + $0x4c] sm:$0xf]
        %v7228 = vld [vmem:[#allocation2 + $0x50] sm:$0x1]
        %v7229 = vld [vmem:[#allocation2 + $0x54] sm:$0xe]
        %v7230 = vld [vmem:[#allocation2 + $0x58] sm:$0xf]
        %v7231 = vld [vmem:[#allocation2 + $0x5c] sm:$0x1]
        %v7232 = vld [vmem:[#allocation2 + $0x60] sm:$0xe]
        %v7233 = vld [vmem:[#allocation2 + $0x64] sm:$0xf]
        %v7234 = vld [vmem:[#allocation2 + $0x68] sm:$0x1]
        %v7235 = vld [vmem:[#allocation2 + $0x6c] sm:$0xe]
        %v7236 = vld [vmem:[#allocation2 + $0x70] sm:$0xf]
        %v7237 = vld [vmem:[#allocation2 + $0x74] sm:$0x1]
        %v7238 = vld [vmem:[#allocation2 + $0x78] sm:$0xe]
        %v7239 = vld [vmem:[#allocation2 + $0x7c] sm:$0xf]
        %v7240 = vld [vmem:[#allocation2 + $0x80] sm:$0x1]
        %v7241 = vld [vmem:[#allocation2 + $0x84] sm:$0xe]
        %v7242 = vld [vmem:[#allocation2 + $0x88] sm:$0xf]
        %v7243 = vld [vmem:[#allocation2 + $0x8c] sm:$0x1]
        %v7244 = vld [vmem:[#allocation2 + $0x90] sm:$0xe]
        %v7245 = vld [vmem:[#allocation2 + $0x94] sm:$0xf]
        %v7246 = vld [vmem:[#allocation2 + $0x98] sm:$0x1]
        %v7247 = vld [vmem:[#allocation2 + $0x9c] sm:$0xe]
        %v7248 = vld [vmem:[#allocation2 + $0xa0] sm:$0xf]
        %v7249 = vld [vmem:[#allocation2 + $0xa4] sm:$0x1]
        %v7250 = vld [vmem:[#allocation2 + $0xa8] sm:$0xe]
        %v7251 = vld [vmem:[#allocation2 + $0xac] sm:$0xf]
        %v7252 = vld [vmem:[#allocation2 + $0xb0] sm:$0x1]
        %v7253 = vld [vmem:[#allocation2 + $0xb4] sm:$0xe]
        %v7254 = vld [vmem:[#allocation2 + $0xb8] sm:$0xf]
        %v7255 = vld [vmem:[#allocation2 + $0xbc] sm:$0x1]
        %v7304 = vunpack.c.l.b16 %v7208
        %v7305 = vunpack.c.l.b16 %v7209
        %v7306 = vunpack.c.l.b16 %v7210
        %v7307 = vunpack.c.l.b16 %v7211
        %v7308 = vunpack.c.l.b16 %v7212
        %v7309 = vunpack.c.l.b16 %v7213
        %v7310 = vunpack.c.l.b16 %v7214
        %v7311 = vunpack.c.l.b16 %v7215
        %v7312 = vunpack.c.l.b16 %v7216
        %v7313 = vunpack.c.l.b16 %v7217
        %v7314 = vunpack.c.l.b16 %v7218
        %v7315 = vunpack.c.l.b16 %v7219
        %v7316 = vunpack.c.l.b16 %v7220
        %v7317 = vunpack.c.l.b16 %v7221
        %v7318 = vunpack.c.l.b16 %v7222
        %v7319 = vunpack.c.l.b16 %v7223
        %v7320 = vunpack.c.l.b16 %v7224
        %v7321 = vunpack.c.l.b16 %v7225
        %v7322 = vunpack.c.l.b16 %v7226
        %v7323 = vunpack.c.l.b16 %v7227
        %v7324 = vunpack.c.l.b16 %v7228
        %v7325 = vunpack.c.l.b16 %v7229
        %v7326 = vunpack.c.l.b16 %v7230
        %v7327 = vunpack.c.l.b16 %v7231
        %v7328 = vunpack.c.l.b16 %v7232
        %v7329 = vunpack.c.l.b16 %v7233
        %v7330 = vunpack.c.l.b16 %v7234
        %v7331 = vunpack.c.l.b16 %v7235
        %v7332 = vunpack.c.l.b16 %v7236
        %v7333 = vunpack.c.l.b16 %v7237
        %v7334 = vunpack.c.l.b16 %v7238
        %v7335 = vunpack.c.l.b16 %v7239
        %v7336 = vunpack.c.l.b16 %v7240
        %v7337 = vunpack.c.l.b16 %v7241
        %v7338 = vunpack.c.l.b16 %v7242
        %v7339 = vunpack.c.l.b16 %v7243
        %v7340 = vunpack.c.l.b16 %v7244
        %v7341 = vunpack.c.l.b16 %v7245
        %v7342 = vunpack.c.l.b16 %v7246
        %v7343 = vunpack.c.l.b16 %v7247
        %v7344 = vunpack.c.l.b16 %v7248
        %v7345 = vunpack.c.l.b16 %v7249
        %v7346 = vunpack.c.l.b16 %v7250
        %v7347 = vunpack.c.l.b16 %v7251
        %v7348 = vunpack.c.l.b16 %v7252
        %v7349 = vunpack.c.l.b16 %v7253
        %v7350 = vunpack.c.l.b16 %v7254
        %v7351 = vunpack.c.l.b16 %v7255
        %v7352 = vpack.c.b16 %v7305, %v7304
        %v7353 = vpack.c.b16 %v7306, %v7306
        %v7354 = vpack.c.b16 %v7308, %v7307
        %v7355 = vpack.c.b16 %v7309, %v7309
        %v7356 = vpack.c.b16 %v7311, %v7310
        %v7357 = vpack.c.b16 %v7312, %v7312
        %v7358 = vpack.c.b16 %v7314, %v7313
        %v7359 = vpack.c.b16 %v7315, %v7315
        %v7360 = vpack.c.b16 %v7317, %v7316
        %v7361 = vpack.c.b16 %v7318, %v7318
        %v7362 = vpack.c.b16 %v7320, %v7319
        %v7363 = vpack.c.b16 %v7321, %v7321
        %v7364 = vpack.c.b16 %v7323, %v7322
        %v7365 = vpack.c.b16 %v7324, %v7324
        %v7366 = vpack.c.b16 %v7326, %v7325
        %v7367 = vpack.c.b16 %v7327, %v7327
        %v7368 = vpack.c.b16 %v7329, %v7328
        %v7369 = vpack.c.b16 %v7330, %v7330
        %v7370 = vpack.c.b16 %v7332, %v7331
        %v7371 = vpack.c.b16 %v7333, %v7333
        %v7372 = vpack.c.b16 %v7335, %v7334
        %v7373 = vpack.c.b16 %v7336, %v7336
        %v7374 = vpack.c.b16 %v7338, %v7337
        %v7375 = vpack.c.b16 %v7339, %v7339
        %v7376 = vpack.c.b16 %v7341, %v7340
        %v7377 = vpack.c.b16 %v7342, %v7342
        %v7378 = vpack.c.b16 %v7344, %v7343
        %v7379 = vpack.c.b16 %v7345, %v7345
        %v7380 = vpack.c.b16 %v7347, %v7346
        %v7381 = vpack.c.b16 %v7348, %v7348
        %v7382 = vpack.c.b16 %v7350, %v7349
        %v7383 = vpack.c.b16 %v7351, %v7351
        %v7384 = vrot.slane %v7352, 1
        %v7385 = vrot.slane %v7353, 1
        %v7386 = vsel %vm1717, %v7384, %v7385
        %v7387 = vrot.slane %v7354, 1
        %v7388 = vrot.slane %v7355, 1
        %v7389 = vsel %vm1717, %v7387, %v7388
        %v7390 = vrot.slane %v7356, 1
        %v7391 = vrot.slane %v7357, 1
        %v7392 = vsel %vm1717, %v7390, %v7391
        %v7393 = vrot.slane %v7358, 1
        %v7394 = vrot.slane %v7359, 1
        %v7395 = vsel %vm1717, %v7393, %v7394
        %v7396 = vrot.slane %v7360, 1
        %v7397 = vrot.slane %v7361, 1
        %v7398 = vsel %vm1717, %v7396, %v7397
        %v7399 = vrot.slane %v7362, 1
        %v7400 = vrot.slane %v7363, 1
        %v7401 = vsel %vm1717, %v7399, %v7400
        %v7402 = vrot.slane %v7364, 1
        %v7403 = vrot.slane %v7365, 1
        %v7404 = vsel %vm1717, %v7402, %v7403
        %v7405 = vrot.slane %v7366, 1
        %v7406 = vrot.slane %v7367, 1
        %v7407 = vsel %vm1717, %v7405, %v7406
        %v7408 = vrot.slane %v7368, 1
        %v7409 = vrot.slane %v7369, 1
        %v7410 = vsel %vm1717, %v7408, %v7409
        %v7411 = vrot.slane %v7370, 1
        %v7412 = vrot.slane %v7371, 1
        %v7413 = vsel %vm1717, %v7411, %v7412
        %v7414 = vrot.slane %v7372, 1
        %v7415 = vrot.slane %v7373, 1
        %v7416 = vsel %vm1717, %v7414, %v7415
        %v7417 = vrot.slane %v7374, 1
        %v7418 = vrot.slane %v7375, 1
        %v7419 = vsel %vm1717, %v7417, %v7418
        %v7420 = vrot.slane %v7376, 1
        %v7421 = vrot.slane %v7377, 1
        %v7422 = vsel %vm1717, %v7420, %v7421
        %v7423 = vrot.slane %v7378, 1
        %v7424 = vrot.slane %v7379, 1
        %v7425 = vsel %vm1717, %v7423, %v7424
        %v7426 = vrot.slane %v7380, 1
        %v7427 = vrot.slane %v7381, 1
        %v7428 = vsel %vm1717, %v7426, %v7427
        %v7429 = vrot.slane %v7382, 1
        %v7430 = vrot.slane %v7383, 1
        %v7431 = vsel %vm1717, %v7429, %v7430
        %7448 = vst [vmem:[#allocation3 + $0x10] sm:$0xff] %v7386
        %7449 = vst [vmem:[#allocation3 + $0x58] sm:$0xff] %v7389
        %7450 = vst [vmem:[#allocation3 + $0xa0] sm:$0xff] %v7392
        %7451 = vst [vmem:[#allocation3 + $0xe8] sm:$0xff] %v7395
        %7452 = vst [vmem:[#allocation3 + $0x130] sm:$0xff] %v7398
        %7453 = vst [vmem:[#allocation3 + $0x178] sm:$0xff] %v7401
        %7454 = vst [vmem:[#allocation3 + $0x1c0] sm:$0xff] %v7404
        %7455 = vst [vmem:[#allocation3 + $0x208] sm:$0xff] %v7407
        %7456 = vst [vmem:[#allocation3 + $0x250] sm:$0xff] %v7410
        %7457 = vst [vmem:[#allocation3 + $0x298] sm:$0xff] %v7413
        %7458 = vst [vmem:[#allocation3 + $0x2e0] sm:$0xff] %v7416
        %7459 = vst [vmem:[#allocation3 + $0x328] sm:$0xff] %v7419
        %7460 = vst [vmem:[#allocation3 + $0x370] sm:$0xff] %v7422
        %7461 = vst [vmem:[#allocation3 + $0x3b8] sm:$0xff] %v7425
        %7462 = vst [vmem:[#allocation3 + $0x400] sm:$0xff] %v7428
        %7463 = vst [vmem:[#allocation3 + $0x448] sm:$0xff] %v7431
        %v7464 = vld [vmem:[%s670] sm:$0xf]
        %v7465 = vld [vmem:[%s670 + $0x4] sm:$0xf]
        %v7466 = vld [vmem:[%s670 + $0xc] sm:$0xf]
        %v7467 = vld [vmem:[%s670 + $0x10] sm:$0xf]
        %v7468 = vld [vmem:[%s670 + $0x18] sm:$0xf]
        %v7469 = vld [vmem:[%s670 + $0x1c] sm:$0xf]
        %v7470 = vld [vmem:[%s670 + $0x24] sm:$0xf]
        %v7471 = vld [vmem:[%s670 + $0x28] sm:$0xf]
        %v7472 = vld [vmem:[%s670 + $0x30] sm:$0xf]
        %v7473 = vld [vmem:[%s670 + $0x34] sm:$0xf]
        %v7474 = vld [vmem:[%s670 + $0x3c] sm:$0xf]
        %v7475 = vld [vmem:[%s670 + $0x40] sm:$0xf]
        %v7476 = vld [vmem:[%s670 + $0x48] sm:$0xf]
        %v7477 = vld [vmem:[%s670 + $0x4c] sm:$0xf]
        %v7478 = vld [vmem:[%s670 + $0x54] sm:$0xf]
        %v7479 = vld [vmem:[%s670 + $0x58] sm:$0xf]
        %v7480 = vld [vmem:[%s670 + $0x60] sm:$0xf]
        %v7481 = vld [vmem:[%s670 + $0x64] sm:$0xf]
        %v7482 = vld [vmem:[%s670 + $0x6c] sm:$0xf]
        %v7483 = vld [vmem:[%s670 + $0x70] sm:$0xf]
        %v7484 = vld [vmem:[%s670 + $0x78] sm:$0xf]
        %v7485 = vld [vmem:[%s670 + $0x7c] sm:$0xf]
        %v7486 = vld [vmem:[%s670 + $0x84] sm:$0xf]
        %v7487 = vld [vmem:[%s670 + $0x88] sm:$0xf]
        %v7488 = vld [vmem:[%s670 + $0x90] sm:$0xf]
        %v7489 = vld [vmem:[%s670 + $0x94] sm:$0xf]
        %v7490 = vld [vmem:[%s670 + $0x9c] sm:$0xf]
        %v7491 = vld [vmem:[%s670 + $0xa0] sm:$0xf]
        %v7492 = vld [vmem:[%s670 + $0xa8] sm:$0xf]
        %v7493 = vld [vmem:[%s670 + $0xac] sm:$0xf]
        %v7494 = vld [vmem:[%s670 + $0xb4] sm:$0xf]
        %v7495 = vld [vmem:[%s670 + $0xb8] sm:$0xf]
        %v7528 = vunpack.c.l.b16 %v7464
        %v7529 = vunpack.c.l.b16 %v7465
        %v7530 = vunpack.c.l.b16 %v7466
        %v7531 = vunpack.c.l.b16 %v7467
        %v7532 = vunpack.c.l.b16 %v7468
        %v7533 = vunpack.c.l.b16 %v7469
        %v7534 = vunpack.c.l.b16 %v7470
        %v7535 = vunpack.c.l.b16 %v7471
        %v7536 = vunpack.c.l.b16 %v7472
        %v7537 = vunpack.c.l.b16 %v7473
        %v7538 = vunpack.c.l.b16 %v7474
        %v7539 = vunpack.c.l.b16 %v7475
        %v7540 = vunpack.c.l.b16 %v7476
        %v7541 = vunpack.c.l.b16 %v7477
        %v7542 = vunpack.c.l.b16 %v7478
        %v7543 = vunpack.c.l.b16 %v7479
        %v7544 = vunpack.c.l.b16 %v7480
        %v7545 = vunpack.c.l.b16 %v7481
        %v7546 = vunpack.c.l.b16 %v7482
        %v7547 = vunpack.c.l.b16 %v7483
        %v7548 = vunpack.c.l.b16 %v7484
        %v7549 = vunpack.c.l.b16 %v7485
        %v7550 = vunpack.c.l.b16 %v7486
        %v7551 = vunpack.c.l.b16 %v7487
        %v7552 = vunpack.c.l.b16 %v7488
        %v7553 = vunpack.c.l.b16 %v7489
        %v7554 = vunpack.c.l.b16 %v7490
        %v7555 = vunpack.c.l.b16 %v7491
        %v7556 = vunpack.c.l.b16 %v7492
        %v7557 = vunpack.c.l.b16 %v7493
        %v7558 = vunpack.c.l.b16 %v7494
        %v7559 = vunpack.c.l.b16 %v7495
        %v7560 = vpack.c.b16 %v7529, %v7528
        %v7561 = vpack.c.b16 %v7531, %v7530
        %v7562 = vpack.c.b16 %v7533, %v7532
        %v7563 = vpack.c.b16 %v7535, %v7534
        %v7564 = vpack.c.b16 %v7537, %v7536
        %v7565 = vpack.c.b16 %v7539, %v7538
        %v7566 = vpack.c.b16 %v7541, %v7540
        %v7567 = vpack.c.b16 %v7543, %v7542
        %v7568 = vpack.c.b16 %v7545, %v7544
        %v7569 = vpack.c.b16 %v7547, %v7546
        %v7570 = vpack.c.b16 %v7549, %v7548
        %v7571 = vpack.c.b16 %v7551, %v7550
        %v7572 = vpack.c.b16 %v7553, %v7552
        %v7573 = vpack.c.b16 %v7555, %v7554
        %v7574 = vpack.c.b16 %v7557, %v7556
        %v7575 = vpack.c.b16 %v7559, %v7558
        %7592 = vst [vmem:[#allocation3 + $0x18] sm:$0xff] %v7560
        %7593 = vst [vmem:[#allocation3 + $0x60] sm:$0xff] %v7561
        %7594 = vst [vmem:[#allocation3 + $0xa8] sm:$0xff] %v7562
        %7595 = vst [vmem:[#allocation3 + $0xf0] sm:$0xff] %v7563
        %7596 = vst [vmem:[#allocation3 + $0x138] sm:$0xff] %v7564
        %7597 = vst [vmem:[#allocation3 + $0x180] sm:$0xff] %v7565
        %7598 = vst [vmem:[#allocation3 + $0x1c8] sm:$0xff] %v7566
        %7599 = vst [vmem:[#allocation3 + $0x210] sm:$0xff] %v7567
        %7600 = vst [vmem:[#allocation3 + $0x258] sm:$0xff] %v7568
        %7601 = vst [vmem:[#allocation3 + $0x2a0] sm:$0xff] %v7569
        %7602 = vst [vmem:[#allocation3 + $0x2e8] sm:$0xff] %v7570
        %7603 = vst [vmem:[#allocation3 + $0x330] sm:$0xff] %v7571
        %7604 = vst [vmem:[#allocation3 + $0x378] sm:$0xff] %v7572
        %7605 = vst [vmem:[#allocation3 + $0x3c0] sm:$0xff] %v7573
        %7606 = vst [vmem:[#allocation3 + $0x408] sm:$0xff] %v7574
        %7607 = vst [vmem:[#allocation3 + $0x450] sm:$0xff] %v7575
        %v7608 = vld [vmem:[%s670] sm:$0xf]
        %v7609 = vld [vmem:[%s670 + $0x4] sm:$0xf]
        %v7610 = vld [vmem:[%s670 + $0x8] sm:$0x1]
        %v7611 = vld [vmem:[%s670 + $0xc] sm:$0xf]
        %v7612 = vld [vmem:[%s670 + $0x10] sm:$0xf]
        %v7613 = vld [vmem:[%s670 + $0x14] sm:$0x1]
        %v7614 = vld [vmem:[%s670 + $0x18] sm:$0xf]
        %v7615 = vld [vmem:[%s670 + $0x1c] sm:$0xf]
        %v7616 = vld [vmem:[%s670 + $0x20] sm:$0x1]
        %v7617 = vld [vmem:[%s670 + $0x24] sm:$0xf]
        %v7618 = vld [vmem:[%s670 + $0x28] sm:$0xf]
        %v7619 = vld [vmem:[%s670 + $0x2c] sm:$0x1]
        %v7620 = vld [vmem:[%s670 + $0x30] sm:$0xf]
        %v7621 = vld [vmem:[%s670 + $0x34] sm:$0xf]
        %v7622 = vld [vmem:[%s670 + $0x38] sm:$0x1]
        %v7623 = vld [vmem:[%s670 + $0x3c] sm:$0xf]
        %v7624 = vld [vmem:[%s670 + $0x40] sm:$0xf]
        %v7625 = vld [vmem:[%s670 + $0x44] sm:$0x1]
        %v7626 = vld [vmem:[%s670 + $0x48] sm:$0xf]
        %v7627 = vld [vmem:[%s670 + $0x4c] sm:$0xf]
        %v7628 = vld [vmem:[%s670 + $0x50] sm:$0x1]
        %v7629 = vld [vmem:[%s670 + $0x54] sm:$0xf]
        %v7630 = vld [vmem:[%s670 + $0x58] sm:$0xf]
        %v7631 = vld [vmem:[%s670 + $0x5c] sm:$0x1]
        %v7632 = vld [vmem:[%s670 + $0x60] sm:$0xf]
        %v7633 = vld [vmem:[%s670 + $0x64] sm:$0xf]
        %v7634 = vld [vmem:[%s670 + $0x68] sm:$0x1]
        %v7635 = vld [vmem:[%s670 + $0x6c] sm:$0xf]
        %v7636 = vld [vmem:[%s670 + $0x70] sm:$0xf]
        %v7637 = vld [vmem:[%s670 + $0x74] sm:$0x1]
        %v7638 = vld [vmem:[%s670 + $0x78] sm:$0xf]
        %v7639 = vld [vmem:[%s670 + $0x7c] sm:$0xf]
        %v7640 = vld [vmem:[%s670 + $0x80] sm:$0x1]
        %v7641 = vld [vmem:[%s670 + $0x84] sm:$0xf]
        %v7642 = vld [vmem:[%s670 + $0x88] sm:$0xf]
        %v7643 = vld [vmem:[%s670 + $0x8c] sm:$0x1]
        %v7644 = vld [vmem:[%s670 + $0x90] sm:$0xf]
        %v7645 = vld [vmem:[%s670 + $0x94] sm:$0xf]
        %v7646 = vld [vmem:[%s670 + $0x98] sm:$0x1]
        %v7647 = vld [vmem:[%s670 + $0x9c] sm:$0xf]
        %v7648 = vld [vmem:[%s670 + $0xa0] sm:$0xf]
        %v7649 = vld [vmem:[%s670 + $0xa4] sm:$0x1]
        %v7650 = vld [vmem:[%s670 + $0xa8] sm:$0xf]
        %v7651 = vld [vmem:[%s670 + $0xac] sm:$0xf]
        %v7652 = vld [vmem:[%s670 + $0xb0] sm:$0x1]
        %v7653 = vld [vmem:[%s670 + $0xb4] sm:$0xf]
        %v7654 = vld [vmem:[%s670 + $0xb8] sm:$0xf]
        %v7655 = vld [vmem:[%s670 + $0xbc] sm:$0x1]
        %v7704 = vunpack.c.l.b16 %v7608
        %v7705 = vunpack.c.l.b16 %v7609
        %v7706 = vunpack.c.l.b16 %v7610
        %v7707 = vunpack.c.l.b16 %v7611
        %v7708 = vunpack.c.l.b16 %v7612
        %v7709 = vunpack.c.l.b16 %v7613
        %v7710 = vunpack.c.l.b16 %v7614
        %v7711 = vunpack.c.l.b16 %v7615
        %v7712 = vunpack.c.l.b16 %v7616
        %v7713 = vunpack.c.l.b16 %v7617
        %v7714 = vunpack.c.l.b16 %v7618
        %v7715 = vunpack.c.l.b16 %v7619
        %v7716 = vunpack.c.l.b16 %v7620
        %v7717 = vunpack.c.l.b16 %v7621
        %v7718 = vunpack.c.l.b16 %v7622
        %v7719 = vunpack.c.l.b16 %v7623
        %v7720 = vunpack.c.l.b16 %v7624
        %v7721 = vunpack.c.l.b16 %v7625
        %v7722 = vunpack.c.l.b16 %v7626
        %v7723 = vunpack.c.l.b16 %v7627
        %v7724 = vunpack.c.l.b16 %v7628
        %v7725 = vunpack.c.l.b16 %v7629
        %v7726 = vunpack.c.l.b16 %v7630
        %v7727 = vunpack.c.l.b16 %v7631
        %v7728 = vunpack.c.l.b16 %v7632
        %v7729 = vunpack.c.l.b16 %v7633
        %v7730 = vunpack.c.l.b16 %v7634
        %v7731 = vunpack.c.l.b16 %v7635
        %v7732 = vunpack.c.l.b16 %v7636
        %v7733 = vunpack.c.l.b16 %v7637
        %v7734 = vunpack.c.l.b16 %v7638
        %v7735 = vunpack.c.l.b16 %v7639
        %v7736 = vunpack.c.l.b16 %v7640
        %v7737 = vunpack.c.l.b16 %v7641
        %v7738 = vunpack.c.l.b16 %v7642
        %v7739 = vunpack.c.l.b16 %v7643
        %v7740 = vunpack.c.l.b16 %v7644
        %v7741 = vunpack.c.l.b16 %v7645
        %v7742 = vunpack.c.l.b16 %v7646
        %v7743 = vunpack.c.l.b16 %v7647
        %v7744 = vunpack.c.l.b16 %v7648
        %v7745 = vunpack.c.l.b16 %v7649
        %v7746 = vunpack.c.l.b16 %v7650
        %v7747 = vunpack.c.l.b16 %v7651
        %v7748 = vunpack.c.l.b16 %v7652
        %v7749 = vunpack.c.l.b16 %v7653
        %v7750 = vunpack.c.l.b16 %v7654
        %v7751 = vunpack.c.l.b16 %v7655
        %v7752 = vpack.c.b16 %v7705, %v7704
        %v7753 = vpack.c.b16 %v7706, %v7706
        %v7754 = vpack.c.b16 %v7708, %v7707
        %v7755 = vpack.c.b16 %v7709, %v7709
        %v7756 = vpack.c.b16 %v7711, %v7710
        %v7757 = vpack.c.b16 %v7712, %v7712
        %v7758 = vpack.c.b16 %v7714, %v7713
        %v7759 = vpack.c.b16 %v7715, %v7715
        %v7760 = vpack.c.b16 %v7717, %v7716
        %v7761 = vpack.c.b16 %v7718, %v7718
        %v7762 = vpack.c.b16 %v7720, %v7719
        %v7763 = vpack.c.b16 %v7721, %v7721
        %v7764 = vpack.c.b16 %v7723, %v7722
        %v7765 = vpack.c.b16 %v7724, %v7724
        %v7766 = vpack.c.b16 %v7726, %v7725
        %v7767 = vpack.c.b16 %v7727, %v7727
        %v7768 = vpack.c.b16 %v7729, %v7728
        %v7769 = vpack.c.b16 %v7730, %v7730
        %v7770 = vpack.c.b16 %v7732, %v7731
        %v7771 = vpack.c.b16 %v7733, %v7733
        %v7772 = vpack.c.b16 %v7735, %v7734
        %v7773 = vpack.c.b16 %v7736, %v7736
        %v7774 = vpack.c.b16 %v7738, %v7737
        %v7775 = vpack.c.b16 %v7739, %v7739
        %v7776 = vpack.c.b16 %v7741, %v7740
        %v7777 = vpack.c.b16 %v7742, %v7742
        %v7778 = vpack.c.b16 %v7744, %v7743
        %v7779 = vpack.c.b16 %v7745, %v7745
        %v7780 = vpack.c.b16 %v7747, %v7746
        %v7781 = vpack.c.b16 %v7748, %v7748
        %v7782 = vpack.c.b16 %v7750, %v7749
        %v7783 = vpack.c.b16 %v7751, %v7751
        %v7785 = vshrl.u32 %v7752, 16
        %v7787 = vshll.u32 %v7752, 16
        %v7789 = vrot.slane %v7787, 1
        %v7790 = vor.u32 %v7785, %v7789
        %v7792 = vshll.u32 %v7753, 16
        %v7794 = vrot.slane %v7792, 1
        %v7795 = vsel %vm1316, %v7790, %v7794
        %v7797 = vshrl.u32 %v7754, 16
        %v7799 = vshll.u32 %v7754, 16
        %v7801 = vrot.slane %v7799, 1
        %v7802 = vor.u32 %v7797, %v7801
        %v7804 = vshll.u32 %v7755, 16
        %v7806 = vrot.slane %v7804, 1
        %v7807 = vsel %vm1316, %v7802, %v7806
        %v7809 = vshrl.u32 %v7756, 16
        %v7811 = vshll.u32 %v7756, 16
        %v7813 = vrot.slane %v7811, 1
        %v7814 = vor.u32 %v7809, %v7813
        %v7816 = vshll.u32 %v7757, 16
        %v7818 = vrot.slane %v7816, 1
        %v7819 = vsel %vm1316, %v7814, %v7818
        %v7821 = vshrl.u32 %v7758, 16
        %v7823 = vshll.u32 %v7758, 16
        %v7825 = vrot.slane %v7823, 1
        %v7826 = vor.u32 %v7821, %v7825
        %v7828 = vshll.u32 %v7759, 16
        %v7830 = vrot.slane %v7828, 1
        %v7831 = vsel %vm1316, %v7826, %v7830
        %v7833 = vshrl.u32 %v7760, 16
        %v7835 = vshll.u32 %v7760, 16
        %v7837 = vrot.slane %v7835, 1
        %v7838 = vor.u32 %v7833, %v7837
        %v7840 = vshll.u32 %v7761, 16
        %v7842 = vrot.slane %v7840, 1
        %v7843 = vsel %vm1316, %v7838, %v7842
        %v7845 = vshrl.u32 %v7762, 16
        %v7847 = vshll.u32 %v7762, 16
        %v7849 = vrot.slane %v7847, 1
        %v7850 = vor.u32 %v7845, %v7849
        %v7852 = vshll.u32 %v7763, 16
        %v7854 = vrot.slane %v7852, 1
        %v7855 = vsel %vm1316, %v7850, %v7854
        %v7857 = vshrl.u32 %v7764, 16
        %v7859 = vshll.u32 %v7764, 16
        %v7861 = vrot.slane %v7859, 1
        %v7862 = vor.u32 %v7857, %v7861
        %v7864 = vshll.u32 %v7765, 16
        %v7866 = vrot.slane %v7864, 1
        %v7867 = vsel %vm1316, %v7862, %v7866
        %v7869 = vshrl.u32 %v7766, 16
        %v7871 = vshll.u32 %v7766, 16
        %v7873 = vrot.slane %v7871, 1
        %v7874 = vor.u32 %v7869, %v7873
        %v7876 = vshll.u32 %v7767, 16
        %v7878 = vrot.slane %v7876, 1
        %v7879 = vsel %vm1316, %v7874, %v7878
        %v7881 = vshrl.u32 %v7768, 16
        %v7883 = vshll.u32 %v7768, 16
        %v7885 = vrot.slane %v7883, 1
        %v7886 = vor.u32 %v7881, %v7885
        %v7888 = vshll.u32 %v7769, 16
        %v7890 = vrot.slane %v7888, 1
        %v7891 = vsel %vm1316, %v7886, %v7890
        %v7893 = vshrl.u32 %v7770, 16
        %v7895 = vshll.u32 %v7770, 16
        %v7897 = vrot.slane %v7895, 1
        %v7898 = vor.u32 %v7893, %v7897
        %v7900 = vshll.u32 %v7771, 16
        %v7902 = vrot.slane %v7900, 1
        %v7903 = vsel %vm1316, %v7898, %v7902
        %v7905 = vshrl.u32 %v7772, 16
        %v7907 = vshll.u32 %v7772, 16
        %v7909 = vrot.slane %v7907, 1
        %v7910 = vor.u32 %v7905, %v7909
        %v7912 = vshll.u32 %v7773, 16
        %v7914 = vrot.slane %v7912, 1
        %v7915 = vsel %vm1316, %v7910, %v7914
        %v7917 = vshrl.u32 %v7774, 16
        %v7919 = vshll.u32 %v7774, 16
        %v7921 = vrot.slane %v7919, 1
        %v7922 = vor.u32 %v7917, %v7921
        %v7924 = vshll.u32 %v7775, 16
        %v7926 = vrot.slane %v7924, 1
        %v7927 = vsel %vm1316, %v7922, %v7926
        %v7929 = vshrl.u32 %v7776, 16
        %v7931 = vshll.u32 %v7776, 16
        %v7933 = vrot.slane %v7931, 1
        %v7934 = vor.u32 %v7929, %v7933
        %v7936 = vshll.u32 %v7777, 16
        %v7938 = vrot.slane %v7936, 1
        %v7939 = vsel %vm1316, %v7934, %v7938
        %v7941 = vshrl.u32 %v7778, 16
        %v7943 = vshll.u32 %v7778, 16
        %v7945 = vrot.slane %v7943, 1
        %v7946 = vor.u32 %v7941, %v7945
        %v7948 = vshll.u32 %v7779, 16
        %v7950 = vrot.slane %v7948, 1
        %v7951 = vsel %vm1316, %v7946, %v7950
        %v7953 = vshrl.u32 %v7780, 16
        %v7955 = vshll.u32 %v7780, 16
        %v7957 = vrot.slane %v7955, 1
        %v7958 = vor.u32 %v7953, %v7957
        %v7960 = vshll.u32 %v7781, 16
        %v7962 = vrot.slane %v7960, 1
        %v7963 = vsel %vm1316, %v7958, %v7962
        %v7965 = vshrl.u32 %v7782, 16
        %v7967 = vshll.u32 %v7782, 16
        %v7969 = vrot.slane %v7967, 1
        %v7970 = vor.u32 %v7965, %v7969
        %v7972 = vshll.u32 %v7783, 16
        %v7974 = vrot.slane %v7972, 1
        %v7975 = vsel %vm1316, %v7970, %v7974
        %7992 = vst [vmem:[#allocation3 + $0x20] sm:$0xff] %v7795
        %7993 = vst [vmem:[#allocation3 + $0x68] sm:$0xff] %v7807
        %7994 = vst [vmem:[#allocation3 + $0xb0] sm:$0xff] %v7819
        %7995 = vst [vmem:[#allocation3 + $0xf8] sm:$0xff] %v7831
        %7996 = vst [vmem:[#allocation3 + $0x140] sm:$0xff] %v7843
        %7997 = vst [vmem:[#allocation3 + $0x188] sm:$0xff] %v7855
        %7998 = vst [vmem:[#allocation3 + $0x1d0] sm:$0xff] %v7867
        %7999 = vst [vmem:[#allocation3 + $0x218] sm:$0xff] %v7879
        %8000 = vst [vmem:[#allocation3 + $0x260] sm:$0xff] %v7891
        %8001 = vst [vmem:[#allocation3 + $0x2a8] sm:$0xff] %v7903
        %8002 = vst [vmem:[#allocation3 + $0x2f0] sm:$0xff] %v7915
        %8003 = vst [vmem:[#allocation3 + $0x338] sm:$0xff] %v7927
        %8004 = vst [vmem:[#allocation3 + $0x380] sm:$0xff] %v7939
        %8005 = vst [vmem:[#allocation3 + $0x3c8] sm:$0xff] %v7951
        %8006 = vst [vmem:[#allocation3 + $0x410] sm:$0xff] %v7963
        %8007 = vst [vmem:[#allocation3 + $0x458] sm:$0xff] %v7975
        %v8008 = vld [vmem:[%s670] sm:$0xe]
        %v8009 = vld [vmem:[%s670 + $0x4] sm:$0xf]
        %v8010 = vld [vmem:[%s670 + $0x8] sm:$0x1]
        %v8011 = vld [vmem:[%s670 + $0xc] sm:$0xe]
        %v8012 = vld [vmem:[%s670 + $0x10] sm:$0xf]
        %v8013 = vld [vmem:[%s670 + $0x14] sm:$0x1]
        %v8014 = vld [vmem:[%s670 + $0x18] sm:$0xe]
        %v8015 = vld [vmem:[%s670 + $0x1c] sm:$0xf]
        %v8016 = vld [vmem:[%s670 + $0x20] sm:$0x1]
        %v8017 = vld [vmem:[%s670 + $0x24] sm:$0xe]
        %v8018 = vld [vmem:[%s670 + $0x28] sm:$0xf]
        %v8019 = vld [vmem:[%s670 + $0x2c] sm:$0x1]
        %v8020 = vld [vmem:[%s670 + $0x30] sm:$0xe]
        %v8021 = vld [vmem:[%s670 + $0x34] sm:$0xf]
        %v8022 = vld [vmem:[%s670 + $0x38] sm:$0x1]
        %v8023 = vld [vmem:[%s670 + $0x3c] sm:$0xe]
        %v8024 = vld [vmem:[%s670 + $0x40] sm:$0xf]
        %v8025 = vld [vmem:[%s670 + $0x44] sm:$0x1]
        %v8026 = vld [vmem:[%s670 + $0x48] sm:$0xe]
        %v8027 = vld [vmem:[%s670 + $0x4c] sm:$0xf]
        %v8028 = vld [vmem:[%s670 + $0x50] sm:$0x1]
        %v8029 = vld [vmem:[%s670 + $0x54] sm:$0xe]
        %v8030 = vld [vmem:[%s670 + $0x58] sm:$0xf]
        %v8031 = vld [vmem:[%s670 + $0x5c] sm:$0x1]
        %v8032 = vld [vmem:[%s670 + $0x60] sm:$0xe]
        %v8033 = vld [vmem:[%s670 + $0x64] sm:$0xf]
        %v8034 = vld [vmem:[%s670 + $0x68] sm:$0x1]
        %v8035 = vld [vmem:[%s670 + $0x6c] sm:$0xe]
        %v8036 = vld [vmem:[%s670 + $0x70] sm:$0xf]
        %v8037 = vld [vmem:[%s670 + $0x74] sm:$0x1]
        %v8038 = vld [vmem:[%s670 + $0x78] sm:$0xe]
        %v8039 = vld [vmem:[%s670 + $0x7c] sm:$0xf]
        %v8040 = vld [vmem:[%s670 + $0x80] sm:$0x1]
        %v8041 = vld [vmem:[%s670 + $0x84] sm:$0xe]
        %v8042 = vld [vmem:[%s670 + $0x88] sm:$0xf]
        %v8043 = vld [vmem:[%s670 + $0x8c] sm:$0x1]
        %v8044 = vld [vmem:[%s670 + $0x90] sm:$0xe]
        %v8045 = vld [vmem:[%s670 + $0x94] sm:$0xf]
        %v8046 = vld [vmem:[%s670 + $0x98] sm:$0x1]
        %v8047 = vld [vmem:[%s670 + $0x9c] sm:$0xe]
        %v8048 = vld [vmem:[%s670 + $0xa0] sm:$0xf]
        %v8049 = vld [vmem:[%s670 + $0xa4] sm:$0x1]
        %v8050 = vld [vmem:[%s670 + $0xa8] sm:$0xe]
        %v8051 = vld [vmem:[%s670 + $0xac] sm:$0xf]
        %v8052 = vld [vmem:[%s670 + $0xb0] sm:$0x1]
        %v8053 = vld [vmem:[%s670 + $0xb4] sm:$0xe]
        %v8054 = vld [vmem:[%s670 + $0xb8] sm:$0xf]
        %v8055 = vld [vmem:[%s670 + $0xbc] sm:$0x1]
        %v8104 = vunpack.c.l.b16 %v8008
        %v8105 = vunpack.c.l.b16 %v8009
        %v8106 = vunpack.c.l.b16 %v8010
        %v8107 = vunpack.c.l.b16 %v8011
        %v8108 = vunpack.c.l.b16 %v8012
        %v8109 = vunpack.c.l.b16 %v8013
        %v8110 = vunpack.c.l.b16 %v8014
        %v8111 = vunpack.c.l.b16 %v8015
        %v8112 = vunpack.c.l.b16 %v8016
        %v8113 = vunpack.c.l.b16 %v8017
        %v8114 = vunpack.c.l.b16 %v8018
        %v8115 = vunpack.c.l.b16 %v8019
        %v8116 = vunpack.c.l.b16 %v8020
        %v8117 = vunpack.c.l.b16 %v8021
        %v8118 = vunpack.c.l.b16 %v8022
        %v8119 = vunpack.c.l.b16 %v8023
        %v8120 = vunpack.c.l.b16 %v8024
        %v8121 = vunpack.c.l.b16 %v8025
        %v8122 = vunpack.c.l.b16 %v8026
        %v8123 = vunpack.c.l.b16 %v8027
        %v8124 = vunpack.c.l.b16 %v8028
        %v8125 = vunpack.c.l.b16 %v8029
        %v8126 = vunpack.c.l.b16 %v8030
        %v8127 = vunpack.c.l.b16 %v8031
        %v8128 = vunpack.c.l.b16 %v8032
        %v8129 = vunpack.c.l.b16 %v8033
        %v8130 = vunpack.c.l.b16 %v8034
        %v8131 = vunpack.c.l.b16 %v8035
        %v8132 = vunpack.c.l.b16 %v8036
        %v8133 = vunpack.c.l.b16 %v8037
        %v8134 = vunpack.c.l.b16 %v8038
        %v8135 = vunpack.c.l.b16 %v8039
        %v8136 = vunpack.c.l.b16 %v8040
        %v8137 = vunpack.c.l.b16 %v8041
        %v8138 = vunpack.c.l.b16 %v8042
        %v8139 = vunpack.c.l.b16 %v8043
        %v8140 = vunpack.c.l.b16 %v8044
        %v8141 = vunpack.c.l.b16 %v8045
        %v8142 = vunpack.c.l.b16 %v8046
        %v8143 = vunpack.c.l.b16 %v8047
        %v8144 = vunpack.c.l.b16 %v8048
        %v8145 = vunpack.c.l.b16 %v8049
        %v8146 = vunpack.c.l.b16 %v8050
        %v8147 = vunpack.c.l.b16 %v8051
        %v8148 = vunpack.c.l.b16 %v8052
        %v8149 = vunpack.c.l.b16 %v8053
        %v8150 = vunpack.c.l.b16 %v8054
        %v8151 = vunpack.c.l.b16 %v8055
        %v8152 = vpack.c.b16 %v8105, %v8104
        %v8153 = vpack.c.b16 %v8106, %v8106
        %v8154 = vpack.c.b16 %v8108, %v8107
        %v8155 = vpack.c.b16 %v8109, %v8109
        %v8156 = vpack.c.b16 %v8111, %v8110
        %v8157 = vpack.c.b16 %v8112, %v8112
        %v8158 = vpack.c.b16 %v8114, %v8113
        %v8159 = vpack.c.b16 %v8115, %v8115
        %v8160 = vpack.c.b16 %v8117, %v8116
        %v8161 = vpack.c.b16 %v8118, %v8118
        %v8162 = vpack.c.b16 %v8120, %v8119
        %v8163 = vpack.c.b16 %v8121, %v8121
        %v8164 = vpack.c.b16 %v8123, %v8122
        %v8165 = vpack.c.b16 %v8124, %v8124
        %v8166 = vpack.c.b16 %v8126, %v8125
        %v8167 = vpack.c.b16 %v8127, %v8127
        %v8168 = vpack.c.b16 %v8129, %v8128
        %v8169 = vpack.c.b16 %v8130, %v8130
        %v8170 = vpack.c.b16 %v8132, %v8131
        %v8171 = vpack.c.b16 %v8133, %v8133
        %v8172 = vpack.c.b16 %v8135, %v8134
        %v8173 = vpack.c.b16 %v8136, %v8136
        %v8174 = vpack.c.b16 %v8138, %v8137
        %v8175 = vpack.c.b16 %v8139, %v8139
        %v8176 = vpack.c.b16 %v8141, %v8140
        %v8177 = vpack.c.b16 %v8142, %v8142
        %v8178 = vpack.c.b16 %v8144, %v8143
        %v8179 = vpack.c.b16 %v8145, %v8145
        %v8180 = vpack.c.b16 %v8147, %v8146
        %v8181 = vpack.c.b16 %v8148, %v8148
        %v8182 = vpack.c.b16 %v8150, %v8149
        %v8183 = vpack.c.b16 %v8151, %v8151
        %v8184 = vrot.slane %v8152, 1
        %v8185 = vrot.slane %v8153, 1
        %v8186 = vsel %vm1717, %v8184, %v8185
        %v8187 = vrot.slane %v8154, 1
        %v8188 = vrot.slane %v8155, 1
        %v8189 = vsel %vm1717, %v8187, %v8188
        %v8190 = vrot.slane %v8156, 1
        %v8191 = vrot.slane %v8157, 1
        %v8192 = vsel %vm1717, %v8190, %v8191
        %v8193 = vrot.slane %v8158, 1
        %v8194 = vrot.slane %v8159, 1
        %v8195 = vsel %vm1717, %v8193, %v8194
        %v8196 = vrot.slane %v8160, 1
        %v8197 = vrot.slane %v8161, 1
        %v8198 = vsel %vm1717, %v8196, %v8197
        %v8199 = vrot.slane %v8162, 1
        %v8200 = vrot.slane %v8163, 1
        %v8201 = vsel %vm1717, %v8199, %v8200
        %v8202 = vrot.slane %v8164, 1
        %v8203 = vrot.slane %v8165, 1
        %v8204 = vsel %vm1717, %v8202, %v8203
        %v8205 = vrot.slane %v8166, 1
        %v8206 = vrot.slane %v8167, 1
        %v8207 = vsel %vm1717, %v8205, %v8206
        %v8208 = vrot.slane %v8168, 1
        %v8209 = vrot.slane %v8169, 1
        %v8210 = vsel %vm1717, %v8208, %v8209
        %v8211 = vrot.slane %v8170, 1
        %v8212 = vrot.slane %v8171, 1
        %v8213 = vsel %vm1717, %v8211, %v8212
        %v8214 = vrot.slane %v8172, 1
        %v8215 = vrot.slane %v8173, 1
        %v8216 = vsel %vm1717, %v8214, %v8215
        %v8217 = vrot.slane %v8174, 1
        %v8218 = vrot.slane %v8175, 1
        %v8219 = vsel %vm1717, %v8217, %v8218
        %v8220 = vrot.slane %v8176, 1
        %v8221 = vrot.slane %v8177, 1
        %v8222 = vsel %vm1717, %v8220, %v8221
        %v8223 = vrot.slane %v8178, 1
        %v8224 = vrot.slane %v8179, 1
        %v8225 = vsel %vm1717, %v8223, %v8224
        %v8226 = vrot.slane %v8180, 1
        %v8227 = vrot.slane %v8181, 1
        %v8228 = vsel %vm1717, %v8226, %v8227
        %v8229 = vrot.slane %v8182, 1
        %v8230 = vrot.slane %v8183, 1
        %v8231 = vsel %vm1717, %v8229, %v8230
        %8248 = vst [vmem:[#allocation3 + $0x28] sm:$0xff] %v8186
        %8249 = vst [vmem:[#allocation3 + $0x70] sm:$0xff] %v8189
        %8250 = vst [vmem:[#allocation3 + $0xb8] sm:$0xff] %v8192
        %8251 = vst [vmem:[#allocation3 + $0x100] sm:$0xff] %v8195
        %8252 = vst [vmem:[#allocation3 + $0x148] sm:$0xff] %v8198
        %8253 = vst [vmem:[#allocation3 + $0x190] sm:$0xff] %v8201
        %8254 = vst [vmem:[#allocation3 + $0x1d8] sm:$0xff] %v8204
        %8255 = vst [vmem:[#allocation3 + $0x220] sm:$0xff] %v8207
        %8256 = vst [vmem:[#allocation3 + $0x268] sm:$0xff] %v8210
        %8257 = vst [vmem:[#allocation3 + $0x2b0] sm:$0xff] %v8213
        %8258 = vst [vmem:[#allocation3 + $0x2f8] sm:$0xff] %v8216
        %8259 = vst [vmem:[#allocation3 + $0x340] sm:$0xff] %v8219
        %8260 = vst [vmem:[#allocation3 + $0x388] sm:$0xff] %v8222
        %8261 = vst [vmem:[#allocation3 + $0x3d0] sm:$0xff] %v8225
        %8262 = vst [vmem:[#allocation3 + $0x418] sm:$0xff] %v8228
        %8263 = vst [vmem:[#allocation3 + $0x460] sm:$0xff] %v8231
        %v8264 = vld [vmem:[%s981] sm:$0xf]
        %v8265 = vld [vmem:[%s981 + $0x4] sm:$0xf]
        %v8266 = vld [vmem:[%s981 + $0xc] sm:$0xf]
        %v8267 = vld [vmem:[%s981 + $0x10] sm:$0xf]
        %v8268 = vld [vmem:[%s981 + $0x18] sm:$0xf]
        %v8269 = vld [vmem:[%s981 + $0x1c] sm:$0xf]
        %v8270 = vld [vmem:[%s981 + $0x24] sm:$0xf]
        %v8271 = vld [vmem:[%s981 + $0x28] sm:$0xf]
        %v8272 = vld [vmem:[%s981 + $0x30] sm:$0xf]
        %v8273 = vld [vmem:[%s981 + $0x34] sm:$0xf]
        %v8274 = vld [vmem:[%s981 + $0x3c] sm:$0xf]
        %v8275 = vld [vmem:[%s981 + $0x40] sm:$0xf]
        %v8276 = vld [vmem:[%s981 + $0x48] sm:$0xf]
        %v8277 = vld [vmem:[%s981 + $0x4c] sm:$0xf]
        %v8278 = vld [vmem:[%s981 + $0x54] sm:$0xf]
        %v8279 = vld [vmem:[%s981 + $0x58] sm:$0xf]
        %v8280 = vld [vmem:[%s981 + $0x60] sm:$0xf]
        %v8281 = vld [vmem:[%s981 + $0x64] sm:$0xf]
        %v8282 = vld [vmem:[%s981 + $0x6c] sm:$0xf]
        %v8283 = vld [vmem:[%s981 + $0x70] sm:$0xf]
        %v8284 = vld [vmem:[%s981 + $0x78] sm:$0xf]
        %v8285 = vld [vmem:[%s981 + $0x7c] sm:$0xf]
        %v8286 = vld [vmem:[%s981 + $0x84] sm:$0xf]
        %v8287 = vld [vmem:[%s981 + $0x88] sm:$0xf]
        %v8288 = vld [vmem:[%s981 + $0x90] sm:$0xf]
        %v8289 = vld [vmem:[%s981 + $0x94] sm:$0xf]
        %v8290 = vld [vmem:[%s981 + $0x9c] sm:$0xf]
        %v8291 = vld [vmem:[%s981 + $0xa0] sm:$0xf]
        %v8292 = vld [vmem:[%s981 + $0xa8] sm:$0xf]
        %v8293 = vld [vmem:[%s981 + $0xac] sm:$0xf]
        %v8294 = vld [vmem:[%s981 + $0xb4] sm:$0xf]
        %v8295 = vld [vmem:[%s981 + $0xb8] sm:$0xf]
        %v8328 = vunpack.c.l.b16 %v8264
        %v8329 = vunpack.c.l.b16 %v8265
        %v8330 = vunpack.c.l.b16 %v8266
        %v8331 = vunpack.c.l.b16 %v8267
        %v8332 = vunpack.c.l.b16 %v8268
        %v8333 = vunpack.c.l.b16 %v8269
        %v8334 = vunpack.c.l.b16 %v8270
        %v8335 = vunpack.c.l.b16 %v8271
        %v8336 = vunpack.c.l.b16 %v8272
        %v8337 = vunpack.c.l.b16 %v8273
        %v8338 = vunpack.c.l.b16 %v8274
        %v8339 = vunpack.c.l.b16 %v8275
        %v8340 = vunpack.c.l.b16 %v8276
        %v8341 = vunpack.c.l.b16 %v8277
        %v8342 = vunpack.c.l.b16 %v8278
        %v8343 = vunpack.c.l.b16 %v8279
        %v8344 = vunpack.c.l.b16 %v8280
        %v8345 = vunpack.c.l.b16 %v8281
        %v8346 = vunpack.c.l.b16 %v8282
        %v8347 = vunpack.c.l.b16 %v8283
        %v8348 = vunpack.c.l.b16 %v8284
        %v8349 = vunpack.c.l.b16 %v8285
        %v8350 = vunpack.c.l.b16 %v8286
        %v8351 = vunpack.c.l.b16 %v8287
        %v8352 = vunpack.c.l.b16 %v8288
        %v8353 = vunpack.c.l.b16 %v8289
        %v8354 = vunpack.c.l.b16 %v8290
        %v8355 = vunpack.c.l.b16 %v8291
        %v8356 = vunpack.c.l.b16 %v8292
        %v8357 = vunpack.c.l.b16 %v8293
        %v8358 = vunpack.c.l.b16 %v8294
        %v8359 = vunpack.c.l.b16 %v8295
        %v8360 = vpack.c.b16 %v8329, %v8328
        %v8361 = vpack.c.b16 %v8331, %v8330
        %v8362 = vpack.c.b16 %v8333, %v8332
        %v8363 = vpack.c.b16 %v8335, %v8334
        %v8364 = vpack.c.b16 %v8337, %v8336
        %v8365 = vpack.c.b16 %v8339, %v8338
        %v8366 = vpack.c.b16 %v8341, %v8340
        %v8367 = vpack.c.b16 %v8343, %v8342
        %v8368 = vpack.c.b16 %v8345, %v8344
        %v8369 = vpack.c.b16 %v8347, %v8346
        %v8370 = vpack.c.b16 %v8349, %v8348
        %v8371 = vpack.c.b16 %v8351, %v8350
        %v8372 = vpack.c.b16 %v8353, %v8352
        %v8373 = vpack.c.b16 %v8355, %v8354
        %v8374 = vpack.c.b16 %v8357, %v8356
        %v8375 = vpack.c.b16 %v8359, %v8358
        %8392 = vst [vmem:[#allocation3 + $0x30] sm:$0xff] %v8360
        %8393 = vst [vmem:[#allocation3 + $0x78] sm:$0xff] %v8361
        %8394 = vst [vmem:[#allocation3 + $0xc0] sm:$0xff] %v8362
        %8395 = vst [vmem:[#allocation3 + $0x108] sm:$0xff] %v8363
        %8396 = vst [vmem:[#allocation3 + $0x150] sm:$0xff] %v8364
        %8397 = vst [vmem:[#allocation3 + $0x198] sm:$0xff] %v8365
        %8398 = vst [vmem:[#allocation3 + $0x1e0] sm:$0xff] %v8366
        %8399 = vst [vmem:[#allocation3 + $0x228] sm:$0xff] %v8367
        %8400 = vst [vmem:[#allocation3 + $0x270] sm:$0xff] %v8368
        %8401 = vst [vmem:[#allocation3 + $0x2b8] sm:$0xff] %v8369
        %8402 = vst [vmem:[#allocation3 + $0x300] sm:$0xff] %v8370
        %8403 = vst [vmem:[#allocation3 + $0x348] sm:$0xff] %v8371
        %8404 = vst [vmem:[#allocation3 + $0x390] sm:$0xff] %v8372
        %8405 = vst [vmem:[#allocation3 + $0x3d8] sm:$0xff] %v8373
        %8406 = vst [vmem:[#allocation3 + $0x420] sm:$0xff] %v8374
        %8407 = vst [vmem:[#allocation3 + $0x468] sm:$0xff] %v8375
        %v8408 = vld [vmem:[%s981] sm:$0xf]
        %v8409 = vld [vmem:[%s981 + $0x4] sm:$0xf]
        %v8410 = vld [vmem:[%s981 + $0x8] sm:$0x1]
        %v8411 = vld [vmem:[%s981 + $0xc] sm:$0xf]
        %v8412 = vld [vmem:[%s981 + $0x10] sm:$0xf]
        %v8413 = vld [vmem:[%s981 + $0x14] sm:$0x1]
        %v8414 = vld [vmem:[%s981 + $0x18] sm:$0xf]
        %v8415 = vld [vmem:[%s981 + $0x1c] sm:$0xf]
        %v8416 = vld [vmem:[%s981 + $0x20] sm:$0x1]
        %v8417 = vld [vmem:[%s981 + $0x24] sm:$0xf]
        %v8418 = vld [vmem:[%s981 + $0x28] sm:$0xf]
        %v8419 = vld [vmem:[%s981 + $0x2c] sm:$0x1]
        %v8420 = vld [vmem:[%s981 + $0x30] sm:$0xf]
        %v8421 = vld [vmem:[%s981 + $0x34] sm:$0xf]
        %v8422 = vld [vmem:[%s981 + $0x38] sm:$0x1]
        %v8423 = vld [vmem:[%s981 + $0x3c] sm:$0xf]
        %v8424 = vld [vmem:[%s981 + $0x40] sm:$0xf]
        %v8425 = vld [vmem:[%s981 + $0x44] sm:$0x1]
        %v8426 = vld [vmem:[%s981 + $0x48] sm:$0xf]
        %v8427 = vld [vmem:[%s981 + $0x4c] sm:$0xf]
        %v8428 = vld [vmem:[%s981 + $0x50] sm:$0x1]
        %v8429 = vld [vmem:[%s981 + $0x54] sm:$0xf]
        %v8430 = vld [vmem:[%s981 + $0x58] sm:$0xf]
        %v8431 = vld [vmem:[%s981 + $0x5c] sm:$0x1]
        %v8432 = vld [vmem:[%s981 + $0x60] sm:$0xf]
        %v8433 = vld [vmem:[%s981 + $0x64] sm:$0xf]
        %v8434 = vld [vmem:[%s981 + $0x68] sm:$0x1]
        %v8435 = vld [vmem:[%s981 + $0x6c] sm:$0xf]
        %v8436 = vld [vmem:[%s981 + $0x70] sm:$0xf]
        %v8437 = vld [vmem:[%s981 + $0x74] sm:$0x1]
        %v8438 = vld [vmem:[%s981 + $0x78] sm:$0xf]
        %v8439 = vld [vmem:[%s981 + $0x7c] sm:$0xf]
        %v8440 = vld [vmem:[%s981 + $0x80] sm:$0x1]
        %v8441 = vld [vmem:[%s981 + $0x84] sm:$0xf]
        %v8442 = vld [vmem:[%s981 + $0x88] sm:$0xf]
        %v8443 = vld [vmem:[%s981 + $0x8c] sm:$0x1]
        %v8444 = vld [vmem:[%s981 + $0x90] sm:$0xf]
        %v8445 = vld [vmem:[%s981 + $0x94] sm:$0xf]
        %v8446 = vld [vmem:[%s981 + $0x98] sm:$0x1]
        %v8447 = vld [vmem:[%s981 + $0x9c] sm:$0xf]
        %v8448 = vld [vmem:[%s981 + $0xa0] sm:$0xf]
        %v8449 = vld [vmem:[%s981 + $0xa4] sm:$0x1]
        %v8450 = vld [vmem:[%s981 + $0xa8] sm:$0xf]
        %v8451 = vld [vmem:[%s981 + $0xac] sm:$0xf]
        %v8452 = vld [vmem:[%s981 + $0xb0] sm:$0x1]
        %v8453 = vld [vmem:[%s981 + $0xb4] sm:$0xf]
        %v8454 = vld [vmem:[%s981 + $0xb8] sm:$0xf]
        %v8455 = vld [vmem:[%s981 + $0xbc] sm:$0x1]
        %v8504 = vunpack.c.l.b16 %v8408
        %v8505 = vunpack.c.l.b16 %v8409
        %v8506 = vunpack.c.l.b16 %v8410
        %v8507 = vunpack.c.l.b16 %v8411
        %v8508 = vunpack.c.l.b16 %v8412
        %v8509 = vunpack.c.l.b16 %v8413
        %v8510 = vunpack.c.l.b16 %v8414
        %v8511 = vunpack.c.l.b16 %v8415
        %v8512 = vunpack.c.l.b16 %v8416
        %v8513 = vunpack.c.l.b16 %v8417
        %v8514 = vunpack.c.l.b16 %v8418
        %v8515 = vunpack.c.l.b16 %v8419
        %v8516 = vunpack.c.l.b16 %v8420
        %v8517 = vunpack.c.l.b16 %v8421
        %v8518 = vunpack.c.l.b16 %v8422
        %v8519 = vunpack.c.l.b16 %v8423
        %v8520 = vunpack.c.l.b16 %v8424
        %v8521 = vunpack.c.l.b16 %v8425
        %v8522 = vunpack.c.l.b16 %v8426
        %v8523 = vunpack.c.l.b16 %v8427
        %v8524 = vunpack.c.l.b16 %v8428
        %v8525 = vunpack.c.l.b16 %v8429
        %v8526 = vunpack.c.l.b16 %v8430
        %v8527 = vunpack.c.l.b16 %v8431
        %v8528 = vunpack.c.l.b16 %v8432
        %v8529 = vunpack.c.l.b16 %v8433
        %v8530 = vunpack.c.l.b16 %v8434
        %v8531 = vunpack.c.l.b16 %v8435
        %v8532 = vunpack.c.l.b16 %v8436
        %v8533 = vunpack.c.l.b16 %v8437
        %v8534 = vunpack.c.l.b16 %v8438
        %v8535 = vunpack.c.l.b16 %v8439
        %v8536 = vunpack.c.l.b16 %v8440
        %v8537 = vunpack.c.l.b16 %v8441
        %v8538 = vunpack.c.l.b16 %v8442
        %v8539 = vunpack.c.l.b16 %v8443
        %v8540 = vunpack.c.l.b16 %v8444
        %v8541 = vunpack.c.l.b16 %v8445
        %v8542 = vunpack.c.l.b16 %v8446
        %v8543 = vunpack.c.l.b16 %v8447
        %v8544 = vunpack.c.l.b16 %v8448
        %v8545 = vunpack.c.l.b16 %v8449
        %v8546 = vunpack.c.l.b16 %v8450
        %v8547 = vunpack.c.l.b16 %v8451
        %v8548 = vunpack.c.l.b16 %v8452
        %v8549 = vunpack.c.l.b16 %v8453
        %v8550 = vunpack.c.l.b16 %v8454
        %v8551 = vunpack.c.l.b16 %v8455
        %v8552 = vpack.c.b16 %v8505, %v8504
        %v8553 = vpack.c.b16 %v8506, %v8506
        %v8554 = vpack.c.b16 %v8508, %v8507
        %v8555 = vpack.c.b16 %v8509, %v8509
        %v8556 = vpack.c.b16 %v8511, %v8510
        %v8557 = vpack.c.b16 %v8512, %v8512
        %v8558 = vpack.c.b16 %v8514, %v8513
        %v8559 = vpack.c.b16 %v8515, %v8515
        %v8560 = vpack.c.b16 %v8517, %v8516
        %v8561 = vpack.c.b16 %v8518, %v8518
        %v8562 = vpack.c.b16 %v8520, %v8519
        %v8563 = vpack.c.b16 %v8521, %v8521
        %v8564 = vpack.c.b16 %v8523, %v8522
        %v8565 = vpack.c.b16 %v8524, %v8524
        %v8566 = vpack.c.b16 %v8526, %v8525
        %v8567 = vpack.c.b16 %v8527, %v8527
        %v8568 = vpack.c.b16 %v8529, %v8528
        %v8569 = vpack.c.b16 %v8530, %v8530
        %v8570 = vpack.c.b16 %v8532, %v8531
        %v8571 = vpack.c.b16 %v8533, %v8533
        %v8572 = vpack.c.b16 %v8535, %v8534
        %v8573 = vpack.c.b16 %v8536, %v8536
        %v8574 = vpack.c.b16 %v8538, %v8537
        %v8575 = vpack.c.b16 %v8539, %v8539
        %v8576 = vpack.c.b16 %v8541, %v8540
        %v8577 = vpack.c.b16 %v8542, %v8542
        %v8578 = vpack.c.b16 %v8544, %v8543
        %v8579 = vpack.c.b16 %v8545, %v8545
        %v8580 = vpack.c.b16 %v8547, %v8546
        %v8581 = vpack.c.b16 %v8548, %v8548
        %v8582 = vpack.c.b16 %v8550, %v8549
        %v8583 = vpack.c.b16 %v8551, %v8551
        %v8585 = vshrl.u32 %v8552, 16
        %v8587 = vshll.u32 %v8552, 16
        %v8589 = vrot.slane %v8587, 1
        %v8590 = vor.u32 %v8585, %v8589
        %v8592 = vshll.u32 %v8553, 16
        %v8594 = vrot.slane %v8592, 1
        %v8595 = vsel %vm1316, %v8590, %v8594
        %v8597 = vshrl.u32 %v8554, 16
        %v8599 = vshll.u32 %v8554, 16
        %v8601 = vrot.slane %v8599, 1
        %v8602 = vor.u32 %v8597, %v8601
        %v8604 = vshll.u32 %v8555, 16
        %v8606 = vrot.slane %v8604, 1
        %v8607 = vsel %vm1316, %v8602, %v8606
        %v8609 = vshrl.u32 %v8556, 16
        %v8611 = vshll.u32 %v8556, 16
        %v8613 = vrot.slane %v8611, 1
        %v8614 = vor.u32 %v8609, %v8613
        %v8616 = vshll.u32 %v8557, 16
        %v8618 = vrot.slane %v8616, 1
        %v8619 = vsel %vm1316, %v8614, %v8618
        %v8621 = vshrl.u32 %v8558, 16
        %v8623 = vshll.u32 %v8558, 16
        %v8625 = vrot.slane %v8623, 1
        %v8626 = vor.u32 %v8621, %v8625
        %v8628 = vshll.u32 %v8559, 16
        %v8630 = vrot.slane %v8628, 1
        %v8631 = vsel %vm1316, %v8626, %v8630
        %v8633 = vshrl.u32 %v8560, 16
        %v8635 = vshll.u32 %v8560, 16
        %v8637 = vrot.slane %v8635, 1
        %v8638 = vor.u32 %v8633, %v8637
        %v8640 = vshll.u32 %v8561, 16
        %v8642 = vrot.slane %v8640, 1
        %v8643 = vsel %vm1316, %v8638, %v8642
        %v8645 = vshrl.u32 %v8562, 16
        %v8647 = vshll.u32 %v8562, 16
        %v8649 = vrot.slane %v8647, 1
        %v8650 = vor.u32 %v8645, %v8649
        %v8652 = vshll.u32 %v8563, 16
        %v8654 = vrot.slane %v8652, 1
        %v8655 = vsel %vm1316, %v8650, %v8654
        %v8657 = vshrl.u32 %v8564, 16
        %v8659 = vshll.u32 %v8564, 16
        %v8661 = vrot.slane %v8659, 1
        %v8662 = vor.u32 %v8657, %v8661
        %v8664 = vshll.u32 %v8565, 16
        %v8666 = vrot.slane %v8664, 1
        %v8667 = vsel %vm1316, %v8662, %v8666
        %v8669 = vshrl.u32 %v8566, 16
        %v8671 = vshll.u32 %v8566, 16
        %v8673 = vrot.slane %v8671, 1
        %v8674 = vor.u32 %v8669, %v8673
        %v8676 = vshll.u32 %v8567, 16
        %v8678 = vrot.slane %v8676, 1
        %v8679 = vsel %vm1316, %v8674, %v8678
        %v8681 = vshrl.u32 %v8568, 16
        %v8683 = vshll.u32 %v8568, 16
        %v8685 = vrot.slane %v8683, 1
        %v8686 = vor.u32 %v8681, %v8685
        %v8688 = vshll.u32 %v8569, 16
        %v8690 = vrot.slane %v8688, 1
        %v8691 = vsel %vm1316, %v8686, %v8690
        %v8693 = vshrl.u32 %v8570, 16
        %v8695 = vshll.u32 %v8570, 16
        %v8697 = vrot.slane %v8695, 1
        %v8698 = vor.u32 %v8693, %v8697
        %v8700 = vshll.u32 %v8571, 16
        %v8702 = vrot.slane %v8700, 1
        %v8703 = vsel %vm1316, %v8698, %v8702
        %v8705 = vshrl.u32 %v8572, 16
        %v8707 = vshll.u32 %v8572, 16
        %v8709 = vrot.slane %v8707, 1
        %v8710 = vor.u32 %v8705, %v8709
        %v8712 = vshll.u32 %v8573, 16
        %v8714 = vrot.slane %v8712, 1
        %v8715 = vsel %vm1316, %v8710, %v8714
        %v8717 = vshrl.u32 %v8574, 16
        %v8719 = vshll.u32 %v8574, 16
        %v8721 = vrot.slane %v8719, 1
        %v8722 = vor.u32 %v8717, %v8721
        %v8724 = vshll.u32 %v8575, 16
        %v8726 = vrot.slane %v8724, 1
        %v8727 = vsel %vm1316, %v8722, %v8726
        %v8729 = vshrl.u32 %v8576, 16
        %v8731 = vshll.u32 %v8576, 16
        %v8733 = vrot.slane %v8731, 1
        %v8734 = vor.u32 %v8729, %v8733
        %v8736 = vshll.u32 %v8577, 16
        %v8738 = vrot.slane %v8736, 1
        %v8739 = vsel %vm1316, %v8734, %v8738
        %v8741 = vshrl.u32 %v8578, 16
        %v8743 = vshll.u32 %v8578, 16
        %v8745 = vrot.slane %v8743, 1
        %v8746 = vor.u32 %v8741, %v8745
        %v8748 = vshll.u32 %v8579, 16
        %v8750 = vrot.slane %v8748, 1
        %v8751 = vsel %vm1316, %v8746, %v8750
        %v8753 = vshrl.u32 %v8580, 16
        %v8755 = vshll.u32 %v8580, 16
        %v8757 = vrot.slane %v8755, 1
        %v8758 = vor.u32 %v8753, %v8757
        %v8760 = vshll.u32 %v8581, 16
        %v8762 = vrot.slane %v8760, 1
        %v8763 = vsel %vm1316, %v8758, %v8762
        %v8765 = vshrl.u32 %v8582, 16
        %v8767 = vshll.u32 %v8582, 16
        %v8769 = vrot.slane %v8767, 1
        %v8770 = vor.u32 %v8765, %v8769
        %v8772 = vshll.u32 %v8583, 16
        %v8774 = vrot.slane %v8772, 1
        %v8775 = vsel %vm1316, %v8770, %v8774
        %8792 = vst [vmem:[#allocation3 + $0x38] sm:$0xff] %v8595
        %8793 = vst [vmem:[#allocation3 + $0x80] sm:$0xff] %v8607
        %8794 = vst [vmem:[#allocation3 + $0xc8] sm:$0xff] %v8619
        %8795 = vst [vmem:[#allocation3 + $0x110] sm:$0xff] %v8631
        %8796 = vst [vmem:[#allocation3 + $0x158] sm:$0xff] %v8643
        %8797 = vst [vmem:[#allocation3 + $0x1a0] sm:$0xff] %v8655
        %8798 = vst [vmem:[#allocation3 + $0x1e8] sm:$0xff] %v8667
        %8799 = vst [vmem:[#allocation3 + $0x230] sm:$0xff] %v8679
        %8800 = vst [vmem:[#allocation3 + $0x278] sm:$0xff] %v8691
        %8801 = vst [vmem:[#allocation3 + $0x2c0] sm:$0xff] %v8703
        %8802 = vst [vmem:[#allocation3 + $0x308] sm:$0xff] %v8715
        %8803 = vst [vmem:[#allocation3 + $0x350] sm:$0xff] %v8727
        %8804 = vst [vmem:[#allocation3 + $0x398] sm:$0xff] %v8739
        %8805 = vst [vmem:[#allocation3 + $0x3e0] sm:$0xff] %v8751
        %8806 = vst [vmem:[#allocation3 + $0x428] sm:$0xff] %v8763
        %8807 = vst [vmem:[#allocation3 + $0x470] sm:$0xff] %v8775
        %v8808 = vld [vmem:[%s981] sm:$0xe]
        %v8809 = vld [vmem:[%s981 + $0x4] sm:$0xf]
        %v8810 = vld [vmem:[%s981 + $0x8] sm:$0x1]
        %v8811 = vld [vmem:[%s981 + $0xc] sm:$0xe]
        %v8812 = vld [vmem:[%s981 + $0x10] sm:$0xf]
        %v8813 = vld [vmem:[%s981 + $0x14] sm:$0x1]
        %v8814 = vld [vmem:[%s981 + $0x18] sm:$0xe]
        %v8815 = vld [vmem:[%s981 + $0x1c] sm:$0xf]
        %v8816 = vld [vmem:[%s981 + $0x20] sm:$0x1]
        %v8817 = vld [vmem:[%s981 + $0x24] sm:$0xe]
        %v8818 = vld [vmem:[%s981 + $0x28] sm:$0xf]
        %v8819 = vld [vmem:[%s981 + $0x2c] sm:$0x1]
        %v8820 = vld [vmem:[%s981 + $0x30] sm:$0xe]
        %v8821 = vld [vmem:[%s981 + $0x34] sm:$0xf]
        %v8822 = vld [vmem:[%s981 + $0x38] sm:$0x1]
        %v8823 = vld [vmem:[%s981 + $0x3c] sm:$0xe]
        %v8824 = vld [vmem:[%s981 + $0x40] sm:$0xf]
        %v8825 = vld [vmem:[%s981 + $0x44] sm:$0x1]
        %v8826 = vld [vmem:[%s981 + $0x48] sm:$0xe]
        %v8827 = vld [vmem:[%s981 + $0x4c] sm:$0xf]
        %v8828 = vld [vmem:[%s981 + $0x50] sm:$0x1]
        %v8829 = vld [vmem:[%s981 + $0x54] sm:$0xe]
        %v8830 = vld [vmem:[%s981 + $0x58] sm:$0xf]
        %v8831 = vld [vmem:[%s981 + $0x5c] sm:$0x1]
        %v8832 = vld [vmem:[%s981 + $0x60] sm:$0xe]
        %v8833 = vld [vmem:[%s981 + $0x64] sm:$0xf]
        %v8834 = vld [vmem:[%s981 + $0x68] sm:$0x1]
        %v8835 = vld [vmem:[%s981 + $0x6c] sm:$0xe]
        %v8836 = vld [vmem:[%s981 + $0x70] sm:$0xf]
        %v8837 = vld [vmem:[%s981 + $0x74] sm:$0x1]
        %v8838 = vld [vmem:[%s981 + $0x78] sm:$0xe]
        %v8839 = vld [vmem:[%s981 + $0x7c] sm:$0xf]
        %v8840 = vld [vmem:[%s981 + $0x80] sm:$0x1]
        %v8841 = vld [vmem:[%s981 + $0x84] sm:$0xe]
        %v8842 = vld [vmem:[%s981 + $0x88] sm:$0xf]
        %v8843 = vld [vmem:[%s981 + $0x8c] sm:$0x1]
        %v8844 = vld [vmem:[%s981 + $0x90] sm:$0xe]
        %v8845 = vld [vmem:[%s981 + $0x94] sm:$0xf]
        %v8846 = vld [vmem:[%s981 + $0x98] sm:$0x1]
        %v8847 = vld [vmem:[%s981 + $0x9c] sm:$0xe]
        %v8848 = vld [vmem:[%s981 + $0xa0] sm:$0xf]
        %v8849 = vld [vmem:[%s981 + $0xa4] sm:$0x1]
        %v8850 = vld [vmem:[%s981 + $0xa8] sm:$0xe]
        %v8851 = vld [vmem:[%s981 + $0xac] sm:$0xf]
        %v8852 = vld [vmem:[%s981 + $0xb0] sm:$0x1]
        %v8853 = vld [vmem:[%s981 + $0xb4] sm:$0xe]
        %v8854 = vld [vmem:[%s981 + $0xb8] sm:$0xf]
        %v8855 = vld [vmem:[%s981 + $0xbc] sm:$0x1]
        %v8904 = vunpack.c.l.b16 %v8808
        %v8905 = vunpack.c.l.b16 %v8809
        %v8906 = vunpack.c.l.b16 %v8810
        %v8907 = vunpack.c.l.b16 %v8811
        %v8908 = vunpack.c.l.b16 %v8812
        %v8909 = vunpack.c.l.b16 %v8813
        %v8910 = vunpack.c.l.b16 %v8814
        %v8911 = vunpack.c.l.b16 %v8815
        %v8912 = vunpack.c.l.b16 %v8816
        %v8913 = vunpack.c.l.b16 %v8817
        %v8914 = vunpack.c.l.b16 %v8818
        %v8915 = vunpack.c.l.b16 %v8819
        %v8916 = vunpack.c.l.b16 %v8820
        %v8917 = vunpack.c.l.b16 %v8821
        %v8918 = vunpack.c.l.b16 %v8822
        %v8919 = vunpack.c.l.b16 %v8823
        %v8920 = vunpack.c.l.b16 %v8824
        %v8921 = vunpack.c.l.b16 %v8825
        %v8922 = vunpack.c.l.b16 %v8826
        %v8923 = vunpack.c.l.b16 %v8827
        %v8924 = vunpack.c.l.b16 %v8828
        %v8925 = vunpack.c.l.b16 %v8829
        %v8926 = vunpack.c.l.b16 %v8830
        %v8927 = vunpack.c.l.b16 %v8831
        %v8928 = vunpack.c.l.b16 %v8832
        %v8929 = vunpack.c.l.b16 %v8833
        %v8930 = vunpack.c.l.b16 %v8834
        %v8931 = vunpack.c.l.b16 %v8835
        %v8932 = vunpack.c.l.b16 %v8836
        %v8933 = vunpack.c.l.b16 %v8837
        %v8934 = vunpack.c.l.b16 %v8838
        %v8935 = vunpack.c.l.b16 %v8839
        %v8936 = vunpack.c.l.b16 %v8840
        %v8937 = vunpack.c.l.b16 %v8841
        %v8938 = vunpack.c.l.b16 %v8842
        %v8939 = vunpack.c.l.b16 %v8843
        %v8940 = vunpack.c.l.b16 %v8844
        %v8941 = vunpack.c.l.b16 %v8845
        %v8942 = vunpack.c.l.b16 %v8846
        %v8943 = vunpack.c.l.b16 %v8847
        %v8944 = vunpack.c.l.b16 %v8848
        %v8945 = vunpack.c.l.b16 %v8849
        %v8946 = vunpack.c.l.b16 %v8850
        %v8947 = vunpack.c.l.b16 %v8851
        %v8948 = vunpack.c.l.b16 %v8852
        %v8949 = vunpack.c.l.b16 %v8853
        %v8950 = vunpack.c.l.b16 %v8854
        %v8951 = vunpack.c.l.b16 %v8855
        %v8952 = vpack.c.b16 %v8905, %v8904
        %v8953 = vpack.c.b16 %v8906, %v8906
        %v8954 = vpack.c.b16 %v8908, %v8907
        %v8955 = vpack.c.b16 %v8909, %v8909
        %v8956 = vpack.c.b16 %v8911, %v8910
        %v8957 = vpack.c.b16 %v8912, %v8912
        %v8958 = vpack.c.b16 %v8914, %v8913
        %v8959 = vpack.c.b16 %v8915, %v8915
        %v8960 = vpack.c.b16 %v8917, %v8916
        %v8961 = vpack.c.b16 %v8918, %v8918
        %v8962 = vpack.c.b16 %v8920, %v8919
        %v8963 = vpack.c.b16 %v8921, %v8921
        %v8964 = vpack.c.b16 %v8923, %v8922
        %v8965 = vpack.c.b16 %v8924, %v8924
        %v8966 = vpack.c.b16 %v8926, %v8925
        %v8967 = vpack.c.b16 %v8927, %v8927
        %v8968 = vpack.c.b16 %v8929, %v8928
        %v8969 = vpack.c.b16 %v8930, %v8930
        %v8970 = vpack.c.b16 %v8932, %v8931
        %v8971 = vpack.c.b16 %v8933, %v8933
        %v8972 = vpack.c.b16 %v8935, %v8934
        %v8973 = vpack.c.b16 %v8936, %v8936
        %v8974 = vpack.c.b16 %v8938, %v8937
        %v8975 = vpack.c.b16 %v8939, %v8939
        %v8976 = vpack.c.b16 %v8941, %v8940
        %v8977 = vpack.c.b16 %v8942, %v8942
        %v8978 = vpack.c.b16 %v8944, %v8943
        %v8979 = vpack.c.b16 %v8945, %v8945
        %v8980 = vpack.c.b16 %v8947, %v8946
        %v8981 = vpack.c.b16 %v8948, %v8948
        %v8982 = vpack.c.b16 %v8950, %v8949
        %v8983 = vpack.c.b16 %v8951, %v8951
        %v8984 = vrot.slane %v8952, 1
        %v8985 = vrot.slane %v8953, 1
        %v8986 = vsel %vm1717, %v8984, %v8985
        %v8987 = vrot.slane %v8954, 1
        %v8988 = vrot.slane %v8955, 1
        %v8989 = vsel %vm1717, %v8987, %v8988
        %v8990 = vrot.slane %v8956, 1
        %v8991 = vrot.slane %v8957, 1
        %v8992 = vsel %vm1717, %v8990, %v8991
        %v8993 = vrot.slane %v8958, 1
        %v8994 = vrot.slane %v8959, 1
        %v8995 = vsel %vm1717, %v8993, %v8994
        %v8996 = vrot.slane %v8960, 1
        %v8997 = vrot.slane %v8961, 1
        %v8998 = vsel %vm1717, %v8996, %v8997
        %v8999 = vrot.slane %v8962, 1
        %v9000 = vrot.slane %v8963, 1
        %v9001 = vsel %vm1717, %v8999, %v9000
        %v9002 = vrot.slane %v8964, 1
        %v9003 = vrot.slane %v8965, 1
        %v9004 = vsel %vm1717, %v9002, %v9003
        %v9005 = vrot.slane %v8966, 1
        %v9006 = vrot.slane %v8967, 1
        %v9007 = vsel %vm1717, %v9005, %v9006
        %v9008 = vrot.slane %v8968, 1
        %v9009 = vrot.slane %v8969, 1
        %v9010 = vsel %vm1717, %v9008, %v9009
        %v9011 = vrot.slane %v8970, 1
        %v9012 = vrot.slane %v8971, 1
        %v9013 = vsel %vm1717, %v9011, %v9012
        %v9014 = vrot.slane %v8972, 1
        %v9015 = vrot.slane %v8973, 1
        %v9016 = vsel %vm1717, %v9014, %v9015
        %v9017 = vrot.slane %v8974, 1
        %v9018 = vrot.slane %v8975, 1
        %v9019 = vsel %vm1717, %v9017, %v9018
        %v9020 = vrot.slane %v8976, 1
        %v9021 = vrot.slane %v8977, 1
        %v9022 = vsel %vm1717, %v9020, %v9021
        %v9023 = vrot.slane %v8978, 1
        %v9024 = vrot.slane %v8979, 1
        %v9025 = vsel %vm1717, %v9023, %v9024
        %v9026 = vrot.slane %v8980, 1
        %v9027 = vrot.slane %v8981, 1
        %v9028 = vsel %vm1717, %v9026, %v9027
        %v9029 = vrot.slane %v8982, 1
        %v9030 = vrot.slane %v8983, 1
        %v9031 = vsel %vm1717, %v9029, %v9030
        %9048 = vst [vmem:[#allocation3 + $0x40] sm:$0xff] %v8986
        %9049 = vst [vmem:[#allocation3 + $0x88] sm:$0xff] %v8989
        %9050 = vst [vmem:[#allocation3 + $0xd0] sm:$0xff] %v8992
        %9051 = vst [vmem:[#allocation3 + $0x118] sm:$0xff] %v8995
        %9052 = vst [vmem:[#allocation3 + $0x160] sm:$0xff] %v8998
        %9053 = vst [vmem:[#allocation3 + $0x1a8] sm:$0xff] %v9001
        %9054 = vst [vmem:[#allocation3 + $0x1f0] sm:$0xff] %v9004
        %9055 = vst [vmem:[#allocation3 + $0x238] sm:$0xff] %v9007
        %9056 = vst [vmem:[#allocation3 + $0x280] sm:$0xff] %v9010
        %9057 = vst [vmem:[#allocation3 + $0x2c8] sm:$0xff] %v9013
        %9058 = vst [vmem:[#allocation3 + $0x310] sm:$0xff] %v9016
        %9059 = vst [vmem:[#allocation3 + $0x358] sm:$0xff] %v9019
        %9060 = vst [vmem:[#allocation3 + $0x3a0] sm:$0xff] %v9022
        %9061 = vst [vmem:[#allocation3 + $0x3e8] sm:$0xff] %v9025
        %9062 = vst [vmem:[#allocation3 + $0x430] sm:$0xff] %v9028
        %9063 = vst [vmem:[#allocation3 + $0x478] sm:$0xff] %v9031
        %v9064 = vld [vmem:[#allocation3] sm:$0xff]
        %v9065 = vld [vmem:[#allocation3 + $0x8] sm:$0xff]
        %v9066 = vld [vmem:[#allocation3 + $0x10] sm:$0xff]
        %v9067 = vld [vmem:[#allocation3 + $0x18] sm:$0xff]
        %v9068 = vld [vmem:[#allocation3 + $0x20] sm:$0xff]
        %v9069 = vld [vmem:[#allocation3 + $0x28] sm:$0xff]
        %v9070 = vld [vmem:[#allocation3 + $0x30] sm:$0xff]
        %v9071 = vld [vmem:[#allocation3 + $0x38] sm:$0xff]
        %v9072 = vld [vmem:[#allocation3 + $0x40] sm:$0xff]
        %v9073 = vld [vmem:[#allocation3 + $0x48] sm:$0xff]
        %v9074 = vld [vmem:[#allocation3 + $0x50] sm:$0xff]
        %v9075 = vld [vmem:[#allocation3 + $0x58] sm:$0xff]
        %v9076 = vld [vmem:[#allocation3 + $0x60] sm:$0xff]
        %v9077 = vld [vmem:[#allocation3 + $0x68] sm:$0xff]
        %v9078 = vld [vmem:[#allocation3 + $0x70] sm:$0xff]
        %v9079 = vld [vmem:[#allocation3 + $0x78] sm:$0xff]
        %v9080 = vld [vmem:[#allocation3 + $0x80] sm:$0xff]
        %v9081 = vld [vmem:[#allocation3 + $0x88] sm:$0xff]
        %v9082 = vld [vmem:[#allocation3 + $0x90] sm:$0xff]
        %v9083 = vld [vmem:[#allocation3 + $0x98] sm:$0xff]
        %v9084 = vld [vmem:[#allocation3 + $0xa0] sm:$0xff]
        %v9085 = vld [vmem:[#allocation3 + $0xa8] sm:$0xff]
        %v9086 = vld [vmem:[#allocation3 + $0xb0] sm:$0xff]
        %v9087 = vld [vmem:[#allocation3 + $0xb8] sm:$0xff]
        %v9088 = vld [vmem:[#allocation3 + $0xc0] sm:$0xff]
        %v9089 = vld [vmem:[#allocation3 + $0xc8] sm:$0xff]
        %v9090 = vld [vmem:[#allocation3 + $0xd0] sm:$0xff]
        %v9091 = vld [vmem:[#allocation3 + $0xd8] sm:$0xff]
        %v9092 = vld [vmem:[#allocation3 + $0xe0] sm:$0xff]
        %v9093 = vld [vmem:[#allocation3 + $0xe8] sm:$0xff]
        %v9094 = vld [vmem:[#allocation3 + $0xf0] sm:$0xff]
        %v9095 = vld [vmem:[#allocation3 + $0xf8] sm:$0xff]
        %v9096 = vld [vmem:[#allocation3 + $0x100] sm:$0xff]
        %v9097 = vld [vmem:[#allocation3 + $0x108] sm:$0xff]
        %v9098 = vld [vmem:[#allocation3 + $0x110] sm:$0xff]
        %v9099 = vld [vmem:[#allocation3 + $0x118] sm:$0xff]
        %v9100 = vld [vmem:[#allocation3 + $0x120] sm:$0xff]
        %v9101 = vld [vmem:[#allocation3 + $0x128] sm:$0xff]
        %v9102 = vld [vmem:[#allocation3 + $0x130] sm:$0xff]
        %v9103 = vld [vmem:[#allocation3 + $0x138] sm:$0xff]
        %v9104 = vld [vmem:[#allocation3 + $0x140] sm:$0xff]
        %v9105 = vld [vmem:[#allocation3 + $0x148] sm:$0xff]
        %v9106 = vld [vmem:[#allocation3 + $0x150] sm:$0xff]
        %v9107 = vld [vmem:[#allocation3 + $0x158] sm:$0xff]
        %v9108 = vld [vmem:[#allocation3 + $0x160] sm:$0xff]
        %v9109 = vld [vmem:[#allocation3 + $0x168] sm:$0xff]
        %v9110 = vld [vmem:[#allocation3 + $0x170] sm:$0xff]
        %v9111 = vld [vmem:[#allocation3 + $0x178] sm:$0xff]
        %v9112 = vld [vmem:[#allocation3 + $0x180] sm:$0xff]
        %v9113 = vld [vmem:[#allocation3 + $0x188] sm:$0xff]
        %v9114 = vld [vmem:[#allocation3 + $0x190] sm:$0xff]
        %v9115 = vld [vmem:[#allocation3 + $0x198] sm:$0xff]
        %v9116 = vld [vmem:[#allocation3 + $0x1a0] sm:$0xff]
        %v9117 = vld [vmem:[#allocation3 + $0x1a8] sm:$0xff]
        %v9118 = vld [vmem:[#allocation3 + $0x1b0] sm:$0xff]
        %v9119 = vld [vmem:[#allocation3 + $0x1b8] sm:$0xff]
        %v9120 = vld [vmem:[#allocation3 + $0x1c0] sm:$0xff]
        %v9121 = vld [vmem:[#allocation3 + $0x1c8] sm:$0xff]
        %v9122 = vld [vmem:[#allocation3 + $0x1d0] sm:$0xff]
        %v9123 = vld [vmem:[#allocation3 + $0x1d8] sm:$0xff]
        %v9124 = vld [vmem:[#allocation3 + $0x1e0] sm:$0xff]
        %v9125 = vld [vmem:[#allocation3 + $0x1e8] sm:$0xff]
        %v9126 = vld [vmem:[#allocation3 + $0x1f0] sm:$0xff]
        %v9127 = vld [vmem:[#allocation3 + $0x1f8] sm:$0xff]
        %v9128 = vld [vmem:[#allocation3 + $0x200] sm:$0xff]
        %v9129 = vld [vmem:[#allocation3 + $0x208] sm:$0xff]
        %v9130 = vld [vmem:[#allocation3 + $0x210] sm:$0xff]
        %v9131 = vld [vmem:[#allocation3 + $0x218] sm:$0xff]
        %v9132 = vld [vmem:[#allocation3 + $0x220] sm:$0xff]
        %v9133 = vld [vmem:[#allocation3 + $0x228] sm:$0xff]
        %v9134 = vld [vmem:[#allocation3 + $0x230] sm:$0xff]
        %v9135 = vld [vmem:[#allocation3 + $0x238] sm:$0xff]
        %v9136 = vld [vmem:[#allocation3 + $0x240] sm:$0xff]
        %v9137 = vld [vmem:[#allocation3 + $0x248] sm:$0xff]
        %v9138 = vld [vmem:[#allocation3 + $0x250] sm:$0xff]
        %v9139 = vld [vmem:[#allocation3 + $0x258] sm:$0xff]
        %v9140 = vld [vmem:[#allocation3 + $0x260] sm:$0xff]
        %v9141 = vld [vmem:[#allocation3 + $0x268] sm:$0xff]
        %v9142 = vld [vmem:[#allocation3 + $0x270] sm:$0xff]
        %v9143 = vld [vmem:[#allocation3 + $0x278] sm:$0xff]
        %v9144 = vld [vmem:[#allocation3 + $0x280] sm:$0xff]
        %v9145 = vld [vmem:[#allocation3 + $0x288] sm:$0xff]
        %v9146 = vld [vmem:[#allocation3 + $0x290] sm:$0xff]
        %v9147 = vld [vmem:[#allocation3 + $0x298] sm:$0xff]
        %v9148 = vld [vmem:[#allocation3 + $0x2a0] sm:$0xff]
        %v9149 = vld [vmem:[#allocation3 + $0x2a8] sm:$0xff]
        %v9150 = vld [vmem:[#allocation3 + $0x2b0] sm:$0xff]
        %v9151 = vld [vmem:[#allocation3 + $0x2b8] sm:$0xff]
        %v9152 = vld [vmem:[#allocation3 + $0x2c0] sm:$0xff]
        %v9153 = vld [vmem:[#allocation3 + $0x2c8] sm:$0xff]
        %v9154 = vld [vmem:[#allocation3 + $0x2d0] sm:$0xff]
        %v9155 = vld [vmem:[#allocation3 + $0x2d8] sm:$0xff]
        %v9156 = vld [vmem:[#allocation3 + $0x2e0] sm:$0xff]
        %v9157 = vld [vmem:[#allocation3 + $0x2e8] sm:$0xff]
        %v9158 = vld [vmem:[#allocation3 + $0x2f0] sm:$0xff]
        %v9159 = vld [vmem:[#allocation3 + $0x2f8] sm:$0xff]
        %v9160 = vld [vmem:[#allocation3 + $0x300] sm:$0xff]
        %v9161 = vld [vmem:[#allocation3 + $0x308] sm:$0xff]
        %v9162 = vld [vmem:[#allocation3 + $0x310] sm:$0xff]
        %v9163 = vld [vmem:[#allocation3 + $0x318] sm:$0xff]
        %v9164 = vld [vmem:[#allocation3 + $0x320] sm:$0xff]
        %v9165 = vld [vmem:[#allocation3 + $0x328] sm:$0xff]
        %v9166 = vld [vmem:[#allocation3 + $0x330] sm:$0xff]
        %v9167 = vld [vmem:[#allocation3 + $0x338] sm:$0xff]
        %v9168 = vld [vmem:[#allocation3 + $0x340] sm:$0xff]
        %v9169 = vld [vmem:[#allocation3 + $0x348] sm:$0xff]
        %v9170 = vld [vmem:[#allocation3 + $0x350] sm:$0xff]
        %v9171 = vld [vmem:[#allocation3 + $0x358] sm:$0xff]
        %v9172 = vld [vmem:[#allocation3 + $0x360] sm:$0xff]
        %v9173 = vld [vmem:[#allocation3 + $0x368] sm:$0xff]
        %v9174 = vld [vmem:[#allocation3 + $0x370] sm:$0xff]
        %v9175 = vld [vmem:[#allocation3 + $0x378] sm:$0xff]
        %v9176 = vld [vmem:[#allocation3 + $0x380] sm:$0xff]
        %v9177 = vld [vmem:[#allocation3 + $0x388] sm:$0xff]
        %v9178 = vld [vmem:[#allocation3 + $0x390] sm:$0xff]
        %v9179 = vld [vmem:[#allocation3 + $0x398] sm:$0xff]
        %v9180 = vld [vmem:[#allocation3 + $0x3a0] sm:$0xff]
        %v9181 = vld [vmem:[#allocation3 + $0x3a8] sm:$0xff]
        %v9182 = vld [vmem:[#allocation3 + $0x3b0] sm:$0xff]
        %v9183 = vld [vmem:[#allocation3 + $0x3b8] sm:$0xff]
        %v9184 = vld [vmem:[#allocation3 + $0x3c0] sm:$0xff]
        %v9185 = vld [vmem:[#allocation3 + $0x3c8] sm:$0xff]
        %v9186 = vld [vmem:[#allocation3 + $0x3d0] sm:$0xff]
        %v9187 = vld [vmem:[#allocation3 + $0x3d8] sm:$0xff]
        %v9188 = vld [vmem:[#allocation3 + $0x3e0] sm:$0xff]
        %v9189 = vld [vmem:[#allocation3 + $0x3e8] sm:$0xff]
        %v9190 = vld [vmem:[#allocation3 + $0x3f0] sm:$0xff]
        %v9191 = vld [vmem:[#allocation3 + $0x3f8] sm:$0xff]
        %v9192 = vld [vmem:[#allocation3 + $0x400] sm:$0xff]
        %v9193 = vld [vmem:[#allocation3 + $0x408] sm:$0xff]
        %v9194 = vld [vmem:[#allocation3 + $0x410] sm:$0xff]
        %v9195 = vld [vmem:[#allocation3 + $0x418] sm:$0xff]
        %v9196 = vld [vmem:[#allocation3 + $0x420] sm:$0xff]
        %v9197 = vld [vmem:[#allocation3 + $0x428] sm:$0xff]
        %v9198 = vld [vmem:[#allocation3 + $0x430] sm:$0xff]
        %v9199 = vld [vmem:[#allocation3 + $0x438] sm:$0xff]
        %v9200 = vld [vmem:[#allocation3 + $0x440] sm:$0xff]
        %v9201 = vld [vmem:[#allocation3 + $0x448] sm:$0xff]
        %v9202 = vld [vmem:[#allocation3 + $0x450] sm:$0xff]
        %v9203 = vld [vmem:[#allocation3 + $0x458] sm:$0xff]
        %v9204 = vld [vmem:[#allocation3 + $0x460] sm:$0xff]
        %v9205 = vld [vmem:[#allocation3 + $0x468] sm:$0xff]
        %v9206 = vld [vmem:[#allocation3 + $0x470] sm:$0xff]
        %v9207 = vld [vmem:[#allocation3 + $0x478] sm:$0xff]
        %v9208 = vld [vmem:[#allocation9] sm:$0xf]
        %v9209 = vld [vmem:[#allocation9 + $0x4] sm:$0xf]
        %v9210 = vld [vmem:[#allocation9 + $0x8] sm:$0xf]
        %v9211 = vld [vmem:[#allocation9 + $0xc] sm:$0xf]
        %v9212 = vld [vmem:[#allocation9 + $0x10] sm:$0xf]
        %v9213 = vld [vmem:[#allocation9 + $0x14] sm:$0xf]
        %v9214 = vld [vmem:[#allocation9 + $0x18] sm:$0xf]
        %v9215 = vld [vmem:[#allocation9 + $0x1c] sm:$0xf]
        %v9216 = vld [vmem:[#allocation9 + $0x20] sm:$0xf]
        %v9217 = vld [vmem:[#allocation9 + $0x24] sm:$0xf]
        %v9218 = vld [vmem:[#allocation9 + $0x28] sm:$0xf]
        %v9219 = vld [vmem:[#allocation9 + $0x2c] sm:$0xf]
        %v9220 = vld [vmem:[#allocation9 + $0x30] sm:$0xf]
        %v9221 = vld [vmem:[#allocation9 + $0x34] sm:$0xf]
        %v9222 = vld [vmem:[#allocation9 + $0x38] sm:$0xf]
        %v9223 = vld [vmem:[#allocation9 + $0x3c] sm:$0xf]
        %v9224 = vld [vmem:[#allocation9 + $0x40] sm:$0xf]
        %v9225 = vld [vmem:[#allocation9 + $0x44] sm:$0xf]
        %v9226 = vld [vmem:[#allocation9 + $0x48] sm:$0xf]
        %v9227 = vld [vmem:[#allocation9 + $0x4c] sm:$0xf]
        %v9228 = vld [vmem:[#allocation9 + $0x50] sm:$0xf]
        %v9229 = vld [vmem:[#allocation9 + $0x54] sm:$0xf]
        %v9230 = vld [vmem:[#allocation9 + $0x58] sm:$0xf]
        %v9231 = vld [vmem:[#allocation9 + $0x5c] sm:$0xf]
        %v9232 = vld [vmem:[#allocation9 + $0x60] sm:$0xf]
        %v9233 = vld [vmem:[#allocation9 + $0x64] sm:$0xf]
        %v9234 = vld [vmem:[#allocation9 + $0x68] sm:$0xf]
        %v9235 = vld [vmem:[#allocation9 + $0x6c] sm:$0xf]
        %v9236 = vld [vmem:[#allocation9 + $0x70] sm:$0xf]
        %v9237 = vld [vmem:[#allocation9 + $0x74] sm:$0xf]
        %v9238 = vld [vmem:[#allocation9 + $0x78] sm:$0xf]
        %v9239 = vld [vmem:[#allocation9 + $0x7c] sm:$0xf]
        %v9240 = vld [vmem:[#allocation9 + $0x80] sm:$0xf]
        %v9241 = vld [vmem:[#allocation9 + $0x84] sm:$0xf]
        %v9242 = vld [vmem:[#allocation9 + $0x88] sm:$0xf]
        %v9243 = vld [vmem:[#allocation9 + $0x8c] sm:$0xf]
        %v9244 = vld [vmem:[#allocation9 + $0x90] sm:$0xf]
        %v9245 = vld [vmem:[#allocation9 + $0x94] sm:$0xf]
        %v9246 = vld [vmem:[#allocation9 + $0x98] sm:$0xf]
        %v9247 = vld [vmem:[#allocation9 + $0x9c] sm:$0xf]
        %v9248 = vld [vmem:[#allocation9 + $0xa0] sm:$0xf]
        %v9249 = vld [vmem:[#allocation9 + $0xa4] sm:$0xf]
        %v9250 = vld [vmem:[#allocation9 + $0xa8] sm:$0xf]
        %v9251 = vld [vmem:[#allocation9 + $0xac] sm:$0xf]
        %v9252 = vld [vmem:[#allocation9 + $0xb0] sm:$0xf]
        %v9253 = vld [vmem:[#allocation9 + $0xb4] sm:$0xf]
        %v9254 = vld [vmem:[#allocation9 + $0xb8] sm:$0xf]
        %v9255 = vld [vmem:[#allocation9 + $0xbc] sm:$0xf]
        %v9256 = vld [vmem:[#allocation9 + $0xc0] sm:$0xf]
        %v9257 = vld [vmem:[#allocation9 + $0xc4] sm:$0xf]
        %v9258 = vld [vmem:[#allocation9 + $0xc8] sm:$0xf]
        %v9259 = vld [vmem:[#allocation9 + $0xcc] sm:$0xf]
        %v9260 = vld [vmem:[#allocation9 + $0xd0] sm:$0xf]
        %v9261 = vld [vmem:[#allocation9 + $0xd4] sm:$0xf]
        %v9262 = vld [vmem:[#allocation9 + $0xd8] sm:$0xf]
        %v9263 = vld [vmem:[#allocation9 + $0xdc] sm:$0xf]
        %v9264 = vld [vmem:[#allocation9 + $0xe0] sm:$0xf]
        %v9265 = vld [vmem:[#allocation9 + $0xe4] sm:$0xf]
        %v9266 = vld [vmem:[#allocation9 + $0xe8] sm:$0xf]
        %v9267 = vld [vmem:[#allocation9 + $0xec] sm:$0xf]
        %v9268 = vld [vmem:[#allocation9 + $0xf0] sm:$0xf]
        %v9269 = vld [vmem:[#allocation9 + $0xf4] sm:$0xf]
        %v9270 = vld [vmem:[#allocation9 + $0xf8] sm:$0xf]
        %v9271 = vld [vmem:[#allocation9 + $0xfc] sm:$0xf]
        %v9272 = vld [vmem:[#allocation9 + $0x100] sm:$0xf]
        %v9273 = vld [vmem:[#allocation9 + $0x104] sm:$0xf]
        %v9274 = vld [vmem:[#allocation9 + $0x108] sm:$0xf]
        %v9275 = vld [vmem:[#allocation9 + $0x10c] sm:$0xf]
        %v9276 = vld [vmem:[#allocation9 + $0x110] sm:$0xf]
        %v9277 = vld [vmem:[#allocation9 + $0x114] sm:$0xf]
        %v9278 = vld [vmem:[#allocation9 + $0x118] sm:$0xf]
        %v9279 = vld [vmem:[#allocation9 + $0x11c] sm:$0xf]
        %v9280 = vld [vmem:[#allocation9 + $0x120] sm:$0xf]
        %v9281 = vld [vmem:[#allocation9 + $0x124] sm:$0xf]
        %v9282 = vld [vmem:[#allocation9 + $0x128] sm:$0xf]
        %v9283 = vld [vmem:[#allocation9 + $0x12c] sm:$0xf]
        %v9284 = vld [vmem:[#allocation9 + $0x130] sm:$0xf]
        %v9285 = vld [vmem:[#allocation9 + $0x134] sm:$0xf]
        %v9286 = vld [vmem:[#allocation9 + $0x138] sm:$0xf]
        %v9287 = vld [vmem:[#allocation9 + $0x13c] sm:$0xf]
        %v9288 = vld [vmem:[#allocation9 + $0x140] sm:$0xf]
        %v9289 = vld [vmem:[#allocation9 + $0x144] sm:$0xf]
        %v9290 = vld [vmem:[#allocation9 + $0x148] sm:$0xf]
        %v9291 = vld [vmem:[#allocation9 + $0x14c] sm:$0xf]
        %v9292 = vld [vmem:[#allocation9 + $0x150] sm:$0xf]
        %v9293 = vld [vmem:[#allocation9 + $0x154] sm:$0xf]
        %v9294 = vld [vmem:[#allocation9 + $0x158] sm:$0xf]
        %v9295 = vld [vmem:[#allocation9 + $0x15c] sm:$0xf]
        %v9296 = vld [vmem:[#allocation9 + $0x160] sm:$0xf]
        %v9297 = vld [vmem:[#allocation9 + $0x164] sm:$0xf]
        %v9298 = vld [vmem:[#allocation9 + $0x168] sm:$0xf]
        %v9299 = vld [vmem:[#allocation9 + $0x16c] sm:$0xf]
        %v9300 = vld [vmem:[#allocation9 + $0x170] sm:$0xf]
        %v9301 = vld [vmem:[#allocation9 + $0x174] sm:$0xf]
        %v9302 = vld [vmem:[#allocation9 + $0x178] sm:$0xf]
        %v9303 = vld [vmem:[#allocation9 + $0x17c] sm:$0xf]
        %v9304 = vld [vmem:[#allocation9 + $0x180] sm:$0xf]
        %v9305 = vld [vmem:[#allocation9 + $0x184] sm:$0xf]
        %v9306 = vld [vmem:[#allocation9 + $0x188] sm:$0xf]
        %v9307 = vld [vmem:[#allocation9 + $0x18c] sm:$0xf]
        %v9308 = vld [vmem:[#allocation9 + $0x190] sm:$0xf]
        %v9309 = vld [vmem:[#allocation9 + $0x194] sm:$0xf]
        %v9310 = vld [vmem:[#allocation9 + $0x198] sm:$0xf]
        %v9311 = vld [vmem:[#allocation9 + $0x19c] sm:$0xf]
        %v9312 = vld [vmem:[#allocation9 + $0x1a0] sm:$0xf]
        %v9313 = vld [vmem:[#allocation9 + $0x1a4] sm:$0xf]
        %v9314 = vld [vmem:[#allocation9 + $0x1a8] sm:$0xf]
        %v9315 = vld [vmem:[#allocation9 + $0x1ac] sm:$0xf]
        %v9316 = vld [vmem:[#allocation9 + $0x1b0] sm:$0xf]
        %v9317 = vld [vmem:[#allocation9 + $0x1b4] sm:$0xf]
        %v9318 = vld [vmem:[#allocation9 + $0x1b8] sm:$0xf]
        %v9319 = vld [vmem:[#allocation9 + $0x1bc] sm:$0xf]
        %v9320 = vld [vmem:[#allocation9 + $0x1c0] sm:$0xf]
        %v9321 = vld [vmem:[#allocation9 + $0x1c4] sm:$0xf]
        %v9322 = vld [vmem:[#allocation9 + $0x1c8] sm:$0xf]
        %v9323 = vld [vmem:[#allocation9 + $0x1cc] sm:$0xf]
        %v9324 = vld [vmem:[#allocation9 + $0x1d0] sm:$0xf]
        %v9325 = vld [vmem:[#allocation9 + $0x1d4] sm:$0xf]
        %v9326 = vld [vmem:[#allocation9 + $0x1d8] sm:$0xf]
        %v9327 = vld [vmem:[#allocation9 + $0x1dc] sm:$0xf]
        %v9328 = vld [vmem:[#allocation9 + $0x1e0] sm:$0xf]
        %v9329 = vld [vmem:[#allocation9 + $0x1e4] sm:$0xf]
        %v9330 = vld [vmem:[#allocation9 + $0x1e8] sm:$0xf]
        %v9331 = vld [vmem:[#allocation9 + $0x1ec] sm:$0xf]
        %v9332 = vld [vmem:[#allocation9 + $0x1f0] sm:$0xf]
        %v9333 = vld [vmem:[#allocation9 + $0x1f4] sm:$0xf]
        %v9334 = vld [vmem:[#allocation9 + $0x1f8] sm:$0xf]
        %v9335 = vld [vmem:[#allocation9 + $0x1fc] sm:$0xf]
        %v9336 = vld [vmem:[#allocation9 + $0x200] sm:$0xf]
        %v9337 = vld [vmem:[#allocation9 + $0x204] sm:$0xf]
        %v9338 = vld [vmem:[#allocation9 + $0x208] sm:$0xf]
        %v9339 = vld [vmem:[#allocation9 + $0x20c] sm:$0xf]
        %v9340 = vld [vmem:[#allocation9 + $0x210] sm:$0xf]
        %v9341 = vld [vmem:[#allocation9 + $0x214] sm:$0xf]
        %v9342 = vld [vmem:[#allocation9 + $0x218] sm:$0xf]
        %v9343 = vld [vmem:[#allocation9 + $0x21c] sm:$0xf]
        %v9344 = vld [vmem:[#allocation9 + $0x220] sm:$0xf]
        %v9345 = vld [vmem:[#allocation9 + $0x224] sm:$0xf]
        %v9346 = vld [vmem:[#allocation9 + $0x228] sm:$0xf]
        %v9347 = vld [vmem:[#allocation9 + $0x22c] sm:$0xf]
        %v9348 = vld [vmem:[#allocation9 + $0x230] sm:$0xf]
        %v9349 = vld [vmem:[#allocation9 + $0x234] sm:$0xf]
        %v9350 = vld [vmem:[#allocation9 + $0x238] sm:$0xf]
        %v9351 = vld [vmem:[#allocation9 + $0x23c] sm:$0xf]
        %v9496 = vunpack.c.l.b16 %v9208
        %v9497 = vunpack.c.l.b16 %v9209
        %v9498 = vunpack.c.l.b16 %v9210
        %v9499 = vunpack.c.l.b16 %v9211
        %v9500 = vunpack.c.l.b16 %v9212
        %v9501 = vunpack.c.l.b16 %v9213
        %v9502 = vunpack.c.l.b16 %v9214
        %v9503 = vunpack.c.l.b16 %v9215
        %v9504 = vunpack.c.l.b16 %v9216
        %v9505 = vunpack.c.l.b16 %v9217
        %v9506 = vunpack.c.l.b16 %v9218
        %v9507 = vunpack.c.l.b16 %v9219
        %v9508 = vunpack.c.l.b16 %v9220
        %v9509 = vunpack.c.l.b16 %v9221
        %v9510 = vunpack.c.l.b16 %v9222
        %v9511 = vunpack.c.l.b16 %v9223
        %v9512 = vunpack.c.l.b16 %v9224
        %v9513 = vunpack.c.l.b16 %v9225
        %v9514 = vunpack.c.l.b16 %v9226
        %v9515 = vunpack.c.l.b16 %v9227
        %v9516 = vunpack.c.l.b16 %v9228
        %v9517 = vunpack.c.l.b16 %v9229
        %v9518 = vunpack.c.l.b16 %v9230
        %v9519 = vunpack.c.l.b16 %v9231
        %v9520 = vunpack.c.l.b16 %v9232
        %v9521 = vunpack.c.l.b16 %v9233
        %v9522 = vunpack.c.l.b16 %v9234
        %v9523 = vunpack.c.l.b16 %v9235
        %v9524 = vunpack.c.l.b16 %v9236
        %v9525 = vunpack.c.l.b16 %v9237
        %v9526 = vunpack.c.l.b16 %v9238
        %v9527 = vunpack.c.l.b16 %v9239
        %v9528 = vunpack.c.l.b16 %v9240
        %v9529 = vunpack.c.l.b16 %v9241
        %v9530 = vunpack.c.l.b16 %v9242
        %v9531 = vunpack.c.l.b16 %v9243
        %v9532 = vunpack.c.l.b16 %v9244
        %v9533 = vunpack.c.l.b16 %v9245
        %v9534 = vunpack.c.l.b16 %v9246
        %v9535 = vunpack.c.l.b16 %v9247
        %v9536 = vunpack.c.l.b16 %v9248
        %v9537 = vunpack.c.l.b16 %v9249
        %v9538 = vunpack.c.l.b16 %v9250
        %v9539 = vunpack.c.l.b16 %v9251
        %v9540 = vunpack.c.l.b16 %v9252
        %v9541 = vunpack.c.l.b16 %v9253
        %v9542 = vunpack.c.l.b16 %v9254
        %v9543 = vunpack.c.l.b16 %v9255
        %v9544 = vunpack.c.l.b16 %v9256
        %v9545 = vunpack.c.l.b16 %v9257
        %v9546 = vunpack.c.l.b16 %v9258
        %v9547 = vunpack.c.l.b16 %v9259
        %v9548 = vunpack.c.l.b16 %v9260
        %v9549 = vunpack.c.l.b16 %v9261
        %v9550 = vunpack.c.l.b16 %v9262
        %v9551 = vunpack.c.l.b16 %v9263
        %v9552 = vunpack.c.l.b16 %v9264
        %v9553 = vunpack.c.l.b16 %v9265
        %v9554 = vunpack.c.l.b16 %v9266
        %v9555 = vunpack.c.l.b16 %v9267
        %v9556 = vunpack.c.l.b16 %v9268
        %v9557 = vunpack.c.l.b16 %v9269
        %v9558 = vunpack.c.l.b16 %v9270
        %v9559 = vunpack.c.l.b16 %v9271
        %v9560 = vunpack.c.l.b16 %v9272
        %v9561 = vunpack.c.l.b16 %v9273
        %v9562 = vunpack.c.l.b16 %v9274
        %v9563 = vunpack.c.l.b16 %v9275
        %v9564 = vunpack.c.l.b16 %v9276
        %v9565 = vunpack.c.l.b16 %v9277
        %v9566 = vunpack.c.l.b16 %v9278
        %v9567 = vunpack.c.l.b16 %v9279
        %v9568 = vunpack.c.l.b16 %v9280
        %v9569 = vunpack.c.l.b16 %v9281
        %v9570 = vunpack.c.l.b16 %v9282
        %v9571 = vunpack.c.l.b16 %v9283
        %v9572 = vunpack.c.l.b16 %v9284
        %v9573 = vunpack.c.l.b16 %v9285
        %v9574 = vunpack.c.l.b16 %v9286
        %v9575 = vunpack.c.l.b16 %v9287
        %v9576 = vunpack.c.l.b16 %v9288
        %v9577 = vunpack.c.l.b16 %v9289
        %v9578 = vunpack.c.l.b16 %v9290
        %v9579 = vunpack.c.l.b16 %v9291
        %v9580 = vunpack.c.l.b16 %v9292
        %v9581 = vunpack.c.l.b16 %v9293
        %v9582 = vunpack.c.l.b16 %v9294
        %v9583 = vunpack.c.l.b16 %v9295
        %v9584 = vunpack.c.l.b16 %v9296
        %v9585 = vunpack.c.l.b16 %v9297
        %v9586 = vunpack.c.l.b16 %v9298
        %v9587 = vunpack.c.l.b16 %v9299
        %v9588 = vunpack.c.l.b16 %v9300
        %v9589 = vunpack.c.l.b16 %v9301
        %v9590 = vunpack.c.l.b16 %v9302
        %v9591 = vunpack.c.l.b16 %v9303
        %v9592 = vunpack.c.l.b16 %v9304
        %v9593 = vunpack.c.l.b16 %v9305
        %v9594 = vunpack.c.l.b16 %v9306
        %v9595 = vunpack.c.l.b16 %v9307
        %v9596 = vunpack.c.l.b16 %v9308
        %v9597 = vunpack.c.l.b16 %v9309
        %v9598 = vunpack.c.l.b16 %v9310
        %v9599 = vunpack.c.l.b16 %v9311
        %v9600 = vunpack.c.l.b16 %v9312
        %v9601 = vunpack.c.l.b16 %v9313
        %v9602 = vunpack.c.l.b16 %v9314
        %v9603 = vunpack.c.l.b16 %v9315
        %v9604 = vunpack.c.l.b16 %v9316
        %v9605 = vunpack.c.l.b16 %v9317
        %v9606 = vunpack.c.l.b16 %v9318
        %v9607 = vunpack.c.l.b16 %v9319
        %v9608 = vunpack.c.l.b16 %v9320
        %v9609 = vunpack.c.l.b16 %v9321
        %v9610 = vunpack.c.l.b16 %v9322
        %v9611 = vunpack.c.l.b16 %v9323
        %v9612 = vunpack.c.l.b16 %v9324
        %v9613 = vunpack.c.l.b16 %v9325
        %v9614 = vunpack.c.l.b16 %v9326
        %v9615 = vunpack.c.l.b16 %v9327
        %v9616 = vunpack.c.l.b16 %v9328
        %v9617 = vunpack.c.l.b16 %v9329
        %v9618 = vunpack.c.l.b16 %v9330
        %v9619 = vunpack.c.l.b16 %v9331
        %v9620 = vunpack.c.l.b16 %v9332
        %v9621 = vunpack.c.l.b16 %v9333
        %v9622 = vunpack.c.l.b16 %v9334
        %v9623 = vunpack.c.l.b16 %v9335
        %v9624 = vunpack.c.l.b16 %v9336
        %v9625 = vunpack.c.l.b16 %v9337
        %v9626 = vunpack.c.l.b16 %v9338
        %v9627 = vunpack.c.l.b16 %v9339
        %v9628 = vunpack.c.l.b16 %v9340
        %v9629 = vunpack.c.l.b16 %v9341
        %v9630 = vunpack.c.l.b16 %v9342
        %v9631 = vunpack.c.l.b16 %v9343
        %v9632 = vunpack.c.l.b16 %v9344
        %v9633 = vunpack.c.l.b16 %v9345
        %v9634 = vunpack.c.l.b16 %v9346
        %v9635 = vunpack.c.l.b16 %v9347
        %v9636 = vunpack.c.l.b16 %v9348
        %v9637 = vunpack.c.l.b16 %v9349
        %v9638 = vunpack.c.l.b16 %v9350
        %v9639 = vunpack.c.l.b16 %v9351
        %v9640 = vpack.c.b16 %v9497, %v9496
        %v9641 = vpack.c.b16 %v9499, %v9498
        %v9642 = vpack.c.b16 %v9501, %v9500
        %v9643 = vpack.c.b16 %v9503, %v9502
        %v9644 = vpack.c.b16 %v9505, %v9504
        %v9645 = vpack.c.b16 %v9507, %v9506
        %v9646 = vpack.c.b16 %v9509, %v9508
        %v9647 = vpack.c.b16 %v9511, %v9510
        %v9648 = vpack.c.b16 %v9513, %v9512
        %v9649 = vpack.c.b16 %v9515, %v9514
        %v9650 = vpack.c.b16 %v9517, %v9516
        %v9651 = vpack.c.b16 %v9519, %v9518
        %v9652 = vpack.c.b16 %v9521, %v9520
        %v9653 = vpack.c.b16 %v9523, %v9522
        %v9654 = vpack.c.b16 %v9525, %v9524
        %v9655 = vpack.c.b16 %v9527, %v9526
        %v9656 = vpack.c.b16 %v9529, %v9528
        %v9657 = vpack.c.b16 %v9531, %v9530
        %v9658 = vpack.c.b16 %v9533, %v9532
        %v9659 = vpack.c.b16 %v9535, %v9534
        %v9660 = vpack.c.b16 %v9537, %v9536
        %v9661 = vpack.c.b16 %v9539, %v9538
        %v9662 = vpack.c.b16 %v9541, %v9540
        %v9663 = vpack.c.b16 %v9543, %v9542
        %v9664 = vpack.c.b16 %v9545, %v9544
        %v9665 = vpack.c.b16 %v9547, %v9546
        %v9666 = vpack.c.b16 %v9549, %v9548
        %v9667 = vpack.c.b16 %v9551, %v9550
        %v9668 = vpack.c.b16 %v9553, %v9552
        %v9669 = vpack.c.b16 %v9555, %v9554
        %v9670 = vpack.c.b16 %v9557, %v9556
        %v9671 = vpack.c.b16 %v9559, %v9558
        %v9672 = vpack.c.b16 %v9561, %v9560
        %v9673 = vpack.c.b16 %v9563, %v9562
        %v9674 = vpack.c.b16 %v9565, %v9564
        %v9675 = vpack.c.b16 %v9567, %v9566
        %v9676 = vpack.c.b16 %v9569, %v9568
        %v9677 = vpack.c.b16 %v9571, %v9570
        %v9678 = vpack.c.b16 %v9573, %v9572
        %v9679 = vpack.c.b16 %v9575, %v9574
        %v9680 = vpack.c.b16 %v9577, %v9576
        %v9681 = vpack.c.b16 %v9579, %v9578
        %v9682 = vpack.c.b16 %v9581, %v9580
        %v9683 = vpack.c.b16 %v9583, %v9582
        %v9684 = vpack.c.b16 %v9585, %v9584
        %v9685 = vpack.c.b16 %v9587, %v9586
        %v9686 = vpack.c.b16 %v9589, %v9588
        %v9687 = vpack.c.b16 %v9591, %v9590
        %v9688 = vpack.c.b16 %v9593, %v9592
        %v9689 = vpack.c.b16 %v9595, %v9594
        %v9690 = vpack.c.b16 %v9597, %v9596
        %v9691 = vpack.c.b16 %v9599, %v9598
        %v9692 = vpack.c.b16 %v9601, %v9600
        %v9693 = vpack.c.b16 %v9603, %v9602
        %v9694 = vpack.c.b16 %v9605, %v9604
        %v9695 = vpack.c.b16 %v9607, %v9606
        %v9696 = vpack.c.b16 %v9609, %v9608
        %v9697 = vpack.c.b16 %v9611, %v9610
        %v9698 = vpack.c.b16 %v9613, %v9612
        %v9699 = vpack.c.b16 %v9615, %v9614
        %v9700 = vpack.c.b16 %v9617, %v9616
        %v9701 = vpack.c.b16 %v9619, %v9618
        %v9702 = vpack.c.b16 %v9621, %v9620
        %v9703 = vpack.c.b16 %v9623, %v9622
        %v9704 = vpack.c.b16 %v9625, %v9624
        %v9705 = vpack.c.b16 %v9627, %v9626
        %v9706 = vpack.c.b16 %v9629, %v9628
        %v9707 = vpack.c.b16 %v9631, %v9630
        %v9708 = vpack.c.b16 %v9633, %v9632
        %v9709 = vpack.c.b16 %v9635, %v9634
        %v9710 = vpack.c.b16 %v9637, %v9636
        %v9711 = vpack.c.b16 %v9639, %v9638
        %9784 = vmatprep.subr.bf16.mxu0 0
        %9785 = vmatpush1.bf16.msra.mxu0 %v9640
        %9786 = vmatprep.subr.bf16.mxu0 0
        %9787 = vmatpush1.bf16.msra.mxu0 %v9641
        %9788 = vmatprep.subr.bf16.mxu0 0
        %9789 = vmatpush1.bf16.msra.mxu0 %v9642
        %9790 = vmatprep.subr.bf16.mxu0 0
        %9791 = vmatpush1.bf16.msra.mxu0 %v9643
        %9792 = vmatprep.subr.bf16.mxu0 0
        %9793 = vmatpush1.bf16.msra.mxu0 %v9644
        %9794 = vmatprep.subr.bf16.mxu0 0
        %9795 = vmatpush1.bf16.msra.mxu0 %v9645
        %9796 = vmatprep.subr.bf16.mxu0 0
        %9797 = vmatpush1.bf16.msra.mxu0 %v9646
        %9798 = vmatprep.subr.bf16.mxu0 0
        %9799 = vmatpush1.bf16.msra.mxu0 %v9647
        %9800 = vmatprep.subr.bf16.mxu0 0
        %9801 = vmatpush1.bf16.msra.mxu0 %v9648
        %9802 = vmatprep.subr.bf16.mxu0 0
        %9803 = vmatpush1.bf16.msra.mxu0 %v9649
        %9804 = vmatprep.subr.bf16.mxu0 0
        %9805 = vmatpush1.bf16.msra.mxu0 %v9650
        %9806 = vmatprep.subr.bf16.mxu0 0
        %9807 = vmatpush1.bf16.msra.mxu0 %v9651
        %9808 = vmatprep.subr.bf16.mxu0 0
        %9809 = vmatpush1.bf16.msra.mxu0 %v9652
        %9810 = vmatprep.subr.bf16.mxu0 0
        %9811 = vmatpush1.bf16.msra.mxu0 %v9653
        %9812 = vmatprep.subr.bf16.mxu0 0
        %9813 = vmatpush1.bf16.msra.mxu0 %v9654
        %9814 = vmatprep.subr.bf16.mxu0 0
        %9815 = vmatpush1.bf16.msra.mxu0 %v9655
        %9816 = vmatprep.mubr.bf16.mxu0 %v9065
        %9817 = vmatmul.mubr.bf16.gmra.mrb[0].mxu0 %v9064
        %v9818 = vpop.f32.mrb[0].mxu0
        %v9819 = vadd.f32 0.0, %v9818
        %v9820 = vpop.f32.mrb[0].mxu0
        %v9821 = vpop.f32.mrb[0].mxu0
        %v9822 = vadd.f32 0.0, %v9821
        %v9823 = vpop.f32.mrb[0].mxu0
        %9824 = vmatprep.mubr.bf16.mxu0 %v9074
        %9825 = vmatmul.mubr.bf16.gmra.mrb[0].mxu0 %v9073
        %v9826 = vpop.f32.mrb[0].mxu0
        %v9827 = vadd.f32 0.0, %v9826
        %v9828 = vpop.f32.mrb[0].mxu0
        %v9829 = vpop.f32.mrb[0].mxu0
        %v9830 = vadd.f32 0.0, %v9829
        %v9831 = vpop.f32.mrb[0].mxu0
        %9832 = vmatprep.mubr.bf16.mxu0 %v9083
        %9833 = vmatmul.mubr.bf16.gmra.mrb[0].mxu0 %v9082
        %v9834 = vpop.f32.mrb[0].mxu0
        %v9835 = vadd.f32 0.0, %v9834
        %v9836 = vpop.f32.mrb[0].mxu0
        %v9837 = vpop.f32.mrb[0].mxu0
        %v9838 = vadd.f32 0.0, %v9837
        %v9839 = vpop.f32.mrb[0].mxu0
        %9840 = vmatprep.mubr.bf16.mxu0 %v9092
        %9841 = vmatmul.mubr.bf16.gmra.mrb[0].mxu0 %v9091
        %v9842 = vpop.f32.mrb[0].mxu0
        %v9843 = vadd.f32 0.0, %v9842
        %v9844 = vpop.f32.mrb[0].mxu0
        %v9845 = vpop.f32.mrb[0].mxu0
        %v9846 = vadd.f32 0.0, %v9845
        %v9847 = vpop.f32.mrb[0].mxu0
        %9848 = vmatprep.mubr.bf16.mxu0 %v9101
        %9849 = vmatmul.mubr.bf16.gmra.mrb[0].mxu0 %v9100
        %v9850 = vpop.f32.mrb[0].mxu0
        %v9851 = vadd.f32 0.0, %v9850
        %v9852 = vpop.f32.mrb[0].mxu0
        %v9853 = vpop.f32.mrb[0].mxu0
        %v9854 = vadd.f32 0.0, %v9853
        %v9855 = vpop.f32.mrb[0].mxu0
        %9856 = vmatprep.mubr.bf16.mxu0 %v9110
        %9857 = vmatmul.mubr.bf16.gmra.mrb[0].mxu0 %v9109
        %v9858 = vpop.f32.mrb[0].mxu0
        %v9859 = vadd.f32 0.0, %v9858
        %v9860 = vpop.f32.mrb[0].mxu0
        %v9861 = vpop.f32.mrb[0].mxu0
        %v9862 = vadd.f32 0.0, %v9861
        %v9863 = vpop.f32.mrb[0].mxu0
        %9864 = vmatprep.mubr.bf16.mxu0 %v9119
        %9865 = vmatmul.mubr.bf16.gmra.mrb[0].mxu0 %v9118
        %v9866 = vpop.f32.mrb[0].mxu0
        %v9867 = vadd.f32 0.0, %v9866
        %v9868 = vpop.f32.mrb[0].mxu0
        %v9869 = vpop.f32.mrb[0].mxu0
        %v9870 = vadd.f32 0.0, %v9869
        %v9871 = vpop.f32.mrb[0].mxu0
        %9872 = vmatprep.mubr.bf16.mxu0 %v9128
        %9873 = vmatmul.mubr.bf16.gmra.mrb[0].mxu0 %v9127
        %v9874 = vpop.f32.mrb[0].mxu0
        %v9875 = vadd.f32 0.0, %v9874
        %v9876 = vpop.f32.mrb[0].mxu0
        %v9877 = vpop.f32.mrb[0].mxu0
        %v9878 = vadd.f32 0.0, %v9877
        %v9879 = vpop.f32.mrb[0].mxu0
        %9880 = vmatprep.mubr.bf16.mxu0 %v9137
        %9881 = vmatmul.mubr.bf16.gmra.mrb[0].mxu0 %v9136
        %v9882 = vpop.f32.mrb[0].mxu0
        %v9883 = vadd.f32 0.0, %v9882
        %v9884 = vpop.f32.mrb[0].mxu0
        %v9885 = vpop.f32.mrb[0].mxu0
        %v9886 = vadd.f32 0.0, %v9885
        %v9887 = vpop.f32.mrb[0].mxu0
        %9888 = vmatprep.mubr.bf16.mxu0 %v9146
        %9889 = vmatmul.mubr.bf16.gmra.mrb[0].mxu0 %v9145
        %v9890 = vpop.f32.mrb[0].mxu0
        %v9891 = vadd.f32 0.0, %v9890
        %v9892 = vpop.f32.mrb[0].mxu0
        %v9893 = vpop.f32.mrb[0].mxu0
        %v9894 = vadd.f32 0.0, %v9893
        %v9895 = vpop.f32.mrb[0].mxu0
        %9896 = vmatprep.mubr.bf16.mxu0 %v9155
        %9897 = vmatmul.mubr.bf16.gmra.mrb[0].mxu0 %v9154
        %v9898 = vpop.f32.mrb[0].mxu0
        %v9899 = vadd.f32 0.0, %v9898
        %v9900 = vpop.f32.mrb[0].mxu0
        %v9901 = vpop.f32.mrb[0].mxu0
        %v9902 = vadd.f32 0.0, %v9901
        %v9903 = vpop.f32.mrb[0].mxu0
        %9904 = vmatprep.mubr.bf16.mxu0 %v9164
        %9905 = vmatmul.mubr.bf16.gmra.mrb[0].mxu0 %v9163
        %v9906 = vpop.f32.mrb[0].mxu0
        %v9907 = vadd.f32 0.0, %v9906
        %v9908 = vpop.f32.mrb[0].mxu0
        %v9909 = vpop.f32.mrb[0].mxu0
        %v9910 = vadd.f32 0.0, %v9909
        %v9911 = vpop.f32.mrb[0].mxu0
        %9912 = vmatprep.mubr.bf16.mxu0 %v9173
        %9913 = vmatmul.mubr.bf16.gmra.mrb[0].mxu0 %v9172
        %v9914 = vpop.f32.mrb[0].mxu0
        %v9915 = vadd.f32 0.0, %v9914
        %v9916 = vpop.f32.mrb[0].mxu0
        %v9917 = vpop.f32.mrb[0].mxu0
        %v9918 = vadd.f32 0.0, %v9917
        %v9919 = vpop.f32.mrb[0].mxu0
        %9920 = vmatprep.mubr.bf16.mxu0 %v9182
        %9921 = vmatmul.mubr.bf16.gmra.mrb[0].mxu0 %v9181
        %v9922 = vpop.f32.mrb[0].mxu0
        %v9923 = vadd.f32 0.0, %v9922
        %v9924 = vpop.f32.mrb[0].mxu0
        %v9925 = vpop.f32.mrb[0].mxu0
        %v9926 = vadd.f32 0.0, %v9925
        %v9927 = vpop.f32.mrb[0].mxu0
        %9928 = vmatprep.mubr.bf16.mxu0 %v9191
        %9929 = vmatmul.mubr.bf16.gmra.mrb[0].mxu0 %v9190
        %v9930 = vpop.f32.mrb[0].mxu0
        %v9931 = vadd.f32 0.0, %v9930
        %v9932 = vpop.f32.mrb[0].mxu0
        %v9933 = vpop.f32.mrb[0].mxu0
        %v9934 = vadd.f32 0.0, %v9933
        %v9935 = vpop.f32.mrb[0].mxu0
        %9936 = vmatprep.mubr.bf16.mxu0 %v9200
        %9937 = vmatmul.mubr.bf16.gmra.mrb[0].mxu0 %v9199
        %v9938 = vpop.f32.mrb[0].mxu0
        %v9939 = vadd.f32 0.0, %v9938
        %v9940 = vpop.f32.mrb[0].mxu0
        %v9941 = vpop.f32.mrb[0].mxu0
        %v9942 = vadd.f32 0.0, %v9941
        %v9943 = vpop.f32.mrb[0].mxu0
        %9944 = vdwg.mxu0
        %9945 = vmatprep.subr.bf16.mxu0 0
        %9946 = vmatpush1.bf16.msra.mxu0 %v9656
        %9947 = vmatprep.subr.bf16.mxu0 0
        %9948 = vmatpush1.bf16.msra.mxu0 %v9657
        %9949 = vmatprep.subr.bf16.mxu0 0
        %9950 = vmatpush1.bf16.msra.mxu0 %v9658
        %9951 = vmatprep.subr.bf16.mxu0 0
        %9952 = vmatpush1.bf16.msra.mxu0 %v9659
        %9953 = vmatprep.subr.bf16.mxu0 0
        %9954 = vmatpush1.bf16.msra.mxu0 %v9660
        %9955 = vmatprep.subr.bf16.mxu0 0
        %9956 = vmatpush1.bf16.msra.mxu0 %v9661
        %9957 = vmatprep.subr.bf16.mxu0 0
        %9958 = vmatpush1.bf16.msra.mxu0 %v9662
        %9959 = vmatprep.subr.bf16.mxu0 0
        %9960 = vmatpush1.bf16.msra.mxu0 %v9663
        %9961 = vmatprep.subr.bf16.mxu0 0
        %9962 = vmatpush1.bf16.msra.mxu0 %v9664
        %9963 = vmatprep.subr.bf16.mxu0 0
        %9964 = vmatpush1.bf16.msra.mxu0 %v9665
        %9965 = vmatprep.subr.bf16.mxu0 0
        %9966 = vmatpush1.bf16.msra.mxu0 %v9666
        %9967 = vmatprep.subr.bf16.mxu0 0
        %9968 = vmatpush1.bf16.msra.mxu0 %v9667
        %9969 = vmatprep.subr.bf16.mxu0 0
        %9970 = vmatpush1.bf16.msra.mxu0 %v9668
        %9971 = vmatprep.subr.bf16.mxu0 0
        %9972 = vmatpush1.bf16.msra.mxu0 %v9669
        %9973 = vmatprep.subr.bf16.mxu0 0
        %9974 = vmatpush1.bf16.msra.mxu0 %v9670
        %9975 = vmatprep.subr.bf16.mxu0 0
        %9976 = vmatpush1.bf16.msra.mxu0 %v9671
        %9977 = vmatprep.mubr.bf16.mxu0 %v9067
        %9978 = vmatmul.mubr.bf16.gmra.mrb[0].mxu0 %v9066
        %v9979 = vpop.f32.mrb[0].mxu0
        %v9980 = vadd.f32 %v9819, %v9979
        %v9981 = vpop.f32.mrb[0].mxu0
        %v9982 = vpop.f32.mrb[0].mxu0
        %v9983 = vadd.f32 %v9822, %v9982
        %v9984 = vpop.f32.mrb[0].mxu0
        %9985 = vmatprep.mubr.bf16.mxu0 %v9076
        %9986 = vmatmul.mubr.bf16.gmra.mrb[0].mxu0 %v9075
        %v9987 = vpop.f32.mrb[0].mxu0
        %v9988 = vadd.f32 %v9827, %v9987
        %v9989 = vpop.f32.mrb[0].mxu0
        %v9990 = vpop.f32.mrb[0].mxu0
        %v9991 = vadd.f32 %v9830, %v9990
        %v9992 = vpop.f32.mrb[0].mxu0
        %9993 = vmatprep.mubr.bf16.mxu0 %v9085
        %9994 = vmatmul.mubr.bf16.gmra.mrb[0].mxu0 %v9084
        %v9995 = vpop.f32.mrb[0].mxu0
        %v9996 = vadd.f32 %v9835, %v9995
        %v9997 = vpop.f32.mrb[0].mxu0
        %v9998 = vpop.f32.mrb[0].mxu0
        %v9999 = vadd.f32 %v9838, %v9998
        %v10000 = vpop.f32.mrb[0].mxu0
        %10001 = vmatprep.mubr.bf16.mxu0 %v9094
        %10002 = vmatmul.mubr.bf16.gmra.mrb[0].mxu0 %v9093
        %v10003 = vpop.f32.mrb[0].mxu0
        %v10004 = vadd.f32 %v9843, %v10003
        %v10005 = vpop.f32.mrb[0].mxu0
        %v10006 = vpop.f32.mrb[0].mxu0
        %v10007 = vadd.f32 %v9846, %v10006
        %v10008 = vpop.f32.mrb[0].mxu0
        %10009 = vmatprep.mubr.bf16.mxu0 %v9103
        %10010 = vmatmul.mubr.bf16.gmra.mrb[0].mxu0 %v9102
        %v10011 = vpop.f32.mrb[0].mxu0
        %v10012 = vadd.f32 %v9851, %v10011
        %v10013 = vpop.f32.mrb[0].mxu0
        %v10014 = vpop.f32.mrb[0].mxu0
        %v10015 = vadd.f32 %v9854, %v10014
        %v10016 = vpop.f32.mrb[0].mxu0
        %10017 = vmatprep.mubr.bf16.mxu0 %v9112
        %10018 = vmatmul.mubr.bf16.gmra.mrb[0].mxu0 %v9111
        %v10019 = vpop.f32.mrb[0].mxu0
        %v10020 = vadd.f32 %v9859, %v10019
        %v10021 = vpop.f32.mrb[0].mxu0
        %v10022 = vpop.f32.mrb[0].mxu0
        %v10023 = vadd.f32 %v9862, %v10022
        %v10024 = vpop.f32.mrb[0].mxu0
        %10025 = vmatprep.mubr.bf16.mxu0 %v9121
        %10026 = vmatmul.mubr.bf16.gmra.mrb[0].mxu0 %v9120
        %v10027 = vpop.f32.mrb[0].mxu0
        %v10028 = vadd.f32 %v9867, %v10027
        %v10029 = vpop.f32.mrb[0].mxu0
        %v10030 = vpop.f32.mrb[0].mxu0
        %v10031 = vadd.f32 %v9870, %v10030
        %v10032 = vpop.f32.mrb[0].mxu0
        %10033 = vmatprep.mubr.bf16.mxu0 %v9130
        %10034 = vmatmul.mubr.bf16.gmra.mrb[0].mxu0 %v9129
        %v10035 = vpop.f32.mrb[0].mxu0
        %v10036 = vadd.f32 %v9875, %v10035
        %v10037 = vpop.f32.mrb[0].mxu0
        %v10038 = vpop.f32.mrb[0].mxu0
        %v10039 = vadd.f32 %v9878, %v10038
        %v10040 = vpop.f32.mrb[0].mxu0
        %10041 = vmatprep.mubr.bf16.mxu0 %v9139
        %10042 = vmatmul.mubr.bf16.gmra.mrb[0].mxu0 %v9138
        %v10043 = vpop.f32.mrb[0].mxu0
        %v10044 = vadd.f32 %v9883, %v10043
        %v10045 = vpop.f32.mrb[0].mxu0
        %v10046 = vpop.f32.mrb[0].mxu0
        %v10047 = vadd.f32 %v9886, %v10046
        %v10048 = vpop.f32.mrb[0].mxu0
        %10049 = vmatprep.mubr.bf16.mxu0 %v9148
        %10050 = vmatmul.mubr.bf16.gmra.mrb[0].mxu0 %v9147
        %v10051 = vpop.f32.mrb[0].mxu0
        %v10052 = vadd.f32 %v9891, %v10051
        %v10053 = vpop.f32.mrb[0].mxu0
        %v10054 = vpop.f32.mrb[0].mxu0
        %v10055 = vadd.f32 %v9894, %v10054
        %v10056 = vpop.f32.mrb[0].mxu0
        %10057 = vmatprep.mubr.bf16.mxu0 %v9157
        %10058 = vmatmul.mubr.bf16.gmra.mrb[0].mxu0 %v9156
        %v10059 = vpop.f32.mrb[0].mxu0
        %v10060 = vadd.f32 %v9899, %v10059
        %v10061 = vpop.f32.mrb[0].mxu0
        %v10062 = vpop.f32.mrb[0].mxu0
        %v10063 = vadd.f32 %v9902, %v10062
        %v10064 = vpop.f32.mrb[0].mxu0
        %10065 = vmatprep.mubr.bf16.mxu0 %v9166
        %10066 = vmatmul.mubr.bf16.gmra.mrb[0].mxu0 %v9165
        %v10067 = vpop.f32.mrb[0].mxu0
        %v10068 = vadd.f32 %v9907, %v10067
        %v10069 = vpop.f32.mrb[0].mxu0
        %v10070 = vpop.f32.mrb[0].mxu0
        %v10071 = vadd.f32 %v9910, %v10070
        %v10072 = vpop.f32.mrb[0].mxu0
        %10073 = vmatprep.mubr.bf16.mxu0 %v9175
        %10074 = vmatmul.mubr.bf16.gmra.mrb[0].mxu0 %v9174
        %v10075 = vpop.f32.mrb[0].mxu0
        %v10076 = vadd.f32 %v9915, %v10075
        %v10077 = vpop.f32.mrb[0].mxu0
        %v10078 = vpop.f32.mrb[0].mxu0
        %v10079 = vadd.f32 %v9918, %v10078
        %v10080 = vpop.f32.mrb[0].mxu0
        %10081 = vmatprep.mubr.bf16.mxu0 %v9184
        %10082 = vmatmul.mubr.bf16.gmra.mrb[0].mxu0 %v9183
        %v10083 = vpop.f32.mrb[0].mxu0
        %v10084 = vadd.f32 %v9923, %v10083
        %v10085 = vpop.f32.mrb[0].mxu0
        %v10086 = vpop.f32.mrb[0].mxu0
        %v10087 = vadd.f32 %v9926, %v10086
        %v10088 = vpop.f32.mrb[0].mxu0
        %10089 = vmatprep.mubr.bf16.mxu0 %v9193
        %10090 = vmatmul.mubr.bf16.gmra.mrb[0].mxu0 %v9192
        %v10091 = vpop.f32.mrb[0].mxu0
        %v10092 = vadd.f32 %v9931, %v10091
        %v10093 = vpop.f32.mrb[0].mxu0
        %v10094 = vpop.f32.mrb[0].mxu0
        %v10095 = vadd.f32 %v9934, %v10094
        %v10096 = vpop.f32.mrb[0].mxu0
        %10097 = vmatprep.mubr.bf16.mxu0 %v9202
        %10098 = vmatmul.mubr.bf16.gmra.mrb[0].mxu0 %v9201
        %v10099 = vpop.f32.mrb[0].mxu0
        %v10100 = vadd.f32 %v9939, %v10099
        %v10101 = vpop.f32.mrb[0].mxu0
        %v10102 = vpop.f32.mrb[0].mxu0
        %v10103 = vadd.f32 %v9942, %v10102
        %v10104 = vpop.f32.mrb[0].mxu0
        %10105 = vdwg.mxu0
        %10106 = vmatprep.subr.bf16.mxu0 0
        %10107 = vmatpush1.bf16.msra.mxu0 %v9672
        %10108 = vmatprep.subr.bf16.mxu0 0
        %10109 = vmatpush1.bf16.msra.mxu0 %v9673
        %10110 = vmatprep.subr.bf16.mxu0 0
        %10111 = vmatpush1.bf16.msra.mxu0 %v9674
        %10112 = vmatprep.subr.bf16.mxu0 0
        %10113 = vmatpush1.bf16.msra.mxu0 %v9675
        %10114 = vmatprep.subr.bf16.mxu0 0
        %10115 = vmatpush1.bf16.msra.mxu0 %v9676
        %10116 = vmatprep.subr.bf16.mxu0 0
        %10117 = vmatpush1.bf16.msra.mxu0 %v9677
        %10118 = vmatprep.subr.bf16.mxu0 0
        %10119 = vmatpush1.bf16.msra.mxu0 %v9678
        %10120 = vmatprep.subr.bf16.mxu0 0
        %10121 = vmatpush1.bf16.msra.mxu0 %v9679
        %10122 = vmatprep.subr.bf16.mxu0 0
        %10123 = vmatpush1.bf16.msra.mxu0 %v9680
        %10124 = vmatprep.subr.bf16.mxu0 0
        %10125 = vmatpush1.bf16.msra.mxu0 %v9681
        %10126 = vmatprep.subr.bf16.mxu0 0
        %10127 = vmatpush1.bf16.msra.mxu0 %v9682
        %10128 = vmatprep.subr.bf16.mxu0 0
        %10129 = vmatpush1.bf16.msra.mxu0 %v9683
        %10130 = vmatprep.subr.bf16.mxu0 0
        %10131 = vmatpush1.bf16.msra.mxu0 %v9684
        %10132 = vmatprep.subr.bf16.mxu0 0
        %10133 = vmatpush1.bf16.msra.mxu0 %v9685
        %10134 = vmatprep.subr.bf16.mxu0 0
        %10135 = vmatpush1.bf16.msra.mxu0 %v9686
        %10136 = vmatprep.subr.bf16.mxu0 0
        %10137 = vmatpush1.bf16.msra.mxu0 %v9687
        %10138 = vmatprep.mubr.bf16.mxu0 %v9069
        %10139 = vmatmul.mubr.bf16.gmra.mrb[0].mxu0 %v9068
        %v10140 = vpop.f32.mrb[0].mxu0
        %v10141 = vadd.f32 %v9980, %v10140
        %v10142 = vpop.f32.mrb[0].mxu0
        %v10143 = vpop.f32.mrb[0].mxu0
        %v10144 = vadd.f32 %v9983, %v10143
        %v10145 = vpop.f32.mrb[0].mxu0
        %10146 = vmatprep.mubr.bf16.mxu0 %v9078
        %10147 = vmatmul.mubr.bf16.gmra.mrb[0].mxu0 %v9077
        %v10148 = vpop.f32.mrb[0].mxu0
        %v10149 = vadd.f32 %v9988, %v10148
        %v10150 = vpop.f32.mrb[0].mxu0
        %v10151 = vpop.f32.mrb[0].mxu0
        %v10152 = vadd.f32 %v9991, %v10151
        %v10153 = vpop.f32.mrb[0].mxu0
        %10154 = vmatprep.mubr.bf16.mxu0 %v9087
        %10155 = vmatmul.mubr.bf16.gmra.mrb[0].mxu0 %v9086
        %v10156 = vpop.f32.mrb[0].mxu0
        %v10157 = vadd.f32 %v9996, %v10156
        %v10158 = vpop.f32.mrb[0].mxu0
        %v10159 = vpop.f32.mrb[0].mxu0
        %v10160 = vadd.f32 %v9999, %v10159
        %v10161 = vpop.f32.mrb[0].mxu0
        %10162 = vmatprep.mubr.bf16.mxu0 %v9096
        %10163 = vmatmul.mubr.bf16.gmra.mrb[0].mxu0 %v9095
        %v10164 = vpop.f32.mrb[0].mxu0
        %v10165 = vadd.f32 %v10004, %v10164
        %v10166 = vpop.f32.mrb[0].mxu0
        %v10167 = vpop.f32.mrb[0].mxu0
        %v10168 = vadd.f32 %v10007, %v10167
        %v10169 = vpop.f32.mrb[0].mxu0
        %10170 = vmatprep.mubr.bf16.mxu0 %v9105
        %10171 = vmatmul.mubr.bf16.gmra.mrb[0].mxu0 %v9104
        %v10172 = vpop.f32.mrb[0].mxu0
        %v10173 = vadd.f32 %v10012, %v10172
        %v10174 = vpop.f32.mrb[0].mxu0
        %v10175 = vpop.f32.mrb[0].mxu0
        %v10176 = vadd.f32 %v10015, %v10175
        %v10177 = vpop.f32.mrb[0].mxu0
        %10178 = vmatprep.mubr.bf16.mxu0 %v9114
        %10179 = vmatmul.mubr.bf16.gmra.mrb[0].mxu0 %v9113
        %v10180 = vpop.f32.mrb[0].mxu0
        %v10181 = vadd.f32 %v10020, %v10180
        %v10182 = vpop.f32.mrb[0].mxu0
        %v10183 = vpop.f32.mrb[0].mxu0
        %v10184 = vadd.f32 %v10023, %v10183
        %v10185 = vpop.f32.mrb[0].mxu0
        %10186 = vmatprep.mubr.bf16.mxu0 %v9123
        %10187 = vmatmul.mubr.bf16.gmra.mrb[0].mxu0 %v9122
        %v10188 = vpop.f32.mrb[0].mxu0
        %v10189 = vadd.f32 %v10028, %v10188
        %v10190 = vpop.f32.mrb[0].mxu0
        %v10191 = vpop.f32.mrb[0].mxu0
        %v10192 = vadd.f32 %v10031, %v10191
        %v10193 = vpop.f32.mrb[0].mxu0
        %10194 = vmatprep.mubr.bf16.mxu0 %v9132
        %10195 = vmatmul.mubr.bf16.gmra.mrb[0].mxu0 %v9131
        %v10196 = vpop.f32.mrb[0].mxu0
        %v10197 = vadd.f32 %v10036, %v10196
        %v10198 = vpop.f32.mrb[0].mxu0
        %v10199 = vpop.f32.mrb[0].mxu0
        %v10200 = vadd.f32 %v10039, %v10199
        %v10201 = vpop.f32.mrb[0].mxu0
        %10202 = vmatprep.mubr.bf16.mxu0 %v9141
        %10203 = vmatmul.mubr.bf16.gmra.mrb[0].mxu0 %v9140
        %v10204 = vpop.f32.mrb[0].mxu0
        %v10205 = vadd.f32 %v10044, %v10204
        %v10206 = vpop.f32.mrb[0].mxu0
        %v10207 = vpop.f32.mrb[0].mxu0
        %v10208 = vadd.f32 %v10047, %v10207
        %v10209 = vpop.f32.mrb[0].mxu0
        %10210 = vmatprep.mubr.bf16.mxu0 %v9150
        %10211 = vmatmul.mubr.bf16.gmra.mrb[0].mxu0 %v9149
        %v10212 = vpop.f32.mrb[0].mxu0
        %v10213 = vadd.f32 %v10052, %v10212
        %v10214 = vpop.f32.mrb[0].mxu0
        %v10215 = vpop.f32.mrb[0].mxu0
        %v10216 = vadd.f32 %v10055, %v10215
        %v10217 = vpop.f32.mrb[0].mxu0
        %10218 = vmatprep.mubr.bf16.mxu0 %v9159
        %10219 = vmatmul.mubr.bf16.gmra.mrb[0].mxu0 %v9158
        %v10220 = vpop.f32.mrb[0].mxu0
        %v10221 = vadd.f32 %v10060, %v10220
        %v10222 = vpop.f32.mrb[0].mxu0
        %v10223 = vpop.f32.mrb[0].mxu0
        %v10224 = vadd.f32 %v10063, %v10223
        %v10225 = vpop.f32.mrb[0].mxu0
        %10226 = vmatprep.mubr.bf16.mxu0 %v9168
        %10227 = vmatmul.mubr.bf16.gmra.mrb[0].mxu0 %v9167
        %v10228 = vpop.f32.mrb[0].mxu0
        %v10229 = vadd.f32 %v10068, %v10228
        %v10230 = vpop.f32.mrb[0].mxu0
        %v10231 = vpop.f32.mrb[0].mxu0
        %v10232 = vadd.f32 %v10071, %v10231
        %v10233 = vpop.f32.mrb[0].mxu0
        %10234 = vmatprep.mubr.bf16.mxu0 %v9177
        %10235 = vmatmul.mubr.bf16.gmra.mrb[0].mxu0 %v9176
        %v10236 = vpop.f32.mrb[0].mxu0
        %v10237 = vadd.f32 %v10076, %v10236
        %v10238 = vpop.f32.mrb[0].mxu0
        %v10239 = vpop.f32.mrb[0].mxu0
        %v10240 = vadd.f32 %v10079, %v10239
        %v10241 = vpop.f32.mrb[0].mxu0
        %10242 = vmatprep.mubr.bf16.mxu0 %v9186
        %10243 = vmatmul.mubr.bf16.gmra.mrb[0].mxu0 %v9185
        %v10244 = vpop.f32.mrb[0].mxu0
        %v10245 = vadd.f32 %v10084, %v10244
        %v10246 = vpop.f32.mrb[0].mxu0
        %v10247 = vpop.f32.mrb[0].mxu0
        %v10248 = vadd.f32 %v10087, %v10247
        %v10249 = vpop.f32.mrb[0].mxu0
        %10250 = vmatprep.mubr.bf16.mxu0 %v9195
        %10251 = vmatmul.mubr.bf16.gmra.mrb[0].mxu0 %v9194
        %v10252 = vpop.f32.mrb[0].mxu0
        %v10253 = vadd.f32 %v10092, %v10252
        %v10254 = vpop.f32.mrb[0].mxu0
        %v10255 = vpop.f32.mrb[0].mxu0
        %v10256 = vadd.f32 %v10095, %v10255
        %v10257 = vpop.f32.mrb[0].mxu0
        %10258 = vmatprep.mubr.bf16.mxu0 %v9204
        %10259 = vmatmul.mubr.bf16.gmra.mrb[0].mxu0 %v9203
        %v10260 = vpop.f32.mrb[0].mxu0
        %v10261 = vadd.f32 %v10100, %v10260
        %v10262 = vpop.f32.mrb[0].mxu0
        %v10263 = vpop.f32.mrb[0].mxu0
        %v10264 = vadd.f32 %v10103, %v10263
        %v10265 = vpop.f32.mrb[0].mxu0
        %10266 = vdwg.mxu0
        %10267 = vmatprep.subr.bf16.mxu0 0
        %10268 = vmatpush1.bf16.msra.mxu0 %v9688
        %10269 = vmatprep.subr.bf16.mxu0 0
        %10270 = vmatpush1.bf16.msra.mxu0 %v9689
        %10271 = vmatprep.subr.bf16.mxu0 0
        %10272 = vmatpush1.bf16.msra.mxu0 %v9690
        %10273 = vmatprep.subr.bf16.mxu0 0
        %10274 = vmatpush1.bf16.msra.mxu0 %v9691
        %10275 = vmatprep.subr.bf16.mxu0 0
        %10276 = vmatpush1.bf16.msra.mxu0 %v9692
        %10277 = vmatprep.subr.bf16.mxu0 0
        %10278 = vmatpush1.bf16.msra.mxu0 %v9693
        %10279 = vmatprep.subr.bf16.mxu0 0
        %10280 = vmatpush1.bf16.msra.mxu0 %v9694
        %10281 = vmatprep.subr.bf16.mxu0 0
        %10282 = vmatpush1.bf16.msra.mxu0 %v9695
        %10283 = vmatprep.subr.bf16.mxu0 0
        %10284 = vmatpush1.bf16.msra.mxu0 %v9696
        %10285 = vmatprep.subr.bf16.mxu0 0
        %10286 = vmatpush1.bf16.msra.mxu0 %v9697
        %10287 = vmatprep.subr.bf16.mxu0 0
        %10288 = vmatpush1.bf16.msra.mxu0 %v9698
        %10289 = vmatprep.subr.bf16.mxu0 0
        %10290 = vmatpush1.bf16.msra.mxu0 %v9699
        %10291 = vmatprep.subr.bf16.mxu0 0
        %10292 = vmatpush1.bf16.msra.mxu0 %v9700
        %10293 = vmatprep.subr.bf16.mxu0 0
        %10294 = vmatpush1.bf16.msra.mxu0 %v9701
        %10295 = vmatprep.subr.bf16.mxu0 0
        %10296 = vmatpush1.bf16.msra.mxu0 %v9702
        %10297 = vmatprep.subr.bf16.mxu0 0
        %10298 = vmatpush1.bf16.msra.mxu0 %v9703
        %10299 = vmatprep.mubr.bf16.mxu0 %v9071
        %10300 = vmatmul.mubr.bf16.gmra.mrb[0].mxu0 %v9070
        %v10301 = vpop.f32.mrb[0].mxu0
        %v10302 = vadd.f32 %v10141, %v10301
        %v10303 = vpop.f32.mrb[0].mxu0
        %v10304 = vpop.f32.mrb[0].mxu0
        %v10305 = vadd.f32 %v10144, %v10304
        %v10306 = vpop.f32.mrb[0].mxu0
        %10307 = vmatprep.mubr.bf16.mxu0 %v9080
        %10308 = vmatmul.mubr.bf16.gmra.mrb[0].mxu0 %v9079
        %v10309 = vpop.f32.mrb[0].mxu0
        %v10310 = vadd.f32 %v10149, %v10309
        %v10311 = vpop.f32.mrb[0].mxu0
        %v10312 = vpop.f32.mrb[0].mxu0
        %v10313 = vadd.f32 %v10152, %v10312
        %v10314 = vpop.f32.mrb[0].mxu0
        %10315 = vmatprep.mubr.bf16.mxu0 %v9089
        %10316 = vmatmul.mubr.bf16.gmra.mrb[0].mxu0 %v9088
        %v10317 = vpop.f32.mrb[0].mxu0
        %v10318 = vadd.f32 %v10157, %v10317
        %v10319 = vpop.f32.mrb[0].mxu0
        %v10320 = vpop.f32.mrb[0].mxu0
        %v10321 = vadd.f32 %v10160, %v10320
        %v10322 = vpop.f32.mrb[0].mxu0
        %10323 = vmatprep.mubr.bf16.mxu0 %v9098
        %10324 = vmatmul.mubr.bf16.gmra.mrb[0].mxu0 %v9097
        %v10325 = vpop.f32.mrb[0].mxu0
        %v10326 = vadd.f32 %v10165, %v10325
        %v10327 = vpop.f32.mrb[0].mxu0
        %v10328 = vpop.f32.mrb[0].mxu0
        %v10329 = vadd.f32 %v10168, %v10328
        %v10330 = vpop.f32.mrb[0].mxu0
        %10331 = vmatprep.mubr.bf16.mxu0 %v9107
        %10332 = vmatmul.mubr.bf16.gmra.mrb[0].mxu0 %v9106
        %v10333 = vpop.f32.mrb[0].mxu0
        %v10334 = vadd.f32 %v10173, %v10333
        %v10335 = vpop.f32.mrb[0].mxu0
        %v10336 = vpop.f32.mrb[0].mxu0
        %v10337 = vadd.f32 %v10176, %v10336
        %v10338 = vpop.f32.mrb[0].mxu0
        %10339 = vmatprep.mubr.bf16.mxu0 %v9116
        %10340 = vmatmul.mubr.bf16.gmra.mrb[0].mxu0 %v9115
        %v10341 = vpop.f32.mrb[0].mxu0
        %v10342 = vadd.f32 %v10181, %v10341
        %v10343 = vpop.f32.mrb[0].mxu0
        %v10344 = vpop.f32.mrb[0].mxu0
        %v10345 = vadd.f32 %v10184, %v10344
        %v10346 = vpop.f32.mrb[0].mxu0
        %10347 = vmatprep.mubr.bf16.mxu0 %v9125
        %10348 = vmatmul.mubr.bf16.gmra.mrb[0].mxu0 %v9124
        %v10349 = vpop.f32.mrb[0].mxu0
        %v10350 = vadd.f32 %v10189, %v10349
        %v10351 = vpop.f32.mrb[0].mxu0
        %v10352 = vpop.f32.mrb[0].mxu0
        %v10353 = vadd.f32 %v10192, %v10352
        %v10354 = vpop.f32.mrb[0].mxu0
        %10355 = vmatprep.mubr.bf16.mxu0 %v9134
        %10356 = vmatmul.mubr.bf16.gmra.mrb[0].mxu0 %v9133
        %v10357 = vpop.f32.mrb[0].mxu0
        %v10358 = vadd.f32 %v10197, %v10357
        %v10359 = vpop.f32.mrb[0].mxu0
        %v10360 = vpop.f32.mrb[0].mxu0
        %v10361 = vadd.f32 %v10200, %v10360
        %v10362 = vpop.f32.mrb[0].mxu0
        %10363 = vmatprep.mubr.bf16.mxu0 %v9143
        %10364 = vmatmul.mubr.bf16.gmra.mrb[0].mxu0 %v9142
        %v10365 = vpop.f32.mrb[0].mxu0
        %v10366 = vadd.f32 %v10205, %v10365
        %v10367 = vpop.f32.mrb[0].mxu0
        %v10368 = vpop.f32.mrb[0].mxu0
        %v10369 = vadd.f32 %v10208, %v10368
        %v10370 = vpop.f32.mrb[0].mxu0
        %10371 = vmatprep.mubr.bf16.mxu0 %v9152
        %10372 = vmatmul.mubr.bf16.gmra.mrb[0].mxu0 %v9151
        %v10373 = vpop.f32.mrb[0].mxu0
        %v10374 = vadd.f32 %v10213, %v10373
        %v10375 = vpop.f32.mrb[0].mxu0
        %v10376 = vpop.f32.mrb[0].mxu0
        %v10377 = vadd.f32 %v10216, %v10376
        %v10378 = vpop.f32.mrb[0].mxu0
        %10379 = vmatprep.mubr.bf16.mxu0 %v9161
        %10380 = vmatmul.mubr.bf16.gmra.mrb[0].mxu0 %v9160
        %v10381 = vpop.f32.mrb[0].mxu0
        %v10382 = vadd.f32 %v10221, %v10381
        %v10383 = vpop.f32.mrb[0].mxu0
        %v10384 = vpop.f32.mrb[0].mxu0
        %v10385 = vadd.f32 %v10224, %v10384
        %v10386 = vpop.f32.mrb[0].mxu0
        %10387 = vmatprep.mubr.bf16.mxu0 %v9170
        %10388 = vmatmul.mubr.bf16.gmra.mrb[0].mxu0 %v9169
        %v10389 = vpop.f32.mrb[0].mxu0
        %v10390 = vadd.f32 %v10229, %v10389
        %v10391 = vpop.f32.mrb[0].mxu0
        %v10392 = vpop.f32.mrb[0].mxu0
        %v10393 = vadd.f32 %v10232, %v10392
        %v10394 = vpop.f32.mrb[0].mxu0
        %10395 = vmatprep.mubr.bf16.mxu0 %v9179
        %10396 = vmatmul.mubr.bf16.gmra.mrb[0].mxu0 %v9178
        %v10397 = vpop.f32.mrb[0].mxu0
        %v10398 = vadd.f32 %v10237, %v10397
        %v10399 = vpop.f32.mrb[0].mxu0
        %v10400 = vpop.f32.mrb[0].mxu0
        %v10401 = vadd.f32 %v10240, %v10400
        %v10402 = vpop.f32.mrb[0].mxu0
        %10403 = vmatprep.mubr.bf16.mxu0 %v9188
        %10404 = vmatmul.mubr.bf16.gmra.mrb[0].mxu0 %v9187
        %v10405 = vpop.f32.mrb[0].mxu0
        %v10406 = vadd.f32 %v10245, %v10405
        %v10407 = vpop.f32.mrb[0].mxu0
        %v10408 = vpop.f32.mrb[0].mxu0
        %v10409 = vadd.f32 %v10248, %v10408
        %v10410 = vpop.f32.mrb[0].mxu0
        %10411 = vmatprep.mubr.bf16.mxu0 %v9197
        %10412 = vmatmul.mubr.bf16.gmra.mrb[0].mxu0 %v9196
        %v10413 = vpop.f32.mrb[0].mxu0
        %v10414 = vadd.f32 %v10253, %v10413
        %v10415 = vpop.f32.mrb[0].mxu0
        %v10416 = vpop.f32.mrb[0].mxu0
        %v10417 = vadd.f32 %v10256, %v10416
        %v10418 = vpop.f32.mrb[0].mxu0
        %10419 = vmatprep.mubr.bf16.mxu0 %v9206
        %10420 = vmatmul.mubr.bf16.gmra.mrb[0].mxu0 %v9205
        %v10421 = vpop.f32.mrb[0].mxu0
        %v10422 = vadd.f32 %v10261, %v10421
        %v10423 = vpop.f32.mrb[0].mxu0
        %v10424 = vpop.f32.mrb[0].mxu0
        %v10425 = vadd.f32 %v10264, %v10424
        %v10426 = vpop.f32.mrb[0].mxu0
        %10427 = vdwg.mxu0
        %10428 = vmatprep.subr.bf16.mxu0 0
        %10429 = vmatpush1.bf16.msra.mxu0 %v9704
        %10430 = vmatprep.subr.bf16.mxu0 0
        %10431 = vmatpush1.bf16.msra.mxu0 %v9705
        %10432 = vmatprep.subr.bf16.mxu0 0
        %10433 = vmatpush1.bf16.msra.mxu0 %v9706
        %10434 = vmatprep.subr.bf16.mxu0 0
        %10435 = vmatpush1.bf16.msra.mxu0 %v9707
        %10436 = vmatprep.subr.bf16.mxu0 0
        %10437 = vmatpush1.bf16.msra.mxu0 %v9708
        %10438 = vmatprep.subr.bf16.mxu0 0
        %10439 = vmatpush1.bf16.msra.mxu0 %v9709
        %10440 = vmatprep.subr.bf16.mxu0 0
        %10441 = vmatpush1.bf16.msra.mxu0 %v9710
        %10442 = vmatprep.subr.bf16.mxu0 0
        %10443 = vmatpush1.bf16.msra.mxu0 %v9711
        %10444 = vmatprep.subr.bf16.mxu0 0
        %10445 = vmatpush1.bf16.msra.mxu0 0
        %10446 = vmatprep.subr.bf16.mxu0 0
        %10447 = vmatpush1.bf16.msra.mxu0 0
        %10448 = vmatprep.subr.bf16.mxu0 0
        %10449 = vmatpush1.bf16.msra.mxu0 0
        %10450 = vmatprep.subr.bf16.mxu0 0
        %10451 = vmatpush1.bf16.msra.mxu0 0
        %10452 = vmatprep.subr.bf16.mxu0 0
        %10453 = vmatpush1.bf16.msra.mxu0 0
        %10454 = vmatprep.subr.bf16.mxu0 0
        %10455 = vmatpush1.bf16.msra.mxu0 0
        %10456 = vmatprep.subr.bf16.mxu0 0
        %10457 = vmatpush1.bf16.msra.mxu0 0
        %10458 = vmatprep.subr.bf16.mxu0 0
        %10459 = vmatpush1.bf16.msra.mxu0 0
        %10460 = vmatprep.mubr.bf16.mxu0 0
        %10461 = vmatmul.mubr.bf16.gmra.mrb[0].mxu0 %v9072
        %v10462 = vpop.f32.mrb[0].mxu0
        %v10463 = vadd.f32 %v10302, %v10462
        %v10464 = vpop.f32.mrb[0].mxu0
        %v10465 = vpop.f32.mrb[0].mxu0
        %v10466 = vadd.f32 %v10305, %v10465
        %v10467 = vpop.f32.mrb[0].mxu0
        %10468 = vmatprep.mubr.bf16.mxu0 0
        %10469 = vmatmul.mubr.bf16.gmra.mrb[0].mxu0 %v9081
        %v10470 = vpop.f32.mrb[0].mxu0
        %v10471 = vadd.f32 %v10310, %v10470
        %v10472 = vpop.f32.mrb[0].mxu0
        %v10473 = vpop.f32.mrb[0].mxu0
        %v10474 = vadd.f32 %v10313, %v10473
        %v10475 = vpop.f32.mrb[0].mxu0
        %10476 = vmatprep.mubr.bf16.mxu0 0
        %10477 = vmatmul.mubr.bf16.gmra.mrb[0].mxu0 %v9090
        %v10478 = vpop.f32.mrb[0].mxu0
        %v10479 = vadd.f32 %v10318, %v10478
        %v10480 = vpop.f32.mrb[0].mxu0
        %v10481 = vpop.f32.mrb[0].mxu0
        %v10482 = vadd.f32 %v10321, %v10481
        %v10483 = vpop.f32.mrb[0].mxu0
        %10484 = vmatprep.mubr.bf16.mxu0 0
        %10485 = vmatmul.mubr.bf16.gmra.mrb[0].mxu0 %v9099
        %v10486 = vpop.f32.mrb[0].mxu0
        %v10487 = vadd.f32 %v10326, %v10486
        %v10488 = vpop.f32.mrb[0].mxu0
        %v10489 = vpop.f32.mrb[0].mxu0
        %v10490 = vadd.f32 %v10329, %v10489
        %v10491 = vpop.f32.mrb[0].mxu0
        %10492 = vmatprep.mubr.bf16.mxu0 0
        %10493 = vmatmul.mubr.bf16.gmra.mrb[0].mxu0 %v9108
        %v10494 = vpop.f32.mrb[0].mxu0
        %v10495 = vadd.f32 %v10334, %v10494
        %v10496 = vpop.f32.mrb[0].mxu0
        %v10497 = vpop.f32.mrb[0].mxu0
        %v10498 = vadd.f32 %v10337, %v10497
        %v10499 = vpop.f32.mrb[0].mxu0
        %10500 = vmatprep.mubr.bf16.mxu0 0
        %10501 = vmatmul.mubr.bf16.gmra.mrb[0].mxu0 %v9117
        %v10502 = vpop.f32.mrb[0].mxu0
        %v10503 = vadd.f32 %v10342, %v10502
        %v10504 = vpop.f32.mrb[0].mxu0
        %v10505 = vpop.f32.mrb[0].mxu0
        %v10506 = vadd.f32 %v10345, %v10505
        %v10507 = vpop.f32.mrb[0].mxu0
        %10508 = vmatprep.mubr.bf16.mxu0 0
        %10509 = vmatmul.mubr.bf16.gmra.mrb[0].mxu0 %v9126
        %v10510 = vpop.f32.mrb[0].mxu0
        %v10511 = vadd.f32 %v10350, %v10510
        %v10512 = vpop.f32.mrb[0].mxu0
        %v10513 = vpop.f32.mrb[0].mxu0
        %v10514 = vadd.f32 %v10353, %v10513
        %v10515 = vpop.f32.mrb[0].mxu0
        %10516 = vmatprep.mubr.bf16.mxu0 0
        %10517 = vmatmul.mubr.bf16.gmra.mrb[0].mxu0 %v9135
        %v10518 = vpop.f32.mrb[0].mxu0
        %v10519 = vadd.f32 %v10358, %v10518
        %v10520 = vpop.f32.mrb[0].mxu0
        %v10521 = vpop.f32.mrb[0].mxu0
        %v10522 = vadd.f32 %v10361, %v10521
        %v10523 = vpop.f32.mrb[0].mxu0
        %10524 = vmatprep.mubr.bf16.mxu0 0
        %10525 = vmatmul.mubr.bf16.gmra.mrb[0].mxu0 %v9144
        %v10526 = vpop.f32.mrb[0].mxu0
        %v10527 = vadd.f32 %v10366, %v10526
        %v10528 = vpop.f32.mrb[0].mxu0
        %v10529 = vpop.f32.mrb[0].mxu0
        %v10530 = vadd.f32 %v10369, %v10529
        %v10531 = vpop.f32.mrb[0].mxu0
        %10532 = vmatprep.mubr.bf16.mxu0 0
        %10533 = vmatmul.mubr.bf16.gmra.mrb[0].mxu0 %v9153
        %v10534 = vpop.f32.mrb[0].mxu0
        %v10535 = vadd.f32 %v10374, %v10534
        %v10536 = vpop.f32.mrb[0].mxu0
        %v10537 = vpop.f32.mrb[0].mxu0
        %v10538 = vadd.f32 %v10377, %v10537
        %v10539 = vpop.f32.mrb[0].mxu0
        %10540 = vmatprep.mubr.bf16.mxu0 0
        %10541 = vmatmul.mubr.bf16.gmra.mrb[0].mxu0 %v9162
        %v10542 = vpop.f32.mrb[0].mxu0
        %v10543 = vadd.f32 %v10382, %v10542
        %v10544 = vpop.f32.mrb[0].mxu0
        %v10545 = vpop.f32.mrb[0].mxu0
        %v10546 = vadd.f32 %v10385, %v10545
        %v10547 = vpop.f32.mrb[0].mxu0
        %10548 = vmatprep.mubr.bf16.mxu0 0
        %10549 = vmatmul.mubr.bf16.gmra.mrb[0].mxu0 %v9171
        %v10550 = vpop.f32.mrb[0].mxu0
        %v10551 = vadd.f32 %v10390, %v10550
        %v10552 = vpop.f32.mrb[0].mxu0
        %v10553 = vpop.f32.mrb[0].mxu0
        %v10554 = vadd.f32 %v10393, %v10553
        %v10555 = vpop.f32.mrb[0].mxu0
        %10556 = vmatprep.mubr.bf16.mxu0 0
        %10557 = vmatmul.mubr.bf16.gmra.mrb[0].mxu0 %v9180
        %v10558 = vpop.f32.mrb[0].mxu0
        %v10559 = vadd.f32 %v10398, %v10558
        %v10560 = vpop.f32.mrb[0].mxu0
        %v10561 = vpop.f32.mrb[0].mxu0
        %v10562 = vadd.f32 %v10401, %v10561
        %v10563 = vpop.f32.mrb[0].mxu0
        %10564 = vmatprep.mubr.bf16.mxu0 0
        %10565 = vmatmul.mubr.bf16.gmra.mrb[0].mxu0 %v9189
        %v10566 = vpop.f32.mrb[0].mxu0
        %v10567 = vadd.f32 %v10406, %v10566
        %v10568 = vpop.f32.mrb[0].mxu0
        %v10569 = vpop.f32.mrb[0].mxu0
        %v10570 = vadd.f32 %v10409, %v10569
        %v10571 = vpop.f32.mrb[0].mxu0
        %10572 = vmatprep.mubr.bf16.mxu0 0
        %10573 = vmatmul.mubr.bf16.gmra.mrb[0].mxu0 %v9198
        %v10574 = vpop.f32.mrb[0].mxu0
        %v10575 = vadd.f32 %v10414, %v10574
        %v10576 = vpop.f32.mrb[0].mxu0
        %v10577 = vpop.f32.mrb[0].mxu0
        %v10578 = vadd.f32 %v10417, %v10577
        %v10579 = vpop.f32.mrb[0].mxu0
        %10580 = vmatprep.mubr.bf16.mxu0 0
        %10581 = vmatmul.mubr.bf16.gmra.mrb[0].mxu0 %v9207
        %v10582 = vpop.f32.mrb[0].mxu0
        %v10583 = vadd.f32 %v10422, %v10582
        %v10584 = vpop.f32.mrb[0].mxu0
        %v10585 = vpop.f32.mrb[0].mxu0
        %v10586 = vadd.f32 %v10425, %v10585
        %v10587 = vpop.f32.mrb[0].mxu0
        %10588 = vdwg.mxu0
        %v10589 = vadd.f32 %v10463, %v10466
        %v10590 = vadd.f32 %v10589, %v10471
        %v10591 = vadd.f32 %v10590, %v10474
        %v10592 = vadd.f32 %v10591, %v10479
        %v10593 = vadd.f32 %v10592, %v10482
        %v10594 = vadd.f32 %v10593, %v10487
        %v10595 = vadd.f32 %v10594, %v10490
        %v10596 = vadd.f32 %v10595, %v10495
        %v10597 = vadd.f32 %v10596, %v10498
        %v10598 = vadd.f32 %v10597, %v10503
        %v10599 = vadd.f32 %v10598, %v10506
        %v10600 = vadd.f32 %v10599, %v10511
        %v10601 = vadd.f32 %v10600, %v10514
        %v10602 = vadd.f32 %v10601, %v10519
        %v10603 = vadd.f32 %v10602, %v10522
        %v10604 = vadd.f32 %v10603, %v10527
        %v10605 = vadd.f32 %v10604, %v10530
        %v10606 = vadd.f32 %v10605, %v10535
        %v10607 = vadd.f32 %v10606, %v10538
        %v10608 = vadd.f32 %v10607, %v10543
        %v10609 = vadd.f32 %v10608, %v10546
        %v10610 = vadd.f32 %v10609, %v10551
        %v10611 = vadd.f32 %v10610, %v10554
        %v10612 = vadd.f32 %v10611, %v10559
        %v10613 = vadd.f32 %v10612, %v10562
        %v10614 = vadd.f32 %v10613, %v10567
        %v10615 = vadd.f32 %v10614, %v10570
        %v10616 = vadd.f32 %v10615, %v10575
        %v10617 = vadd.f32 %v10616, %v10578
        %v10618 = vadd.f32 %v10617, %v10583
        %v10619 = vadd.f32 %v10618, %v10586
        %v10620 = vrot.slane %v10619, 4
        %v10621 = vadd.f32 %v10619, %v10620
        %v10622 = vrot.slane %v10621, 2
        %v10623 = vadd.f32 %v10621, %v10622
        %v10624 = vrot.slane %v10623, 1
        %v10625 = vadd.f32 %v10623, %v10624
        %v10626 = vmul.f32 %v10463, %v10463
        %v10627 = vmul.f32 %v10466, %v10466
        %v10628 = vmul.f32 %v10471, %v10471
        %v10629 = vmul.f32 %v10474, %v10474
        %v10630 = vmul.f32 %v10479, %v10479
        %v10631 = vmul.f32 %v10482, %v10482
        %v10632 = vmul.f32 %v10487, %v10487
        %v10633 = vmul.f32 %v10490, %v10490
        %v10634 = vmul.f32 %v10495, %v10495
        %v10635 = vmul.f32 %v10498, %v10498
        %v10636 = vmul.f32 %v10503, %v10503
        %v10637 = vmul.f32 %v10506, %v10506
        %v10638 = vmul.f32 %v10511, %v10511
        %v10639 = vmul.f32 %v10514, %v10514
        %v10640 = vmul.f32 %v10519, %v10519
        %v10641 = vmul.f32 %v10522, %v10522
        %v10642 = vmul.f32 %v10527, %v10527
        %v10643 = vmul.f32 %v10530, %v10530
        %v10644 = vmul.f32 %v10535, %v10535
        %v10645 = vmul.f32 %v10538, %v10538
        %v10646 = vmul.f32 %v10543, %v10543
        %v10647 = vmul.f32 %v10546, %v10546
        %v10648 = vmul.f32 %v10551, %v10551
        %v10649 = vmul.f32 %v10554, %v10554
        %v10650 = vmul.f32 %v10559, %v10559
        %v10651 = vmul.f32 %v10562, %v10562
        %v10652 = vmul.f32 %v10567, %v10567
        %v10653 = vmul.f32 %v10570, %v10570
        %v10654 = vmul.f32 %v10575, %v10575
        %v10655 = vmul.f32 %v10578, %v10578
        %v10656 = vmul.f32 %v10583, %v10583
        %v10657 = vmul.f32 %v10586, %v10586
        %v10658 = vadd.f32 %v10626, %v10627
        %v10659 = vadd.f32 %v10658, %v10628
        %v10660 = vadd.f32 %v10659, %v10629
        %v10661 = vadd.f32 %v10660, %v10630
        %v10662 = vadd.f32 %v10661, %v10631
        %v10663 = vadd.f32 %v10662, %v10632
        %v10664 = vadd.f32 %v10663, %v10633
        %v10665 = vadd.f32 %v10664, %v10634
        %v10666 = vadd.f32 %v10665, %v10635
        %v10667 = vadd.f32 %v10666, %v10636
        %v10668 = vadd.f32 %v10667, %v10637
        %v10669 = vadd.f32 %v10668, %v10638
        %v10670 = vadd.f32 %v10669, %v10639
        %v10671 = vadd.f32 %v10670, %v10640
        %v10672 = vadd.f32 %v10671, %v10641
        %v10673 = vadd.f32 %v10672, %v10642
        %v10674 = vadd.f32 %v10673, %v10643
        %v10675 = vadd.f32 %v10674, %v10644
        %v10676 = vadd.f32 %v10675, %v10645
        %v10677 = vadd.f32 %v10676, %v10646
        %v10678 = vadd.f32 %v10677, %v10647
        %v10679 = vadd.f32 %v10678, %v10648
        %v10680 = vadd.f32 %v10679, %v10649
        %v10681 = vadd.f32 %v10680, %v10650
        %v10682 = vadd.f32 %v10681, %v10651
        %v10683 = vadd.f32 %v10682, %v10652
        %v10684 = vadd.f32 %v10683, %v10653
        %v10685 = vadd.f32 %v10684, %v10654
        %v10686 = vadd.f32 %v10685, %v10655
        %v10687 = vadd.f32 %v10686, %v10656
        %v10688 = vadd.f32 %v10687, %v10657
        %v10689 = vrot.slane %v10688, 4
        %v10690 = vadd.f32 %v10688, %v10689
        %v10691 = vrot.slane %v10690, 2
        %v10692 = vadd.f32 %v10690, %v10691
        %v10693 = vrot.slane %v10692, 1
        %v10694 = vadd.f32 %v10692, %v10693
        %v10695 = vmul.f32 %v10625, 0.00390625
        %v10696 = vmul.f32 %v10694, 0.00390625
        %v10697 = vmul.f32 %v10695, %v10695
        %v10698 = vsub.f32 %v10696, %v10697
        %v10699 = vmax.f32 %v10698, 0.0
        %v10700 = vsub.f32 %v10463, %v10695
        %v10701 = vsub.f32 %v10466, %v10695
        %v10702 = vsub.f32 %v10471, %v10695
        %v10703 = vsub.f32 %v10474, %v10695
        %v10704 = vsub.f32 %v10479, %v10695
        %v10705 = vsub.f32 %v10482, %v10695
        %v10706 = vsub.f32 %v10487, %v10695
        %v10707 = vsub.f32 %v10490, %v10695
        %v10708 = vsub.f32 %v10495, %v10695
        %v10709 = vsub.f32 %v10498, %v10695
        %v10710 = vsub.f32 %v10503, %v10695
        %v10711 = vsub.f32 %v10506, %v10695
        %v10712 = vsub.f32 %v10511, %v10695
        %v10713 = vsub.f32 %v10514, %v10695
        %v10714 = vsub.f32 %v10519, %v10695
        %v10715 = vsub.f32 %v10522, %v10695
        %v10716 = vsub.f32 %v10527, %v10695
        %v10717 = vsub.f32 %v10530, %v10695
        %v10718 = vsub.f32 %v10535, %v10695
        %v10719 = vsub.f32 %v10538, %v10695
        %v10720 = vsub.f32 %v10543, %v10695
        %v10721 = vsub.f32 %v10546, %v10695
        %v10722 = vsub.f32 %v10551, %v10695
        %v10723 = vsub.f32 %v10554, %v10695
        %v10724 = vsub.f32 %v10559, %v10695
        %v10725 = vsub.f32 %v10562, %v10695
        %v10726 = vsub.f32 %v10567, %v10695
        %v10727 = vsub.f32 %v10570, %v10695
        %v10728 = vsub.f32 %v10575, %v10695
        %v10729 = vsub.f32 %v10578, %v10695
        %v10730 = vsub.f32 %v10583, %v10695
        %v10731 = vsub.f32 %v10586, %v10695
        %v10732 = vadd.f32 %v10699, 1e-05
        %v10733 = vrsqrt.pop %v10732
        %v10734 = vmul.f32 %v10700, %v10733
        %v10735 = vmul.f32 %v10701, %v10733
        %v10736 = vmul.f32 %v10702, %v10733
        %v10737 = vmul.f32 %v10703, %v10733
        %v10738 = vmul.f32 %v10704, %v10733
        %v10739 = vmul.f32 %v10705, %v10733
        %v10740 = vmul.f32 %v10706, %v10733
        %v10741 = vmul.f32 %v10707, %v10733
        %v10742 = vmul.f32 %v10708, %v10733
        %v10743 = vmul.f32 %v10709, %v10733
        %v10744 = vmul.f32 %v10710, %v10733
        %v10745 = vmul.f32 %v10711, %v10733
        %v10746 = vmul.f32 %v10712, %v10733
        %v10747 = vmul.f32 %v10713, %v10733
        %v10748 = vmul.f32 %v10714, %v10733
        %v10749 = vmul.f32 %v10715, %v10733
        %v10750 = vmul.f32 %v10716, %v10733
        %v10751 = vmul.f32 %v10717, %v10733
        %v10752 = vmul.f32 %v10718, %v10733
        %v10753 = vmul.f32 %v10719, %v10733
        %v10754 = vmul.f32 %v10720, %v10733
        %v10755 = vmul.f32 %v10721, %v10733
        %v10756 = vmul.f32 %v10722, %v10733
        %v10757 = vmul.f32 %v10723, %v10733
        %v10758 = vmul.f32 %v10724, %v10733
        %v10759 = vmul.f32 %v10725, %v10733
        %v10760 = vmul.f32 %v10726, %v10733
        %v10761 = vmul.f32 %v10727, %v10733
        %v10762 = vmul.f32 %v10728, %v10733
        %v10763 = vmul.f32 %v10729, %v10733
        %v10764 = vmul.f32 %v10730, %v10733
        %v10765 = vmul.f32 %v10731, %v10733
        %v10766 = vld [vmem:[%s187] sm:$0xff]
        %v10767 = vld [vmem:[%s187 + $0x8] sm:$0xff]
        %v10768 = vld [vmem:[%s187 + $0x10] sm:$0xff]
        %v10769 = vld [vmem:[%s187 + $0x18] sm:$0xff]
        %v10770 = vld [vmem:[%s187 + $0x20] sm:$0xff]
        %v10771 = vld [vmem:[%s187 + $0x28] sm:$0xff]
        %v10772 = vld [vmem:[%s187 + $0x30] sm:$0xff]
        %v10773 = vld [vmem:[%s187 + $0x38] sm:$0xff]
        %v10774 = vld [vmem:[%s187 + $0x40] sm:$0xff]
        %v10775 = vld [vmem:[%s187 + $0x48] sm:$0xff]
        %v10776 = vld [vmem:[%s187 + $0x50] sm:$0xff]
        %v10777 = vld [vmem:[%s187 + $0x58] sm:$0xff]
        %v10778 = vld [vmem:[%s187 + $0x60] sm:$0xff]
        %v10779 = vld [vmem:[%s187 + $0x68] sm:$0xff]
        %v10780 = vld [vmem:[%s187 + $0x70] sm:$0xff]
        %v10781 = vld [vmem:[%s187 + $0x78] sm:$0xff]
        %v10782 = vld [vmem:[%s187 + $0x80] sm:$0xff]
        %v10783 = vld [vmem:[%s187 + $0x88] sm:$0xff]
        %v10784 = vld [vmem:[%s187 + $0x90] sm:$0xff]
        %v10785 = vld [vmem:[%s187 + $0x98] sm:$0xff]
        %v10786 = vld [vmem:[%s187 + $0xa0] sm:$0xff]
        %v10787 = vld [vmem:[%s187 + $0xa8] sm:$0xff]
        %v10788 = vld [vmem:[%s187 + $0xb0] sm:$0xff]
        %v10789 = vld [vmem:[%s187 + $0xb8] sm:$0xff]
        %v10790 = vld [vmem:[%s187 + $0xc0] sm:$0xff]
        %v10791 = vld [vmem:[%s187 + $0xc8] sm:$0xff]
        %v10792 = vld [vmem:[%s187 + $0xd0] sm:$0xff]
        %v10793 = vld [vmem:[%s187 + $0xd8] sm:$0xff]
        %v10794 = vld [vmem:[%s187 + $0xe0] sm:$0xff]
        %v10795 = vld [vmem:[%s187 + $0xe8] sm:$0xff]
        %v10796 = vld [vmem:[%s187 + $0xf0] sm:$0xff]
        %v10797 = vld [vmem:[%s187 + $0xf8] sm:$0xff]
        %v10798 = vadd.f32 %v10766, %v10734
        %v10799 = vadd.f32 %v10767, %v10735
        %v10800 = vadd.f32 %v10768, %v10736
        %v10801 = vadd.f32 %v10769, %v10737
        %v10802 = vadd.f32 %v10770, %v10738
        %v10803 = vadd.f32 %v10771, %v10739
        %v10804 = vadd.f32 %v10772, %v10740
        %v10805 = vadd.f32 %v10773, %v10741
        %v10806 = vadd.f32 %v10774, %v10742
        %v10807 = vadd.f32 %v10775, %v10743
        %v10808 = vadd.f32 %v10776, %v10744
        %v10809 = vadd.f32 %v10777, %v10745
        %v10810 = vadd.f32 %v10778, %v10746
        %v10811 = vadd.f32 %v10779, %v10747
        %v10812 = vadd.f32 %v10780, %v10748
        %v10813 = vadd.f32 %v10781, %v10749
        %v10814 = vadd.f32 %v10782, %v10750
        %v10815 = vadd.f32 %v10783, %v10751
        %v10816 = vadd.f32 %v10784, %v10752
        %v10817 = vadd.f32 %v10785, %v10753
        %v10818 = vadd.f32 %v10786, %v10754
        %v10819 = vadd.f32 %v10787, %v10755
        %v10820 = vadd.f32 %v10788, %v10756
        %v10821 = vadd.f32 %v10789, %v10757
        %v10822 = vadd.f32 %v10790, %v10758
        %v10823 = vadd.f32 %v10791, %v10759
        %v10824 = vadd.f32 %v10792, %v10760
        %v10825 = vadd.f32 %v10793, %v10761
        %v10826 = vadd.f32 %v10794, %v10762
        %v10827 = vadd.f32 %v10795, %v10763
        %v10828 = vadd.f32 %v10796, %v10764
        %v10829 = vadd.f32 %v10797, %v10765
        %10830 = vst [vmem:[%s217] sm:$0xff] %v10798
        %10831 = vst [vmem:[%s217 + $0x8] sm:$0xff] %v10799
        %10832 = vst [vmem:[%s217 + $0x10] sm:$0xff] %v10800
        %10833 = vst [vmem:[%s217 + $0x18] sm:$0xff] %v10801
        %10834 = vst [vmem:[%s217 + $0x20] sm:$0xff] %v10802
        %10835 = vst [vmem:[%s217 + $0x28] sm:$0xff] %v10803
        %10836 = vst [vmem:[%s217 + $0x30] sm:$0xff] %v10804
        %10837 = vst [vmem:[%s217 + $0x38] sm:$0xff] %v10805
        %10838 = vst [vmem:[%s217 + $0x40] sm:$0xff] %v10806
        %10839 = vst [vmem:[%s217 + $0x48] sm:$0xff] %v10807
        %10840 = vst [vmem:[%s217 + $0x50] sm:$0xff] %v10808
        %10841 = vst [vmem:[%s217 + $0x58] sm:$0xff] %v10809
        %10842 = vst [vmem:[%s217 + $0x60] sm:$0xff] %v10810
        %10843 = vst [vmem:[%s217 + $0x68] sm:$0xff] %v10811
        %10844 = vst [vmem:[%s217 + $0x70] sm:$0xff] %v10812
        %10845 = vst [vmem:[%s217 + $0x78] sm:$0xff] %v10813
        %10846 = vst [vmem:[%s217 + $0x80] sm:$0xff] %v10814
        %10847 = vst [vmem:[%s217 + $0x88] sm:$0xff] %v10815
        %10848 = vst [vmem:[%s217 + $0x90] sm:$0xff] %v10816
        %10849 = vst [vmem:[%s217 + $0x98] sm:$0xff] %v10817
        %10850 = vst [vmem:[%s217 + $0xa0] sm:$0xff] %v10818
        %10851 = vst [vmem:[%s217 + $0xa8] sm:$0xff] %v10819
        %10852 = vst [vmem:[%s217 + $0xb0] sm:$0xff] %v10820
        %10853 = vst [vmem:[%s217 + $0xb8] sm:$0xff] %v10821
        %10854 = vst [vmem:[%s217 + $0xc0] sm:$0xff] %v10822
        %10855 = vst [vmem:[%s217 + $0xc8] sm:$0xff] %v10823
        %10856 = vst [vmem:[%s217 + $0xd0] sm:$0xff] %v10824
        %10857 = vst [vmem:[%s217 + $0xd8] sm:$0xff] %v10825
        %10858 = vst [vmem:[%s217 + $0xe0] sm:$0xff] %v10826
        %10859 = vst [vmem:[%s217 + $0xe8] sm:$0xff] %v10827
        %10860 = vst [vmem:[%s217 + $0xf0] sm:$0xff] %v10828
        %10861 = vst [vmem:[%s217 + $0xf8] sm:$0xff] %v10829
        %s10862 = sand.u32 %s97, 1
        %s10863 = scalar_lea.sflag [#allocation6], %s10862
        %s10864 = sand.u32 %s97, 1
        %s10865 = smul.addr %s10864, 256
        %s10866 = scalar_lea.vmem [#allocation10], %s10865
        // Predicated region
        $region45: #{resblock_forward.1} parent=31 // pred_check
          %p10867 = pneg %p107
        $region46: #{resblock_forward.1} parent=31 // pred_check_branch
          %10869 = sbr.rel (%p10867) target = $region48
        $region47: #{resblock_forward.1} parent=31 // pred_region
          %s10871 = ssub.s32 4096, 4096
          %10872 = vsyncadd %s10863, %s10871
          %s10873 = smul.addr %s21, 32
          %s10874 = smul.addr %s10873, 128
          %s10875 = scalar_lea.hbm %s3, %s10874
          %s10876 = sshll.u32 %s10866, 4
          %s10877 = int_to_ptr.vmem [resolvable:$true] %s10876
          %10882 = dma.vmem_to_hbm [thread:$0]  %s10877, 4096, %s10875, %s10863, 128, 128, 8
        $region48: #{resblock_forward.1} parent=31 // pred_fallthru
          _
      $region32: #{resblock_forward.1} parent=5 // pred_fallthru
        _
      %p10883 = scmp.le.s32.totalorder 2, %s16
      // Predicated region
      $region49: #{resblock_forward.1} parent=5 // pred_check
        %p10884 = pneg %p10883
      $region50: #{resblock_forward.1} parent=5 // pred_check_branch
        %10886 = sbr.rel (%p10884) target = $region52
      $region51: #{resblock_forward.1} parent=5 // pred_region
        %s10887 = ssub.s32 %s16, 2
        // Predicated region
        $region53: #{resblock_forward.1} parent=51 // pred_check
          %p10888 = pneg %p113
        $region54: #{resblock_forward.1} parent=51 // pred_check_branch
          %10890 = sbr.rel (%p10888) target = $region56
        $region55: #{resblock_forward.1} parent=51 // pred_region
          %s10891 = sand.u32 %s98, 1
          %s10892 = scalar_lea.sflag [#allocation6], %s10891
          %s10893 = sand.u32 %s98, 1
          %s10894 = smul.addr %s10893, 256
          %s10895 = scalar_lea.vmem [#allocation10], %s10894
          %10896 = dma.done %s10892, 4096
        $region56: #{resblock_forward.1} parent=51 // pred_fallthru
          _
      $region52: #{resblock_forward.1} parent=5 // pred_fallthru
        _
    $region6: #{resblock_forward.1} parent=1 // loop_footer
      %s20 = sadd.s32 1, %s16
    $region7: #{resblock_forward.1} parent=1 // loop_footer_branch
      %15 = sbr.rel target = $region3
    $region8: #{resblock_forward.1} parent=1 // loop_exit
      _
    %10897 = vsyncpa [#allocation5], 1
    %s10898 = scalar_lea.sflag [#allocation5], 1
    %10899 = vsyncpa %s10898, 1
    %10900 = vsyncpa [#allocation8], 1
    %10901 = vsyncpa [#allocation6], 1
    %s10902 = scalar_lea.sflag [#allocation6], 1
    %10903 = vsyncpa %s10902, 1

</llo_original>
